<compile_context>
chip_gen: v7x
topology: tpu7x:2x2x1
jax: 0.10.0
libtpu: 0.0.40
codegen_flags: <defaults>
</compile_context>

<pallas_src>
import jax
import jax.numpy as jnp
from jax.experimental import pallas as pl
from jax.experimental.pallas import tpu as pltpu

ZDIM, YDIM = 100, 10
HZ, HY = 200, 1000
JOIN = HZ + HY          # 1200
JOIN_PAD = 1280         # padded to a multiple of 2*128 so each half is 640
HALF = JOIN_PAD // 2    # 640
OUT = 784


def generator_kernel(z_ref, y_ref,
                     wz_ref, bz_ref,
                     wy_ref, by_ref,
                     wj1_ref, wj2_ref, bj_ref,
                     wo_ref,
                     out_ref):
    bf16 = jnp.bfloat16

    # layer_z: Linear(100 -> 200) + ReLU   (dropout = identity in eval mode)
    h_z = jnp.dot(z_ref[...].astype(bf16), wz_ref[...],
                  preferred_element_type=jnp.float32)
    h_z = jnp.maximum(h_z + bz_ref[...], 0.0)

    # layer_y: Linear(10 -> 1000) + ReLU
    h_y = jnp.dot(y_ref[...].astype(bf16), wy_ref[...],
                  preferred_element_type=jnp.float32)
    h_y = jnp.maximum(h_y + by_ref[...], 0.0)

    # layer_join (this grid point's 640-wide slice of the padded 1280 outputs):
    # Linear(1200 -> 1200) + ReLU on cat([h_z, h_y], 1), as a split matmul.
    h_j = (jnp.dot(h_z.astype(bf16), wj1_ref[...],
                   preferred_element_type=jnp.float32)
           + jnp.dot(h_y.astype(bf16), wj2_ref[...],
                     preferred_element_type=jnp.float32)
           + bj_ref[...])
    h_j = jnp.maximum(h_j, 0.0)

    # layer_out partial contribution: h_j_half @ wo[half, :]  (bias + sigmoid
    # applied in the wrapper after summing the two partials).
    out_ref[0] = jnp.dot(h_j.astype(bf16), wo_ref[...],
                         preferred_element_type=jnp.float32)


def pack_params(params):
    """One-time weight packing: transpose to [in, out], split the join weight
    at the concat boundary, zero-pad the join output dim to 1280, cast weights
    to bf16, reshape biases to broadcastable rows.  Call once, store result."""
    bf16 = jnp.bfloat16
    wz_t = params["wz"].T.astype(bf16)                              # (100, 200)
    wy_t = params["wy"].T.astype(bf16)                              # (10, 1000)
    wj_t = jnp.pad(params["wj"].T, ((0, 0), (0, JOIN_PAD - JOIN)))  # (1200, 1280)
    wj1 = wj_t[:HZ, :].astype(bf16)                                 # (200, 1280)
    wj2 = wj_t[HZ:, :].astype(bf16)                                 # (1000, 1280)
    wo_t = jnp.pad(params["wo"].T, ((0, JOIN_PAD - JOIN), (0, 0))).astype(bf16)  # (1280, 784)
    return {
        "wz": wz_t, "bz": params["bz"].reshape(1, -1).astype(jnp.float32),
        "wy": wy_t, "by": params["by"].reshape(1, -1).astype(jnp.float32),
        "wj1": wj1, "wj2": wj2,
        "bj": jnp.pad(params["bj"], (0, JOIN_PAD - JOIN)).reshape(1, -1).astype(jnp.float32),
        "wo": wo_t, "bo": params["bo"].reshape(1, -1).astype(jnp.float32),
    }


def generator_forward(z, y, packed):
    B = z.shape[0]
    p = packed
    partials = pl.pallas_call(
        generator_kernel,
        out_shape=jax.ShapeDtypeStruct((2, B, OUT), jnp.float32),
        grid=(2,),
        in_specs=[
            pl.BlockSpec((B, ZDIM), lambda c: (0, 0)),        # z      (full)
            pl.BlockSpec((B, YDIM), lambda c: (0, 0)),        # y      (full)
            pl.BlockSpec((ZDIM, HZ), lambda c: (0, 0)),       # wz     (full)
            pl.BlockSpec((1, HZ), lambda c: (0, 0)),          # bz     (full)
            pl.BlockSpec((YDIM, HY), lambda c: (0, 0)),       # wy     (full)
            pl.BlockSpec((1, HY), lambda c: (0, 0)),          # by     (full)
            pl.BlockSpec((HZ, HALF), lambda c: (0, c)),       # wj1    (half cols)
            pl.BlockSpec((HY, HALF), lambda c: (0, c)),       # wj2    (half cols)
            pl.BlockSpec((1, HALF), lambda c: (0, c)),        # bj     (half cols)
            pl.BlockSpec((HALF, OUT), lambda c: (c, 0)),      # wo     (half rows)
        ],
        out_specs=pl.BlockSpec((1, B, OUT), lambda c: (c, 0, 0)),
        compiler_params=pltpu.CompilerParams(
            dimension_semantics=("parallel",),
            vmem_limit_bytes=24 << 20,
        ),
    )(z, y, p["wz"], p["bz"], p["wy"], p["by"],
      p["wj1"], p["wj2"], p["bj"], p["wo"])

    # Tiny epilogue (25 KB at B=8): sum the two partial contributions of the
    # split output contraction, add the output bias, apply sigmoid.
    return jax.nn.sigmoid(partials[0] + partials[1] + p["bo"])


generator_forward_jit = jax.jit(generator_forward)


def init_params(key, std=1e-4):
    """Init matching the PyTorch module: weights ~ Normal(0, 0.0001), bias 0."""
    ks = jax.random.split(key, 4)
    return {
        "wz": std * jax.random.normal(ks[0], (HZ, ZDIM), jnp.float32),   # Linear(100,200)
        "bz": jnp.zeros((HZ,), jnp.float32),
        "wy": std * jax.random.normal(ks[1], (HY, YDIM), jnp.float32),   # Linear(10,1000)
        "by": jnp.zeros((HY,), jnp.float32),
        "wj": std * jax.random.normal(ks[2], (JOIN, JOIN), jnp.float32), # Linear(1200,1200)
        "bj": jnp.zeros((JOIN,), jnp.float32),
        "wo": std * jax.random.normal(ks[3], (OUT, JOIN), jnp.float32),  # Linear(1200,784)
        "bo": jnp.zeros((OUT,), jnp.float32),
    }


def reference_forward_f32(z, y, p):
    """Pure-JAX f32 reference of the module (eval-mode dropout = identity)."""
    h_z = jax.nn.relu(z @ p["wz"].T + p["bz"])
    h_y = jax.nn.relu(y @ p["wy"].T + p["by"])
    joint = jnp.concatenate([h_z, h_y], axis=1)
    h_j = jax.nn.relu(joint @ p["wj"].T + p["bj"])
    return jax.nn.sigmoid(h_j @ p["wo"].T + p["bo"])


def reference_forward_bf16(z, y, packed):
    """Pure-JAX reference that emulates the kernel's numerics (bf16 weights,
    bf16 activation casts, f32 accumulation) on the packed params."""
    bf16, f32 = jnp.bfloat16, jnp.float32
    mm = lambda a, w: jnp.dot(a.astype(bf16), w, preferred_element_type=f32)
    h_z = jax.nn.relu(mm(z, packed["wz"]) + packed["bz"])
    h_y = jax.nn.relu(mm(y, packed["wy"]) + packed["by"])
    h_j = jax.nn.relu(mm(h_z, packed["wj1"]) + mm(h_y, packed["wj2"]) + packed["bj"])
    return jax.nn.sigmoid(mm(h_j, packed["wo"]) + packed["bo"])


if __name__ == "__main__":
    key = jax.random.PRNGKey(0)
    k_param, k_param2, k_z, k_y = jax.random.split(key, 4)

    B = 8  # small batch, aligned to 8 sublanes
    z = jax.random.normal(k_z, (B, ZDIM), jnp.float32)
    y = jax.random.normal(k_y, (B, YDIM), jnp.float32)

    # --- Run with the module's init (weights ~ N(0, 1e-4), biases 0) ---
    params = init_params(k_param)
    packed = jax.tree_util.tree_map(jax.block_until_ready, pack_params(params))

    out = generator_forward_jit(z, y, packed)
    out = jax.block_until_ready(out)
    assert out.shape == (B, OUT), out.shape

    ref_f32 = reference_forward_f32(z, y, params)
    ref_emu = reference_forward_bf16(z, y, packed)
    assert jnp.allclose(out, ref_emu, atol=1e-4, rtol=1e-4), \
        float(jnp.max(jnp.abs(out - ref_emu)))
    assert jnp.allclose(out, ref_f32, atol=1e-3, rtol=1e-3), \
        float(jnp.max(jnp.abs(out - ref_f32)))

    # --- Numerics stress check with larger-scale weights (exercises the
    #     weight-split grid indexing and the bf16 path meaningfully) ---
    params_big = init_params(k_param2, std=0.05)
    packed_big = pack_params(params_big)
    out_big = jax.block_until_ready(generator_forward_jit(z, y, packed_big))
    ref_big = reference_forward_bf16(z, y, packed_big)
    assert jnp.allclose(out_big, ref_big, atol=5e-3, rtol=5e-3), \
        float(jnp.max(jnp.abs(out_big - ref_big)))

    print("KERNEL_OK")
</pallas_src>

<mosaic_0001>
module attributes {stable_mosaic.version = 11 : i64} {
  func.func @generator_kernel(%arg0: i32, %arg1: memref<8x100xf32, #tpu.memory_space<vmem>>, %arg2: memref<8x10xf32, #tpu.memory_space<vmem>>, %arg3: memref<100x200xbf16, #tpu.memory_space<vmem>>, %arg4: memref<1x200xf32, #tpu.memory_space<vmem>>, %arg5: memref<10x1000xbf16, #tpu.memory_space<vmem>>, %arg6: memref<1x1000xf32, #tpu.memory_space<vmem>>, %arg7: memref<200x640xbf16, #tpu.memory_space<vmem>>, %arg8: memref<1000x640xbf16, #tpu.memory_space<vmem>>, %arg9: memref<1x640xf32, #tpu.memory_space<vmem>>, %arg10: memref<640x784xbf16, #tpu.memory_space<vmem>>, %arg11: memref<1x8x784xf32, #tpu.memory_space<vmem>>) attributes {dimension_semantics = [#tpu.dimension_semantics<parallel>], iteration_bounds = array<i64: 2>, scalar_prefetch = 0 : i64, scratch_operands = 0 : i64, tpu.core_type = #tpu.core_type<tc>, window_params = [{pipeline_mode = #tpu.pipeline_mode<synchronous>, transform_indices = @transform_0, window_bounds = array<i64: 8, 100>}, {pipeline_mode = #tpu.pipeline_mode<synchronous>, transform_indices = @transform_1, window_bounds = array<i64: 8, 10>}, {pipeline_mode = #tpu.pipeline_mode<synchronous>, transform_indices = @transform_2, window_bounds = array<i64: 100, 200>}, {pipeline_mode = #tpu.pipeline_mode<synchronous>, transform_indices = @transform_3, window_bounds = array<i64: 1, 200>}, {pipeline_mode = #tpu.pipeline_mode<synchronous>, transform_indices = @transform_4, window_bounds = array<i64: 10, 1000>}, {pipeline_mode = #tpu.pipeline_mode<synchronous>, transform_indices = @transform_5, window_bounds = array<i64: 1, 1000>}, {transform_indices = @transform_6, window_bounds = array<i64: 200, 640>}, {transform_indices = @transform_7, window_bounds = array<i64: 1000, 640>}, {transform_indices = @transform_8, window_bounds = array<i64: 1, 640>}, {transform_indices = @transform_9, window_bounds = array<i64: 640, 784>}, {transform_indices = @transform_10, window_bounds = array<i64: 1, 8, 784>}]} {
    %c0 = arith.constant 0 : index
    %c0_0 = arith.constant 0 : index
    %0 = vector.load %arg1[%c0, %c0_0] : memref<8x100xf32, #tpu.memory_space<vmem>>, vector<8x100xf32>
    %1 = arith.truncf %0 : vector<8x100xf32> to vector<8x100xbf16>
    %c0_1 = arith.constant 0 : index
    %c0_2 = arith.constant 0 : index
    %2 = vector.load %arg3[%c0_1, %c0_2] : memref<100x200xbf16, #tpu.memory_space<vmem>>, vector<100x200xbf16>
    %cst = arith.constant dense<0.000000e+00> : vector<8x200xf32>
    %3 = tpu.matmul %1, %2, %cst {dimension_numbers = #tpu.dot_dimension_numbers<[1], [0], [0], [1], [0, 0, 1, 1], [], []>} : vector<8x100xbf16>, vector<100x200xbf16>, vector<8x200xf32> -> vector<8x200xf32>
    %c0_3 = arith.constant 0 : index
    %c0_4 = arith.constant 0 : index
    %4 = vector.load %arg4[%c0_3, %c0_4] : memref<1x200xf32, #tpu.memory_space<vmem>>, vector<1x200xf32>
    %5 = vector.broadcast %4 : vector<1x200xf32> to vector<8x200xf32>
    %6 = arith.addf %3, %5 : vector<8x200xf32>
    %cst_5 = arith.constant 0.000000e+00 : f32
    %7 = vector.broadcast %cst_5 : f32 to vector<8x200xf32>
    %8 = arith.maximumf %6, %7 : vector<8x200xf32>
    %c0_6 = arith.constant 0 : index
    %c0_7 = arith.constant 0 : index
    %9 = vector.load %arg2[%c0_6, %c0_7] : memref<8x10xf32, #tpu.memory_space<vmem>>, vector<8x10xf32>
    %10 = arith.truncf %9 : vector<8x10xf32> to vector<8x10xbf16>
    %c0_8 = arith.constant 0 : index
    %c0_9 = arith.constant 0 : index
    %11 = vector.load %arg5[%c0_8, %c0_9] : memref<10x1000xbf16, #tpu.memory_space<vmem>>, vector<10x1000xbf16>
    %cst_10 = arith.constant dense<0.000000e+00> : vector<8x1000xf32>
    %12 = tpu.matmul %10, %11, %cst_10 {dimension_numbers = #tpu.dot_dimension_numbers<[1], [0], [0], [1], [0, 0, 1, 1], [], []>} : vector<8x10xbf16>, vector<10x1000xbf16>, vector<8x1000xf32> -> vector<8x1000xf32>
    %c0_11 = arith.constant 0 : index
    %c0_12 = arith.constant 0 : index
    %13 = vector.load %arg6[%c0_11, %c0_12] : memref<1x1000xf32, #tpu.memory_space<vmem>>, vector<1x1000xf32>
    %14 = vector.broadcast %13 : vector<1x1000xf32> to vector<8x1000xf32>
    %15 = arith.addf %12, %14 : vector<8x1000xf32>
    %cst_13 = arith.constant 0.000000e+00 : f32
    %16 = vector.broadcast %cst_13 : f32 to vector<8x1000xf32>
    %17 = arith.maximumf %15, %16 : vector<8x1000xf32>
    %18 = arith.truncf %8 : vector<8x200xf32> to vector<8x200xbf16>
    %c0_14 = arith.constant 0 : index
    %c0_15 = arith.constant 0 : index
    %19 = vector.load %arg7[%c0_14, %c0_15] : memref<200x640xbf16, #tpu.memory_space<vmem>>, vector<200x640xbf16>
    %cst_16 = arith.constant dense<0.000000e+00> : vector<8x640xf32>
    %20 = tpu.matmul %18, %19, %cst_16 {dimension_numbers = #tpu.dot_dimension_numbers<[1], [0], [0], [1], [0, 0, 1, 1], [], []>} : vector<8x200xbf16>, vector<200x640xbf16>, vector<8x640xf32> -> vector<8x640xf32>
    %21 = arith.truncf %17 : vector<8x1000xf32> to vector<8x1000xbf16>
    %c0_17 = arith.constant 0 : index
    %c0_18 = arith.constant 0 : index
    %22 = vector.load %arg8[%c0_17, %c0_18] : memref<1000x640xbf16, #tpu.memory_space<vmem>>, vector<1000x640xbf16>
    %cst_19 = arith.constant dense<0.000000e+00> : vector<8x640xf32>
    %23 = tpu.matmul %21, %22, %cst_19 {dimension_numbers = #tpu.dot_dimension_numbers<[1], [0], [0], [1], [0, 0, 1, 1], [], []>} : vector<8x1000xbf16>, vector<1000x640xbf16>, vector<8x640xf32> -> vector<8x640xf32>
    %24 = arith.addf %20, %23 : vector<8x640xf32>
    %c0_20 = arith.constant 0 : index
    %c0_21 = arith.constant 0 : index
    %25 = vector.load %arg9[%c0_20, %c0_21] : memref<1x640xf32, #tpu.memory_space<vmem>>, vector<1x640xf32>
    %26 = vector.broadcast %25 : vector<1x640xf32> to vector<8x640xf32>
    %27 = arith.addf %24, %26 : vector<8x640xf32>
    %cst_22 = arith.constant 0.000000e+00 : f32
    %28 = vector.broadcast %cst_22 : f32 to vector<8x640xf32>
    %29 = arith.maximumf %27, %28 : vector<8x640xf32>
    %30 = arith.truncf %29 : vector<8x640xf32> to vector<8x640xbf16>
    %c0_23 = arith.constant 0 : index
    %c0_24 = arith.constant 0 : index
    %31 = vector.load %arg10[%c0_23, %c0_24] : memref<640x784xbf16, #tpu.memory_space<vmem>>, vector<640x784xbf16>
    %cst_25 = arith.constant dense<0.000000e+00> : vector<8x784xf32>
    %32 = tpu.matmul %30, %31, %cst_25 {dimension_numbers = #tpu.dot_dimension_numbers<[1], [0], [0], [1], [0, 0, 1, 1], [], []>} : vector<8x640xbf16>, vector<640x784xbf16>, vector<8x784xf32> -> vector<8x784xf32>
    %c0_26 = arith.constant 0 : index
    %c0_27 = arith.constant 0 : index
    %c0_28 = arith.constant 0 : index
    %33 = vector.load %arg11[%c0_26, %c0_27, %c0_28] : memref<1x8x784xf32, #tpu.memory_space<vmem>>, vector<1x8x784xf32>
    %34 = vector.shape_cast %33 : vector<1x8x784xf32> to vector<8x784xf32>
    %35 = vector.shape_cast %32 : vector<8x784xf32> to vector<1x8x784xf32>
    tpu.vector_store %arg11[%c0_26, %c0_27, %c0_28], %35 {strides = array<i32>} : memref<1x8x784xf32, #tpu.memory_space<vmem>>, vector<1x8x784xf32>,
    return
  }
  func.func @transform_0(%arg0: i32) -> (i32, i32) {
    %c0_i32 = arith.constant 0 : i32
    %c0_i32_0 = arith.constant 0 : i32
    %c0_i32_1 = arith.constant 0 : i32
    return %c0_i32, %c0_i32_0 : i32, i32
  }
  func.func @transform_1(%arg0: i32) -> (i32, i32) {
    %c0_i32 = arith.constant 0 : i32
    %c0_i32_0 = arith.constant 0 : i32
    %c0_i32_1 = arith.constant 0 : i32
    return %c0_i32, %c0_i32_0 : i32, i32
  }
  func.func @transform_2(%arg0: i32) -> (i32, i32) {
    %c0_i32 = arith.constant 0 : i32
    %c0_i32_0 = arith.constant 0 : i32
    %c0_i32_1 = arith.constant 0 : i32
    return %c0_i32, %c0_i32_0 : i32, i32
  }
  func.func @transform_3(%arg0: i32) -> (i32, i32) {
    %c0_i32 = arith.constant 0 : i32
    %c0_i32_0 = arith.constant 0 : i32
    %c0_i32_1 = arith.constant 0 : i32
    return %c0_i32, %c0_i32_0 : i32, i32
  }
  func.func @transform_4(%arg0: i32) -> (i32, i32) {
    %c0_i32 = arith.constant 0 : i32
    %c0_i32_0 = arith.constant 0 : i32
    %c0_i32_1 = arith.constant 0 : i32
    return %c0_i32, %c0_i32_0 : i32, i32
  }
  func.func @transform_5(%arg0: i32) -> (i32, i32) {
    %c0_i32 = arith.constant 0 : i32
    %c0_i32_0 = arith.constant 0 : i32
    %c0_i32_1 = arith.constant 0 : i32
    return %c0_i32, %c0_i32_0 : i32, i32
  }
  func.func @transform_6(%arg0: i32) -> (i32, i32) {
    %c0_i32 = arith.constant 0 : i32
    %c0_i32_0 = arith.constant 0 : i32
    return %c0_i32, %arg0 : i32, i32
  }
  func.func @transform_7(%arg0: i32) -> (i32, i32) {
    %c0_i32 = arith.constant 0 : i32
    %c0_i32_0 = arith.constant 0 : i32
    return %c0_i32, %arg0 : i32, i32
  }
  func.func @transform_8(%arg0: i32) -> (i32, i32) {
    %c0_i32 = arith.constant 0 : i32
    %c0_i32_0 = arith.constant 0 : i32
    return %c0_i32, %arg0 : i32, i32
  }
  func.func @transform_9(%arg0: i32) -> (i32, i32) {
    %c0_i32 = arith.constant 0 : i32
    %c0_i32_0 = arith.constant 0 : i32
    return %arg0, %c0_i32 : i32, i32
  }
  func.func @transform_10(%arg0: i32) -> (i32, i32, i32) {
    %c0_i32 = arith.constant 0 : i32
    %c0_i32_0 = arith.constant 0 : i32
    %c0_i32_1 = arith.constant 0 : i32
    return %arg0, %c0_i32, %c0_i32_0 : i32, i32, i32
  }
}

</mosaic_0001>

<llo_original>
// kernel: generator_forward.1
$region0: #{generator_forward.1}
  #allocation0 [shape = 'u32[]', space=smem, size = 0x4, offset = 0x4, fixed_abs, tag = 'smem constant byte address 0x4 - core index']
  #allocation1 [shape = 'u32[144,128]{1,0:T(1,128)}', space=vmem, size = 0x12000, scoped, tag = 'internal scratch']
  %s0 = inlined_call_operand.vmem [shape: f32[8,100], index: 0, kind: input, shape index: {}]
  %s1 = inlined_call_operand.vmem [shape: f32[8,10], index: 1, kind: input, shape index: {}]
  %s2 = inlined_call_operand.vmem [shape: bf16[100,200], index: 2, kind: input, shape index: {}]
  %s3 = inlined_call_operand.vmem [shape: f32[1,200], index: 3, kind: input, shape index: {}]
  %s4 = inlined_call_operand.vmem [shape: bf16[10,1000], index: 4, kind: input, shape index: {}]
  %s5 = inlined_call_operand.vmem [shape: f32[1,1000], index: 5, kind: input, shape index: {}]
  %s6 = inlined_call_operand.vmem [shape: bf16[200,1280], index: 6, kind: input, shape index: {}]
  %s7 = inlined_call_operand.vmem [shape: bf16[1000,1280], index: 7, kind: input, shape index: {}]
  %s8 = inlined_call_operand.vmem [shape: f32[1,1280], index: 8, kind: input, shape index: {}]
  %s9 = inlined_call_operand.vmem [shape: bf16[1280,784], index: 9, kind: input, shape index: {}]
  %s10 = inlined_call_operand.vmem [shape: f32[2,8,784], index: 10, kind: output, shape index: {}]
  %s11 = sld [smem:[#allocation0]]
  $region125: #{generator_forward.1} parent=0
    _
  %s13 = ssub.s32 1, %s11
  %s14 = scalar_select 0, %s13, %s11
  $region1: #{generator_forward.1} parent=0
    #allocation2 [shape = 'u8[512000]{0}', space=vmem, size = 0x7d000, scoped, tag = 'input window, operand 6']
    #allocation3 [shape = 'u8[2560000]{0}', space=vmem, size = 0x271000, scoped, tag = 'input window, operand 7']
    loop: start=0, step=1, limit=4
    $region2: #{generator_forward.1} parent=1 // loop_pre_header
      _
    $region3: #{generator_forward.1} parent=1 // loop_header
      %s16 = sphi 0, %s20
      %p17 = scmp.ge.s32.totalorder %s16, 4
      %s24 = sphi 0, %s24
      %s26 = sphi 0, %s24
      %s27 = sphi 0, %s26
      %s41 = sphi 0, %s27
      %s45 = sphi 0, %s45
      %s47 = sphi 0, %s45
      %s48 = sphi 0, %s47
      %s62 = sphi 0, %s48
      %s66 = sphi 0, %s66
      %s68 = sphi 0, %s66
      %s69 = sphi 0, %s68
      %s83 = sphi 0, %s69
      %s87 = sphi 0, %s87
      %s89 = sphi 0, %s87
      %s90 = sphi 0, %s89
      %s104 = sphi 0, %s90
      %s108 = sphi 0, %s108
      %s110 = sphi 0, %s108
      %s111 = sphi 0, %s110
      %s125 = sphi 0, %s111
      %s129 = sphi 0, %s129
      %s131 = sphi 0, %s129
      %s132 = sphi 0, %s131
      %s146 = sphi 0, %s132
      %s152 = sphi 0, %s154
      %s155 = sphi 0, %s152
      %s156 = sphi 0, %s155
      %s172 = sphi 0, %s156
      %s178 = sphi 0, %s180
      %s181 = sphi 0, %s178
      %s182 = sphi 0, %s181
      %s198 = sphi 0, %s182
      %s204 = sphi 0, %s206
      %s207 = sphi 0, %s204
      %s208 = sphi 0, %s207
      %s224 = sphi 0, %s208
      %s230 = sphi 0, %s232
      %s233 = sphi 0, %s230
      %s234 = sphi 0, %s233
      %s250 = sphi 0, %s234
      %s256 = sphi 0, %s258
      %s259 = sphi 0, %s256
      %s260 = sphi 0, %s259
      %s276 = sphi 0, %s260
    $region4: #{generator_forward.1} parent=1 // loop_header_branch
      %19 = sbr.rel (%p17) target = $region8
    $region5: #{generator_forward.1} parent=1 // loop_body
      %s21 = ssub.s32 %s16, 1
      %s22 = ssub.s32 %s16, 2
      %s23 = sadd.s32 %s16, 1
      %s25 = sadd.s32 %s24, 1
      %p28 = scmp.eq.s32.totalorder %s16, 1
      %p29 = scmp.ne.s32.totalorder %s24, %s26
      %p30 = scmp.eq.s32.totalorder %s16, 0
      %p31 = por %p29, %p30
      %p32 = scmp.ne.s32.totalorder %s24, %s26
      %p33 = scmp.eq.s32.totalorder %s21, 1
      %p34 = por %p32, %p33
      %p35 = scmp.ne.s32.totalorder %s26, %s27
      %p36 = scmp.eq.s32.totalorder %s21, 0
      %p37 = por %p35, %p36
      %p38 = scmp.ne.s32.totalorder %s26, %s27
      %p39 = scmp.eq.s32.totalorder %s22, 1
      %p40 = por %p38, %p39
      %p42 = scmp.ne.s32.totalorder %s27, %s41
      %p43 = scmp.eq.s32.totalorder %s22, 0
      %p44 = por %p42, %p43
      %s46 = sadd.s32 %s45, 1
      %p49 = scmp.eq.s32.totalorder %s16, 1
      %p50 = scmp.ne.s32.totalorder %s45, %s47
      %p51 = scmp.eq.s32.totalorder %s16, 0
      %p52 = por %p50, %p51
      %p53 = scmp.ne.s32.totalorder %s45, %s47
      %p54 = scmp.eq.s32.totalorder %s21, 1
      %p55 = por %p53, %p54
      %p56 = scmp.ne.s32.totalorder %s47, %s48
      %p57 = scmp.eq.s32.totalorder %s21, 0
      %p58 = por %p56, %p57
      %p59 = scmp.ne.s32.totalorder %s47, %s48
      %p60 = scmp.eq.s32.totalorder %s22, 1
      %p61 = por %p59, %p60
      %p63 = scmp.ne.s32.totalorder %s48, %s62
      %p64 = scmp.eq.s32.totalorder %s22, 0
      %p65 = por %p63, %p64
      %s67 = sadd.s32 %s66, 1
      %p70 = scmp.eq.s32.totalorder %s16, 1
      %p71 = scmp.ne.s32.totalorder %s66, %s68
      %p72 = scmp.eq.s32.totalorder %s16, 0
      %p73 = por %p71, %p72
      %p74 = scmp.ne.s32.totalorder %s66, %s68
      %p75 = scmp.eq.s32.totalorder %s21, 1
      %p76 = por %p74, %p75
      %p77 = scmp.ne.s32.totalorder %s68, %s69
      %p78 = scmp.eq.s32.totalorder %s21, 0
      %p79 = por %p77, %p78
      %p80 = scmp.ne.s32.totalorder %s68, %s69
      %p81 = scmp.eq.s32.totalorder %s22, 1
      %p82 = por %p80, %p81
      %p84 = scmp.ne.s32.totalorder %s69, %s83
      %p85 = scmp.eq.s32.totalorder %s22, 0
      %p86 = por %p84, %p85
      %s88 = sadd.s32 %s87, 1
      %p91 = scmp.eq.s32.totalorder %s16, 1
      %p92 = scmp.ne.s32.totalorder %s87, %s89
      %p93 = scmp.eq.s32.totalorder %s16, 0
      %p94 = por %p92, %p93
      %p95 = scmp.ne.s32.totalorder %s87, %s89
      %p96 = scmp.eq.s32.totalorder %s21, 1
      %p97 = por %p95, %p96
      %p98 = scmp.ne.s32.totalorder %s89, %s90
      %p99 = scmp.eq.s32.totalorder %s21, 0
      %p100 = por %p98, %p99
      %p101 = scmp.ne.s32.totalorder %s89, %s90
      %p102 = scmp.eq.s32.totalorder %s22, 1
      %p103 = por %p101, %p102
      %p105 = scmp.ne.s32.totalorder %s90, %s104
      %p106 = scmp.eq.s32.totalorder %s22, 0
      %p107 = por %p105, %p106
      %s109 = sadd.s32 %s108, 1
      %p112 = scmp.eq.s32.totalorder %s16, 1
      %p113 = scmp.ne.s32.totalorder %s108, %s110
      %p114 = scmp.eq.s32.totalorder %s16, 0
      %p115 = por %p113, %p114
      %p116 = scmp.ne.s32.totalorder %s108, %s110
      %p117 = scmp.eq.s32.totalorder %s21, 1
      %p118 = por %p116, %p117
      %p119 = scmp.ne.s32.totalorder %s110, %s111
      %p120 = scmp.eq.s32.totalorder %s21, 0
      %p121 = por %p119, %p120
      %p122 = scmp.ne.s32.totalorder %s110, %s111
      %p123 = scmp.eq.s32.totalorder %s22, 1
      %p124 = por %p122, %p123
      %p126 = scmp.ne.s32.totalorder %s111, %s125
      %p127 = scmp.eq.s32.totalorder %s22, 0
      %p128 = por %p126, %p127
      %s130 = sadd.s32 %s129, 1
      %p133 = scmp.eq.s32.totalorder %s16, 1
      %p134 = scmp.ne.s32.totalorder %s129, %s131
      %p135 = scmp.eq.s32.totalorder %s16, 0
      %p136 = por %p134, %p135
      %p137 = scmp.ne.s32.totalorder %s129, %s131
      %p138 = scmp.eq.s32.totalorder %s21, 1
      %p139 = por %p137, %p138
      %p140 = scmp.ne.s32.totalorder %s131, %s132
      %p141 = scmp.eq.s32.totalorder %s21, 0
      %p142 = por %p140, %p141
      %p143 = scmp.ne.s32.totalorder %s131, %s132
      %p144 = scmp.eq.s32.totalorder %s22, 1
      %p145 = por %p143, %p144
      %p147 = scmp.ne.s32.totalorder %s132, %s146
      %p148 = scmp.eq.s32.totalorder %s22, 0
      %p149 = por %p147, %p148
      %s150 = ssub.s32 %s16, %s23
      %p151 = scmp.eq.s32.totalorder %s150, 0
      %s153 = sadd.s32 %s152, 1
      %s154 = scalar_select %p151, %s152, %s153
      %p157 = pneg %p151
      %p158 = scmp.eq.s32.totalorder %s16, 1
      %p159 = por %p157, %p158
      %p160 = scmp.ne.s32.totalorder %s152, %s155
      %p161 = scmp.eq.s32.totalorder %s16, 0
      %p162 = por %p160, %p161
      %p163 = scmp.ne.s32.totalorder %s152, %s155
      %p164 = scmp.eq.s32.totalorder %s21, 1
      %p165 = por %p163, %p164
      %p166 = scmp.ne.s32.totalorder %s155, %s156
      %p167 = scmp.eq.s32.totalorder %s21, 0
      %p168 = por %p166, %p167
      %p169 = scmp.ne.s32.totalorder %s155, %s156
      %p170 = scmp.eq.s32.totalorder %s22, 1
      %p171 = por %p169, %p170
      %p173 = scmp.ne.s32.totalorder %s156, %s172
      %p174 = scmp.eq.s32.totalorder %s22, 0
      %p175 = por %p173, %p174
      %s176 = ssub.s32 %s16, %s23
      %p177 = scmp.eq.s32.totalorder %s176, 0
      %s179 = sadd.s32 %s178, 1
      %s180 = scalar_select %p177, %s178, %s179
      %p183 = pneg %p177
      %p184 = scmp.eq.s32.totalorder %s16, 1
      %p185 = por %p183, %p184
      %p186 = scmp.ne.s32.totalorder %s178, %s181
      %p187 = scmp.eq.s32.totalorder %s16, 0
      %p188 = por %p186, %p187
      %p189 = scmp.ne.s32.totalorder %s178, %s181
      %p190 = scmp.eq.s32.totalorder %s21, 1
      %p191 = por %p189, %p190
      %p192 = scmp.ne.s32.totalorder %s181, %s182
      %p193 = scmp.eq.s32.totalorder %s21, 0
      %p194 = por %p192, %p193
      %p195 = scmp.ne.s32.totalorder %s181, %s182
      %p196 = scmp.eq.s32.totalorder %s22, 1
      %p197 = por %p195, %p196
      %p199 = scmp.ne.s32.totalorder %s182, %s198
      %p200 = scmp.eq.s32.totalorder %s22, 0
      %p201 = por %p199, %p200
      %s202 = ssub.s32 %s16, %s23
      %p203 = scmp.eq.s32.totalorder %s202, 0
      %s205 = sadd.s32 %s204, 1
      %s206 = scalar_select %p203, %s204, %s205
      %p209 = pneg %p203
      %p210 = scmp.eq.s32.totalorder %s16, 1
      %p211 = por %p209, %p210
      %p212 = scmp.ne.s32.totalorder %s204, %s207
      %p213 = scmp.eq.s32.totalorder %s16, 0
      %p214 = por %p212, %p213
      %p215 = scmp.ne.s32.totalorder %s204, %s207
      %p216 = scmp.eq.s32.totalorder %s21, 1
      %p217 = por %p215, %p216
      %p218 = scmp.ne.s32.totalorder %s207, %s208
      %p219 = scmp.eq.s32.totalorder %s21, 0
      %p220 = por %p218, %p219
      %p221 = scmp.ne.s32.totalorder %s207, %s208
      %p222 = scmp.eq.s32.totalorder %s22, 1
      %p223 = por %p221, %p222
      %p225 = scmp.ne.s32.totalorder %s208, %s224
      %p226 = scmp.eq.s32.totalorder %s22, 0
      %p227 = por %p225, %p226
      %s228 = ssub.s32 %s16, %s23
      %p229 = scmp.eq.s32.totalorder %s228, 0
      %s231 = sadd.s32 %s230, 1
      %s232 = scalar_select %p229, %s230, %s231
      %p235 = pneg %p229
      %p236 = scmp.eq.s32.totalorder %s16, 1
      %p237 = por %p235, %p236
      %p238 = scmp.ne.s32.totalorder %s230, %s233
      %p239 = scmp.eq.s32.totalorder %s16, 0
      %p240 = por %p238, %p239
      %p241 = scmp.ne.s32.totalorder %s230, %s233
      %p242 = scmp.eq.s32.totalorder %s21, 1
      %p243 = por %p241, %p242
      %p244 = scmp.ne.s32.totalorder %s233, %s234
      %p245 = scmp.eq.s32.totalorder %s21, 0
      %p246 = por %p244, %p245
      %p247 = scmp.ne.s32.totalorder %s233, %s234
      %p248 = scmp.eq.s32.totalorder %s22, 1
      %p249 = por %p247, %p248
      %p251 = scmp.ne.s32.totalorder %s234, %s250
      %p252 = scmp.eq.s32.totalorder %s22, 0
      %p253 = por %p251, %p252
      %s254 = ssub.s32 %s16, %s23
      %p255 = scmp.eq.s32.totalorder %s254, 0
      %s257 = sadd.s32 %s256, 1
      %s258 = scalar_select %p255, %s256, %s257
      %p261 = pneg %p255
      %p262 = scmp.eq.s32.totalorder %s16, 1
      %p263 = por %p261, %p262
      %p264 = scmp.ne.s32.totalorder %s256, %s259
      %p265 = scmp.eq.s32.totalorder %s16, 0
      %p266 = por %p264, %p265
      %p267 = scmp.ne.s32.totalorder %s256, %s259
      %p268 = scmp.eq.s32.totalorder %s21, 1
      %p269 = por %p267, %p268
      %p270 = scmp.ne.s32.totalorder %s259, %s260
      %p271 = scmp.eq.s32.totalorder %s21, 0
      %p272 = por %p270, %p271
      %p273 = scmp.ne.s32.totalorder %s259, %s260
      %p274 = scmp.eq.s32.totalorder %s22, 1
      %p275 = por %p273, %p274
      %p277 = scmp.ne.s32.totalorder %s260, %s276
      %p278 = scmp.eq.s32.totalorder %s22, 0
      %p279 = por %p277, %p278
      %p280 = scmp.le.s32.totalorder 1, %s16
      %p281 = scmp.lt.s32.totalorder %s16, 3
      %p282 = pnand %p280, %p281
      %p283 = pneg %p282
      // Predicated region
      $region9: #{generator_forward.1} parent=5 // pred_check
        _
      $region10: #{generator_forward.1} parent=5 // pred_check_branch
        %285 = sbr.rel (%p282) target = $region12
      $region11: #{generator_forward.1} parent=5 // pred_region
        %s286 = ssub.s32 %s16, 1
        // Predicated region
        $region13: #{generator_forward.1} parent=11 // pred_check
          %p287 = pneg %p37
        $region14: #{generator_forward.1} parent=11 // pred_check_branch
          %289 = sbr.rel (%p287) target = $region16
        $region15: #{generator_forward.1} parent=11 // pred_region
          _
        $region16: #{generator_forward.1} parent=11 // pred_fallthru
          _
        // Predicated region
        $region17: #{generator_forward.1} parent=11 // pred_check
          %p290 = pneg %p58
        $region18: #{generator_forward.1} parent=11 // pred_check_branch
          %292 = sbr.rel (%p290) target = $region20
        $region19: #{generator_forward.1} parent=11 // pred_region
          _
        $region20: #{generator_forward.1} parent=11 // pred_fallthru
          _
        // Predicated region
        $region21: #{generator_forward.1} parent=11 // pred_check
          %p293 = pneg %p79
        $region22: #{generator_forward.1} parent=11 // pred_check_branch
          %295 = sbr.rel (%p293) target = $region24
        $region23: #{generator_forward.1} parent=11 // pred_region
          _
        $region24: #{generator_forward.1} parent=11 // pred_fallthru
          _
        // Predicated region
        $region25: #{generator_forward.1} parent=11 // pred_check
          %p296 = pneg %p100
        $region26: #{generator_forward.1} parent=11 // pred_check_branch
          %298 = sbr.rel (%p296) target = $region28
        $region27: #{generator_forward.1} parent=11 // pred_region
          _
        $region28: #{generator_forward.1} parent=11 // pred_fallthru
          _
        // Predicated region
        $region29: #{generator_forward.1} parent=11 // pred_check
          %p299 = pneg %p121
        $region30: #{generator_forward.1} parent=11 // pred_check_branch
          %301 = sbr.rel (%p299) target = $region32
        $region31: #{generator_forward.1} parent=11 // pred_region
          _
        $region32: #{generator_forward.1} parent=11 // pred_fallthru
          _
        // Predicated region
        $region33: #{generator_forward.1} parent=11 // pred_check
          %p302 = pneg %p142
        $region34: #{generator_forward.1} parent=11 // pred_check_branch
          %304 = sbr.rel (%p302) target = $region36
        $region35: #{generator_forward.1} parent=11 // pred_region
          _
        $region36: #{generator_forward.1} parent=11 // pred_fallthru
          _
      $region12: #{generator_forward.1} parent=5 // pred_fallthru
        _
      %p305 = scmp.lt.s32.totalorder %s16, 2
      // Predicated region
      $region37: #{generator_forward.1} parent=5 // pred_check
        %p306 = pneg %p305
      $region38: #{generator_forward.1} parent=5 // pred_check_branch
        %308 = sbr.rel (%p306) target = $region40
      $region39: #{generator_forward.1} parent=5 // pred_region
        // Predicated region
        $region41: #{generator_forward.1} parent=39 // pred_check
          %p309 = pneg %p162
        $region42: #{generator_forward.1} parent=39 // pred_check_branch
          %311 = sbr.rel (%p309) target = $region44
        $region43: #{generator_forward.1} parent=39 // pred_region
          %s312 = sand.u32 %s152, 1
          %s313 = sand.u32 %s152, 1
          %s314 = smul.addr %s313, 500
          %s315 = scalar_lea.vmem [#allocation2], %s314
          %s316 = smul.u32 5, %s16
          %s317 = smul.addr %s316, 4
          %s318 = scalar_lea.vmem %s6, %s317
          // Predicated region
          $region45: #{generator_forward.1} parent=43 // pred_check
            _
          $region46: #{generator_forward.1} parent=43 // pred_check_branch
            %320 = sbr.rel (0) target = $region48
          $region47: #{generator_forward.1} parent=43 // pred_region
            // Predicated region
            $region49: #{generator_forward.1} parent=47 // pred_check
              _
            $region50: #{generator_forward.1} parent=47 // pred_check_branch
              %322 = sbr.rel (0) target = $region52
            $region51: #{generator_forward.1} parent=47 // pred_region
              %s323 = scalar_lea.vmem %s318, 16
              %s324 = scalar_lea.vmem %s315, 16 [#allocation2]
              loop: start=0, step=1, limit=1
              $region53: #{generator_forward.1} parent=51 // loop_pre_header
                _
              $region54: #{generator_forward.1} parent=51 // loop_header
                %s326 = sphi 0, %s330
                %p327 = scmp.ge.s32.totalorder %s326, 1
                %s331 = sphi %s318, %s318
                %s332 = sphi %s315, %s315
              $region55: #{generator_forward.1} parent=51 // loop_header_branch
                %329 = sbr.rel (%p327) target = $region59
              $region56: #{generator_forward.1} parent=51 // loop_body
                %v333 = vld [vmem:[%s331] sm:$0xff]
                %334 = vst [vmem:[%s332] sm:$0xff] %v333
                %v335 = vld [vmem:[%s331 + $0x8] sm:$0xff]
                %336 = vst [vmem:[%s332 + $0x8] sm:$0xff] %v335
                %v337 = vld [vmem:[%s331 + $0x28] sm:$0xff]
                %338 = vst [vmem:[%s332 + $0x14] sm:$0xff] %v337
                %v339 = vld [vmem:[%s331 + $0x30] sm:$0xff]
                %340 = vst [vmem:[%s332 + $0x1c] sm:$0xff] %v339
                %v341 = vld [vmem:[%s331 + $0x50] sm:$0xff]
                %342 = vst [vmem:[%s332 + $0x28] sm:$0xff] %v341
                %v343 = vld [vmem:[%s331 + $0x58] sm:$0xff]
                %344 = vst [vmem:[%s332 + $0x30] sm:$0xff] %v343
                %v345 = vld [vmem:[%s331 + $0x78] sm:$0xff]
                %346 = vst [vmem:[%s332 + $0x3c] sm:$0xff] %v345
                %v347 = vld [vmem:[%s331 + $0x80] sm:$0xff]
                %348 = vst [vmem:[%s332 + $0x44] sm:$0xff] %v347
                %v349 = vld [vmem:[%s331 + $0xa0] sm:$0xff]
                %350 = vst [vmem:[%s332 + $0x50] sm:$0xff] %v349
                %v351 = vld [vmem:[%s331 + $0xa8] sm:$0xff]
                %352 = vst [vmem:[%s332 + $0x58] sm:$0xff] %v351
                %v353 = vld [vmem:[%s331 + $0xc8] sm:$0xff]
                %354 = vst [vmem:[%s332 + $0x64] sm:$0xff] %v353
                %v355 = vld [vmem:[%s331 + $0xd0] sm:$0xff]
                %356 = vst [vmem:[%s332 + $0x6c] sm:$0xff] %v355
                %v357 = vld [vmem:[%s331 + $0xf0] sm:$0xff]
                %358 = vst [vmem:[%s332 + $0x78] sm:$0xff] %v357
                %v359 = vld [vmem:[%s331 + $0xf8] sm:$0xff]
                %360 = vst [vmem:[%s332 + $0x80] sm:$0xff] %v359
                %v361 = vld [vmem:[%s331 + $0x118] sm:$0xff]
                %362 = vst [vmem:[%s332 + $0x8c] sm:$0xff] %v361
                %v363 = vld [vmem:[%s331 + $0x120] sm:$0xff]
                %364 = vst [vmem:[%s332 + $0x94] sm:$0xff] %v363
                %v365 = vld [vmem:[%s331 + $0x140] sm:$0xff]
                %366 = vst [vmem:[%s332 + $0xa0] sm:$0xff] %v365
                %v367 = vld [vmem:[%s331 + $0x148] sm:$0xff]
                %368 = vst [vmem:[%s332 + $0xa8] sm:$0xff] %v367
                %v369 = vld [vmem:[%s331 + $0x168] sm:$0xff]
                %370 = vst [vmem:[%s332 + $0xb4] sm:$0xff] %v369
                %v371 = vld [vmem:[%s331 + $0x170] sm:$0xff]
                %372 = vst [vmem:[%s332 + $0xbc] sm:$0xff] %v371
                %v373 = vld [vmem:[%s331 + $0x190] sm:$0xff]
                %374 = vst [vmem:[%s332 + $0xc8] sm:$0xff] %v373
                %v375 = vld [vmem:[%s331 + $0x198] sm:$0xff]
                %376 = vst [vmem:[%s332 + $0xd0] sm:$0xff] %v375
                %v377 = vld [vmem:[%s331 + $0x1b8] sm:$0xff]
                %378 = vst [vmem:[%s332 + $0xdc] sm:$0xff] %v377
                %v379 = vld [vmem:[%s331 + $0x1c0] sm:$0xff]
                %380 = vst [vmem:[%s332 + $0xe4] sm:$0xff] %v379
                %v381 = vld [vmem:[%s331 + $0x1e0] sm:$0xff]
                %382 = vst [vmem:[%s332 + $0xf0] sm:$0xff] %v381
                %v383 = vld [vmem:[%s331 + $0x1e8] sm:$0xff]
                %384 = vst [vmem:[%s332 + $0xf8] sm:$0xff] %v383
                %v385 = vld [vmem:[%s331 + $0x208] sm:$0xff]
                %386 = vst [vmem:[%s332 + $0x104] sm:$0xff] %v385
                %v387 = vld [vmem:[%s331 + $0x210] sm:$0xff]
                %388 = vst [vmem:[%s332 + $0x10c] sm:$0xff] %v387
                %v389 = vld [vmem:[%s331 + $0x230] sm:$0xff]
                %390 = vst [vmem:[%s332 + $0x118] sm:$0xff] %v389
                %v391 = vld [vmem:[%s331 + $0x238] sm:$0xff]
                %392 = vst [vmem:[%s332 + $0x120] sm:$0xff] %v391
                %v393 = vld [vmem:[%s331 + $0x258] sm:$0xff]
                %394 = vst [vmem:[%s332 + $0x12c] sm:$0xff] %v393
                %v395 = vld [vmem:[%s331 + $0x260] sm:$0xff]
                %396 = vst [vmem:[%s332 + $0x134] sm:$0xff] %v395
                %v397 = vld [vmem:[%s331 + $0x280] sm:$0xff]
                %398 = vst [vmem:[%s332 + $0x140] sm:$0xff] %v397
                %v399 = vld [vmem:[%s331 + $0x288] sm:$0xff]
                %400 = vst [vmem:[%s332 + $0x148] sm:$0xff] %v399
                %v401 = vld [vmem:[%s331 + $0x2a8] sm:$0xff]
                %402 = vst [vmem:[%s332 + $0x154] sm:$0xff] %v401
                %v403 = vld [vmem:[%s331 + $0x2b0] sm:$0xff]
                %404 = vst [vmem:[%s332 + $0x15c] sm:$0xff] %v403
                %v405 = vld [vmem:[%s331 + $0x2d0] sm:$0xff]
                %406 = vst [vmem:[%s332 + $0x168] sm:$0xff] %v405
                %v407 = vld [vmem:[%s331 + $0x2d8] sm:$0xff]
                %408 = vst [vmem:[%s332 + $0x170] sm:$0xff] %v407
                %v409 = vld [vmem:[%s331 + $0x2f8] sm:$0xff]
                %410 = vst [vmem:[%s332 + $0x17c] sm:$0xff] %v409
                %v411 = vld [vmem:[%s331 + $0x300] sm:$0xff]
                %412 = vst [vmem:[%s332 + $0x184] sm:$0xff] %v411
                %v413 = vld [vmem:[%s331 + $0x320] sm:$0xff]
                %414 = vst [vmem:[%s332 + $0x190] sm:$0xff] %v413
                %v415 = vld [vmem:[%s331 + $0x328] sm:$0xff]
                %416 = vst [vmem:[%s332 + $0x198] sm:$0xff] %v415
                %v417 = vld [vmem:[%s331 + $0x348] sm:$0xff]
                %418 = vst [vmem:[%s332 + $0x1a4] sm:$0xff] %v417
                %v419 = vld [vmem:[%s331 + $0x350] sm:$0xff]
                %420 = vst [vmem:[%s332 + $0x1ac] sm:$0xff] %v419
                %v421 = vld [vmem:[%s331 + $0x370] sm:$0xff]
                %422 = vst [vmem:[%s332 + $0x1b8] sm:$0xff] %v421
                %v423 = vld [vmem:[%s331 + $0x378] sm:$0xff]
                %424 = vst [vmem:[%s332 + $0x1c0] sm:$0xff] %v423
                %v425 = vld [vmem:[%s331 + $0x398] sm:$0xff]
                %426 = vst [vmem:[%s332 + $0x1cc] sm:$0xff] %v425
                %v427 = vld [vmem:[%s331 + $0x3a0] sm:$0xff]
                %428 = vst [vmem:[%s332 + $0x1d4] sm:$0xff] %v427
                %v429 = vld [vmem:[%s331 + $0x3c0] sm:$0xff]
                %430 = vst [vmem:[%s332 + $0x1e0] sm:$0xff] %v429
                %v431 = vld [vmem:[%s331 + $0x3c8] sm:$0xff]
                %432 = vst [vmem:[%s332 + $0x1e8] sm:$0xff] %v431
              $region57: #{generator_forward.1} parent=51 // loop_footer
                %s330 = sadd.s32 1, %s326
              $region58: #{generator_forward.1} parent=51 // loop_footer_branch
                %325 = sbr.rel target = $region54
              $region59: #{generator_forward.1} parent=51 // loop_exit
                _
              loop: start=0, step=1, limit=1
              $region60: #{generator_forward.1} parent=51 // loop_pre_header
                _
              $region61: #{generator_forward.1} parent=51 // loop_header
                %s435 = sphi 0, %s439
                %p436 = scmp.ge.s32.totalorder %s435, 1
                %s440 = sphi %s323, %s323
                %s441 = sphi %s324, %s324
              $region62: #{generator_forward.1} parent=51 // loop_header_branch
                %438 = sbr.rel (%p436) target = $region66
              $region63: #{generator_forward.1} parent=51 // loop_body
                %v442 = vld [vmem:[%s440] sm:$0xf]
                %443 = vst [vmem:[%s441] sm:$0xf] %v442
                %v444 = vld [vmem:[%s440 + $0x28] sm:$0xf]
                %445 = vst [vmem:[%s441 + $0x14] sm:$0xf] %v444
                %v446 = vld [vmem:[%s440 + $0x50] sm:$0xf]
                %447 = vst [vmem:[%s441 + $0x28] sm:$0xf] %v446
                %v448 = vld [vmem:[%s440 + $0x78] sm:$0xf]
                %449 = vst [vmem:[%s441 + $0x3c] sm:$0xf] %v448
                %v450 = vld [vmem:[%s440 + $0xa0] sm:$0xf]
                %451 = vst [vmem:[%s441 + $0x50] sm:$0xf] %v450
                %v452 = vld [vmem:[%s440 + $0xc8] sm:$0xf]
                %453 = vst [vmem:[%s441 + $0x64] sm:$0xf] %v452
                %v454 = vld [vmem:[%s440 + $0xf0] sm:$0xf]
                %455 = vst [vmem:[%s441 + $0x78] sm:$0xf] %v454
                %v456 = vld [vmem:[%s440 + $0x118] sm:$0xf]
                %457 = vst [vmem:[%s441 + $0x8c] sm:$0xf] %v456
                %v458 = vld [vmem:[%s440 + $0x140] sm:$0xf]
                %459 = vst [vmem:[%s441 + $0xa0] sm:$0xf] %v458
                %v460 = vld [vmem:[%s440 + $0x168] sm:$0xf]
                %461 = vst [vmem:[%s441 + $0xb4] sm:$0xf] %v460
                %v462 = vld [vmem:[%s440 + $0x190] sm:$0xf]
                %463 = vst [vmem:[%s441 + $0xc8] sm:$0xf] %v462
                %v464 = vld [vmem:[%s440 + $0x1b8] sm:$0xf]
                %465 = vst [vmem:[%s441 + $0xdc] sm:$0xf] %v464
                %v466 = vld [vmem:[%s440 + $0x1e0] sm:$0xf]
                %467 = vst [vmem:[%s441 + $0xf0] sm:$0xf] %v466
                %v468 = vld [vmem:[%s440 + $0x208] sm:$0xf]
                %469 = vst [vmem:[%s441 + $0x104] sm:$0xf] %v468
                %v470 = vld [vmem:[%s440 + $0x230] sm:$0xf]
                %471 = vst [vmem:[%s441 + $0x118] sm:$0xf] %v470
                %v472 = vld [vmem:[%s440 + $0x258] sm:$0xf]
                %473 = vst [vmem:[%s441 + $0x12c] sm:$0xf] %v472
                %v474 = vld [vmem:[%s440 + $0x280] sm:$0xf]
                %475 = vst [vmem:[%s441 + $0x140] sm:$0xf] %v474
                %v476 = vld [vmem:[%s440 + $0x2a8] sm:$0xf]
                %477 = vst [vmem:[%s441 + $0x154] sm:$0xf] %v476
                %v478 = vld [vmem:[%s440 + $0x2d0] sm:$0xf]
                %479 = vst [vmem:[%s441 + $0x168] sm:$0xf] %v478
                %v480 = vld [vmem:[%s440 + $0x2f8] sm:$0xf]
                %481 = vst [vmem:[%s441 + $0x17c] sm:$0xf] %v480
                %v482 = vld [vmem:[%s440 + $0x320] sm:$0xf]
                %483 = vst [vmem:[%s441 + $0x190] sm:$0xf] %v482
                %v484 = vld [vmem:[%s440 + $0x348] sm:$0xf]
                %485 = vst [vmem:[%s441 + $0x1a4] sm:$0xf] %v484
                %v486 = vld [vmem:[%s440 + $0x370] sm:$0xf]
                %487 = vst [vmem:[%s441 + $0x1b8] sm:$0xf] %v486
                %v488 = vld [vmem:[%s440 + $0x398] sm:$0xf]
                %489 = vst [vmem:[%s441 + $0x1cc] sm:$0xf] %v488
                %v490 = vld [vmem:[%s440 + $0x3c0] sm:$0xf]
                %491 = vst [vmem:[%s441 + $0x1e0] sm:$0xf] %v490
              $region64: #{generator_forward.1} parent=51 // loop_footer
                %s439 = sadd.s32 1, %s435
              $region65: #{generator_forward.1} parent=51 // loop_footer_branch
                %434 = sbr.rel target = $region61
              $region66: #{generator_forward.1} parent=51 // loop_exit
                _
            $region52: #{generator_forward.1} parent=47 // pred_fallthru
              _
          $region48: #{generator_forward.1} parent=43 // pred_fallthru
            _
          %492 = vnop
        $region44: #{generator_forward.1} parent=39 // pred_fallthru
          _
        // Predicated region
        $region67: #{generator_forward.1} parent=39 // pred_check
          %p493 = pneg %p188
        $region68: #{generator_forward.1} parent=39 // pred_check_branch
          %495 = sbr.rel (%p493) target = $region70
        $region69: #{generator_forward.1} parent=39 // pred_region
          %s496 = sand.u32 %s178, 1
          %s497 = sand.u32 %s178, 1
          %s498 = smul.addr %s497, 2500
          %s499 = scalar_lea.vmem [#allocation3], %s498
          %s500 = smul.u32 5, %s16
          %s501 = smul.addr %s500, 4
          %s502 = scalar_lea.vmem %s7, %s501
          // Predicated region
          $region71: #{generator_forward.1} parent=69 // pred_check
            _
          $region72: #{generator_forward.1} parent=69 // pred_check_branch
            %504 = sbr.rel (0) target = $region74
          $region73: #{generator_forward.1} parent=69 // pred_region
            // Predicated region
            $region75: #{generator_forward.1} parent=73 // pred_check
              _
            $region76: #{generator_forward.1} parent=73 // pred_check_branch
              %506 = sbr.rel (0) target = $region78
            $region77: #{generator_forward.1} parent=73 // pred_region
              %s507 = scalar_lea.vmem %s502, 16
              %s508 = scalar_lea.vmem %s499, 16 [#allocation3]
              loop: start=0, step=1, limit=1
              $region79: #{generator_forward.1} parent=77 // loop_pre_header
                _
              $region80: #{generator_forward.1} parent=77 // loop_header
                %s510 = sphi 0, %s514
                %p511 = scmp.ge.s32.totalorder %s510, 1
                %s515 = sphi %s502, %s502
                %s516 = sphi %s499, %s499
              $region81: #{generator_forward.1} parent=77 // loop_header_branch
                %513 = sbr.rel (%p511) target = $region85
              $region82: #{generator_forward.1} parent=77 // loop_body
                %v517 = vld [vmem:[%s515] sm:$0xff]
                %518 = vst [vmem:[%s516] sm:$0xff] %v517
                %v519 = vld [vmem:[%s515 + $0x8] sm:$0xff]
                %520 = vst [vmem:[%s516 + $0x8] sm:$0xff] %v519
                %v521 = vld [vmem:[%s515 + $0x28] sm:$0xff]
                %522 = vst [vmem:[%s516 + $0x14] sm:$0xff] %v521
                %v523 = vld [vmem:[%s515 + $0x30] sm:$0xff]
                %524 = vst [vmem:[%s516 + $0x1c] sm:$0xff] %v523
                %v525 = vld [vmem:[%s515 + $0x50] sm:$0xff]
                %526 = vst [vmem:[%s516 + $0x28] sm:$0xff] %v525
                %v527 = vld [vmem:[%s515 + $0x58] sm:$0xff]
                %528 = vst [vmem:[%s516 + $0x30] sm:$0xff] %v527
                %v529 = vld [vmem:[%s515 + $0x78] sm:$0xff]
                %530 = vst [vmem:[%s516 + $0x3c] sm:$0xff] %v529
                %v531 = vld [vmem:[%s515 + $0x80] sm:$0xff]
                %532 = vst [vmem:[%s516 + $0x44] sm:$0xff] %v531
                %v533 = vld [vmem:[%s515 + $0xa0] sm:$0xff]
                %534 = vst [vmem:[%s516 + $0x50] sm:$0xff] %v533
                %v535 = vld [vmem:[%s515 + $0xa8] sm:$0xff]
                %536 = vst [vmem:[%s516 + $0x58] sm:$0xff] %v535
                %v537 = vld [vmem:[%s515 + $0xc8] sm:$0xff]
                %538 = vst [vmem:[%s516 + $0x64] sm:$0xff] %v537
                %v539 = vld [vmem:[%s515 + $0xd0] sm:$0xff]
                %540 = vst [vmem:[%s516 + $0x6c] sm:$0xff] %v539
                %v541 = vld [vmem:[%s515 + $0xf0] sm:$0xff]
                %542 = vst [vmem:[%s516 + $0x78] sm:$0xff] %v541
                %v543 = vld [vmem:[%s515 + $0xf8] sm:$0xff]
                %544 = vst [vmem:[%s516 + $0x80] sm:$0xff] %v543
                %v545 = vld [vmem:[%s515 + $0x118] sm:$0xff]
                %546 = vst [vmem:[%s516 + $0x8c] sm:$0xff] %v545
                %v547 = vld [vmem:[%s515 + $0x120] sm:$0xff]
                %548 = vst [vmem:[%s516 + $0x94] sm:$0xff] %v547
                %v549 = vld [vmem:[%s515 + $0x140] sm:$0xff]
                %550 = vst [vmem:[%s516 + $0xa0] sm:$0xff] %v549
                %v551 = vld [vmem:[%s515 + $0x148] sm:$0xff]
                %552 = vst [vmem:[%s516 + $0xa8] sm:$0xff] %v551
                %v553 = vld [vmem:[%s515 + $0x168] sm:$0xff]
                %554 = vst [vmem:[%s516 + $0xb4] sm:$0xff] %v553
                %v555 = vld [vmem:[%s515 + $0x170] sm:$0xff]
                %556 = vst [vmem:[%s516 + $0xbc] sm:$0xff] %v555
                %v557 = vld [vmem:[%s515 + $0x190] sm:$0xff]
                %558 = vst [vmem:[%s516 + $0xc8] sm:$0xff] %v557
                %v559 = vld [vmem:[%s515 + $0x198] sm:$0xff]
                %560 = vst [vmem:[%s516 + $0xd0] sm:$0xff] %v559
                %v561 = vld [vmem:[%s515 + $0x1b8] sm:$0xff]
                %562 = vst [vmem:[%s516 + $0xdc] sm:$0xff] %v561
                %v563 = vld [vmem:[%s515 + $0x1c0] sm:$0xff]
                %564 = vst [vmem:[%s516 + $0xe4] sm:$0xff] %v563
                %v565 = vld [vmem:[%s515 + $0x1e0] sm:$0xff]
                %566 = vst [vmem:[%s516 + $0xf0] sm:$0xff] %v565
                %v567 = vld [vmem:[%s515 + $0x1e8] sm:$0xff]
                %568 = vst [vmem:[%s516 + $0xf8] sm:$0xff] %v567
                %v569 = vld [vmem:[%s515 + $0x208] sm:$0xff]
                %570 = vst [vmem:[%s516 + $0x104] sm:$0xff] %v569
                %v571 = vld [vmem:[%s515 + $0x210] sm:$0xff]
                %572 = vst [vmem:[%s516 + $0x10c] sm:$0xff] %v571
                %v573 = vld [vmem:[%s515 + $0x230] sm:$0xff]
                %574 = vst [vmem:[%s516 + $0x118] sm:$0xff] %v573
                %v575 = vld [vmem:[%s515 + $0x238] sm:$0xff]
                %576 = vst [vmem:[%s516 + $0x120] sm:$0xff] %v575
                %v577 = vld [vmem:[%s515 + $0x258] sm:$0xff]
                %578 = vst [vmem:[%s516 + $0x12c] sm:$0xff] %v577
                %v579 = vld [vmem:[%s515 + $0x260] sm:$0xff]
                %580 = vst [vmem:[%s516 + $0x134] sm:$0xff] %v579
                %v581 = vld [vmem:[%s515 + $0x280] sm:$0xff]
                %582 = vst [vmem:[%s516 + $0x140] sm:$0xff] %v581
                %v583 = vld [vmem:[%s515 + $0x288] sm:$0xff]
                %584 = vst [vmem:[%s516 + $0x148] sm:$0xff] %v583
                %v585 = vld [vmem:[%s515 + $0x2a8] sm:$0xff]
                %586 = vst [vmem:[%s516 + $0x154] sm:$0xff] %v585
                %v587 = vld [vmem:[%s515 + $0x2b0] sm:$0xff]
                %588 = vst [vmem:[%s516 + $0x15c] sm:$0xff] %v587
                %v589 = vld [vmem:[%s515 + $0x2d0] sm:$0xff]
                %590 = vst [vmem:[%s516 + $0x168] sm:$0xff] %v589
                %v591 = vld [vmem:[%s515 + $0x2d8] sm:$0xff]
                %592 = vst [vmem:[%s516 + $0x170] sm:$0xff] %v591
                %v593 = vld [vmem:[%s515 + $0x2f8] sm:$0xff]
                %594 = vst [vmem:[%s516 + $0x17c] sm:$0xff] %v593
                %v595 = vld [vmem:[%s515 + $0x300] sm:$0xff]
                %596 = vst [vmem:[%s516 + $0x184] sm:$0xff] %v595
                %v597 = vld [vmem:[%s515 + $0x320] sm:$0xff]
                %598 = vst [vmem:[%s516 + $0x190] sm:$0xff] %v597
                %v599 = vld [vmem:[%s515 + $0x328] sm:$0xff]
                %600 = vst [vmem:[%s516 + $0x198] sm:$0xff] %v599
                %v601 = vld [vmem:[%s515 + $0x348] sm:$0xff]
                %602 = vst [vmem:[%s516 + $0x1a4] sm:$0xff] %v601
                %v603 = vld [vmem:[%s515 + $0x350] sm:$0xff]
                %604 = vst [vmem:[%s516 + $0x1ac] sm:$0xff] %v603
                %v605 = vld [vmem:[%s515 + $0x370] sm:$0xff]
                %606 = vst [vmem:[%s516 + $0x1b8] sm:$0xff] %v605
                %v607 = vld [vmem:[%s515 + $0x378] sm:$0xff]
                %608 = vst [vmem:[%s516 + $0x1c0] sm:$0xff] %v607
                %v609 = vld [vmem:[%s515 + $0x398] sm:$0xff]
                %610 = vst [vmem:[%s516 + $0x1cc] sm:$0xff] %v609
                %v611 = vld [vmem:[%s515 + $0x3a0] sm:$0xff]
                %612 = vst [vmem:[%s516 + $0x1d4] sm:$0xff] %v611
                %v613 = vld [vmem:[%s515 + $0x3c0] sm:$0xff]
                %614 = vst [vmem:[%s516 + $0x1e0] sm:$0xff] %v613
                %v615 = vld [vmem:[%s515 + $0x3c8] sm:$0xff]
                %616 = vst [vmem:[%s516 + $0x1e8] sm:$0xff] %v615
                %v617 = vld [vmem:[%s515 + $0x3e8] sm:$0xff]
                %618 = vst [vmem:[%s516 + $0x1f4] sm:$0xff] %v617
                %v619 = vld [vmem:[%s515 + $0x3f0] sm:$0xff]
                %620 = vst [vmem:[%s516 + $0x1fc] sm:$0xff] %v619
                %v621 = vld [vmem:[%s515 + $0x410] sm:$0xff]
                %622 = vst [vmem:[%s516 + $0x208] sm:$0xff] %v621
                %v623 = vld [vmem:[%s515 + $0x418] sm:$0xff]
                %624 = vst [vmem:[%s516 + $0x210] sm:$0xff] %v623
                %v625 = vld [vmem:[%s515 + $0x438] sm:$0xff]
                %626 = vst [vmem:[%s516 + $0x21c] sm:$0xff] %v625
                %v627 = vld [vmem:[%s515 + $0x440] sm:$0xff]
                %628 = vst [vmem:[%s516 + $0x224] sm:$0xff] %v627
                %v629 = vld [vmem:[%s515 + $0x460] sm:$0xff]
                %630 = vst [vmem:[%s516 + $0x230] sm:$0xff] %v629
                %v631 = vld [vmem:[%s515 + $0x468] sm:$0xff]
                %632 = vst [vmem:[%s516 + $0x238] sm:$0xff] %v631
                %v633 = vld [vmem:[%s515 + $0x488] sm:$0xff]
                %634 = vst [vmem:[%s516 + $0x244] sm:$0xff] %v633
                %v635 = vld [vmem:[%s515 + $0x490] sm:$0xff]
                %636 = vst [vmem:[%s516 + $0x24c] sm:$0xff] %v635
                %v637 = vld [vmem:[%s515 + $0x4b0] sm:$0xff]
                %638 = vst [vmem:[%s516 + $0x258] sm:$0xff] %v637
                %v639 = vld [vmem:[%s515 + $0x4b8] sm:$0xff]
                %640 = vst [vmem:[%s516 + $0x260] sm:$0xff] %v639
                %v641 = vld [vmem:[%s515 + $0x4d8] sm:$0xff]
                %642 = vst [vmem:[%s516 + $0x26c] sm:$0xff] %v641
                %v643 = vld [vmem:[%s515 + $0x4e0] sm:$0xff]
                %644 = vst [vmem:[%s516 + $0x274] sm:$0xff] %v643
                %v645 = vld [vmem:[%s515 + $0x500] sm:$0xff]
                %646 = vst [vmem:[%s516 + $0x280] sm:$0xff] %v645
                %v647 = vld [vmem:[%s515 + $0x508] sm:$0xff]
                %648 = vst [vmem:[%s516 + $0x288] sm:$0xff] %v647
                %v649 = vld [vmem:[%s515 + $0x528] sm:$0xff]
                %650 = vst [vmem:[%s516 + $0x294] sm:$0xff] %v649
                %v651 = vld [vmem:[%s515 + $0x530] sm:$0xff]
                %652 = vst [vmem:[%s516 + $0x29c] sm:$0xff] %v651
                %v653 = vld [vmem:[%s515 + $0x550] sm:$0xff]
                %654 = vst [vmem:[%s516 + $0x2a8] sm:$0xff] %v653
                %v655 = vld [vmem:[%s515 + $0x558] sm:$0xff]
                %656 = vst [vmem:[%s516 + $0x2b0] sm:$0xff] %v655
                %v657 = vld [vmem:[%s515 + $0x578] sm:$0xff]
                %658 = vst [vmem:[%s516 + $0x2bc] sm:$0xff] %v657
                %v659 = vld [vmem:[%s515 + $0x580] sm:$0xff]
                %660 = vst [vmem:[%s516 + $0x2c4] sm:$0xff] %v659
                %v661 = vld [vmem:[%s515 + $0x5a0] sm:$0xff]
                %662 = vst [vmem:[%s516 + $0x2d0] sm:$0xff] %v661
                %v663 = vld [vmem:[%s515 + $0x5a8] sm:$0xff]
                %664 = vst [vmem:[%s516 + $0x2d8] sm:$0xff] %v663
                %v665 = vld [vmem:[%s515 + $0x5c8] sm:$0xff]
                %666 = vst [vmem:[%s516 + $0x2e4] sm:$0xff] %v665
                %v667 = vld [vmem:[%s515 + $0x5d0] sm:$0xff]
                %668 = vst [vmem:[%s516 + $0x2ec] sm:$0xff] %v667
                %v669 = vld [vmem:[%s515 + $0x5f0] sm:$0xff]
                %670 = vst [vmem:[%s516 + $0x2f8] sm:$0xff] %v669
                %v671 = vld [vmem:[%s515 + $0x5f8] sm:$0xff]
                %672 = vst [vmem:[%s516 + $0x300] sm:$0xff] %v671
                %v673 = vld [vmem:[%s515 + $0x618] sm:$0xff]
                %674 = vst [vmem:[%s516 + $0x30c] sm:$0xff] %v673
                %v675 = vld [vmem:[%s515 + $0x620] sm:$0xff]
                %676 = vst [vmem:[%s516 + $0x314] sm:$0xff] %v675
                %v677 = vld [vmem:[%s515 + $0x640] sm:$0xff]
                %678 = vst [vmem:[%s516 + $0x320] sm:$0xff] %v677
                %v679 = vld [vmem:[%s515 + $0x648] sm:$0xff]
                %680 = vst [vmem:[%s516 + $0x328] sm:$0xff] %v679
                %v681 = vld [vmem:[%s515 + $0x668] sm:$0xff]
                %682 = vst [vmem:[%s516 + $0x334] sm:$0xff] %v681
                %v683 = vld [vmem:[%s515 + $0x670] sm:$0xff]
                %684 = vst [vmem:[%s516 + $0x33c] sm:$0xff] %v683
                %v685 = vld [vmem:[%s515 + $0x690] sm:$0xff]
                %686 = vst [vmem:[%s516 + $0x348] sm:$0xff] %v685
                %v687 = vld [vmem:[%s515 + $0x698] sm:$0xff]
                %688 = vst [vmem:[%s516 + $0x350] sm:$0xff] %v687
                %v689 = vld [vmem:[%s515 + $0x6b8] sm:$0xff]
                %690 = vst [vmem:[%s516 + $0x35c] sm:$0xff] %v689
                %v691 = vld [vmem:[%s515 + $0x6c0] sm:$0xff]
                %692 = vst [vmem:[%s516 + $0x364] sm:$0xff] %v691
                %v693 = vld [vmem:[%s515 + $0x6e0] sm:$0xff]
                %694 = vst [vmem:[%s516 + $0x370] sm:$0xff] %v693
                %v695 = vld [vmem:[%s515 + $0x6e8] sm:$0xff]
                %696 = vst [vmem:[%s516 + $0x378] sm:$0xff] %v695
                %v697 = vld [vmem:[%s515 + $0x708] sm:$0xff]
                %698 = vst [vmem:[%s516 + $0x384] sm:$0xff] %v697
                %v699 = vld [vmem:[%s515 + $0x710] sm:$0xff]
                %700 = vst [vmem:[%s516 + $0x38c] sm:$0xff] %v699
                %v701 = vld [vmem:[%s515 + $0x730] sm:$0xff]
                %702 = vst [vmem:[%s516 + $0x398] sm:$0xff] %v701
                %v703 = vld [vmem:[%s515 + $0x738] sm:$0xff]
                %704 = vst [vmem:[%s516 + $0x3a0] sm:$0xff] %v703
                %v705 = vld [vmem:[%s515 + $0x758] sm:$0xff]
                %706 = vst [vmem:[%s516 + $0x3ac] sm:$0xff] %v705
                %v707 = vld [vmem:[%s515 + $0x760] sm:$0xff]
                %708 = vst [vmem:[%s516 + $0x3b4] sm:$0xff] %v707
                %v709 = vld [vmem:[%s515 + $0x780] sm:$0xff]
                %710 = vst [vmem:[%s516 + $0x3c0] sm:$0xff] %v709
                %v711 = vld [vmem:[%s515 + $0x788] sm:$0xff]
                %712 = vst [vmem:[%s516 + $0x3c8] sm:$0xff] %v711
                %v713 = vld [vmem:[%s515 + $0x7a8] sm:$0xff]
                %714 = vst [vmem:[%s516 + $0x3d4] sm:$0xff] %v713
                %v715 = vld [vmem:[%s515 + $0x7b0] sm:$0xff]
                %716 = vst [vmem:[%s516 + $0x3dc] sm:$0xff] %v715
                %v717 = vld [vmem:[%s515 + $0x7d0] sm:$0xff]
                %718 = vst [vmem:[%s516 + $0x3e8] sm:$0xff] %v717
                %v719 = vld [vmem:[%s515 + $0x7d8] sm:$0xff]
                %720 = vst [vmem:[%s516 + $0x3f0] sm:$0xff] %v719
                %v721 = vld [vmem:[%s515 + $0x7f8] sm:$0xff]
                %722 = vst [vmem:[%s516 + $0x3fc] sm:$0xff] %v721
                %v723 = vld [vmem:[%s515 + $0x800] sm:$0xff]
                %724 = vst [vmem:[%s516 + $0x404] sm:$0xff] %v723
                %v725 = vld [vmem:[%s515 + $0x820] sm:$0xff]
                %726 = vst [vmem:[%s516 + $0x410] sm:$0xff] %v725
                %v727 = vld [vmem:[%s515 + $0x828] sm:$0xff]
                %728 = vst [vmem:[%s516 + $0x418] sm:$0xff] %v727
                %v729 = vld [vmem:[%s515 + $0x848] sm:$0xff]
                %730 = vst [vmem:[%s516 + $0x424] sm:$0xff] %v729
                %v731 = vld [vmem:[%s515 + $0x850] sm:$0xff]
                %732 = vst [vmem:[%s516 + $0x42c] sm:$0xff] %v731
                %v733 = vld [vmem:[%s515 + $0x870] sm:$0xff]
                %734 = vst [vmem:[%s516 + $0x438] sm:$0xff] %v733
                %v735 = vld [vmem:[%s515 + $0x878] sm:$0xff]
                %736 = vst [vmem:[%s516 + $0x440] sm:$0xff] %v735
                %v737 = vld [vmem:[%s515 + $0x898] sm:$0xff]
                %738 = vst [vmem:[%s516 + $0x44c] sm:$0xff] %v737
                %v739 = vld [vmem:[%s515 + $0x8a0] sm:$0xff]
                %740 = vst [vmem:[%s516 + $0x454] sm:$0xff] %v739
                %v741 = vld [vmem:[%s515 + $0x8c0] sm:$0xff]
                %742 = vst [vmem:[%s516 + $0x460] sm:$0xff] %v741
                %v743 = vld [vmem:[%s515 + $0x8c8] sm:$0xff]
                %744 = vst [vmem:[%s516 + $0x468] sm:$0xff] %v743
                %v745 = vld [vmem:[%s515 + $0x8e8] sm:$0xff]
                %746 = vst [vmem:[%s516 + $0x474] sm:$0xff] %v745
                %v747 = vld [vmem:[%s515 + $0x8f0] sm:$0xff]
                %748 = vst [vmem:[%s516 + $0x47c] sm:$0xff] %v747
                %v749 = vld [vmem:[%s515 + $0x910] sm:$0xff]
                %750 = vst [vmem:[%s516 + $0x488] sm:$0xff] %v749
                %v751 = vld [vmem:[%s515 + $0x918] sm:$0xff]
                %752 = vst [vmem:[%s516 + $0x490] sm:$0xff] %v751
                %v753 = vld [vmem:[%s515 + $0x938] sm:$0xff]
                %754 = vst [vmem:[%s516 + $0x49c] sm:$0xff] %v753
                %v755 = vld [vmem:[%s515 + $0x940] sm:$0xff]
                %756 = vst [vmem:[%s516 + $0x4a4] sm:$0xff] %v755
                %v757 = vld [vmem:[%s515 + $0x960] sm:$0xff]
                %758 = vst [vmem:[%s516 + $0x4b0] sm:$0xff] %v757
                %v759 = vld [vmem:[%s515 + $0x968] sm:$0xff]
                %760 = vst [vmem:[%s516 + $0x4b8] sm:$0xff] %v759
                %v761 = vld [vmem:[%s515 + $0x988] sm:$0xff]
                %762 = vst [vmem:[%s516 + $0x4c4] sm:$0xff] %v761
                %v763 = vld [vmem:[%s515 + $0x990] sm:$0xff]
                %764 = vst [vmem:[%s516 + $0x4cc] sm:$0xff] %v763
                %v765 = vld [vmem:[%s515 + $0x9b0] sm:$0xff]
                %766 = vst [vmem:[%s516 + $0x4d8] sm:$0xff] %v765
                %v767 = vld [vmem:[%s515 + $0x9b8] sm:$0xff]
                %768 = vst [vmem:[%s516 + $0x4e0] sm:$0xff] %v767
                %v769 = vld [vmem:[%s515 + $0x9d8] sm:$0xff]
                %770 = vst [vmem:[%s516 + $0x4ec] sm:$0xff] %v769
                %v771 = vld [vmem:[%s515 + $0x9e0] sm:$0xff]
                %772 = vst [vmem:[%s516 + $0x4f4] sm:$0xff] %v771
                %v773 = vld [vmem:[%s515 + $0xa00] sm:$0xff]
                %774 = vst [vmem:[%s516 + $0x500] sm:$0xff] %v773
                %v775 = vld [vmem:[%s515 + $0xa08] sm:$0xff]
                %776 = vst [vmem:[%s516 + $0x508] sm:$0xff] %v775
                %v777 = vld [vmem:[%s515 + $0xa28] sm:$0xff]
                %778 = vst [vmem:[%s516 + $0x514] sm:$0xff] %v777
                %v779 = vld [vmem:[%s515 + $0xa30] sm:$0xff]
                %780 = vst [vmem:[%s516 + $0x51c] sm:$0xff] %v779
                %v781 = vld [vmem:[%s515 + $0xa50] sm:$0xff]
                %782 = vst [vmem:[%s516 + $0x528] sm:$0xff] %v781
                %v783 = vld [vmem:[%s515 + $0xa58] sm:$0xff]
                %784 = vst [vmem:[%s516 + $0x530] sm:$0xff] %v783
                %v785 = vld [vmem:[%s515 + $0xa78] sm:$0xff]
                %786 = vst [vmem:[%s516 + $0x53c] sm:$0xff] %v785
                %v787 = vld [vmem:[%s515 + $0xa80] sm:$0xff]
                %788 = vst [vmem:[%s516 + $0x544] sm:$0xff] %v787
                %v789 = vld [vmem:[%s515 + $0xaa0] sm:$0xff]
                %790 = vst [vmem:[%s516 + $0x550] sm:$0xff] %v789
                %v791 = vld [vmem:[%s515 + $0xaa8] sm:$0xff]
                %792 = vst [vmem:[%s516 + $0x558] sm:$0xff] %v791
                %v793 = vld [vmem:[%s515 + $0xac8] sm:$0xff]
                %794 = vst [vmem:[%s516 + $0x564] sm:$0xff] %v793
                %v795 = vld [vmem:[%s515 + $0xad0] sm:$0xff]
                %796 = vst [vmem:[%s516 + $0x56c] sm:$0xff] %v795
                %v797 = vld [vmem:[%s515 + $0xaf0] sm:$0xff]
                %798 = vst [vmem:[%s516 + $0x578] sm:$0xff] %v797
                %v799 = vld [vmem:[%s515 + $0xaf8] sm:$0xff]
                %800 = vst [vmem:[%s516 + $0x580] sm:$0xff] %v799
                %v801 = vld [vmem:[%s515 + $0xb18] sm:$0xff]
                %802 = vst [vmem:[%s516 + $0x58c] sm:$0xff] %v801
                %v803 = vld [vmem:[%s515 + $0xb20] sm:$0xff]
                %804 = vst [vmem:[%s516 + $0x594] sm:$0xff] %v803
                %v805 = vld [vmem:[%s515 + $0xb40] sm:$0xff]
                %806 = vst [vmem:[%s516 + $0x5a0] sm:$0xff] %v805
                %v807 = vld [vmem:[%s515 + $0xb48] sm:$0xff]
                %808 = vst [vmem:[%s516 + $0x5a8] sm:$0xff] %v807
                %v809 = vld [vmem:[%s515 + $0xb68] sm:$0xff]
                %810 = vst [vmem:[%s516 + $0x5b4] sm:$0xff] %v809
                %v811 = vld [vmem:[%s515 + $0xb70] sm:$0xff]
                %812 = vst [vmem:[%s516 + $0x5bc] sm:$0xff] %v811
                %v813 = vld [vmem:[%s515 + $0xb90] sm:$0xff]
                %814 = vst [vmem:[%s516 + $0x5c8] sm:$0xff] %v813
                %v815 = vld [vmem:[%s515 + $0xb98] sm:$0xff]
                %816 = vst [vmem:[%s516 + $0x5d0] sm:$0xff] %v815
                %v817 = vld [vmem:[%s515 + $0xbb8] sm:$0xff]
                %818 = vst [vmem:[%s516 + $0x5dc] sm:$0xff] %v817
                %v819 = vld [vmem:[%s515 + $0xbc0] sm:$0xff]
                %820 = vst [vmem:[%s516 + $0x5e4] sm:$0xff] %v819
                %v821 = vld [vmem:[%s515 + $0xbe0] sm:$0xff]
                %822 = vst [vmem:[%s516 + $0x5f0] sm:$0xff] %v821
                %v823 = vld [vmem:[%s515 + $0xbe8] sm:$0xff]
                %824 = vst [vmem:[%s516 + $0x5f8] sm:$0xff] %v823
                %v825 = vld [vmem:[%s515 + $0xc08] sm:$0xff]
                %826 = vst [vmem:[%s516 + $0x604] sm:$0xff] %v825
                %v827 = vld [vmem:[%s515 + $0xc10] sm:$0xff]
                %828 = vst [vmem:[%s516 + $0x60c] sm:$0xff] %v827
                %v829 = vld [vmem:[%s515 + $0xc30] sm:$0xff]
                %830 = vst [vmem:[%s516 + $0x618] sm:$0xff] %v829
                %v831 = vld [vmem:[%s515 + $0xc38] sm:$0xff]
                %832 = vst [vmem:[%s516 + $0x620] sm:$0xff] %v831
                %v833 = vld [vmem:[%s515 + $0xc58] sm:$0xff]
                %834 = vst [vmem:[%s516 + $0x62c] sm:$0xff] %v833
                %v835 = vld [vmem:[%s515 + $0xc60] sm:$0xff]
                %836 = vst [vmem:[%s516 + $0x634] sm:$0xff] %v835
                %v837 = vld [vmem:[%s515 + $0xc80] sm:$0xff]
                %838 = vst [vmem:[%s516 + $0x640] sm:$0xff] %v837
                %v839 = vld [vmem:[%s515 + $0xc88] sm:$0xff]
                %840 = vst [vmem:[%s516 + $0x648] sm:$0xff] %v839
                %v841 = vld [vmem:[%s515 + $0xca8] sm:$0xff]
                %842 = vst [vmem:[%s516 + $0x654] sm:$0xff] %v841
                %v843 = vld [vmem:[%s515 + $0xcb0] sm:$0xff]
                %844 = vst [vmem:[%s516 + $0x65c] sm:$0xff] %v843
                %v845 = vld [vmem:[%s515 + $0xcd0] sm:$0xff]
                %846 = vst [vmem:[%s516 + $0x668] sm:$0xff] %v845
                %v847 = vld [vmem:[%s515 + $0xcd8] sm:$0xff]
                %848 = vst [vmem:[%s516 + $0x670] sm:$0xff] %v847
                %v849 = vld [vmem:[%s515 + $0xcf8] sm:$0xff]
                %850 = vst [vmem:[%s516 + $0x67c] sm:$0xff] %v849
                %v851 = vld [vmem:[%s515 + $0xd00] sm:$0xff]
                %852 = vst [vmem:[%s516 + $0x684] sm:$0xff] %v851
                %v853 = vld [vmem:[%s515 + $0xd20] sm:$0xff]
                %854 = vst [vmem:[%s516 + $0x690] sm:$0xff] %v853
                %v855 = vld [vmem:[%s515 + $0xd28] sm:$0xff]
                %856 = vst [vmem:[%s516 + $0x698] sm:$0xff] %v855
                %v857 = vld [vmem:[%s515 + $0xd48] sm:$0xff]
                %858 = vst [vmem:[%s516 + $0x6a4] sm:$0xff] %v857
                %v859 = vld [vmem:[%s515 + $0xd50] sm:$0xff]
                %860 = vst [vmem:[%s516 + $0x6ac] sm:$0xff] %v859
                %v861 = vld [vmem:[%s515 + $0xd70] sm:$0xff]
                %862 = vst [vmem:[%s516 + $0x6b8] sm:$0xff] %v861
                %v863 = vld [vmem:[%s515 + $0xd78] sm:$0xff]
                %864 = vst [vmem:[%s516 + $0x6c0] sm:$0xff] %v863
                %v865 = vld [vmem:[%s515 + $0xd98] sm:$0xff]
                %866 = vst [vmem:[%s516 + $0x6cc] sm:$0xff] %v865
                %v867 = vld [vmem:[%s515 + $0xda0] sm:$0xff]
                %868 = vst [vmem:[%s516 + $0x6d4] sm:$0xff] %v867
                %v869 = vld [vmem:[%s515 + $0xdc0] sm:$0xff]
                %870 = vst [vmem:[%s516 + $0x6e0] sm:$0xff] %v869
                %v871 = vld [vmem:[%s515 + $0xdc8] sm:$0xff]
                %872 = vst [vmem:[%s516 + $0x6e8] sm:$0xff] %v871
                %v873 = vld [vmem:[%s515 + $0xde8] sm:$0xff]
                %874 = vst [vmem:[%s516 + $0x6f4] sm:$0xff] %v873
                %v875 = vld [vmem:[%s515 + $0xdf0] sm:$0xff]
                %876 = vst [vmem:[%s516 + $0x6fc] sm:$0xff] %v875
                %v877 = vld [vmem:[%s515 + $0xe10] sm:$0xff]
                %878 = vst [vmem:[%s516 + $0x708] sm:$0xff] %v877
                %v879 = vld [vmem:[%s515 + $0xe18] sm:$0xff]
                %880 = vst [vmem:[%s516 + $0x710] sm:$0xff] %v879
                %v881 = vld [vmem:[%s515 + $0xe38] sm:$0xff]
                %882 = vst [vmem:[%s516 + $0x71c] sm:$0xff] %v881
                %v883 = vld [vmem:[%s515 + $0xe40] sm:$0xff]
                %884 = vst [vmem:[%s516 + $0x724] sm:$0xff] %v883
                %v885 = vld [vmem:[%s515 + $0xe60] sm:$0xff]
                %886 = vst [vmem:[%s516 + $0x730] sm:$0xff] %v885
                %v887 = vld [vmem:[%s515 + $0xe68] sm:$0xff]
                %888 = vst [vmem:[%s516 + $0x738] sm:$0xff] %v887
                %v889 = vld [vmem:[%s515 + $0xe88] sm:$0xff]
                %890 = vst [vmem:[%s516 + $0x744] sm:$0xff] %v889
                %v891 = vld [vmem:[%s515 + $0xe90] sm:$0xff]
                %892 = vst [vmem:[%s516 + $0x74c] sm:$0xff] %v891
                %v893 = vld [vmem:[%s515 + $0xeb0] sm:$0xff]
                %894 = vst [vmem:[%s516 + $0x758] sm:$0xff] %v893
                %v895 = vld [vmem:[%s515 + $0xeb8] sm:$0xff]
                %896 = vst [vmem:[%s516 + $0x760] sm:$0xff] %v895
                %v897 = vld [vmem:[%s515 + $0xed8] sm:$0xff]
                %898 = vst [vmem:[%s516 + $0x76c] sm:$0xff] %v897
                %v899 = vld [vmem:[%s515 + $0xee0] sm:$0xff]
                %900 = vst [vmem:[%s516 + $0x774] sm:$0xff] %v899
                %v901 = vld [vmem:[%s515 + $0xf00] sm:$0xff]
                %902 = vst [vmem:[%s516 + $0x780] sm:$0xff] %v901
                %v903 = vld [vmem:[%s515 + $0xf08] sm:$0xff]
                %904 = vst [vmem:[%s516 + $0x788] sm:$0xff] %v903
                %v905 = vld [vmem:[%s515 + $0xf28] sm:$0xff]
                %906 = vst [vmem:[%s516 + $0x794] sm:$0xff] %v905
                %v907 = vld [vmem:[%s515 + $0xf30] sm:$0xff]
                %908 = vst [vmem:[%s516 + $0x79c] sm:$0xff] %v907
                %v909 = vld [vmem:[%s515 + $0xf50] sm:$0xff]
                %910 = vst [vmem:[%s516 + $0x7a8] sm:$0xff] %v909
                %v911 = vld [vmem:[%s515 + $0xf58] sm:$0xff]
                %912 = vst [vmem:[%s516 + $0x7b0] sm:$0xff] %v911
                %v913 = vld [vmem:[%s515 + $0xf78] sm:$0xff]
                %914 = vst [vmem:[%s516 + $0x7bc] sm:$0xff] %v913
                %v915 = vld [vmem:[%s515 + $0xf80] sm:$0xff]
                %916 = vst [vmem:[%s516 + $0x7c4] sm:$0xff] %v915
                %v917 = vld [vmem:[%s515 + $0xfa0] sm:$0xff]
                %918 = vst [vmem:[%s516 + $0x7d0] sm:$0xff] %v917
                %v919 = vld [vmem:[%s515 + $0xfa8] sm:$0xff]
                %920 = vst [vmem:[%s516 + $0x7d8] sm:$0xff] %v919
                %v921 = vld [vmem:[%s515 + $0xfc8] sm:$0xff]
                %922 = vst [vmem:[%s516 + $0x7e4] sm:$0xff] %v921
                %v923 = vld [vmem:[%s515 + $0xfd0] sm:$0xff]
                %924 = vst [vmem:[%s516 + $0x7ec] sm:$0xff] %v923
                %v925 = vld [vmem:[%s515 + $0xff0] sm:$0xff]
                %926 = vst [vmem:[%s516 + $0x7f8] sm:$0xff] %v925
                %v927 = vld [vmem:[%s515 + $0xff8] sm:$0xff]
                %928 = vst [vmem:[%s516 + $0x800] sm:$0xff] %v927
                %v929 = vld [vmem:[%s515 + $0x1018] sm:$0xff]
                %930 = vst [vmem:[%s516 + $0x80c] sm:$0xff] %v929
                %v931 = vld [vmem:[%s515 + $0x1020] sm:$0xff]
                %932 = vst [vmem:[%s516 + $0x814] sm:$0xff] %v931
                %v933 = vld [vmem:[%s515 + $0x1040] sm:$0xff]
                %934 = vst [vmem:[%s516 + $0x820] sm:$0xff] %v933
                %v935 = vld [vmem:[%s515 + $0x1048] sm:$0xff]
                %936 = vst [vmem:[%s516 + $0x828] sm:$0xff] %v935
                %v937 = vld [vmem:[%s515 + $0x1068] sm:$0xff]
                %938 = vst [vmem:[%s516 + $0x834] sm:$0xff] %v937
                %v939 = vld [vmem:[%s515 + $0x1070] sm:$0xff]
                %940 = vst [vmem:[%s516 + $0x83c] sm:$0xff] %v939
                %v941 = vld [vmem:[%s515 + $0x1090] sm:$0xff]
                %942 = vst [vmem:[%s516 + $0x848] sm:$0xff] %v941
                %v943 = vld [vmem:[%s515 + $0x1098] sm:$0xff]
                %944 = vst [vmem:[%s516 + $0x850] sm:$0xff] %v943
                %v945 = vld [vmem:[%s515 + $0x10b8] sm:$0xff]
                %946 = vst [vmem:[%s516 + $0x85c] sm:$0xff] %v945
                %v947 = vld [vmem:[%s515 + $0x10c0] sm:$0xff]
                %948 = vst [vmem:[%s516 + $0x864] sm:$0xff] %v947
                %v949 = vld [vmem:[%s515 + $0x10e0] sm:$0xff]
                %950 = vst [vmem:[%s516 + $0x870] sm:$0xff] %v949
                %v951 = vld [vmem:[%s515 + $0x10e8] sm:$0xff]
                %952 = vst [vmem:[%s516 + $0x878] sm:$0xff] %v951
                %v953 = vld [vmem:[%s515 + $0x1108] sm:$0xff]
                %954 = vst [vmem:[%s516 + $0x884] sm:$0xff] %v953
                %v955 = vld [vmem:[%s515 + $0x1110] sm:$0xff]
                %956 = vst [vmem:[%s516 + $0x88c] sm:$0xff] %v955
                %v957 = vld [vmem:[%s515 + $0x1130] sm:$0xff]
                %958 = vst [vmem:[%s516 + $0x898] sm:$0xff] %v957
                %v959 = vld [vmem:[%s515 + $0x1138] sm:$0xff]
                %960 = vst [vmem:[%s516 + $0x8a0] sm:$0xff] %v959
                %v961 = vld [vmem:[%s515 + $0x1158] sm:$0xff]
                %962 = vst [vmem:[%s516 + $0x8ac] sm:$0xff] %v961
                %v963 = vld [vmem:[%s515 + $0x1160] sm:$0xff]
                %964 = vst [vmem:[%s516 + $0x8b4] sm:$0xff] %v963
                %v965 = vld [vmem:[%s515 + $0x1180] sm:$0xff]
                %966 = vst [vmem:[%s516 + $0x8c0] sm:$0xff] %v965
                %v967 = vld [vmem:[%s515 + $0x1188] sm:$0xff]
                %968 = vst [vmem:[%s516 + $0x8c8] sm:$0xff] %v967
                %v969 = vld [vmem:[%s515 + $0x11a8] sm:$0xff]
                %970 = vst [vmem:[%s516 + $0x8d4] sm:$0xff] %v969
                %v971 = vld [vmem:[%s515 + $0x11b0] sm:$0xff]
                %972 = vst [vmem:[%s516 + $0x8dc] sm:$0xff] %v971
                %v973 = vld [vmem:[%s515 + $0x11d0] sm:$0xff]
                %974 = vst [vmem:[%s516 + $0x8e8] sm:$0xff] %v973
                %v975 = vld [vmem:[%s515 + $0x11d8] sm:$0xff]
                %976 = vst [vmem:[%s516 + $0x8f0] sm:$0xff] %v975
                %v977 = vld [vmem:[%s515 + $0x11f8] sm:$0xff]
                %978 = vst [vmem:[%s516 + $0x8fc] sm:$0xff] %v977
                %v979 = vld [vmem:[%s515 + $0x1200] sm:$0xff]
                %980 = vst [vmem:[%s516 + $0x904] sm:$0xff] %v979
                %v981 = vld [vmem:[%s515 + $0x1220] sm:$0xff]
                %982 = vst [vmem:[%s516 + $0x910] sm:$0xff] %v981
                %v983 = vld [vmem:[%s515 + $0x1228] sm:$0xff]
                %984 = vst [vmem:[%s516 + $0x918] sm:$0xff] %v983
                %v985 = vld [vmem:[%s515 + $0x1248] sm:$0xff]
                %986 = vst [vmem:[%s516 + $0x924] sm:$0xff] %v985
                %v987 = vld [vmem:[%s515 + $0x1250] sm:$0xff]
                %988 = vst [vmem:[%s516 + $0x92c] sm:$0xff] %v987
                %v989 = vld [vmem:[%s515 + $0x1270] sm:$0xff]
                %990 = vst [vmem:[%s516 + $0x938] sm:$0xff] %v989
                %v991 = vld [vmem:[%s515 + $0x1278] sm:$0xff]
                %992 = vst [vmem:[%s516 + $0x940] sm:$0xff] %v991
                %v993 = vld [vmem:[%s515 + $0x1298] sm:$0xff]
                %994 = vst [vmem:[%s516 + $0x94c] sm:$0xff] %v993
                %v995 = vld [vmem:[%s515 + $0x12a0] sm:$0xff]
                %996 = vst [vmem:[%s516 + $0x954] sm:$0xff] %v995
                %v997 = vld [vmem:[%s515 + $0x12c0] sm:$0xff]
                %998 = vst [vmem:[%s516 + $0x960] sm:$0xff] %v997
                %v999 = vld [vmem:[%s515 + $0x12c8] sm:$0xff]
                %1000 = vst [vmem:[%s516 + $0x968] sm:$0xff] %v999
                %v1001 = vld [vmem:[%s515 + $0x12e8] sm:$0xff]
                %1002 = vst [vmem:[%s516 + $0x974] sm:$0xff] %v1001
                %v1003 = vld [vmem:[%s515 + $0x12f0] sm:$0xff]
                %1004 = vst [vmem:[%s516 + $0x97c] sm:$0xff] %v1003
                %v1005 = vld [vmem:[%s515 + $0x1310] sm:$0xff]
                %1006 = vst [vmem:[%s516 + $0x988] sm:$0xff] %v1005
                %v1007 = vld [vmem:[%s515 + $0x1318] sm:$0xff]
                %1008 = vst [vmem:[%s516 + $0x990] sm:$0xff] %v1007
                %v1009 = vld [vmem:[%s515 + $0x1338] sm:$0xff]
                %1010 = vst [vmem:[%s516 + $0x99c] sm:$0xff] %v1009
                %v1011 = vld [vmem:[%s515 + $0x1340] sm:$0xff]
                %1012 = vst [vmem:[%s516 + $0x9a4] sm:$0xff] %v1011
                %v1013 = vld [vmem:[%s515 + $0x1360] sm:$0xff]
                %1014 = vst [vmem:[%s516 + $0x9b0] sm:$0xff] %v1013
                %v1015 = vld [vmem:[%s515 + $0x1368] sm:$0xff]
                %1016 = vst [vmem:[%s516 + $0x9b8] sm:$0xff] %v1015
              $region83: #{generator_forward.1} parent=77 // loop_footer
                %s514 = sadd.s32 1, %s510
              $region84: #{generator_forward.1} parent=77 // loop_footer_branch
                %509 = sbr.rel target = $region80
              $region85: #{generator_forward.1} parent=77 // loop_exit
                _
              loop: start=0, step=1, limit=1
              $region86: #{generator_forward.1} parent=77 // loop_pre_header
                _
              $region87: #{generator_forward.1} parent=77 // loop_header
                %s1019 = sphi 0, %s1023
                %p1020 = scmp.ge.s32.totalorder %s1019, 1
                %s1024 = sphi %s507, %s507
                %s1025 = sphi %s508, %s508
              $region88: #{generator_forward.1} parent=77 // loop_header_branch
                %1022 = sbr.rel (%p1020) target = $region92
              $region89: #{generator_forward.1} parent=77 // loop_body
                %v1026 = vld [vmem:[%s1024] sm:$0xf]
                %1027 = vst [vmem:[%s1025] sm:$0xf] %v1026
                %v1028 = vld [vmem:[%s1024 + $0x28] sm:$0xf]
                %1029 = vst [vmem:[%s1025 + $0x14] sm:$0xf] %v1028
                %v1030 = vld [vmem:[%s1024 + $0x50] sm:$0xf]
                %1031 = vst [vmem:[%s1025 + $0x28] sm:$0xf] %v1030
                %v1032 = vld [vmem:[%s1024 + $0x78] sm:$0xf]
                %1033 = vst [vmem:[%s1025 + $0x3c] sm:$0xf] %v1032
                %v1034 = vld [vmem:[%s1024 + $0xa0] sm:$0xf]
                %1035 = vst [vmem:[%s1025 + $0x50] sm:$0xf] %v1034
                %v1036 = vld [vmem:[%s1024 + $0xc8] sm:$0xf]
                %1037 = vst [vmem:[%s1025 + $0x64] sm:$0xf] %v1036
                %v1038 = vld [vmem:[%s1024 + $0xf0] sm:$0xf]
                %1039 = vst [vmem:[%s1025 + $0x78] sm:$0xf] %v1038
                %v1040 = vld [vmem:[%s1024 + $0x118] sm:$0xf]
                %1041 = vst [vmem:[%s1025 + $0x8c] sm:$0xf] %v1040
                %v1042 = vld [vmem:[%s1024 + $0x140] sm:$0xf]
                %1043 = vst [vmem:[%s1025 + $0xa0] sm:$0xf] %v1042
                %v1044 = vld [vmem:[%s1024 + $0x168] sm:$0xf]
                %1045 = vst [vmem:[%s1025 + $0xb4] sm:$0xf] %v1044
                %v1046 = vld [vmem:[%s1024 + $0x190] sm:$0xf]
                %1047 = vst [vmem:[%s1025 + $0xc8] sm:$0xf] %v1046
                %v1048 = vld [vmem:[%s1024 + $0x1b8] sm:$0xf]
                %1049 = vst [vmem:[%s1025 + $0xdc] sm:$0xf] %v1048
                %v1050 = vld [vmem:[%s1024 + $0x1e0] sm:$0xf]
                %1051 = vst [vmem:[%s1025 + $0xf0] sm:$0xf] %v1050
                %v1052 = vld [vmem:[%s1024 + $0x208] sm:$0xf]
                %1053 = vst [vmem:[%s1025 + $0x104] sm:$0xf] %v1052
                %v1054 = vld [vmem:[%s1024 + $0x230] sm:$0xf]
                %1055 = vst [vmem:[%s1025 + $0x118] sm:$0xf] %v1054
                %v1056 = vld [vmem:[%s1024 + $0x258] sm:$0xf]
                %1057 = vst [vmem:[%s1025 + $0x12c] sm:$0xf] %v1056
                %v1058 = vld [vmem:[%s1024 + $0x280] sm:$0xf]
                %1059 = vst [vmem:[%s1025 + $0x140] sm:$0xf] %v1058
                %v1060 = vld [vmem:[%s1024 + $0x2a8] sm:$0xf]
                %1061 = vst [vmem:[%s1025 + $0x154] sm:$0xf] %v1060
                %v1062 = vld [vmem:[%s1024 + $0x2d0] sm:$0xf]
                %1063 = vst [vmem:[%s1025 + $0x168] sm:$0xf] %v1062
                %v1064 = vld [vmem:[%s1024 + $0x2f8] sm:$0xf]
                %1065 = vst [vmem:[%s1025 + $0x17c] sm:$0xf] %v1064
                %v1066 = vld [vmem:[%s1024 + $0x320] sm:$0xf]
                %1067 = vst [vmem:[%s1025 + $0x190] sm:$0xf] %v1066
                %v1068 = vld [vmem:[%s1024 + $0x348] sm:$0xf]
                %1069 = vst [vmem:[%s1025 + $0x1a4] sm:$0xf] %v1068
                %v1070 = vld [vmem:[%s1024 + $0x370] sm:$0xf]
                %1071 = vst [vmem:[%s1025 + $0x1b8] sm:$0xf] %v1070
                %v1072 = vld [vmem:[%s1024 + $0x398] sm:$0xf]
                %1073 = vst [vmem:[%s1025 + $0x1cc] sm:$0xf] %v1072
                %v1074 = vld [vmem:[%s1024 + $0x3c0] sm:$0xf]
                %1075 = vst [vmem:[%s1025 + $0x1e0] sm:$0xf] %v1074
                %v1076 = vld [vmem:[%s1024 + $0x3e8] sm:$0xf]
                %1077 = vst [vmem:[%s1025 + $0x1f4] sm:$0xf] %v1076
                %v1078 = vld [vmem:[%s1024 + $0x410] sm:$0xf]
                %1079 = vst [vmem:[%s1025 + $0x208] sm:$0xf] %v1078
                %v1080 = vld [vmem:[%s1024 + $0x438] sm:$0xf]
                %1081 = vst [vmem:[%s1025 + $0x21c] sm:$0xf] %v1080
                %v1082 = vld [vmem:[%s1024 + $0x460] sm:$0xf]
                %1083 = vst [vmem:[%s1025 + $0x230] sm:$0xf] %v1082
                %v1084 = vld [vmem:[%s1024 + $0x488] sm:$0xf]
                %1085 = vst [vmem:[%s1025 + $0x244] sm:$0xf] %v1084
                %v1086 = vld [vmem:[%s1024 + $0x4b0] sm:$0xf]
                %1087 = vst [vmem:[%s1025 + $0x258] sm:$0xf] %v1086
                %v1088 = vld [vmem:[%s1024 + $0x4d8] sm:$0xf]
                %1089 = vst [vmem:[%s1025 + $0x26c] sm:$0xf] %v1088
                %v1090 = vld [vmem:[%s1024 + $0x500] sm:$0xf]
                %1091 = vst [vmem:[%s1025 + $0x280] sm:$0xf] %v1090
                %v1092 = vld [vmem:[%s1024 + $0x528] sm:$0xf]
                %1093 = vst [vmem:[%s1025 + $0x294] sm:$0xf] %v1092
                %v1094 = vld [vmem:[%s1024 + $0x550] sm:$0xf]
                %1095 = vst [vmem:[%s1025 + $0x2a8] sm:$0xf] %v1094
                %v1096 = vld [vmem:[%s1024 + $0x578] sm:$0xf]
                %1097 = vst [vmem:[%s1025 + $0x2bc] sm:$0xf] %v1096
                %v1098 = vld [vmem:[%s1024 + $0x5a0] sm:$0xf]
                %1099 = vst [vmem:[%s1025 + $0x2d0] sm:$0xf] %v1098
                %v1100 = vld [vmem:[%s1024 + $0x5c8] sm:$0xf]
                %1101 = vst [vmem:[%s1025 + $0x2e4] sm:$0xf] %v1100
                %v1102 = vld [vmem:[%s1024 + $0x5f0] sm:$0xf]
                %1103 = vst [vmem:[%s1025 + $0x2f8] sm:$0xf] %v1102
                %v1104 = vld [vmem:[%s1024 + $0x618] sm:$0xf]
                %1105 = vst [vmem:[%s1025 + $0x30c] sm:$0xf] %v1104
                %v1106 = vld [vmem:[%s1024 + $0x640] sm:$0xf]
                %1107 = vst [vmem:[%s1025 + $0x320] sm:$0xf] %v1106
                %v1108 = vld [vmem:[%s1024 + $0x668] sm:$0xf]
                %1109 = vst [vmem:[%s1025 + $0x334] sm:$0xf] %v1108
                %v1110 = vld [vmem:[%s1024 + $0x690] sm:$0xf]
                %1111 = vst [vmem:[%s1025 + $0x348] sm:$0xf] %v1110
                %v1112 = vld [vmem:[%s1024 + $0x6b8] sm:$0xf]
                %1113 = vst [vmem:[%s1025 + $0x35c] sm:$0xf] %v1112
                %v1114 = vld [vmem:[%s1024 + $0x6e0] sm:$0xf]
                %1115 = vst [vmem:[%s1025 + $0x370] sm:$0xf] %v1114
                %v1116 = vld [vmem:[%s1024 + $0x708] sm:$0xf]
                %1117 = vst [vmem:[%s1025 + $0x384] sm:$0xf] %v1116
                %v1118 = vld [vmem:[%s1024 + $0x730] sm:$0xf]
                %1119 = vst [vmem:[%s1025 + $0x398] sm:$0xf] %v1118
                %v1120 = vld [vmem:[%s1024 + $0x758] sm:$0xf]
                %1121 = vst [vmem:[%s1025 + $0x3ac] sm:$0xf] %v1120
                %v1122 = vld [vmem:[%s1024 + $0x780] sm:$0xf]
                %1123 = vst [vmem:[%s1025 + $0x3c0] sm:$0xf] %v1122
                %v1124 = vld [vmem:[%s1024 + $0x7a8] sm:$0xf]
                %1125 = vst [vmem:[%s1025 + $0x3d4] sm:$0xf] %v1124
                %v1126 = vld [vmem:[%s1024 + $0x7d0] sm:$0xf]
                %1127 = vst [vmem:[%s1025 + $0x3e8] sm:$0xf] %v1126
                %v1128 = vld [vmem:[%s1024 + $0x7f8] sm:$0xf]
                %1129 = vst [vmem:[%s1025 + $0x3fc] sm:$0xf] %v1128
                %v1130 = vld [vmem:[%s1024 + $0x820] sm:$0xf]
                %1131 = vst [vmem:[%s1025 + $0x410] sm:$0xf] %v1130
                %v1132 = vld [vmem:[%s1024 + $0x848] sm:$0xf]
                %1133 = vst [vmem:[%s1025 + $0x424] sm:$0xf] %v1132
                %v1134 = vld [vmem:[%s1024 + $0x870] sm:$0xf]
                %1135 = vst [vmem:[%s1025 + $0x438] sm:$0xf] %v1134
                %v1136 = vld [vmem:[%s1024 + $0x898] sm:$0xf]
                %1137 = vst [vmem:[%s1025 + $0x44c] sm:$0xf] %v1136
                %v1138 = vld [vmem:[%s1024 + $0x8c0] sm:$0xf]
                %1139 = vst [vmem:[%s1025 + $0x460] sm:$0xf] %v1138
                %v1140 = vld [vmem:[%s1024 + $0x8e8] sm:$0xf]
                %1141 = vst [vmem:[%s1025 + $0x474] sm:$0xf] %v1140
                %v1142 = vld [vmem:[%s1024 + $0x910] sm:$0xf]
                %1143 = vst [vmem:[%s1025 + $0x488] sm:$0xf] %v1142
                %v1144 = vld [vmem:[%s1024 + $0x938] sm:$0xf]
                %1145 = vst [vmem:[%s1025 + $0x49c] sm:$0xf] %v1144
                %v1146 = vld [vmem:[%s1024 + $0x960] sm:$0xf]
                %1147 = vst [vmem:[%s1025 + $0x4b0] sm:$0xf] %v1146
                %v1148 = vld [vmem:[%s1024 + $0x988] sm:$0xf]
                %1149 = vst [vmem:[%s1025 + $0x4c4] sm:$0xf] %v1148
                %v1150 = vld [vmem:[%s1024 + $0x9b0] sm:$0xf]
                %1151 = vst [vmem:[%s1025 + $0x4d8] sm:$0xf] %v1150
                %v1152 = vld [vmem:[%s1024 + $0x9d8] sm:$0xf]
                %1153 = vst [vmem:[%s1025 + $0x4ec] sm:$0xf] %v1152
                %v1154 = vld [vmem:[%s1024 + $0xa00] sm:$0xf]
                %1155 = vst [vmem:[%s1025 + $0x500] sm:$0xf] %v1154
                %v1156 = vld [vmem:[%s1024 + $0xa28] sm:$0xf]
                %1157 = vst [vmem:[%s1025 + $0x514] sm:$0xf] %v1156
                %v1158 = vld [vmem:[%s1024 + $0xa50] sm:$0xf]
                %1159 = vst [vmem:[%s1025 + $0x528] sm:$0xf] %v1158
                %v1160 = vld [vmem:[%s1024 + $0xa78] sm:$0xf]
                %1161 = vst [vmem:[%s1025 + $0x53c] sm:$0xf] %v1160
                %v1162 = vld [vmem:[%s1024 + $0xaa0] sm:$0xf]
                %1163 = vst [vmem:[%s1025 + $0x550] sm:$0xf] %v1162
                %v1164 = vld [vmem:[%s1024 + $0xac8] sm:$0xf]
                %1165 = vst [vmem:[%s1025 + $0x564] sm:$0xf] %v1164
                %v1166 = vld [vmem:[%s1024 + $0xaf0] sm:$0xf]
                %1167 = vst [vmem:[%s1025 + $0x578] sm:$0xf] %v1166
                %v1168 = vld [vmem:[%s1024 + $0xb18] sm:$0xf]
                %1169 = vst [vmem:[%s1025 + $0x58c] sm:$0xf] %v1168
                %v1170 = vld [vmem:[%s1024 + $0xb40] sm:$0xf]
                %1171 = vst [vmem:[%s1025 + $0x5a0] sm:$0xf] %v1170
                %v1172 = vld [vmem:[%s1024 + $0xb68] sm:$0xf]
                %1173 = vst [vmem:[%s1025 + $0x5b4] sm:$0xf] %v1172
                %v1174 = vld [vmem:[%s1024 + $0xb90] sm:$0xf]
                %1175 = vst [vmem:[%s1025 + $0x5c8] sm:$0xf] %v1174
                %v1176 = vld [vmem:[%s1024 + $0xbb8] sm:$0xf]
                %1177 = vst [vmem:[%s1025 + $0x5dc] sm:$0xf] %v1176
                %v1178 = vld [vmem:[%s1024 + $0xbe0] sm:$0xf]
                %1179 = vst [vmem:[%s1025 + $0x5f0] sm:$0xf] %v1178
                %v1180 = vld [vmem:[%s1024 + $0xc08] sm:$0xf]
                %1181 = vst [vmem:[%s1025 + $0x604] sm:$0xf] %v1180
                %v1182 = vld [vmem:[%s1024 + $0xc30] sm:$0xf]
                %1183 = vst [vmem:[%s1025 + $0x618] sm:$0xf] %v1182
                %v1184 = vld [vmem:[%s1024 + $0xc58] sm:$0xf]
                %1185 = vst [vmem:[%s1025 + $0x62c] sm:$0xf] %v1184
                %v1186 = vld [vmem:[%s1024 + $0xc80] sm:$0xf]
                %1187 = vst [vmem:[%s1025 + $0x640] sm:$0xf] %v1186
                %v1188 = vld [vmem:[%s1024 + $0xca8] sm:$0xf]
                %1189 = vst [vmem:[%s1025 + $0x654] sm:$0xf] %v1188
                %v1190 = vld [vmem:[%s1024 + $0xcd0] sm:$0xf]
                %1191 = vst [vmem:[%s1025 + $0x668] sm:$0xf] %v1190
                %v1192 = vld [vmem:[%s1024 + $0xcf8] sm:$0xf]
                %1193 = vst [vmem:[%s1025 + $0x67c] sm:$0xf] %v1192
                %v1194 = vld [vmem:[%s1024 + $0xd20] sm:$0xf]
                %1195 = vst [vmem:[%s1025 + $0x690] sm:$0xf] %v1194
                %v1196 = vld [vmem:[%s1024 + $0xd48] sm:$0xf]
                %1197 = vst [vmem:[%s1025 + $0x6a4] sm:$0xf] %v1196
                %v1198 = vld [vmem:[%s1024 + $0xd70] sm:$0xf]
                %1199 = vst [vmem:[%s1025 + $0x6b8] sm:$0xf] %v1198
                %v1200 = vld [vmem:[%s1024 + $0xd98] sm:$0xf]
                %1201 = vst [vmem:[%s1025 + $0x6cc] sm:$0xf] %v1200
                %v1202 = vld [vmem:[%s1024 + $0xdc0] sm:$0xf]
                %1203 = vst [vmem:[%s1025 + $0x6e0] sm:$0xf] %v1202
                %v1204 = vld [vmem:[%s1024 + $0xde8] sm:$0xf]
                %1205 = vst [vmem:[%s1025 + $0x6f4] sm:$0xf] %v1204
                %v1206 = vld [vmem:[%s1024 + $0xe10] sm:$0xf]
                %1207 = vst [vmem:[%s1025 + $0x708] sm:$0xf] %v1206
                %v1208 = vld [vmem:[%s1024 + $0xe38] sm:$0xf]
                %1209 = vst [vmem:[%s1025 + $0x71c] sm:$0xf] %v1208
                %v1210 = vld [vmem:[%s1024 + $0xe60] sm:$0xf]
                %1211 = vst [vmem:[%s1025 + $0x730] sm:$0xf] %v1210
                %v1212 = vld [vmem:[%s1024 + $0xe88] sm:$0xf]
                %1213 = vst [vmem:[%s1025 + $0x744] sm:$0xf] %v1212
                %v1214 = vld [vmem:[%s1024 + $0xeb0] sm:$0xf]
                %1215 = vst [vmem:[%s1025 + $0x758] sm:$0xf] %v1214
                %v1216 = vld [vmem:[%s1024 + $0xed8] sm:$0xf]
                %1217 = vst [vmem:[%s1025 + $0x76c] sm:$0xf] %v1216
                %v1218 = vld [vmem:[%s1024 + $0xf00] sm:$0xf]
                %1219 = vst [vmem:[%s1025 + $0x780] sm:$0xf] %v1218
                %v1220 = vld [vmem:[%s1024 + $0xf28] sm:$0xf]
                %1221 = vst [vmem:[%s1025 + $0x794] sm:$0xf] %v1220
                %v1222 = vld [vmem:[%s1024 + $0xf50] sm:$0xf]
                %1223 = vst [vmem:[%s1025 + $0x7a8] sm:$0xf] %v1222
                %v1224 = vld [vmem:[%s1024 + $0xf78] sm:$0xf]
                %1225 = vst [vmem:[%s1025 + $0x7bc] sm:$0xf] %v1224
                %v1226 = vld [vmem:[%s1024 + $0xfa0] sm:$0xf]
                %1227 = vst [vmem:[%s1025 + $0x7d0] sm:$0xf] %v1226
                %v1228 = vld [vmem:[%s1024 + $0xfc8] sm:$0xf]
                %1229 = vst [vmem:[%s1025 + $0x7e4] sm:$0xf] %v1228
                %v1230 = vld [vmem:[%s1024 + $0xff0] sm:$0xf]
                %1231 = vst [vmem:[%s1025 + $0x7f8] sm:$0xf] %v1230
                %v1232 = vld [vmem:[%s1024 + $0x1018] sm:$0xf]
                %1233 = vst [vmem:[%s1025 + $0x80c] sm:$0xf] %v1232
                %v1234 = vld [vmem:[%s1024 + $0x1040] sm:$0xf]
                %1235 = vst [vmem:[%s1025 + $0x820] sm:$0xf] %v1234
                %v1236 = vld [vmem:[%s1024 + $0x1068] sm:$0xf]
                %1237 = vst [vmem:[%s1025 + $0x834] sm:$0xf] %v1236
                %v1238 = vld [vmem:[%s1024 + $0x1090] sm:$0xf]
                %1239 = vst [vmem:[%s1025 + $0x848] sm:$0xf] %v1238
                %v1240 = vld [vmem:[%s1024 + $0x10b8] sm:$0xf]
                %1241 = vst [vmem:[%s1025 + $0x85c] sm:$0xf] %v1240
                %v1242 = vld [vmem:[%s1024 + $0x10e0] sm:$0xf]
                %1243 = vst [vmem:[%s1025 + $0x870] sm:$0xf] %v1242
                %v1244 = vld [vmem:[%s1024 + $0x1108] sm:$0xf]
                %1245 = vst [vmem:[%s1025 + $0x884] sm:$0xf] %v1244
                %v1246 = vld [vmem:[%s1024 + $0x1130] sm:$0xf]
                %1247 = vst [vmem:[%s1025 + $0x898] sm:$0xf] %v1246
                %v1248 = vld [vmem:[%s1024 + $0x1158] sm:$0xf]
                %1249 = vst [vmem:[%s1025 + $0x8ac] sm:$0xf] %v1248
                %v1250 = vld [vmem:[%s1024 + $0x1180] sm:$0xf]
                %1251 = vst [vmem:[%s1025 + $0x8c0] sm:$0xf] %v1250
                %v1252 = vld [vmem:[%s1024 + $0x11a8] sm:$0xf]
                %1253 = vst [vmem:[%s1025 + $0x8d4] sm:$0xf] %v1252
                %v1254 = vld [vmem:[%s1024 + $0x11d0] sm:$0xf]
                %1255 = vst [vmem:[%s1025 + $0x8e8] sm:$0xf] %v1254
                %v1256 = vld [vmem:[%s1024 + $0x11f8] sm:$0xf]
                %1257 = vst [vmem:[%s1025 + $0x8fc] sm:$0xf] %v1256
                %v1258 = vld [vmem:[%s1024 + $0x1220] sm:$0xf]
                %1259 = vst [vmem:[%s1025 + $0x910] sm:$0xf] %v1258
                %v1260 = vld [vmem:[%s1024 + $0x1248] sm:$0xf]
                %1261 = vst [vmem:[%s1025 + $0x924] sm:$0xf] %v1260
                %v1262 = vld [vmem:[%s1024 + $0x1270] sm:$0xf]
                %1263 = vst [vmem:[%s1025 + $0x938] sm:$0xf] %v1262
                %v1264 = vld [vmem:[%s1024 + $0x1298] sm:$0xf]
                %1265 = vst [vmem:[%s1025 + $0x94c] sm:$0xf] %v1264
                %v1266 = vld [vmem:[%s1024 + $0x12c0] sm:$0xf]
                %1267 = vst [vmem:[%s1025 + $0x960] sm:$0xf] %v1266
                %v1268 = vld [vmem:[%s1024 + $0x12e8] sm:$0xf]
                %1269 = vst [vmem:[%s1025 + $0x974] sm:$0xf] %v1268
                %v1270 = vld [vmem:[%s1024 + $0x1310] sm:$0xf]
                %1271 = vst [vmem:[%s1025 + $0x988] sm:$0xf] %v1270
                %v1272 = vld [vmem:[%s1024 + $0x1338] sm:$0xf]
                %1273 = vst [vmem:[%s1025 + $0x99c] sm:$0xf] %v1272
                %v1274 = vld [vmem:[%s1024 + $0x1360] sm:$0xf]
                %1275 = vst [vmem:[%s1025 + $0x9b0] sm:$0xf] %v1274
              $region90: #{generator_forward.1} parent=77 // loop_footer
                %s1023 = sadd.s32 1, %s1019
              $region91: #{generator_forward.1} parent=77 // loop_footer_branch
                %1018 = sbr.rel target = $region87
              $region92: #{generator_forward.1} parent=77 // loop_exit
                _
            $region78: #{generator_forward.1} parent=73 // pred_fallthru
              _
          $region74: #{generator_forward.1} parent=69 // pred_fallthru
            _
          %1276 = vnop
        $region70: #{generator_forward.1} parent=39 // pred_fallthru
          _
        // Predicated region
        $region93: #{generator_forward.1} parent=39 // pred_check
          %p1277 = pneg %p214
        $region94: #{generator_forward.1} parent=39 // pred_check_branch
          %1279 = sbr.rel (%p1277) target = $region96
        $region95: #{generator_forward.1} parent=39 // pred_region
          %s1280 = smul.u32 5, %s16
          %p1281 = scmp.lt.s32.totalorder %s1280, 9
          %s1282 = scalar_select %p1281, %s1280, 9
          %s1283 = scalar_lea.vmem %s8, %s1282
          %s1284 = smul.u32 5, %s16
        $region96: #{generator_forward.1} parent=39 // pred_fallthru
          _
        // Predicated region
        $region97: #{generator_forward.1} parent=39 // pred_check
          %p1285 = pneg %p240
        $region98: #{generator_forward.1} parent=39 // pred_check_branch
          %1287 = sbr.rel (%p1285) target = $region100
        $region99: #{generator_forward.1} parent=39 // pred_region
          %s1288 = smul.u32 80, %s16
          %p1289 = scmp.lt.s32.totalorder %s1288, 159
          %s1290 = scalar_select %p1289, %s1288, 159
          %s1291 = smul.addr %s1290, 7
          %s1292 = smul.addr %s1291, 4
          %s1293 = scalar_lea.vmem %s9, %s1292
          %s1294 = smul.u32 80, %s16
        $region100: #{generator_forward.1} parent=39 // pred_fallthru
          _
      $region40: #{generator_forward.1} parent=5 // pred_fallthru
        _
      %p1295 = scmp.le.s32.totalorder 1, %s16
      %p1296 = scmp.lt.s32.totalorder %s16, 3
      %p1297 = pnand %p1295, %p1296
      %p1298 = pneg %p1297
      // Predicated region
      $region101: #{generator_forward.1} parent=5 // pred_check
        _
      $region102: #{generator_forward.1} parent=5 // pred_check_branch
        %1300 = sbr.rel (%p1297) target = $region104
      $region103: #{generator_forward.1} parent=5 // pred_region
        %s1301 = ssub.s32 %s16, 1
        %s1302 = sand.u32 %s155, 1
        %s1303 = sand.u32 %s155, 1
        %s1304 = smul.addr %s1303, 500
        %s1305 = scalar_lea.vmem [#allocation2], %s1304
        // Predicated region
        $region105: #{generator_forward.1} parent=103 // pred_check
          %p1306 = pneg %p168
        $region106: #{generator_forward.1} parent=103 // pred_check_branch
          %1308 = sbr.rel (%p1306) target = $region108
        $region107: #{generator_forward.1} parent=103 // pred_region
          _
        $region108: #{generator_forward.1} parent=103 // pred_fallthru
          _
        %s1309 = sand.u32 %s181, 1
        %s1310 = sand.u32 %s181, 1
        %s1311 = smul.addr %s1310, 2500
        %s1312 = scalar_lea.vmem [#allocation3], %s1311
        // Predicated region
        $region109: #{generator_forward.1} parent=103 // pred_check
          %p1313 = pneg %p194
        $region110: #{generator_forward.1} parent=103 // pred_check_branch
          %1315 = sbr.rel (%p1313) target = $region112
        $region111: #{generator_forward.1} parent=103 // pred_region
          _
        $region112: #{generator_forward.1} parent=103 // pred_fallthru
          _
        %p1316 = pneg %p37
        %p1317 = pneg %p34
        %p1318 = pneg %p58
        %p1319 = pneg %p55
        %p1320 = pneg %p79
        %p1321 = pneg %p76
        %p1322 = pneg %p100
        %p1323 = pneg %p97
        %p1324 = pneg %p121
        %p1325 = pneg %p118
        %p1326 = pneg %p142
        %p1327 = pneg %p139
        %s1328 = sand.u32 %s155, 1
        %s1329 = sand.u32 %s155, 1
        %s1330 = smul.addr %s1329, 500
        %s1331 = scalar_lea.vmem [#allocation2], %s1330
        %p1332 = pneg %p168
        %p1333 = pneg %p165
        %s1334 = sand.u32 %s181, 1
        %s1335 = sand.u32 %s181, 1
        %s1336 = smul.addr %s1335, 2500
        %s1337 = scalar_lea.vmem [#allocation3], %s1336
        %p1338 = pneg %p194
        %p1339 = pneg %p191
        %s1340 = smul.u32 5, %s21
        %p1341 = scmp.lt.s32.totalorder %s1340, 9
        %s1342 = scalar_select %p1341, %s1340, 9
        %s1343 = scalar_lea.vmem %s8, %s1342
        %p1344 = pneg %p220
        %p1345 = pneg %p217
        %s1346 = smul.u32 80, %s21
        %p1347 = scmp.lt.s32.totalorder %s1346, 159
        %s1348 = scalar_select %p1347, %s1346, 159
        %s1349 = smul.addr %s1348, 7
        %s1350 = smul.addr %s1349, 4
        %s1351 = scalar_lea.vmem %s9, %s1350
        %p1352 = pneg %p246
        %p1353 = pneg %p243
        %p1354 = pneg %p272
        %p1355 = pneg %p269
        %p1356 = scmp.lt.s32.totalorder %s21, 1
        %s1357 = scalar_select %p1356, %s21, 1
        %s1358 = smul.addr %s1357, 7
        %s1359 = smul.addr %s1358, 8
        %s1360 = scalar_lea.vmem %s10, %s1359
        %s1361 = smul.u32 5, %s21
        %s1362 = smul.u32 5, %s21
        %s1363 = smul.u32 5, %s21
        %p1364 = scmp.lt.s32.totalorder %s1363, 9
        %s1365 = scalar_select %p1364, %s1363, 9
        %s1366 = scalar_lea.vmem %s8, %s1365
        %s1367 = smul.u32 5, %s21
        %s1368 = smul.u32 80, %s21
        %p1369 = scmp.lt.s32.totalorder %s1368, 159
        %s1370 = scalar_select %p1369, %s1368, 159
        %s1371 = smul.addr %s1370, 7
        %s1372 = smul.addr %s1371, 4
        %s1373 = scalar_lea.vmem %s9, %s1372
        %s1374 = smul.u32 80, %s21
        %p1375 = scmp.lt.s32.totalorder %s21, 1
        %s1376 = scalar_select %p1375, %s21, 1
        %s1377 = smul.addr %s1376, 7
        %s1378 = smul.addr %s1377, 8
        %s1379 = scalar_lea.vmem %s10, %s1378
        %v1381 = vld [vmem:[%s0] sm:$0xff]
        %v1382 = vpack.c.bf16 %v1381, %v1381
        %v1383 = vld [vmem:[%s2] sm:$0xff]
        %v1384 = vld [vmem:[%s2 + $0x8] sm:$0xff]
        %v1385 = vld [vmem:[%s2 + $0x10] sm:$0xff]
        %v1386 = vld [vmem:[%s2 + $0x18] sm:$0xff]
        %v1387 = vld [vmem:[%s2 + $0x20] sm:$0xff]
        %v1388 = vld [vmem:[%s2 + $0x28] sm:$0xff]
        %v1389 = vld [vmem:[%s2 + $0x30] sm:$0xff]
        %v1390 = vld [vmem:[%s2 + $0x38] sm:$0xff]
        %v1391 = vld [vmem:[%s2 + $0x40] sm:$0xff]
        %v1392 = vld [vmem:[%s2 + $0x48] sm:$0xff]
        %v1393 = vld [vmem:[%s2 + $0x50] sm:$0xff]
        %v1394 = vld [vmem:[%s2 + $0x58] sm:$0xff]
        %v1395 = vld [vmem:[%s2 + $0x60] sm:$0x33]
        %v1396 = vld [vmem:[%s3] sm:$0x3]
        %v1398 = vlaneseq
        %v1399 = vshrl.u32 %v1398, 7
        %v1400 = vsub.s32 0, %v1399
        %v1401 = vrot.slane %v1396, %v1400
        %v1402 = vlaneseq
        %v1403 = vshrl.u32 %v1402, 7
        %v1404 = vsub.s32 1, %v1403
        %v1405 = vrot.slane %v1396, %v1404
        %v1421 = vunpack.c.l.b16 %v1383
        %v1422 = vunpack.c.h.b16 %v1383
        %v1423 = vunpack.c.l.b16 %v1384
        %v1424 = vunpack.c.h.b16 %v1384
        %v1425 = vunpack.c.l.b16 %v1385
        %v1426 = vunpack.c.h.b16 %v1385
        %v1427 = vunpack.c.l.b16 %v1386
        %v1428 = vunpack.c.h.b16 %v1386
        %v1429 = vunpack.c.l.b16 %v1387
        %v1430 = vunpack.c.h.b16 %v1387
        %v1431 = vunpack.c.l.b16 %v1388
        %v1432 = vunpack.c.h.b16 %v1388
        %v1433 = vunpack.c.l.b16 %v1389
        %v1434 = vunpack.c.h.b16 %v1389
        %v1435 = vunpack.c.l.b16 %v1390
        %v1436 = vunpack.c.h.b16 %v1390
        %v1437 = vunpack.c.l.b16 %v1391
        %v1438 = vunpack.c.h.b16 %v1391
        %v1439 = vunpack.c.l.b16 %v1392
        %v1440 = vunpack.c.h.b16 %v1392
        %v1441 = vunpack.c.l.b16 %v1393
        %v1442 = vunpack.c.h.b16 %v1393
        %v1443 = vunpack.c.l.b16 %v1394
        %v1444 = vunpack.c.h.b16 %v1394
        %v1445 = vunpack.c.l.b16 %v1395
        %v1446 = vunpack.c.h.b16 %v1395
        %v1447 = vpack.c.b16 %v1423, %v1421
        %v1448 = vpack.c.b16 %v1424, %v1422
        %v1449 = vpack.c.b16 %v1427, %v1425
        %v1450 = vpack.c.b16 %v1428, %v1426
        %v1451 = vpack.c.b16 %v1431, %v1429
        %v1452 = vpack.c.b16 %v1432, %v1430
        %v1453 = vpack.c.b16 %v1435, %v1433
        %v1454 = vpack.c.b16 %v1436, %v1434
        %v1455 = vpack.c.b16 %v1439, %v1437
        %v1456 = vpack.c.b16 %v1440, %v1438
        %v1457 = vpack.c.b16 %v1443, %v1441
        %v1458 = vpack.c.b16 %v1444, %v1442
        %v1459 = vpack.c.b16 %v1445, %v1445
        %v1460 = vpack.c.b16 %v1446, %v1446
        %vm1473 = vcmask 818176
        %v1475 = vsel %vm1473, %v1382, 0
        %vm1477 = vcmask 1041408
        %v1479 = vsel %vm1477, %v1459, 0
        %v1482 = vsel %vm1477, %v1460, 0
        %1484 = vmatprep.subr.bf16.mxu0 %v1448
        %1485 = vmatpush1.bf16.msra.mxu0 %v1447
        %1486 = vmatprep.subr.bf16.mxu0 %v1450
        %1487 = vmatpush1.bf16.msra.mxu0 %v1449
        %1488 = vmatprep.subr.bf16.mxu0 %v1452
        %1489 = vmatpush1.bf16.msra.mxu0 %v1451
        %1490 = vmatprep.subr.bf16.mxu0 %v1454
        %1491 = vmatpush1.bf16.msra.mxu0 %v1453
        %1492 = vmatprep.subr.bf16.mxu0 %v1456
        %1493 = vmatpush1.bf16.msra.mxu0 %v1455
        %1494 = vmatprep.subr.bf16.mxu0 %v1458
        %1495 = vmatpush1.bf16.msra.mxu0 %v1457
        %1496 = vmatprep.subr.bf16.mxu0 %v1482
        %1497 = vmatpush1.bf16.msra.mxu0 %v1479
        %1498 = vmatprep.subr.bf16.mxu0 0
        %1499 = vmatpush1.bf16.msra.mxu0 0
        %1500 = vmatprep.subr.bf16.mxu0 0
        %1501 = vmatpush1.bf16.msra.mxu0 0
        %1502 = vmatprep.subr.bf16.mxu0 0
        %1503 = vmatpush1.bf16.msra.mxu0 0
        %1504 = vmatprep.subr.bf16.mxu0 0
        %1505 = vmatpush1.bf16.msra.mxu0 0
        %1506 = vmatprep.subr.bf16.mxu0 0
        %1507 = vmatpush1.bf16.msra.mxu0 0
        %1508 = vmatprep.subr.bf16.mxu0 0
        %1509 = vmatpush1.bf16.msra.mxu0 0
        %1510 = vmatprep.subr.bf16.mxu0 0
        %1511 = vmatpush1.bf16.msra.mxu0 0
        %1512 = vmatprep.subr.bf16.mxu0 0
        %1513 = vmatpush1.bf16.msra.mxu0 0
        %1514 = vmatprep.subr.bf16.mxu0 0
        %1515 = vmatpush1.bf16.msra.mxu0 0
        %1516 = vmatprep.mubr.bf16.mxu0 0
        %1517 = vmatmul.mubr.bf16.gmra.mrb[0].mxu0 %v1475
        %v1518 = vpop.f32.mrb[0].mxu0
        %v1519 = vadd.f32 %v1401, %v1518
        %v1520 = vpop.f32.mrb[0].mxu0
        %v1521 = vadd.f32 %v1405, %v1520
        %v1522 = vpop.f32.mrb[0].mxu0
        %v1523 = vpop.f32.mrb[0].mxu0
        %1524 = vdwg.mxu0
        %v1525 = vmax.f32 %v1519, 0.0
        %v1526 = vmax.f32 %v1521, 0.0
        %v1527 = vld [vmem:[%s1] sm:$0xff]
        %v1528 = vpack.c.bf16 %v1527, %v1527
        %v1529 = vld [vmem:[%s4] sm:$0xff]
        %v1530 = vld [vmem:[%s4 + $0x8] sm:$0xff]
        %v1531 = vld [vmem:[%s4 + $0x10] sm:$0xff]
        %v1532 = vld [vmem:[%s4 + $0x18] sm:$0xff]
        %v1533 = vld [vmem:[%s4 + $0x20] sm:$0x11]
        %v1534 = vld [vmem:[%s4 + $0x28] sm:$0x11]
        %v1535 = vld [vmem:[%s4 + $0x30] sm:$0x11]
        %v1536 = vld [vmem:[%s4 + $0x38] sm:$0x11]
        %v1537 = vld [vmem:[%s5] sm:$0xff]
        %v1539 = vlaneseq
        %v1540 = vshrl.u32 %v1539, 7
        %v1541 = vsub.s32 0, %v1540
        %v1542 = vrot.slane %v1537, %v1541
        %v1543 = vlaneseq
        %v1544 = vshrl.u32 %v1543, 7
        %v1545 = vsub.s32 1, %v1544
        %v1546 = vrot.slane %v1537, %v1545
        %v1547 = vlaneseq
        %v1548 = vshrl.u32 %v1547, 7
        %v1549 = vsub.s32 2, %v1548
        %v1550 = vrot.slane %v1537, %v1549
        %v1551 = vlaneseq
        %v1552 = vshrl.u32 %v1551, 7
        %v1553 = vsub.s32 3, %v1552
        %v1554 = vrot.slane %v1537, %v1553
        %v1555 = vlaneseq
        %v1556 = vshrl.u32 %v1555, 7
        %v1557 = vsub.s32 4, %v1556
        %v1558 = vrot.slane %v1537, %v1557
        %v1559 = vlaneseq
        %v1560 = vshrl.u32 %v1559, 7
        %v1561 = vsub.s32 5, %v1560
        %v1562 = vrot.slane %v1537, %v1561
        %v1563 = vlaneseq
        %v1564 = vshrl.u32 %v1563, 7
        %v1565 = vsub.s32 6, %v1564
        %v1566 = vrot.slane %v1537, %v1565
        %v1567 = vlaneseq
        %v1568 = vshrl.u32 %v1567, 7
        %v1569 = vsub.s32 7, %v1568
        %v1570 = vrot.slane %v1537, %v1569
        %v1587 = vunpack.c.l.b16 %v1529
        %v1588 = vunpack.c.h.b16 %v1529
        %v1589 = vunpack.c.l.b16 %v1530
        %v1590 = vunpack.c.h.b16 %v1530
        %v1591 = vunpack.c.l.b16 %v1531
        %v1592 = vunpack.c.h.b16 %v1531
        %v1593 = vunpack.c.l.b16 %v1532
        %v1594 = vunpack.c.h.b16 %v1532
        %v1595 = vunpack.c.l.b16 %v1533
        %v1596 = vunpack.c.h.b16 %v1533
        %v1597 = vunpack.c.l.b16 %v1534
        %v1598 = vunpack.c.h.b16 %v1534
        %v1599 = vunpack.c.l.b16 %v1535
        %v1600 = vunpack.c.h.b16 %v1535
        %v1601 = vunpack.c.l.b16 %v1536
        %v1602 = vunpack.c.h.b16 %v1536
        %v1603 = vpack.c.b16 %v1595, %v1587
        %v1604 = vpack.c.b16 %v1596, %v1588
        %v1605 = vpack.c.b16 %v1597, %v1589
        %v1606 = vpack.c.b16 %v1598, %v1590
        %v1607 = vpack.c.b16 %v1599, %v1591
        %v1608 = vpack.c.b16 %v1600, %v1592
        %v1609 = vpack.c.b16 %v1601, %v1593
        %v1610 = vpack.c.b16 %v1602, %v1594
        %vm1611 = vcmask 80896
        %v1613 = vsel %vm1611, %v1528, 0
        %vm1615 = vcmask 1044480
        %v1617 = vsel %vm1615, %v1603, 0
        %v1620 = vsel %vm1615, %v1604, 0
        %v1623 = vsel %vm1615, %v1605, 0
        %v1626 = vsel %vm1615, %v1606, 0
        %v1629 = vsel %vm1615, %v1607, 0
        %v1632 = vsel %vm1615, %v1608, 0
        %v1635 = vsel %vm1615, %v1609, 0
        %v1638 = vsel %vm1615, %v1610, 0
        %1640 = vmatprep.subr.bf16.mxu0 %v1620
        %1641 = vmatpush1.bf16.msra.mxu0 %v1617
        %1642 = vmatprep.subr.bf16.mxu0 0
        %1643 = vmatpush1.bf16.msra.mxu0 0
        %1644 = vmatprep.subr.bf16.mxu0 0
        %1645 = vmatpush1.bf16.msra.mxu0 0
        %1646 = vmatprep.subr.bf16.mxu0 0
        %1647 = vmatpush1.bf16.msra.mxu0 0
        %1648 = vmatprep.subr.bf16.mxu0 0
        %1649 = vmatpush1.bf16.msra.mxu0 0
        %1650 = vmatprep.subr.bf16.mxu0 0
        %1651 = vmatpush1.bf16.msra.mxu0 0
        %1652 = vmatprep.subr.bf16.mxu0 0
        %1653 = vmatpush1.bf16.msra.mxu0 0
        %1654 = vmatprep.subr.bf16.mxu0 0
        %1655 = vmatpush1.bf16.msra.mxu0 0
        %1656 = vmatprep.subr.bf16.mxu0 0
        %1657 = vmatpush1.bf16.msra.mxu0 0
        %1658 = vmatprep.subr.bf16.mxu0 0
        %1659 = vmatpush1.bf16.msra.mxu0 0
        %1660 = vmatprep.subr.bf16.mxu0 0
        %1661 = vmatpush1.bf16.msra.mxu0 0
        %1662 = vmatprep.subr.bf16.mxu0 0
        %1663 = vmatpush1.bf16.msra.mxu0 0
        %1664 = vmatprep.subr.bf16.mxu0 0
        %1665 = vmatpush1.bf16.msra.mxu0 0
        %1666 = vmatprep.subr.bf16.mxu0 0
        %1667 = vmatpush1.bf16.msra.mxu0 0
        %1668 = vmatprep.subr.bf16.mxu0 0
        %1669 = vmatpush1.bf16.msra.mxu0 0
        %1670 = vmatprep.subr.bf16.mxu0 0
        %1671 = vmatpush1.bf16.msra.mxu0 0
        %1672 = vmatprep.mubr.bf16.mxu0 0
        %1673 = vmatmul.mubr.bf16.gmra.mrb[0].mxu0 %v1613
        %v1674 = vpop.f32.mrb[0].mxu0
        %v1675 = vadd.f32 %v1542, %v1674
        %v1676 = vpop.f32.mrb[0].mxu0
        %v1677 = vadd.f32 %v1546, %v1676
        %v1678 = vpop.f32.mrb[0].mxu0
        %v1679 = vpop.f32.mrb[0].mxu0
        %1680 = vdwg.mxu0
        %1681 = vmatprep.subr.bf16.mxu0 %v1626
        %1682 = vmatpush1.bf16.msra.mxu0 %v1623
        %1683 = vmatprep.subr.bf16.mxu0 0
        %1684 = vmatpush1.bf16.msra.mxu0 0
        %1685 = vmatprep.subr.bf16.mxu0 0
        %1686 = vmatpush1.bf16.msra.mxu0 0
        %1687 = vmatprep.subr.bf16.mxu0 0
        %1688 = vmatpush1.bf16.msra.mxu0 0
        %1689 = vmatprep.subr.bf16.mxu0 0
        %1690 = vmatpush1.bf16.msra.mxu0 0
        %1691 = vmatprep.subr.bf16.mxu0 0
        %1692 = vmatpush1.bf16.msra.mxu0 0
        %1693 = vmatprep.subr.bf16.mxu0 0
        %1694 = vmatpush1.bf16.msra.mxu0 0
        %1695 = vmatprep.subr.bf16.mxu0 0
        %1696 = vmatpush1.bf16.msra.mxu0 0
        %1697 = vmatprep.subr.bf16.mxu0 0
        %1698 = vmatpush1.bf16.msra.mxu0 0
        %1699 = vmatprep.subr.bf16.mxu0 0
        %1700 = vmatpush1.bf16.msra.mxu0 0
        %1701 = vmatprep.subr.bf16.mxu0 0
        %1702 = vmatpush1.bf16.msra.mxu0 0
        %1703 = vmatprep.subr.bf16.mxu0 0
        %1704 = vmatpush1.bf16.msra.mxu0 0
        %1705 = vmatprep.subr.bf16.mxu0 0
        %1706 = vmatpush1.bf16.msra.mxu0 0
        %1707 = vmatprep.subr.bf16.mxu0 0
        %1708 = vmatpush1.bf16.msra.mxu0 0
        %1709 = vmatprep.subr.bf16.mxu0 0
        %1710 = vmatpush1.bf16.msra.mxu0 0
        %1711 = vmatprep.subr.bf16.mxu0 0
        %1712 = vmatpush1.bf16.msra.mxu0 0
        %1713 = vmatprep.mubr.bf16.mxu0 0
        %1714 = vmatmul.mubr.bf16.gmra.mrb[0].mxu0 %v1613
        %v1715 = vpop.f32.mrb[0].mxu0
        %v1716 = vadd.f32 %v1550, %v1715
        %v1717 = vpop.f32.mrb[0].mxu0
        %v1718 = vadd.f32 %v1554, %v1717
        %v1719 = vpop.f32.mrb[0].mxu0
        %v1720 = vpop.f32.mrb[0].mxu0
        %1721 = vdwg.mxu0
        %1722 = vmatprep.subr.bf16.mxu0 %v1632
        %1723 = vmatpush1.bf16.msra.mxu0 %v1629
        %1724 = vmatprep.subr.bf16.mxu0 0
        %1725 = vmatpush1.bf16.msra.mxu0 0
        %1726 = vmatprep.subr.bf16.mxu0 0
        %1727 = vmatpush1.bf16.msra.mxu0 0
        %1728 = vmatprep.subr.bf16.mxu0 0
        %1729 = vmatpush1.bf16.msra.mxu0 0
        %1730 = vmatprep.subr.bf16.mxu0 0
        %1731 = vmatpush1.bf16.msra.mxu0 0
        %1732 = vmatprep.subr.bf16.mxu0 0
        %1733 = vmatpush1.bf16.msra.mxu0 0
        %1734 = vmatprep.subr.bf16.mxu0 0
        %1735 = vmatpush1.bf16.msra.mxu0 0
        %1736 = vmatprep.subr.bf16.mxu0 0
        %1737 = vmatpush1.bf16.msra.mxu0 0
        %1738 = vmatprep.subr.bf16.mxu0 0
        %1739 = vmatpush1.bf16.msra.mxu0 0
        %1740 = vmatprep.subr.bf16.mxu0 0
        %1741 = vmatpush1.bf16.msra.mxu0 0
        %1742 = vmatprep.subr.bf16.mxu0 0
        %1743 = vmatpush1.bf16.msra.mxu0 0
        %1744 = vmatprep.subr.bf16.mxu0 0
        %1745 = vmatpush1.bf16.msra.mxu0 0
        %1746 = vmatprep.subr.bf16.mxu0 0
        %1747 = vmatpush1.bf16.msra.mxu0 0
        %1748 = vmatprep.subr.bf16.mxu0 0
        %1749 = vmatpush1.bf16.msra.mxu0 0
        %1750 = vmatprep.subr.bf16.mxu0 0
        %1751 = vmatpush1.bf16.msra.mxu0 0
        %1752 = vmatprep.subr.bf16.mxu0 0
        %1753 = vmatpush1.bf16.msra.mxu0 0
        %1754 = vmatprep.mubr.bf16.mxu0 0
        %1755 = vmatmul.mubr.bf16.gmra.mrb[0].mxu0 %v1613
        %v1756 = vpop.f32.mrb[0].mxu0
        %v1757 = vadd.f32 %v1558, %v1756
        %v1758 = vpop.f32.mrb[0].mxu0
        %v1759 = vadd.f32 %v1562, %v1758
        %v1760 = vpop.f32.mrb[0].mxu0
        %v1761 = vpop.f32.mrb[0].mxu0
        %1762 = vdwg.mxu0
        %1763 = vmatprep.subr.bf16.mxu0 %v1638
        %1764 = vmatpush1.bf16.msra.mxu0 %v1635
        %1765 = vmatprep.subr.bf16.mxu0 0
        %1766 = vmatpush1.bf16.msra.mxu0 0
        %1767 = vmatprep.subr.bf16.mxu0 0
        %1768 = vmatpush1.bf16.msra.mxu0 0
        %1769 = vmatprep.subr.bf16.mxu0 0
        %1770 = vmatpush1.bf16.msra.mxu0 0
        %1771 = vmatprep.subr.bf16.mxu0 0
        %1772 = vmatpush1.bf16.msra.mxu0 0
        %1773 = vmatprep.subr.bf16.mxu0 0
        %1774 = vmatpush1.bf16.msra.mxu0 0
        %1775 = vmatprep.subr.bf16.mxu0 0
        %1776 = vmatpush1.bf16.msra.mxu0 0
        %1777 = vmatprep.subr.bf16.mxu0 0
        %1778 = vmatpush1.bf16.msra.mxu0 0
        %1779 = vmatprep.subr.bf16.mxu0 0
        %1780 = vmatpush1.bf16.msra.mxu0 0
        %1781 = vmatprep.subr.bf16.mxu0 0
        %1782 = vmatpush1.bf16.msra.mxu0 0
        %1783 = vmatprep.subr.bf16.mxu0 0
        %1784 = vmatpush1.bf16.msra.mxu0 0
        %1785 = vmatprep.subr.bf16.mxu0 0
        %1786 = vmatpush1.bf16.msra.mxu0 0
        %1787 = vmatprep.subr.bf16.mxu0 0
        %1788 = vmatpush1.bf16.msra.mxu0 0
        %1789 = vmatprep.subr.bf16.mxu0 0
        %1790 = vmatpush1.bf16.msra.mxu0 0
        %1791 = vmatprep.subr.bf16.mxu0 0
        %1792 = vmatpush1.bf16.msra.mxu0 0
        %1793 = vmatprep.subr.bf16.mxu0 0
        %1794 = vmatpush1.bf16.msra.mxu0 0
        %1795 = vmatprep.mubr.bf16.mxu0 0
        %1796 = vmatmul.mubr.bf16.gmra.mrb[0].mxu0 %v1613
        %v1797 = vpop.f32.mrb[0].mxu0
        %v1798 = vadd.f32 %v1566, %v1797
        %v1799 = vpop.f32.mrb[0].mxu0
        %v1800 = vadd.f32 %v1570, %v1799
        %v1801 = vpop.f32.mrb[0].mxu0
        %v1802 = vpop.f32.mrb[0].mxu0
        %1803 = vdwg.mxu0
        %v1804 = vmax.f32 %v1675, 0.0
        %v1805 = vmax.f32 %v1677, 0.0
        %v1806 = vmax.f32 %v1716, 0.0
        %v1807 = vmax.f32 %v1718, 0.0
        %v1808 = vmax.f32 %v1757, 0.0
        %v1809 = vmax.f32 %v1759, 0.0
        %v1810 = vmax.f32 %v1798, 0.0
        %v1811 = vmax.f32 %v1800, 0.0
        %v1812 = vpack.c.bf16 %v1525, %v1525
        %v1813 = vpack.c.bf16 %v1526, %v1526
        %v1814 = vld [vmem:[%s1305] sm:$0xff]
        %v1815 = vld [vmem:[%s1305 + $0x8] sm:$0xff]
        %v1816 = vld [vmem:[%s1305 + $0x10] sm:$0xf]
        %v1817 = vld [vmem:[%s1305 + $0x14] sm:$0xff]
        %v1818 = vld [vmem:[%s1305 + $0x1c] sm:$0xff]
        %v1819 = vld [vmem:[%s1305 + $0x24] sm:$0xf]
        %v1820 = vld [vmem:[%s1305 + $0x28] sm:$0xff]
        %v1821 = vld [vmem:[%s1305 + $0x30] sm:$0xff]
        %v1822 = vld [vmem:[%s1305 + $0x38] sm:$0xf]
        %v1823 = vld [vmem:[%s1305 + $0x3c] sm:$0xff]
        %v1824 = vld [vmem:[%s1305 + $0x44] sm:$0xff]
        %v1825 = vld [vmem:[%s1305 + $0x4c] sm:$0xf]
        %v1826 = vld [vmem:[%s1305 + $0x50] sm:$0xff]
        %v1827 = vld [vmem:[%s1305 + $0x58] sm:$0xff]
        %v1828 = vld [vmem:[%s1305 + $0x60] sm:$0xf]
        %v1829 = vld [vmem:[%s1305 + $0x64] sm:$0xff]
        %v1830 = vld [vmem:[%s1305 + $0x6c] sm:$0xff]
        %v1831 = vld [vmem:[%s1305 + $0x74] sm:$0xf]
        %v1832 = vld [vmem:[%s1305 + $0x78] sm:$0xff]
        %v1833 = vld [vmem:[%s1305 + $0x80] sm:$0xff]
        %v1834 = vld [vmem:[%s1305 + $0x88] sm:$0xf]
        %v1835 = vld [vmem:[%s1305 + $0x8c] sm:$0xff]
        %v1836 = vld [vmem:[%s1305 + $0x94] sm:$0xff]
        %v1837 = vld [vmem:[%s1305 + $0x9c] sm:$0xf]
        %v1838 = vld [vmem:[%s1305 + $0xa0] sm:$0xff]
        %v1839 = vld [vmem:[%s1305 + $0xa8] sm:$0xff]
        %v1840 = vld [vmem:[%s1305 + $0xb0] sm:$0xf]
        %v1841 = vld [vmem:[%s1305 + $0xb4] sm:$0xff]
        %v1842 = vld [vmem:[%s1305 + $0xbc] sm:$0xff]
        %v1843 = vld [vmem:[%s1305 + $0xc4] sm:$0xf]
        %v1844 = vld [vmem:[%s1305 + $0xc8] sm:$0xff]
        %v1845 = vld [vmem:[%s1305 + $0xd0] sm:$0xff]
        %v1846 = vld [vmem:[%s1305 + $0xd8] sm:$0xf]
        %v1847 = vld [vmem:[%s1305 + $0xdc] sm:$0xff]
        %v1848 = vld [vmem:[%s1305 + $0xe4] sm:$0xff]
        %v1849 = vld [vmem:[%s1305 + $0xec] sm:$0xf]
        %v1850 = vld [vmem:[%s1305 + $0xf0] sm:$0xff]
        %v1851 = vld [vmem:[%s1305 + $0xf8] sm:$0xff]
        %v1852 = vld [vmem:[%s1305 + $0x100] sm:$0xf]
        %v1853 = vld [vmem:[%s1305 + $0x104] sm:$0xff]
        %v1854 = vld [vmem:[%s1305 + $0x10c] sm:$0xff]
        %v1855 = vld [vmem:[%s1305 + $0x114] sm:$0xf]
        %v1856 = vld [vmem:[%s1305 + $0x118] sm:$0xff]
        %v1857 = vld [vmem:[%s1305 + $0x120] sm:$0xff]
        %v1858 = vld [vmem:[%s1305 + $0x128] sm:$0xf]
        %v1859 = vld [vmem:[%s1305 + $0x12c] sm:$0xff]
        %v1860 = vld [vmem:[%s1305 + $0x134] sm:$0xff]
        %v1861 = vld [vmem:[%s1305 + $0x13c] sm:$0xf]
        %v1862 = vld [vmem:[%s1305 + $0x140] sm:$0xff]
        %v1863 = vld [vmem:[%s1305 + $0x148] sm:$0xff]
        %v1864 = vld [vmem:[%s1305 + $0x150] sm:$0xf]
        %v1865 = vld [vmem:[%s1305 + $0x154] sm:$0xff]
        %v1866 = vld [vmem:[%s1305 + $0x15c] sm:$0xff]
        %v1867 = vld [vmem:[%s1305 + $0x164] sm:$0xf]
        %v1868 = vld [vmem:[%s1305 + $0x168] sm:$0xff]
        %v1869 = vld [vmem:[%s1305 + $0x170] sm:$0xff]
        %v1870 = vld [vmem:[%s1305 + $0x178] sm:$0xf]
        %v1871 = vld [vmem:[%s1305 + $0x17c] sm:$0xff]
        %v1872 = vld [vmem:[%s1305 + $0x184] sm:$0xff]
        %v1873 = vld [vmem:[%s1305 + $0x18c] sm:$0xf]
        %v1874 = vld [vmem:[%s1305 + $0x190] sm:$0xff]
        %v1875 = vld [vmem:[%s1305 + $0x198] sm:$0xff]
        %v1876 = vld [vmem:[%s1305 + $0x1a0] sm:$0xf]
        %v1877 = vld [vmem:[%s1305 + $0x1a4] sm:$0xff]
        %v1878 = vld [vmem:[%s1305 + $0x1ac] sm:$0xff]
        %v1879 = vld [vmem:[%s1305 + $0x1b4] sm:$0xf]
        %v1880 = vld [vmem:[%s1305 + $0x1b8] sm:$0xff]
        %v1881 = vld [vmem:[%s1305 + $0x1c0] sm:$0xff]
        %v1882 = vld [vmem:[%s1305 + $0x1c8] sm:$0xf]
        %v1883 = vld [vmem:[%s1305 + $0x1cc] sm:$0xff]
        %v1884 = vld [vmem:[%s1305 + $0x1d4] sm:$0xff]
        %v1885 = vld [vmem:[%s1305 + $0x1dc] sm:$0xf]
        %v1886 = vld [vmem:[%s1305 + $0x1e0] sm:$0xff]
        %v1887 = vld [vmem:[%s1305 + $0x1e8] sm:$0xff]
        %v1888 = vld [vmem:[%s1305 + $0x1f0] sm:$0xf]
        %v1889 = vpack.c.bf16 %v1804, %v1804
        %v1890 = vpack.c.bf16 %v1805, %v1805
        %v1891 = vpack.c.bf16 %v1806, %v1806
        %v1892 = vpack.c.bf16 %v1807, %v1807
        %v1893 = vpack.c.bf16 %v1808, %v1808
        %v1894 = vpack.c.bf16 %v1809, %v1809
        %v1895 = vpack.c.bf16 %v1810, %v1810
        %v1896 = vpack.c.bf16 %v1811, %v1811
        %v1897 = vld [vmem:[%s1312] sm:$0xff]
        %v1898 = vld [vmem:[%s1312 + $0x8] sm:$0xff]
        %v1899 = vld [vmem:[%s1312 + $0x10] sm:$0xf]
        %v1900 = vld [vmem:[%s1312 + $0x14] sm:$0xff]
        %v1901 = vld [vmem:[%s1312 + $0x1c] sm:$0xff]
        %v1902 = vld [vmem:[%s1312 + $0x24] sm:$0xf]
        %v1903 = vld [vmem:[%s1312 + $0x28] sm:$0xff]
        %v1904 = vld [vmem:[%s1312 + $0x30] sm:$0xff]
        %v1905 = vld [vmem:[%s1312 + $0x38] sm:$0xf]
        %v1906 = vld [vmem:[%s1312 + $0x3c] sm:$0xff]
        %v1907 = vld [vmem:[%s1312 + $0x44] sm:$0xff]
        %v1908 = vld [vmem:[%s1312 + $0x4c] sm:$0xf]
        %v1909 = vld [vmem:[%s1312 + $0x50] sm:$0xff]
        %v1910 = vld [vmem:[%s1312 + $0x58] sm:$0xff]
        %v1911 = vld [vmem:[%s1312 + $0x60] sm:$0xf]
        %v1912 = vld [vmem:[%s1312 + $0x64] sm:$0xff]
        %v1913 = vld [vmem:[%s1312 + $0x6c] sm:$0xff]
        %v1914 = vld [vmem:[%s1312 + $0x74] sm:$0xf]
        %v1915 = vld [vmem:[%s1312 + $0x78] sm:$0xff]
        %v1916 = vld [vmem:[%s1312 + $0x80] sm:$0xff]
        %v1917 = vld [vmem:[%s1312 + $0x88] sm:$0xf]
        %v1918 = vld [vmem:[%s1312 + $0x8c] sm:$0xff]
        %v1919 = vld [vmem:[%s1312 + $0x94] sm:$0xff]
        %v1920 = vld [vmem:[%s1312 + $0x9c] sm:$0xf]
        %v1921 = vld [vmem:[%s1312 + $0xa0] sm:$0xff]
        %v1922 = vld [vmem:[%s1312 + $0xa8] sm:$0xff]
        %v1923 = vld [vmem:[%s1312 + $0xb0] sm:$0xf]
        %v1924 = vld [vmem:[%s1312 + $0xb4] sm:$0xff]
        %v1925 = vld [vmem:[%s1312 + $0xbc] sm:$0xff]
        %v1926 = vld [vmem:[%s1312 + $0xc4] sm:$0xf]
        %v1927 = vld [vmem:[%s1312 + $0xc8] sm:$0xff]
        %v1928 = vld [vmem:[%s1312 + $0xd0] sm:$0xff]
        %v1929 = vld [vmem:[%s1312 + $0xd8] sm:$0xf]
        %v1930 = vld [vmem:[%s1312 + $0xdc] sm:$0xff]
        %v1931 = vld [vmem:[%s1312 + $0xe4] sm:$0xff]
        %v1932 = vld [vmem:[%s1312 + $0xec] sm:$0xf]
        %v1933 = vld [vmem:[%s1312 + $0xf0] sm:$0xff]
        %v1934 = vld [vmem:[%s1312 + $0xf8] sm:$0xff]
        %v1935 = vld [vmem:[%s1312 + $0x100] sm:$0xf]
        %v1936 = vld [vmem:[%s1312 + $0x104] sm:$0xff]
        %v1937 = vld [vmem:[%s1312 + $0x10c] sm:$0xff]
        %v1938 = vld [vmem:[%s1312 + $0x114] sm:$0xf]
        %v1939 = vld [vmem:[%s1312 + $0x118] sm:$0xff]
        %v1940 = vld [vmem:[%s1312 + $0x120] sm:$0xff]
        %v1941 = vld [vmem:[%s1312 + $0x128] sm:$0xf]
        %v1942 = vld [vmem:[%s1312 + $0x12c] sm:$0xff]
        %v1943 = vld [vmem:[%s1312 + $0x134] sm:$0xff]
        %v1944 = vld [vmem:[%s1312 + $0x13c] sm:$0xf]
        %v1945 = vld [vmem:[%s1312 + $0x140] sm:$0xff]
        %v1946 = vld [vmem:[%s1312 + $0x148] sm:$0xff]
        %v1947 = vld [vmem:[%s1312 + $0x150] sm:$0xf]
        %v1948 = vld [vmem:[%s1312 + $0x154] sm:$0xff]
        %v1949 = vld [vmem:[%s1312 + $0x15c] sm:$0xff]
        %v1950 = vld [vmem:[%s1312 + $0x164] sm:$0xf]
        %v1951 = vld [vmem:[%s1312 + $0x168] sm:$0xff]
        %v1952 = vld [vmem:[%s1312 + $0x170] sm:$0xff]
        %v1953 = vld [vmem:[%s1312 + $0x178] sm:$0xf]
        %v1954 = vld [vmem:[%s1312 + $0x17c] sm:$0xff]
        %v1955 = vld [vmem:[%s1312 + $0x184] sm:$0xff]
        %v1956 = vld [vmem:[%s1312 + $0x18c] sm:$0xf]
        %v1957 = vld [vmem:[%s1312 + $0x190] sm:$0xff]
        %v1958 = vld [vmem:[%s1312 + $0x198] sm:$0xff]
        %v1959 = vld [vmem:[%s1312 + $0x1a0] sm:$0xf]
        %v1960 = vld [vmem:[%s1312 + $0x1a4] sm:$0xff]
        %v1961 = vld [vmem:[%s1312 + $0x1ac] sm:$0xff]
        %v1962 = vld [vmem:[%s1312 + $0x1b4] sm:$0xf]
        %v1963 = vld [vmem:[%s1312 + $0x1b8] sm:$0xff]
        %v1964 = vld [vmem:[%s1312 + $0x1c0] sm:$0xff]
        %v1965 = vld [vmem:[%s1312 + $0x1c8] sm:$0xf]
        %v1966 = vld [vmem:[%s1312 + $0x1cc] sm:$0xff]
        %v1967 = vld [vmem:[%s1312 + $0x1d4] sm:$0xff]
        %v1968 = vld [vmem:[%s1312 + $0x1dc] sm:$0xf]
        %v1969 = vld [vmem:[%s1312 + $0x1e0] sm:$0xff]
        %v1970 = vld [vmem:[%s1312 + $0x1e8] sm:$0xff]
        %v1971 = vld [vmem:[%s1312 + $0x1f0] sm:$0xf]
        %v1972 = vld [vmem:[%s1312 + $0x1f4] sm:$0xff]
        %v1973 = vld [vmem:[%s1312 + $0x1fc] sm:$0xff]
        %v1974 = vld [vmem:[%s1312 + $0x204] sm:$0xf]
        %v1975 = vld [vmem:[%s1312 + $0x208] sm:$0xff]
        %v1976 = vld [vmem:[%s1312 + $0x210] sm:$0xff]
        %v1977 = vld [vmem:[%s1312 + $0x218] sm:$0xf]
        %v1978 = vld [vmem:[%s1312 + $0x21c] sm:$0xff]
        %v1979 = vld [vmem:[%s1312 + $0x224] sm:$0xff]
        %v1980 = vld [vmem:[%s1312 + $0x22c] sm:$0xf]
        %v1981 = vld [vmem:[%s1312 + $0x230] sm:$0xff]
        %v1982 = vld [vmem:[%s1312 + $0x238] sm:$0xff]
        %v1983 = vld [vmem:[%s1312 + $0x240] sm:$0xf]
        %v1984 = vld [vmem:[%s1312 + $0x244] sm:$0xff]
        %v1985 = vld [vmem:[%s1312 + $0x24c] sm:$0xff]
        %v1986 = vld [vmem:[%s1312 + $0x254] sm:$0xf]
        %v1987 = vld [vmem:[%s1312 + $0x258] sm:$0xff]
        %v1988 = vld [vmem:[%s1312 + $0x260] sm:$0xff]
        %v1989 = vld [vmem:[%s1312 + $0x268] sm:$0xf]
        %v1990 = vld [vmem:[%s1312 + $0x26c] sm:$0xff]
        %v1991 = vld [vmem:[%s1312 + $0x274] sm:$0xff]
        %v1992 = vld [vmem:[%s1312 + $0x27c] sm:$0xf]
        %v1993 = vld [vmem:[%s1312 + $0x280] sm:$0xff]
        %v1994 = vld [vmem:[%s1312 + $0x288] sm:$0xff]
        %v1995 = vld [vmem:[%s1312 + $0x290] sm:$0xf]
        %v1996 = vld [vmem:[%s1312 + $0x294] sm:$0xff]
        %v1997 = vld [vmem:[%s1312 + $0x29c] sm:$0xff]
        %v1998 = vld [vmem:[%s1312 + $0x2a4] sm:$0xf]
        %v1999 = vld [vmem:[%s1312 + $0x2a8] sm:$0xff]
        %v2000 = vld [vmem:[%s1312 + $0x2b0] sm:$0xff]
        %v2001 = vld [vmem:[%s1312 + $0x2b8] sm:$0xf]
        %v2002 = vld [vmem:[%s1312 + $0x2bc] sm:$0xff]
        %v2003 = vld [vmem:[%s1312 + $0x2c4] sm:$0xff]
        %v2004 = vld [vmem:[%s1312 + $0x2cc] sm:$0xf]
        %v2005 = vld [vmem:[%s1312 + $0x2d0] sm:$0xff]
        %v2006 = vld [vmem:[%s1312 + $0x2d8] sm:$0xff]
        %v2007 = vld [vmem:[%s1312 + $0x2e0] sm:$0xf]
        %v2008 = vld [vmem:[%s1312 + $0x2e4] sm:$0xff]
        %v2009 = vld [vmem:[%s1312 + $0x2ec] sm:$0xff]
        %v2010 = vld [vmem:[%s1312 + $0x2f4] sm:$0xf]
        %v2011 = vld [vmem:[%s1312 + $0x2f8] sm:$0xff]
        %v2012 = vld [vmem:[%s1312 + $0x300] sm:$0xff]
        %v2013 = vld [vmem:[%s1312 + $0x308] sm:$0xf]
        %v2014 = vld [vmem:[%s1312 + $0x30c] sm:$0xff]
        %v2015 = vld [vmem:[%s1312 + $0x314] sm:$0xff]
        %v2016 = vld [vmem:[%s1312 + $0x31c] sm:$0xf]
        %v2017 = vld [vmem:[%s1312 + $0x320] sm:$0xff]
        %v2018 = vld [vmem:[%s1312 + $0x328] sm:$0xff]
        %v2019 = vld [vmem:[%s1312 + $0x330] sm:$0xf]
        %v2020 = vld [vmem:[%s1312 + $0x334] sm:$0xff]
        %v2021 = vld [vmem:[%s1312 + $0x33c] sm:$0xff]
        %v2022 = vld [vmem:[%s1312 + $0x344] sm:$0xf]
        %v2023 = vld [vmem:[%s1312 + $0x348] sm:$0xff]
        %v2024 = vld [vmem:[%s1312 + $0x350] sm:$0xff]
        %v2025 = vld [vmem:[%s1312 + $0x358] sm:$0xf]
        %v2026 = vld [vmem:[%s1312 + $0x35c] sm:$0xff]
        %v2027 = vld [vmem:[%s1312 + $0x364] sm:$0xff]
        %v2028 = vld [vmem:[%s1312 + $0x36c] sm:$0xf]
        %v2029 = vld [vmem:[%s1312 + $0x370] sm:$0xff]
        %v2030 = vld [vmem:[%s1312 + $0x378] sm:$0xff]
        %v2031 = vld [vmem:[%s1312 + $0x380] sm:$0xf]
        %v2032 = vld [vmem:[%s1312 + $0x384] sm:$0xff]
        %v2033 = vld [vmem:[%s1312 + $0x38c] sm:$0xff]
        %v2034 = vld [vmem:[%s1312 + $0x394] sm:$0xf]
        %v2035 = vld [vmem:[%s1312 + $0x398] sm:$0xff]
        %v2036 = vld [vmem:[%s1312 + $0x3a0] sm:$0xff]
        %v2037 = vld [vmem:[%s1312 + $0x3a8] sm:$0xf]
        %v2038 = vld [vmem:[%s1312 + $0x3ac] sm:$0xff]
        %v2039 = vld [vmem:[%s1312 + $0x3b4] sm:$0xff]
        %v2040 = vld [vmem:[%s1312 + $0x3bc] sm:$0xf]
        %v2041 = vld [vmem:[%s1312 + $0x3c0] sm:$0xff]
        %v2042 = vld [vmem:[%s1312 + $0x3c8] sm:$0xff]
        %v2043 = vld [vmem:[%s1312 + $0x3d0] sm:$0xf]
        %v2044 = vld [vmem:[%s1312 + $0x3d4] sm:$0xff]
        %v2045 = vld [vmem:[%s1312 + $0x3dc] sm:$0xff]
        %v2046 = vld [vmem:[%s1312 + $0x3e4] sm:$0xf]
        %v2047 = vld [vmem:[%s1312 + $0x3e8] sm:$0xff]
        %v2048 = vld [vmem:[%s1312 + $0x3f0] sm:$0xff]
        %v2049 = vld [vmem:[%s1312 + $0x3f8] sm:$0xf]
        %v2050 = vld [vmem:[%s1312 + $0x3fc] sm:$0xff]
        %v2051 = vld [vmem:[%s1312 + $0x404] sm:$0xff]
        %v2052 = vld [vmem:[%s1312 + $0x40c] sm:$0xf]
        %v2053 = vld [vmem:[%s1312 + $0x410] sm:$0xff]
        %v2054 = vld [vmem:[%s1312 + $0x418] sm:$0xff]
        %v2055 = vld [vmem:[%s1312 + $0x420] sm:$0xf]
        %v2056 = vld [vmem:[%s1312 + $0x424] sm:$0xff]
        %v2057 = vld [vmem:[%s1312 + $0x42c] sm:$0xff]
        %v2058 = vld [vmem:[%s1312 + $0x434] sm:$0xf]
        %v2059 = vld [vmem:[%s1312 + $0x438] sm:$0xff]
        %v2060 = vld [vmem:[%s1312 + $0x440] sm:$0xff]
        %v2061 = vld [vmem:[%s1312 + $0x448] sm:$0xf]
        %v2062 = vld [vmem:[%s1312 + $0x44c] sm:$0xff]
        %v2063 = vld [vmem:[%s1312 + $0x454] sm:$0xff]
        %v2064 = vld [vmem:[%s1312 + $0x45c] sm:$0xf]
        %v2065 = vld [vmem:[%s1312 + $0x460] sm:$0xff]
        %v2066 = vld [vmem:[%s1312 + $0x468] sm:$0xff]
        %v2067 = vld [vmem:[%s1312 + $0x470] sm:$0xf]
        %v2068 = vld [vmem:[%s1312 + $0x474] sm:$0xff]
        %v2069 = vld [vmem:[%s1312 + $0x47c] sm:$0xff]
        %v2070 = vld [vmem:[%s1312 + $0x484] sm:$0xf]
        %v2071 = vld [vmem:[%s1312 + $0x488] sm:$0xff]
        %v2072 = vld [vmem:[%s1312 + $0x490] sm:$0xff]
        %v2073 = vld [vmem:[%s1312 + $0x498] sm:$0xf]
        %v2074 = vld [vmem:[%s1312 + $0x49c] sm:$0xff]
        %v2075 = vld [vmem:[%s1312 + $0x4a4] sm:$0xff]
        %v2076 = vld [vmem:[%s1312 + $0x4ac] sm:$0xf]
        %v2077 = vld [vmem:[%s1312 + $0x4b0] sm:$0xff]
        %v2078 = vld [vmem:[%s1312 + $0x4b8] sm:$0xff]
        %v2079 = vld [vmem:[%s1312 + $0x4c0] sm:$0xf]
        %v2080 = vld [vmem:[%s1312 + $0x4c4] sm:$0xff]
        %v2081 = vld [vmem:[%s1312 + $0x4cc] sm:$0xff]
        %v2082 = vld [vmem:[%s1312 + $0x4d4] sm:$0xf]
        %v2083 = vld [vmem:[%s1312 + $0x4d8] sm:$0xff]
        %v2084 = vld [vmem:[%s1312 + $0x4e0] sm:$0xff]
        %v2085 = vld [vmem:[%s1312 + $0x4e8] sm:$0xf]
        %v2086 = vld [vmem:[%s1312 + $0x4ec] sm:$0xff]
        %v2087 = vld [vmem:[%s1312 + $0x4f4] sm:$0xff]
        %v2088 = vld [vmem:[%s1312 + $0x4fc] sm:$0xf]
        %v2089 = vld [vmem:[%s1312 + $0x500] sm:$0xff]
        %v2090 = vld [vmem:[%s1312 + $0x508] sm:$0xff]
        %v2091 = vld [vmem:[%s1312 + $0x510] sm:$0xf]
        %v2092 = vld [vmem:[%s1312 + $0x514] sm:$0xff]
        %v2093 = vld [vmem:[%s1312 + $0x51c] sm:$0xff]
        %v2094 = vld [vmem:[%s1312 + $0x524] sm:$0xf]
        %v2095 = vld [vmem:[%s1312 + $0x528] sm:$0xff]
        %v2096 = vld [vmem:[%s1312 + $0x530] sm:$0xff]
        %v2097 = vld [vmem:[%s1312 + $0x538] sm:$0xf]
        %v2098 = vld [vmem:[%s1312 + $0x53c] sm:$0xff]
        %v2099 = vld [vmem:[%s1312 + $0x544] sm:$0xff]
        %v2100 = vld [vmem:[%s1312 + $0x54c] sm:$0xf]
        %v2101 = vld [vmem:[%s1312 + $0x550] sm:$0xff]
        %v2102 = vld [vmem:[%s1312 + $0x558] sm:$0xff]
        %v2103 = vld [vmem:[%s1312 + $0x560] sm:$0xf]
        %v2104 = vld [vmem:[%s1312 + $0x564] sm:$0xff]
        %v2105 = vld [vmem:[%s1312 + $0x56c] sm:$0xff]
        %v2106 = vld [vmem:[%s1312 + $0x574] sm:$0xf]
        %v2107 = vld [vmem:[%s1312 + $0x578] sm:$0xff]
        %v2108 = vld [vmem:[%s1312 + $0x580] sm:$0xff]
        %v2109 = vld [vmem:[%s1312 + $0x588] sm:$0xf]
        %v2110 = vld [vmem:[%s1312 + $0x58c] sm:$0xff]
        %v2111 = vld [vmem:[%s1312 + $0x594] sm:$0xff]
        %v2112 = vld [vmem:[%s1312 + $0x59c] sm:$0xf]
        %v2113 = vld [vmem:[%s1312 + $0x5a0] sm:$0xff]
        %v2114 = vld [vmem:[%s1312 + $0x5a8] sm:$0xff]
        %v2115 = vld [vmem:[%s1312 + $0x5b0] sm:$0xf]
        %v2116 = vld [vmem:[%s1312 + $0x5b4] sm:$0xff]
        %v2117 = vld [vmem:[%s1312 + $0x5bc] sm:$0xff]
        %v2118 = vld [vmem:[%s1312 + $0x5c4] sm:$0xf]
        %v2119 = vld [vmem:[%s1312 + $0x5c8] sm:$0xff]
        %v2120 = vld [vmem:[%s1312 + $0x5d0] sm:$0xff]
        %v2121 = vld [vmem:[%s1312 + $0x5d8] sm:$0xf]
        %v2122 = vld [vmem:[%s1312 + $0x5dc] sm:$0xff]
        %v2123 = vld [vmem:[%s1312 + $0x5e4] sm:$0xff]
        %v2124 = vld [vmem:[%s1312 + $0x5ec] sm:$0xf]
        %v2125 = vld [vmem:[%s1312 + $0x5f0] sm:$0xff]
        %v2126 = vld [vmem:[%s1312 + $0x5f8] sm:$0xff]
        %v2127 = vld [vmem:[%s1312 + $0x600] sm:$0xf]
        %v2128 = vld [vmem:[%s1312 + $0x604] sm:$0xff]
        %v2129 = vld [vmem:[%s1312 + $0x60c] sm:$0xff]
        %v2130 = vld [vmem:[%s1312 + $0x614] sm:$0xf]
        %v2131 = vld [vmem:[%s1312 + $0x618] sm:$0xff]
        %v2132 = vld [vmem:[%s1312 + $0x620] sm:$0xff]
        %v2133 = vld [vmem:[%s1312 + $0x628] sm:$0xf]
        %v2134 = vld [vmem:[%s1312 + $0x62c] sm:$0xff]
        %v2135 = vld [vmem:[%s1312 + $0x634] sm:$0xff]
        %v2136 = vld [vmem:[%s1312 + $0x63c] sm:$0xf]
        %v2137 = vld [vmem:[%s1312 + $0x640] sm:$0xff]
        %v2138 = vld [vmem:[%s1312 + $0x648] sm:$0xff]
        %v2139 = vld [vmem:[%s1312 + $0x650] sm:$0xf]
        %v2140 = vld [vmem:[%s1312 + $0x654] sm:$0xff]
        %v2141 = vld [vmem:[%s1312 + $0x65c] sm:$0xff]
        %v2142 = vld [vmem:[%s1312 + $0x664] sm:$0xf]
        %v2143 = vld [vmem:[%s1312 + $0x668] sm:$0xff]
        %v2144 = vld [vmem:[%s1312 + $0x670] sm:$0xff]
        %v2145 = vld [vmem:[%s1312 + $0x678] sm:$0xf]
        %v2146 = vld [vmem:[%s1312 + $0x67c] sm:$0xff]
        %v2147 = vld [vmem:[%s1312 + $0x684] sm:$0xff]
        %v2148 = vld [vmem:[%s1312 + $0x68c] sm:$0xf]
        %v2149 = vld [vmem:[%s1312 + $0x690] sm:$0xff]
        %v2150 = vld [vmem:[%s1312 + $0x698] sm:$0xff]
        %v2151 = vld [vmem:[%s1312 + $0x6a0] sm:$0xf]
        %v2152 = vld [vmem:[%s1312 + $0x6a4] sm:$0xff]
        %v2153 = vld [vmem:[%s1312 + $0x6ac] sm:$0xff]
        %v2154 = vld [vmem:[%s1312 + $0x6b4] sm:$0xf]
        %v2155 = vld [vmem:[%s1312 + $0x6b8] sm:$0xff]
        %v2156 = vld [vmem:[%s1312 + $0x6c0] sm:$0xff]
        %v2157 = vld [vmem:[%s1312 + $0x6c8] sm:$0xf]
        %v2158 = vld [vmem:[%s1312 + $0x6cc] sm:$0xff]
        %v2159 = vld [vmem:[%s1312 + $0x6d4] sm:$0xff]
        %v2160 = vld [vmem:[%s1312 + $0x6dc] sm:$0xf]
        %v2161 = vld [vmem:[%s1312 + $0x6e0] sm:$0xff]
        %v2162 = vld [vmem:[%s1312 + $0x6e8] sm:$0xff]
        %v2163 = vld [vmem:[%s1312 + $0x6f0] sm:$0xf]
        %v2164 = vld [vmem:[%s1312 + $0x6f4] sm:$0xff]
        %v2165 = vld [vmem:[%s1312 + $0x6fc] sm:$0xff]
        %v2166 = vld [vmem:[%s1312 + $0x704] sm:$0xf]
        %v2167 = vld [vmem:[%s1312 + $0x708] sm:$0xff]
        %v2168 = vld [vmem:[%s1312 + $0x710] sm:$0xff]
        %v2169 = vld [vmem:[%s1312 + $0x718] sm:$0xf]
        %v2170 = vld [vmem:[%s1312 + $0x71c] sm:$0xff]
        %v2171 = vld [vmem:[%s1312 + $0x724] sm:$0xff]
        %v2172 = vld [vmem:[%s1312 + $0x72c] sm:$0xf]
        %v2173 = vld [vmem:[%s1312 + $0x730] sm:$0xff]
        %v2174 = vld [vmem:[%s1312 + $0x738] sm:$0xff]
        %v2175 = vld [vmem:[%s1312 + $0x740] sm:$0xf]
        %v2176 = vld [vmem:[%s1312 + $0x744] sm:$0xff]
        %v2177 = vld [vmem:[%s1312 + $0x74c] sm:$0xff]
        %v2178 = vld [vmem:[%s1312 + $0x754] sm:$0xf]
        %v2179 = vld [vmem:[%s1312 + $0x758] sm:$0xff]
        %v2180 = vld [vmem:[%s1312 + $0x760] sm:$0xff]
        %v2181 = vld [vmem:[%s1312 + $0x768] sm:$0xf]
        %v2182 = vld [vmem:[%s1312 + $0x76c] sm:$0xff]
        %v2183 = vld [vmem:[%s1312 + $0x774] sm:$0xff]
        %v2184 = vld [vmem:[%s1312 + $0x77c] sm:$0xf]
        %v2185 = vld [vmem:[%s1312 + $0x780] sm:$0xff]
        %v2186 = vld [vmem:[%s1312 + $0x788] sm:$0xff]
        %v2187 = vld [vmem:[%s1312 + $0x790] sm:$0xf]
        %v2188 = vld [vmem:[%s1312 + $0x794] sm:$0xff]
        %v2189 = vld [vmem:[%s1312 + $0x79c] sm:$0xff]
        %v2190 = vld [vmem:[%s1312 + $0x7a4] sm:$0xf]
        %v2191 = vld [vmem:[%s1312 + $0x7a8] sm:$0xff]
        %v2192 = vld [vmem:[%s1312 + $0x7b0] sm:$0xff]
        %v2193 = vld [vmem:[%s1312 + $0x7b8] sm:$0xf]
        %v2194 = vld [vmem:[%s1312 + $0x7bc] sm:$0xff]
        %v2195 = vld [vmem:[%s1312 + $0x7c4] sm:$0xff]
        %v2196 = vld [vmem:[%s1312 + $0x7cc] sm:$0xf]
        %v2197 = vld [vmem:[%s1312 + $0x7d0] sm:$0xff]
        %v2198 = vld [vmem:[%s1312 + $0x7d8] sm:$0xff]
        %v2199 = vld [vmem:[%s1312 + $0x7e0] sm:$0xf]
        %v2200 = vld [vmem:[%s1312 + $0x7e4] sm:$0xff]
        %v2201 = vld [vmem:[%s1312 + $0x7ec] sm:$0xff]
        %v2202 = vld [vmem:[%s1312 + $0x7f4] sm:$0xf]
        %v2203 = vld [vmem:[%s1312 + $0x7f8] sm:$0xff]
        %v2204 = vld [vmem:[%s1312 + $0x800] sm:$0xff]
        %v2205 = vld [vmem:[%s1312 + $0x808] sm:$0xf]
        %v2206 = vld [vmem:[%s1312 + $0x80c] sm:$0xff]
        %v2207 = vld [vmem:[%s1312 + $0x814] sm:$0xff]
        %v2208 = vld [vmem:[%s1312 + $0x81c] sm:$0xf]
        %v2209 = vld [vmem:[%s1312 + $0x820] sm:$0xff]
        %v2210 = vld [vmem:[%s1312 + $0x828] sm:$0xff]
        %v2211 = vld [vmem:[%s1312 + $0x830] sm:$0xf]
        %v2212 = vld [vmem:[%s1312 + $0x834] sm:$0xff]
        %v2213 = vld [vmem:[%s1312 + $0x83c] sm:$0xff]
        %v2214 = vld [vmem:[%s1312 + $0x844] sm:$0xf]
        %v2215 = vld [vmem:[%s1312 + $0x848] sm:$0xff]
        %v2216 = vld [vmem:[%s1312 + $0x850] sm:$0xff]
        %v2217 = vld [vmem:[%s1312 + $0x858] sm:$0xf]
        %v2218 = vld [vmem:[%s1312 + $0x85c] sm:$0xff]
        %v2219 = vld [vmem:[%s1312 + $0x864] sm:$0xff]
        %v2220 = vld [vmem:[%s1312 + $0x86c] sm:$0xf]
        %v2221 = vld [vmem:[%s1312 + $0x870] sm:$0xff]
        %v2222 = vld [vmem:[%s1312 + $0x878] sm:$0xff]
        %v2223 = vld [vmem:[%s1312 + $0x880] sm:$0xf]
        %v2224 = vld [vmem:[%s1312 + $0x884] sm:$0xff]
        %v2225 = vld [vmem:[%s1312 + $0x88c] sm:$0xff]
        %v2226 = vld [vmem:[%s1312 + $0x894] sm:$0xf]
        %v2227 = vld [vmem:[%s1312 + $0x898] sm:$0xff]
        %v2228 = vld [vmem:[%s1312 + $0x8a0] sm:$0xff]
        %v2229 = vld [vmem:[%s1312 + $0x8a8] sm:$0xf]
        %v2230 = vld [vmem:[%s1312 + $0x8ac] sm:$0xff]
        %v2231 = vld [vmem:[%s1312 + $0x8b4] sm:$0xff]
        %v2232 = vld [vmem:[%s1312 + $0x8bc] sm:$0xf]
        %v2233 = vld [vmem:[%s1312 + $0x8c0] sm:$0xff]
        %v2234 = vld [vmem:[%s1312 + $0x8c8] sm:$0xff]
        %v2235 = vld [vmem:[%s1312 + $0x8d0] sm:$0xf]
        %v2236 = vld [vmem:[%s1312 + $0x8d4] sm:$0xff]
        %v2237 = vld [vmem:[%s1312 + $0x8dc] sm:$0xff]
        %v2238 = vld [vmem:[%s1312 + $0x8e4] sm:$0xf]
        %v2239 = vld [vmem:[%s1312 + $0x8e8] sm:$0xff]
        %v2240 = vld [vmem:[%s1312 + $0x8f0] sm:$0xff]
        %v2241 = vld [vmem:[%s1312 + $0x8f8] sm:$0xf]
        %v2242 = vld [vmem:[%s1312 + $0x8fc] sm:$0xff]
        %v2243 = vld [vmem:[%s1312 + $0x904] sm:$0xff]
        %v2244 = vld [vmem:[%s1312 + $0x90c] sm:$0xf]
        %v2245 = vld [vmem:[%s1312 + $0x910] sm:$0xff]
        %v2246 = vld [vmem:[%s1312 + $0x918] sm:$0xff]
        %v2247 = vld [vmem:[%s1312 + $0x920] sm:$0xf]
        %v2248 = vld [vmem:[%s1312 + $0x924] sm:$0xff]
        %v2249 = vld [vmem:[%s1312 + $0x92c] sm:$0xff]
        %v2250 = vld [vmem:[%s1312 + $0x934] sm:$0xf]
        %v2251 = vld [vmem:[%s1312 + $0x938] sm:$0xff]
        %v2252 = vld [vmem:[%s1312 + $0x940] sm:$0xff]
        %v2253 = vld [vmem:[%s1312 + $0x948] sm:$0xf]
        %v2254 = vld [vmem:[%s1312 + $0x94c] sm:$0xff]
        %v2255 = vld [vmem:[%s1312 + $0x954] sm:$0xff]
        %v2256 = vld [vmem:[%s1312 + $0x95c] sm:$0xf]
        %v2257 = vld [vmem:[%s1312 + $0x960] sm:$0xff]
        %v2258 = vld [vmem:[%s1312 + $0x968] sm:$0xff]
        %v2259 = vld [vmem:[%s1312 + $0x970] sm:$0xf]
        %v2260 = vld [vmem:[%s1312 + $0x974] sm:$0xff]
        %v2261 = vld [vmem:[%s1312 + $0x97c] sm:$0xff]
        %v2262 = vld [vmem:[%s1312 + $0x984] sm:$0xf]
        %v2263 = vld [vmem:[%s1312 + $0x988] sm:$0xff]
        %v2264 = vld [vmem:[%s1312 + $0x990] sm:$0xff]
        %v2265 = vld [vmem:[%s1312 + $0x998] sm:$0xf]
        %v2266 = vld [vmem:[%s1312 + $0x99c] sm:$0xff]
        %v2267 = vld [vmem:[%s1312 + $0x9a4] sm:$0xff]
        %v2268 = vld [vmem:[%s1312 + $0x9ac] sm:$0xf]
        %v2269 = vld [vmem:[%s1312 + $0x9b0] sm:$0xff]
        %v2270 = vld [vmem:[%s1312 + $0x9b8] sm:$0xff]
        %v2271 = vld [vmem:[%s1312 + $0x9c0] sm:$0xf]
        %v2647 = vunpack.c.l.b16 %v1897
        %v2648 = vunpack.c.h.b16 %v1897
        %v2649 = vunpack.c.l.b16 %v1898
        %v2650 = vunpack.c.h.b16 %v1898
        %v2651 = vunpack.c.l.b16 %v1899
        %v2652 = vunpack.c.l.b16 %v1900
        %v2653 = vunpack.c.h.b16 %v1900
        %v2654 = vunpack.c.l.b16 %v1901
        %v2655 = vunpack.c.h.b16 %v1901
        %v2656 = vunpack.c.l.b16 %v1902
        %v2657 = vunpack.c.l.b16 %v1903
        %v2658 = vunpack.c.h.b16 %v1903
        %v2659 = vunpack.c.l.b16 %v1904
        %v2660 = vunpack.c.h.b16 %v1904
        %v2661 = vunpack.c.l.b16 %v1905
        %v2662 = vunpack.c.l.b16 %v1906
        %v2663 = vunpack.c.h.b16 %v1906
        %v2664 = vunpack.c.l.b16 %v1907
        %v2665 = vunpack.c.h.b16 %v1907
        %v2666 = vunpack.c.l.b16 %v1908
        %v2667 = vunpack.c.l.b16 %v1909
        %v2668 = vunpack.c.h.b16 %v1909
        %v2669 = vunpack.c.l.b16 %v1910
        %v2670 = vunpack.c.h.b16 %v1910
        %v2671 = vunpack.c.l.b16 %v1911
        %v2672 = vunpack.c.l.b16 %v1912
        %v2673 = vunpack.c.h.b16 %v1912
        %v2674 = vunpack.c.l.b16 %v1913
        %v2675 = vunpack.c.h.b16 %v1913
        %v2676 = vunpack.c.l.b16 %v1914
        %v2677 = vunpack.c.l.b16 %v1915
        %v2678 = vunpack.c.h.b16 %v1915
        %v2679 = vunpack.c.l.b16 %v1916
        %v2680 = vunpack.c.h.b16 %v1916
        %v2681 = vunpack.c.l.b16 %v1917
        %v2682 = vunpack.c.l.b16 %v1918
        %v2683 = vunpack.c.h.b16 %v1918
        %v2684 = vunpack.c.l.b16 %v1919
        %v2685 = vunpack.c.h.b16 %v1919
        %v2686 = vunpack.c.l.b16 %v1920
        %v2687 = vunpack.c.l.b16 %v1921
        %v2688 = vunpack.c.h.b16 %v1921
        %v2689 = vunpack.c.l.b16 %v1922
        %v2690 = vunpack.c.h.b16 %v1922
        %v2691 = vunpack.c.l.b16 %v1923
        %v2692 = vunpack.c.l.b16 %v1924
        %v2693 = vunpack.c.h.b16 %v1924
        %v2694 = vunpack.c.l.b16 %v1925
        %v2695 = vunpack.c.h.b16 %v1925
        %v2696 = vunpack.c.l.b16 %v1926
        %v2697 = vunpack.c.l.b16 %v1927
        %v2698 = vunpack.c.h.b16 %v1927
        %v2699 = vunpack.c.l.b16 %v1928
        %v2700 = vunpack.c.h.b16 %v1928
        %v2701 = vunpack.c.l.b16 %v1929
        %v2702 = vunpack.c.l.b16 %v1930
        %v2703 = vunpack.c.h.b16 %v1930
        %v2704 = vunpack.c.l.b16 %v1931
        %v2705 = vunpack.c.h.b16 %v1931
        %v2706 = vunpack.c.l.b16 %v1932
        %v2707 = vunpack.c.l.b16 %v1933
        %v2708 = vunpack.c.h.b16 %v1933
        %v2709 = vunpack.c.l.b16 %v1934
        %v2710 = vunpack.c.h.b16 %v1934
        %v2711 = vunpack.c.l.b16 %v1935
        %v2712 = vunpack.c.l.b16 %v1936
        %v2713 = vunpack.c.h.b16 %v1936
        %v2714 = vunpack.c.l.b16 %v1937
        %v2715 = vunpack.c.h.b16 %v1937
        %v2716 = vunpack.c.l.b16 %v1938
        %v2717 = vunpack.c.l.b16 %v1939
        %v2718 = vunpack.c.h.b16 %v1939
        %v2719 = vunpack.c.l.b16 %v1940
        %v2720 = vunpack.c.h.b16 %v1940
        %v2721 = vunpack.c.l.b16 %v1941
        %v2722 = vunpack.c.l.b16 %v1942
        %v2723 = vunpack.c.h.b16 %v1942
        %v2724 = vunpack.c.l.b16 %v1943
        %v2725 = vunpack.c.h.b16 %v1943
        %v2726 = vunpack.c.l.b16 %v1944
        %v2727 = vunpack.c.l.b16 %v1945
        %v2728 = vunpack.c.h.b16 %v1945
        %v2729 = vunpack.c.l.b16 %v1946
        %v2730 = vunpack.c.h.b16 %v1946
        %v2731 = vunpack.c.l.b16 %v1947
        %v2732 = vunpack.c.l.b16 %v1948
        %v2733 = vunpack.c.h.b16 %v1948
        %v2734 = vunpack.c.l.b16 %v1949
        %v2735 = vunpack.c.h.b16 %v1949
        %v2736 = vunpack.c.l.b16 %v1950
        %v2737 = vunpack.c.l.b16 %v1951
        %v2738 = vunpack.c.h.b16 %v1951
        %v2739 = vunpack.c.l.b16 %v1952
        %v2740 = vunpack.c.h.b16 %v1952
        %v2741 = vunpack.c.l.b16 %v1953
        %v2742 = vunpack.c.l.b16 %v1954
        %v2743 = vunpack.c.h.b16 %v1954
        %v2744 = vunpack.c.l.b16 %v1955
        %v2745 = vunpack.c.h.b16 %v1955
        %v2746 = vunpack.c.l.b16 %v1956
        %v2747 = vunpack.c.l.b16 %v1957
        %v2748 = vunpack.c.h.b16 %v1957
        %v2749 = vunpack.c.l.b16 %v1958
        %v2750 = vunpack.c.h.b16 %v1958
        %v2751 = vunpack.c.l.b16 %v1959
        %v2752 = vunpack.c.l.b16 %v1960
        %v2753 = vunpack.c.h.b16 %v1960
        %v2754 = vunpack.c.l.b16 %v1961
        %v2755 = vunpack.c.h.b16 %v1961
        %v2756 = vunpack.c.l.b16 %v1962
        %v2757 = vunpack.c.l.b16 %v1963
        %v2758 = vunpack.c.h.b16 %v1963
        %v2759 = vunpack.c.l.b16 %v1964
        %v2760 = vunpack.c.h.b16 %v1964
        %v2761 = vunpack.c.l.b16 %v1965
        %v2762 = vunpack.c.l.b16 %v1966
        %v2763 = vunpack.c.h.b16 %v1966
        %v2764 = vunpack.c.l.b16 %v1967
        %v2765 = vunpack.c.h.b16 %v1967
        %v2766 = vunpack.c.l.b16 %v1968
        %v2767 = vunpack.c.l.b16 %v1969
        %v2768 = vunpack.c.h.b16 %v1969
        %v2769 = vunpack.c.l.b16 %v1970
        %v2770 = vunpack.c.h.b16 %v1970
        %v2771 = vunpack.c.l.b16 %v1971
        %v2772 = vunpack.c.l.b16 %v1972
        %v2773 = vunpack.c.h.b16 %v1972
        %v2774 = vunpack.c.l.b16 %v1973
        %v2775 = vunpack.c.h.b16 %v1973
        %v2776 = vunpack.c.l.b16 %v1974
        %v2777 = vunpack.c.l.b16 %v1975
        %v2778 = vunpack.c.h.b16 %v1975
        %v2779 = vunpack.c.l.b16 %v1976
        %v2780 = vunpack.c.h.b16 %v1976
        %v2781 = vunpack.c.l.b16 %v1977
        %v2782 = vunpack.c.l.b16 %v1978
        %v2783 = vunpack.c.h.b16 %v1978
        %v2784 = vunpack.c.l.b16 %v1979
        %v2785 = vunpack.c.h.b16 %v1979
        %v2786 = vunpack.c.l.b16 %v1980
        %v2787 = vunpack.c.l.b16 %v1981
        %v2788 = vunpack.c.h.b16 %v1981
        %v2789 = vunpack.c.l.b16 %v1982
        %v2790 = vunpack.c.h.b16 %v1982
        %v2791 = vunpack.c.l.b16 %v1983
        %v2792 = vunpack.c.l.b16 %v1984
        %v2793 = vunpack.c.h.b16 %v1984
        %v2794 = vunpack.c.l.b16 %v1985
        %v2795 = vunpack.c.h.b16 %v1985
        %v2796 = vunpack.c.l.b16 %v1986
        %v2797 = vunpack.c.l.b16 %v1987
        %v2798 = vunpack.c.h.b16 %v1987
        %v2799 = vunpack.c.l.b16 %v1988
        %v2800 = vunpack.c.h.b16 %v1988
        %v2801 = vunpack.c.l.b16 %v1989
        %v2802 = vunpack.c.l.b16 %v1990
        %v2803 = vunpack.c.h.b16 %v1990
        %v2804 = vunpack.c.l.b16 %v1991
        %v2805 = vunpack.c.h.b16 %v1991
        %v2806 = vunpack.c.l.b16 %v1992
        %v2807 = vunpack.c.l.b16 %v1993
        %v2808 = vunpack.c.h.b16 %v1993
        %v2809 = vunpack.c.l.b16 %v1994
        %v2810 = vunpack.c.h.b16 %v1994
        %v2811 = vunpack.c.l.b16 %v1995
        %v2812 = vunpack.c.l.b16 %v1996
        %v2813 = vunpack.c.h.b16 %v1996
        %v2814 = vunpack.c.l.b16 %v1997
        %v2815 = vunpack.c.h.b16 %v1997
        %v2816 = vunpack.c.l.b16 %v1998
        %v2817 = vunpack.c.l.b16 %v1999
        %v2818 = vunpack.c.h.b16 %v1999
        %v2819 = vunpack.c.l.b16 %v2000
        %v2820 = vunpack.c.h.b16 %v2000
        %v2821 = vunpack.c.l.b16 %v2001
        %v2822 = vunpack.c.l.b16 %v2002
        %v2823 = vunpack.c.h.b16 %v2002
        %v2824 = vunpack.c.l.b16 %v2003
        %v2825 = vunpack.c.h.b16 %v2003
        %v2826 = vunpack.c.l.b16 %v2004
        %v2827 = vunpack.c.l.b16 %v2005
        %v2828 = vunpack.c.h.b16 %v2005
        %v2829 = vunpack.c.l.b16 %v2006
        %v2830 = vunpack.c.h.b16 %v2006
        %v2831 = vunpack.c.l.b16 %v2007
        %v2832 = vunpack.c.l.b16 %v2008
        %v2833 = vunpack.c.h.b16 %v2008
        %v2834 = vunpack.c.l.b16 %v2009
        %v2835 = vunpack.c.h.b16 %v2009
        %v2836 = vunpack.c.l.b16 %v2010
        %v2837 = vunpack.c.l.b16 %v2011
        %v2838 = vunpack.c.h.b16 %v2011
        %v2839 = vunpack.c.l.b16 %v2012
        %v2840 = vunpack.c.h.b16 %v2012
        %v2841 = vunpack.c.l.b16 %v2013
        %v2842 = vunpack.c.l.b16 %v2014
        %v2843 = vunpack.c.h.b16 %v2014
        %v2844 = vunpack.c.l.b16 %v2015
        %v2845 = vunpack.c.h.b16 %v2015
        %v2846 = vunpack.c.l.b16 %v2016
        %v2847 = vunpack.c.l.b16 %v2017
        %v2848 = vunpack.c.h.b16 %v2017
        %v2849 = vunpack.c.l.b16 %v2018
        %v2850 = vunpack.c.h.b16 %v2018
        %v2851 = vunpack.c.l.b16 %v2019
        %v2852 = vunpack.c.l.b16 %v2020
        %v2853 = vunpack.c.h.b16 %v2020
        %v2854 = vunpack.c.l.b16 %v2021
        %v2855 = vunpack.c.h.b16 %v2021
        %v2856 = vunpack.c.l.b16 %v2022
        %v2857 = vunpack.c.l.b16 %v2023
        %v2858 = vunpack.c.h.b16 %v2023
        %v2859 = vunpack.c.l.b16 %v2024
        %v2860 = vunpack.c.h.b16 %v2024
        %v2861 = vunpack.c.l.b16 %v2025
        %v2862 = vunpack.c.l.b16 %v2026
        %v2863 = vunpack.c.h.b16 %v2026
        %v2864 = vunpack.c.l.b16 %v2027
        %v2865 = vunpack.c.h.b16 %v2027
        %v2866 = vunpack.c.l.b16 %v2028
        %v2867 = vunpack.c.l.b16 %v2029
        %v2868 = vunpack.c.h.b16 %v2029
        %v2869 = vunpack.c.l.b16 %v2030
        %v2870 = vunpack.c.h.b16 %v2030
        %v2871 = vunpack.c.l.b16 %v2031
        %v2872 = vunpack.c.l.b16 %v2032
        %v2873 = vunpack.c.h.b16 %v2032
        %v2874 = vunpack.c.l.b16 %v2033
        %v2875 = vunpack.c.h.b16 %v2033
        %v2876 = vunpack.c.l.b16 %v2034
        %v2877 = vunpack.c.l.b16 %v2035
        %v2878 = vunpack.c.h.b16 %v2035
        %v2879 = vunpack.c.l.b16 %v2036
        %v2880 = vunpack.c.h.b16 %v2036
        %v2881 = vunpack.c.l.b16 %v2037
        %v2882 = vunpack.c.l.b16 %v2038
        %v2883 = vunpack.c.h.b16 %v2038
        %v2884 = vunpack.c.l.b16 %v2039
        %v2885 = vunpack.c.h.b16 %v2039
        %v2886 = vunpack.c.l.b16 %v2040
        %v2887 = vunpack.c.l.b16 %v2041
        %v2888 = vunpack.c.h.b16 %v2041
        %v2889 = vunpack.c.l.b16 %v2042
        %v2890 = vunpack.c.h.b16 %v2042
        %v2891 = vunpack.c.l.b16 %v2043
        %v2892 = vunpack.c.l.b16 %v2044
        %v2893 = vunpack.c.h.b16 %v2044
        %v2894 = vunpack.c.l.b16 %v2045
        %v2895 = vunpack.c.h.b16 %v2045
        %v2896 = vunpack.c.l.b16 %v2046
        %v2897 = vunpack.c.l.b16 %v2047
        %v2898 = vunpack.c.h.b16 %v2047
        %v2899 = vunpack.c.l.b16 %v2048
        %v2900 = vunpack.c.h.b16 %v2048
        %v2901 = vunpack.c.l.b16 %v2049
        %v2902 = vunpack.c.l.b16 %v2050
        %v2903 = vunpack.c.h.b16 %v2050
        %v2904 = vunpack.c.l.b16 %v2051
        %v2905 = vunpack.c.h.b16 %v2051
        %v2906 = vunpack.c.l.b16 %v2052
        %v2907 = vunpack.c.l.b16 %v2053
        %v2908 = vunpack.c.h.b16 %v2053
        %v2909 = vunpack.c.l.b16 %v2054
        %v2910 = vunpack.c.h.b16 %v2054
        %v2911 = vunpack.c.l.b16 %v2055
        %v2912 = vunpack.c.l.b16 %v2056
        %v2913 = vunpack.c.h.b16 %v2056
        %v2914 = vunpack.c.l.b16 %v2057
        %v2915 = vunpack.c.h.b16 %v2057
        %v2916 = vunpack.c.l.b16 %v2058
        %v2917 = vunpack.c.l.b16 %v2059
        %v2918 = vunpack.c.h.b16 %v2059
        %v2919 = vunpack.c.l.b16 %v2060
        %v2920 = vunpack.c.h.b16 %v2060
        %v2921 = vunpack.c.l.b16 %v2061
        %v2922 = vunpack.c.l.b16 %v2062
        %v2923 = vunpack.c.h.b16 %v2062
        %v2924 = vunpack.c.l.b16 %v2063
        %v2925 = vunpack.c.h.b16 %v2063
        %v2926 = vunpack.c.l.b16 %v2064
        %v2927 = vunpack.c.l.b16 %v2065
        %v2928 = vunpack.c.h.b16 %v2065
        %v2929 = vunpack.c.l.b16 %v2066
        %v2930 = vunpack.c.h.b16 %v2066
        %v2931 = vunpack.c.l.b16 %v2067
        %v2932 = vunpack.c.l.b16 %v2068
        %v2933 = vunpack.c.h.b16 %v2068
        %v2934 = vunpack.c.l.b16 %v2069
        %v2935 = vunpack.c.h.b16 %v2069
        %v2936 = vunpack.c.l.b16 %v2070
        %v2937 = vunpack.c.l.b16 %v2071
        %v2938 = vunpack.c.h.b16 %v2071
        %v2939 = vunpack.c.l.b16 %v2072
        %v2940 = vunpack.c.h.b16 %v2072
        %v2941 = vunpack.c.l.b16 %v2073
        %v2942 = vunpack.c.l.b16 %v2074
        %v2943 = vunpack.c.h.b16 %v2074
        %v2944 = vunpack.c.l.b16 %v2075
        %v2945 = vunpack.c.h.b16 %v2075
        %v2946 = vunpack.c.l.b16 %v2076
        %v2947 = vunpack.c.l.b16 %v2077
        %v2948 = vunpack.c.h.b16 %v2077
        %v2949 = vunpack.c.l.b16 %v2078
        %v2950 = vunpack.c.h.b16 %v2078
        %v2951 = vunpack.c.l.b16 %v2079
        %v2952 = vunpack.c.l.b16 %v2080
        %v2953 = vunpack.c.h.b16 %v2080
        %v2954 = vunpack.c.l.b16 %v2081
        %v2955 = vunpack.c.h.b16 %v2081
        %v2956 = vunpack.c.l.b16 %v2082
        %v2957 = vunpack.c.l.b16 %v2083
        %v2958 = vunpack.c.h.b16 %v2083
        %v2959 = vunpack.c.l.b16 %v2084
        %v2960 = vunpack.c.h.b16 %v2084
        %v2961 = vunpack.c.l.b16 %v2085
        %v2962 = vunpack.c.l.b16 %v2086
        %v2963 = vunpack.c.h.b16 %v2086
        %v2964 = vunpack.c.l.b16 %v2087
        %v2965 = vunpack.c.h.b16 %v2087
        %v2966 = vunpack.c.l.b16 %v2088
        %v2967 = vunpack.c.l.b16 %v2089
        %v2968 = vunpack.c.h.b16 %v2089
        %v2969 = vunpack.c.l.b16 %v2090
        %v2970 = vunpack.c.h.b16 %v2090
        %v2971 = vunpack.c.l.b16 %v2091
        %v2972 = vunpack.c.l.b16 %v2092
        %v2973 = vunpack.c.h.b16 %v2092
        %v2974 = vunpack.c.l.b16 %v2093
        %v2975 = vunpack.c.h.b16 %v2093
        %v2976 = vunpack.c.l.b16 %v2094
        %v2977 = vunpack.c.l.b16 %v2095
        %v2978 = vunpack.c.h.b16 %v2095
        %v2979 = vunpack.c.l.b16 %v2096
        %v2980 = vunpack.c.h.b16 %v2096
        %v2981 = vunpack.c.l.b16 %v2097
        %v2982 = vunpack.c.l.b16 %v2098
        %v2983 = vunpack.c.h.b16 %v2098
        %v2984 = vunpack.c.l.b16 %v2099
        %v2985 = vunpack.c.h.b16 %v2099
        %v2986 = vunpack.c.l.b16 %v2100
        %v2987 = vunpack.c.l.b16 %v2101
        %v2988 = vunpack.c.h.b16 %v2101
        %v2989 = vunpack.c.l.b16 %v2102
        %v2990 = vunpack.c.h.b16 %v2102
        %v2991 = vunpack.c.l.b16 %v2103
        %v2992 = vunpack.c.l.b16 %v2104
        %v2993 = vunpack.c.h.b16 %v2104
        %v2994 = vunpack.c.l.b16 %v2105
        %v2995 = vunpack.c.h.b16 %v2105
        %v2996 = vunpack.c.l.b16 %v2106
        %v2997 = vunpack.c.l.b16 %v2107
        %v2998 = vunpack.c.h.b16 %v2107
        %v2999 = vunpack.c.l.b16 %v2108
        %v3000 = vunpack.c.h.b16 %v2108
        %v3001 = vunpack.c.l.b16 %v2109
        %v3002 = vunpack.c.l.b16 %v2110
        %v3003 = vunpack.c.h.b16 %v2110
        %v3004 = vunpack.c.l.b16 %v2111
        %v3005 = vunpack.c.h.b16 %v2111
        %v3006 = vunpack.c.l.b16 %v2112
        %v3007 = vunpack.c.l.b16 %v2113
        %v3008 = vunpack.c.h.b16 %v2113
        %v3009 = vunpack.c.l.b16 %v2114
        %v3010 = vunpack.c.h.b16 %v2114
        %v3011 = vunpack.c.l.b16 %v2115
        %v3012 = vunpack.c.l.b16 %v2116
        %v3013 = vunpack.c.h.b16 %v2116
        %v3014 = vunpack.c.l.b16 %v2117
        %v3015 = vunpack.c.h.b16 %v2117
        %v3016 = vunpack.c.l.b16 %v2118
        %v3017 = vunpack.c.l.b16 %v2119
        %v3018 = vunpack.c.h.b16 %v2119
        %v3019 = vunpack.c.l.b16 %v2120
        %v3020 = vunpack.c.h.b16 %v2120
        %v3021 = vunpack.c.l.b16 %v2121
        %v3022 = vunpack.c.l.b16 %v2122
        %v3023 = vunpack.c.h.b16 %v2122
        %v3024 = vunpack.c.l.b16 %v2123
        %v3025 = vunpack.c.h.b16 %v2123
        %v3026 = vunpack.c.l.b16 %v2124
        %v3027 = vunpack.c.l.b16 %v2125
        %v3028 = vunpack.c.h.b16 %v2125
        %v3029 = vunpack.c.l.b16 %v2126
        %v3030 = vunpack.c.h.b16 %v2126
        %v3031 = vunpack.c.l.b16 %v2127
        %v3032 = vunpack.c.l.b16 %v2128
        %v3033 = vunpack.c.h.b16 %v2128
        %v3034 = vunpack.c.l.b16 %v2129
        %v3035 = vunpack.c.h.b16 %v2129
        %v3036 = vunpack.c.l.b16 %v2130
        %v3037 = vunpack.c.l.b16 %v2131
        %v3038 = vunpack.c.h.b16 %v2131
        %v3039 = vunpack.c.l.b16 %v2132
        %v3040 = vunpack.c.h.b16 %v2132
        %v3041 = vunpack.c.l.b16 %v2133
        %v3042 = vunpack.c.l.b16 %v2134
        %v3043 = vunpack.c.h.b16 %v2134
        %v3044 = vunpack.c.l.b16 %v2135
        %v3045 = vunpack.c.h.b16 %v2135
        %v3046 = vunpack.c.l.b16 %v2136
        %v3047 = vunpack.c.l.b16 %v2137
        %v3048 = vunpack.c.h.b16 %v2137
        %v3049 = vunpack.c.l.b16 %v2138
        %v3050 = vunpack.c.h.b16 %v2138
        %v3051 = vunpack.c.l.b16 %v2139
        %v3052 = vunpack.c.l.b16 %v2140
        %v3053 = vunpack.c.h.b16 %v2140
        %v3054 = vunpack.c.l.b16 %v2141
        %v3055 = vunpack.c.h.b16 %v2141
        %v3056 = vunpack.c.l.b16 %v2142
        %v3057 = vunpack.c.l.b16 %v2143
        %v3058 = vunpack.c.h.b16 %v2143
        %v3059 = vunpack.c.l.b16 %v2144
        %v3060 = vunpack.c.h.b16 %v2144
        %v3061 = vunpack.c.l.b16 %v2145
        %v3062 = vunpack.c.l.b16 %v2146
        %v3063 = vunpack.c.h.b16 %v2146
        %v3064 = vunpack.c.l.b16 %v2147
        %v3065 = vunpack.c.h.b16 %v2147
        %v3066 = vunpack.c.l.b16 %v2148
        %v3067 = vunpack.c.l.b16 %v2149
        %v3068 = vunpack.c.h.b16 %v2149
        %v3069 = vunpack.c.l.b16 %v2150
        %v3070 = vunpack.c.h.b16 %v2150
        %v3071 = vunpack.c.l.b16 %v2151
        %v3072 = vunpack.c.l.b16 %v2152
        %v3073 = vunpack.c.h.b16 %v2152
        %v3074 = vunpack.c.l.b16 %v2153
        %v3075 = vunpack.c.h.b16 %v2153
        %v3076 = vunpack.c.l.b16 %v2154
        %v3077 = vunpack.c.l.b16 %v2155
        %v3078 = vunpack.c.h.b16 %v2155
        %v3079 = vunpack.c.l.b16 %v2156
        %v3080 = vunpack.c.h.b16 %v2156
        %v3081 = vunpack.c.l.b16 %v2157
        %v3082 = vunpack.c.l.b16 %v2158
        %v3083 = vunpack.c.h.b16 %v2158
        %v3084 = vunpack.c.l.b16 %v2159
        %v3085 = vunpack.c.h.b16 %v2159
        %v3086 = vunpack.c.l.b16 %v2160
        %v3087 = vunpack.c.l.b16 %v2161
        %v3088 = vunpack.c.h.b16 %v2161
        %v3089 = vunpack.c.l.b16 %v2162
        %v3090 = vunpack.c.h.b16 %v2162
        %v3091 = vunpack.c.l.b16 %v2163
        %v3092 = vunpack.c.l.b16 %v2164
        %v3093 = vunpack.c.h.b16 %v2164
        %v3094 = vunpack.c.l.b16 %v2165
        %v3095 = vunpack.c.h.b16 %v2165
        %v3096 = vunpack.c.l.b16 %v2166
        %v3097 = vunpack.c.l.b16 %v2167
        %v3098 = vunpack.c.h.b16 %v2167
        %v3099 = vunpack.c.l.b16 %v2168
        %v3100 = vunpack.c.h.b16 %v2168
        %v3101 = vunpack.c.l.b16 %v2169
        %v3102 = vunpack.c.l.b16 %v2170
        %v3103 = vunpack.c.h.b16 %v2170
        %v3104 = vunpack.c.l.b16 %v2171
        %v3105 = vunpack.c.h.b16 %v2171
        %v3106 = vunpack.c.l.b16 %v2172
        %v3107 = vunpack.c.l.b16 %v2173
        %v3108 = vunpack.c.h.b16 %v2173
        %v3109 = vunpack.c.l.b16 %v2174
        %v3110 = vunpack.c.h.b16 %v2174
        %v3111 = vunpack.c.l.b16 %v2175
        %v3112 = vunpack.c.l.b16 %v2176
        %v3113 = vunpack.c.h.b16 %v2176
        %v3114 = vunpack.c.l.b16 %v2177
        %v3115 = vunpack.c.h.b16 %v2177
        %v3116 = vunpack.c.l.b16 %v2178
        %v3117 = vunpack.c.l.b16 %v2179
        %v3118 = vunpack.c.h.b16 %v2179
        %v3119 = vunpack.c.l.b16 %v2180
        %v3120 = vunpack.c.h.b16 %v2180
        %v3121 = vunpack.c.l.b16 %v2181
        %v3122 = vunpack.c.l.b16 %v2182
        %v3123 = vunpack.c.h.b16 %v2182
        %v3124 = vunpack.c.l.b16 %v2183
        %v3125 = vunpack.c.h.b16 %v2183
        %v3126 = vunpack.c.l.b16 %v2184
        %v3127 = vunpack.c.l.b16 %v2185
        %v3128 = vunpack.c.h.b16 %v2185
        %v3129 = vunpack.c.l.b16 %v2186
        %v3130 = vunpack.c.h.b16 %v2186
        %v3131 = vunpack.c.l.b16 %v2187
        %v3132 = vunpack.c.l.b16 %v2188
        %v3133 = vunpack.c.h.b16 %v2188
        %v3134 = vunpack.c.l.b16 %v2189
        %v3135 = vunpack.c.h.b16 %v2189
        %v3136 = vunpack.c.l.b16 %v2190
        %v3137 = vunpack.c.l.b16 %v2191
        %v3138 = vunpack.c.h.b16 %v2191
        %v3139 = vunpack.c.l.b16 %v2192
        %v3140 = vunpack.c.h.b16 %v2192
        %v3141 = vunpack.c.l.b16 %v2193
        %v3142 = vunpack.c.l.b16 %v2194
        %v3143 = vunpack.c.h.b16 %v2194
        %v3144 = vunpack.c.l.b16 %v2195
        %v3145 = vunpack.c.h.b16 %v2195
        %v3146 = vunpack.c.l.b16 %v2196
        %v3147 = vunpack.c.l.b16 %v2197
        %v3148 = vunpack.c.h.b16 %v2197
        %v3149 = vunpack.c.l.b16 %v2198
        %v3150 = vunpack.c.h.b16 %v2198
        %v3151 = vunpack.c.l.b16 %v2199
        %v3152 = vunpack.c.l.b16 %v2200
        %v3153 = vunpack.c.h.b16 %v2200
        %v3154 = vunpack.c.l.b16 %v2201
        %v3155 = vunpack.c.h.b16 %v2201
        %v3156 = vunpack.c.l.b16 %v2202
        %v3157 = vunpack.c.l.b16 %v2203
        %v3158 = vunpack.c.h.b16 %v2203
        %v3159 = vunpack.c.l.b16 %v2204
        %v3160 = vunpack.c.h.b16 %v2204
        %v3161 = vunpack.c.l.b16 %v2205
        %v3162 = vunpack.c.l.b16 %v2206
        %v3163 = vunpack.c.h.b16 %v2206
        %v3164 = vunpack.c.l.b16 %v2207
        %v3165 = vunpack.c.h.b16 %v2207
        %v3166 = vunpack.c.l.b16 %v2208
        %v3167 = vunpack.c.l.b16 %v2209
        %v3168 = vunpack.c.h.b16 %v2209
        %v3169 = vunpack.c.l.b16 %v2210
        %v3170 = vunpack.c.h.b16 %v2210
        %v3171 = vunpack.c.l.b16 %v2211
        %v3172 = vunpack.c.l.b16 %v2212
        %v3173 = vunpack.c.h.b16 %v2212
        %v3174 = vunpack.c.l.b16 %v2213
        %v3175 = vunpack.c.h.b16 %v2213
        %v3176 = vunpack.c.l.b16 %v2214
        %v3177 = vunpack.c.l.b16 %v2215
        %v3178 = vunpack.c.h.b16 %v2215
        %v3179 = vunpack.c.l.b16 %v2216
        %v3180 = vunpack.c.h.b16 %v2216
        %v3181 = vunpack.c.l.b16 %v2217
        %v3182 = vunpack.c.l.b16 %v2218
        %v3183 = vunpack.c.h.b16 %v2218
        %v3184 = vunpack.c.l.b16 %v2219
        %v3185 = vunpack.c.h.b16 %v2219
        %v3186 = vunpack.c.l.b16 %v2220
        %v3187 = vunpack.c.l.b16 %v2221
        %v3188 = vunpack.c.h.b16 %v2221
        %v3189 = vunpack.c.l.b16 %v2222
        %v3190 = vunpack.c.h.b16 %v2222
        %v3191 = vunpack.c.l.b16 %v2223
        %v3192 = vunpack.c.l.b16 %v2224
        %v3193 = vunpack.c.h.b16 %v2224
        %v3194 = vunpack.c.l.b16 %v2225
        %v3195 = vunpack.c.h.b16 %v2225
        %v3196 = vunpack.c.l.b16 %v2226
        %v3197 = vunpack.c.l.b16 %v2227
        %v3198 = vunpack.c.h.b16 %v2227
        %v3199 = vunpack.c.l.b16 %v2228
        %v3200 = vunpack.c.h.b16 %v2228
        %v3201 = vunpack.c.l.b16 %v2229
        %v3202 = vunpack.c.l.b16 %v2230
        %v3203 = vunpack.c.h.b16 %v2230
        %v3204 = vunpack.c.l.b16 %v2231
        %v3205 = vunpack.c.h.b16 %v2231
        %v3206 = vunpack.c.l.b16 %v2232
        %v3207 = vunpack.c.l.b16 %v2233
        %v3208 = vunpack.c.h.b16 %v2233
        %v3209 = vunpack.c.l.b16 %v2234
        %v3210 = vunpack.c.h.b16 %v2234
        %v3211 = vunpack.c.l.b16 %v2235
        %v3212 = vunpack.c.l.b16 %v2236
        %v3213 = vunpack.c.h.b16 %v2236
        %v3214 = vunpack.c.l.b16 %v2237
        %v3215 = vunpack.c.h.b16 %v2237
        %v3216 = vunpack.c.l.b16 %v2238
        %v3217 = vunpack.c.l.b16 %v2239
        %v3218 = vunpack.c.h.b16 %v2239
        %v3219 = vunpack.c.l.b16 %v2240
        %v3220 = vunpack.c.h.b16 %v2240
        %v3221 = vunpack.c.l.b16 %v2241
        %v3222 = vunpack.c.l.b16 %v2242
        %v3223 = vunpack.c.h.b16 %v2242
        %v3224 = vunpack.c.l.b16 %v2243
        %v3225 = vunpack.c.h.b16 %v2243
        %v3226 = vunpack.c.l.b16 %v2244
        %v3227 = vunpack.c.l.b16 %v2245
        %v3228 = vunpack.c.h.b16 %v2245
        %v3229 = vunpack.c.l.b16 %v2246
        %v3230 = vunpack.c.h.b16 %v2246
        %v3231 = vunpack.c.l.b16 %v2247
        %v3232 = vunpack.c.l.b16 %v2248
        %v3233 = vunpack.c.h.b16 %v2248
        %v3234 = vunpack.c.l.b16 %v2249
        %v3235 = vunpack.c.h.b16 %v2249
        %v3236 = vunpack.c.l.b16 %v2250
        %v3237 = vunpack.c.l.b16 %v2251
        %v3238 = vunpack.c.h.b16 %v2251
        %v3239 = vunpack.c.l.b16 %v2252
        %v3240 = vunpack.c.h.b16 %v2252
        %v3241 = vunpack.c.l.b16 %v2253
        %v3242 = vunpack.c.l.b16 %v2254
        %v3243 = vunpack.c.h.b16 %v2254
        %v3244 = vunpack.c.l.b16 %v2255
        %v3245 = vunpack.c.h.b16 %v2255
        %v3246 = vunpack.c.l.b16 %v2256
        %v3247 = vunpack.c.l.b16 %v2257
        %v3248 = vunpack.c.h.b16 %v2257
        %v3249 = vunpack.c.l.b16 %v2258
        %v3250 = vunpack.c.h.b16 %v2258
        %v3251 = vunpack.c.l.b16 %v2259
        %v3252 = vunpack.c.l.b16 %v2260
        %v3253 = vunpack.c.h.b16 %v2260
        %v3254 = vunpack.c.l.b16 %v2261
        %v3255 = vunpack.c.h.b16 %v2261
        %v3256 = vunpack.c.l.b16 %v2262
        %v3257 = vunpack.c.l.b16 %v2263
        %v3258 = vunpack.c.h.b16 %v2263
        %v3259 = vunpack.c.l.b16 %v2264
        %v3260 = vunpack.c.h.b16 %v2264
        %v3261 = vunpack.c.l.b16 %v2265
        %v3262 = vunpack.c.l.b16 %v2266
        %v3263 = vunpack.c.h.b16 %v2266
        %v3264 = vunpack.c.l.b16 %v2267
        %v3265 = vunpack.c.h.b16 %v2267
        %v3266 = vunpack.c.l.b16 %v2268
        %v3267 = vunpack.c.l.b16 %v2269
        %v3268 = vunpack.c.h.b16 %v2269
        %v3269 = vunpack.c.l.b16 %v2270
        %v3270 = vunpack.c.h.b16 %v2270
        %v3271 = vunpack.c.l.b16 %v2271
        %v3272 = vpack.c.b16 %v2652, %v2647
        %v3273 = vpack.c.b16 %v2653, %v2648
        %v3274 = vpack.c.b16 %v2654, %v2649
        %v3275 = vpack.c.b16 %v2655, %v2650
        %v3276 = vpack.c.b16 %v2656, %v2651
        %v3277 = vpack.c.b16 %v2662, %v2657
        %v3278 = vpack.c.b16 %v2663, %v2658
        %v3279 = vpack.c.b16 %v2664, %v2659
        %v3280 = vpack.c.b16 %v2665, %v2660
        %v3281 = vpack.c.b16 %v2666, %v2661
        %v3282 = vpack.c.b16 %v2672, %v2667
        %v3283 = vpack.c.b16 %v2673, %v2668
        %v3284 = vpack.c.b16 %v2674, %v2669
        %v3285 = vpack.c.b16 %v2675, %v2670
        %v3286 = vpack.c.b16 %v2676, %v2671
        %v3287 = vpack.c.b16 %v2682, %v2677
        %v3288 = vpack.c.b16 %v2683, %v2678
        %v3289 = vpack.c.b16 %v2684, %v2679
        %v3290 = vpack.c.b16 %v2685, %v2680
        %v3291 = vpack.c.b16 %v2686, %v2681
        %v3292 = vpack.c.b16 %v2692, %v2687
        %v3293 = vpack.c.b16 %v2693, %v2688
        %v3294 = vpack.c.b16 %v2694, %v2689
        %v3295 = vpack.c.b16 %v2695, %v2690
        %v3296 = vpack.c.b16 %v2696, %v2691
        %v3297 = vpack.c.b16 %v2702, %v2697
        %v3298 = vpack.c.b16 %v2703, %v2698
        %v3299 = vpack.c.b16 %v2704, %v2699
        %v3300 = vpack.c.b16 %v2705, %v2700
        %v3301 = vpack.c.b16 %v2706, %v2701
        %v3302 = vpack.c.b16 %v2712, %v2707
        %v3303 = vpack.c.b16 %v2713, %v2708
        %v3304 = vpack.c.b16 %v2714, %v2709
        %v3305 = vpack.c.b16 %v2715, %v2710
        %v3306 = vpack.c.b16 %v2716, %v2711
        %v3307 = vpack.c.b16 %v2722, %v2717
        %v3308 = vpack.c.b16 %v2723, %v2718
        %v3309 = vpack.c.b16 %v2724, %v2719
        %v3310 = vpack.c.b16 %v2725, %v2720
        %v3311 = vpack.c.b16 %v2726, %v2721
        %v3312 = vpack.c.b16 %v2732, %v2727
        %v3313 = vpack.c.b16 %v2733, %v2728
        %v3314 = vpack.c.b16 %v2734, %v2729
        %v3315 = vpack.c.b16 %v2735, %v2730
        %v3316 = vpack.c.b16 %v2736, %v2731
        %v3317 = vpack.c.b16 %v2742, %v2737
        %v3318 = vpack.c.b16 %v2743, %v2738
        %v3319 = vpack.c.b16 %v2744, %v2739
        %v3320 = vpack.c.b16 %v2745, %v2740
        %v3321 = vpack.c.b16 %v2746, %v2741
        %v3322 = vpack.c.b16 %v2752, %v2747
        %v3323 = vpack.c.b16 %v2753, %v2748
        %v3324 = vpack.c.b16 %v2754, %v2749
        %v3325 = vpack.c.b16 %v2755, %v2750
        %v3326 = vpack.c.b16 %v2756, %v2751
        %v3327 = vpack.c.b16 %v2762, %v2757
        %v3328 = vpack.c.b16 %v2763, %v2758
        %v3329 = vpack.c.b16 %v2764, %v2759
        %v3330 = vpack.c.b16 %v2765, %v2760
        %v3331 = vpack.c.b16 %v2766, %v2761
        %v3332 = vpack.c.b16 %v2772, %v2767
        %v3333 = vpack.c.b16 %v2773, %v2768
        %v3334 = vpack.c.b16 %v2774, %v2769
        %v3335 = vpack.c.b16 %v2775, %v2770
        %v3336 = vpack.c.b16 %v2776, %v2771
        %v3337 = vpack.c.b16 %v2782, %v2777
        %v3338 = vpack.c.b16 %v2783, %v2778
        %v3339 = vpack.c.b16 %v2784, %v2779
        %v3340 = vpack.c.b16 %v2785, %v2780
        %v3341 = vpack.c.b16 %v2786, %v2781
        %v3342 = vpack.c.b16 %v2792, %v2787
        %v3343 = vpack.c.b16 %v2793, %v2788
        %v3344 = vpack.c.b16 %v2794, %v2789
        %v3345 = vpack.c.b16 %v2795, %v2790
        %v3346 = vpack.c.b16 %v2796, %v2791
        %v3347 = vpack.c.b16 %v2802, %v2797
        %v3348 = vpack.c.b16 %v2803, %v2798
        %v3349 = vpack.c.b16 %v2804, %v2799
        %v3350 = vpack.c.b16 %v2805, %v2800
        %v3351 = vpack.c.b16 %v2806, %v2801
        %v3352 = vpack.c.b16 %v2812, %v2807
        %v3353 = vpack.c.b16 %v2813, %v2808
        %v3354 = vpack.c.b16 %v2814, %v2809
        %v3355 = vpack.c.b16 %v2815, %v2810
        %v3356 = vpack.c.b16 %v2816, %v2811
        %v3357 = vpack.c.b16 %v2822, %v2817
        %v3358 = vpack.c.b16 %v2823, %v2818
        %v3359 = vpack.c.b16 %v2824, %v2819
        %v3360 = vpack.c.b16 %v2825, %v2820
        %v3361 = vpack.c.b16 %v2826, %v2821
        %v3362 = vpack.c.b16 %v2832, %v2827
        %v3363 = vpack.c.b16 %v2833, %v2828
        %v3364 = vpack.c.b16 %v2834, %v2829
        %v3365 = vpack.c.b16 %v2835, %v2830
        %v3366 = vpack.c.b16 %v2836, %v2831
        %v3367 = vpack.c.b16 %v2842, %v2837
        %v3368 = vpack.c.b16 %v2843, %v2838
        %v3369 = vpack.c.b16 %v2844, %v2839
        %v3370 = vpack.c.b16 %v2845, %v2840
        %v3371 = vpack.c.b16 %v2846, %v2841
        %v3372 = vpack.c.b16 %v2852, %v2847
        %v3373 = vpack.c.b16 %v2853, %v2848
        %v3374 = vpack.c.b16 %v2854, %v2849
        %v3375 = vpack.c.b16 %v2855, %v2850
        %v3376 = vpack.c.b16 %v2856, %v2851
        %v3377 = vpack.c.b16 %v2862, %v2857
        %v3378 = vpack.c.b16 %v2863, %v2858
        %v3379 = vpack.c.b16 %v2864, %v2859
        %v3380 = vpack.c.b16 %v2865, %v2860
        %v3381 = vpack.c.b16 %v2866, %v2861
        %v3382 = vpack.c.b16 %v2872, %v2867
        %v3383 = vpack.c.b16 %v2873, %v2868
        %v3384 = vpack.c.b16 %v2874, %v2869
        %v3385 = vpack.c.b16 %v2875, %v2870
        %v3386 = vpack.c.b16 %v2876, %v2871
        %v3387 = vpack.c.b16 %v2882, %v2877
        %v3388 = vpack.c.b16 %v2883, %v2878
        %v3389 = vpack.c.b16 %v2884, %v2879
        %v3390 = vpack.c.b16 %v2885, %v2880
        %v3391 = vpack.c.b16 %v2886, %v2881
        %v3392 = vpack.c.b16 %v2892, %v2887
        %v3393 = vpack.c.b16 %v2893, %v2888
        %v3394 = vpack.c.b16 %v2894, %v2889
        %v3395 = vpack.c.b16 %v2895, %v2890
        %v3396 = vpack.c.b16 %v2896, %v2891
        %v3397 = vpack.c.b16 %v2902, %v2897
        %v3398 = vpack.c.b16 %v2903, %v2898
        %v3399 = vpack.c.b16 %v2904, %v2899
        %v3400 = vpack.c.b16 %v2905, %v2900
        %v3401 = vpack.c.b16 %v2906, %v2901
        %v3402 = vpack.c.b16 %v2912, %v2907
        %v3403 = vpack.c.b16 %v2913, %v2908
        %v3404 = vpack.c.b16 %v2914, %v2909
        %v3405 = vpack.c.b16 %v2915, %v2910
        %v3406 = vpack.c.b16 %v2916, %v2911
        %v3407 = vpack.c.b16 %v2922, %v2917
        %v3408 = vpack.c.b16 %v2923, %v2918
        %v3409 = vpack.c.b16 %v2924, %v2919
        %v3410 = vpack.c.b16 %v2925, %v2920
        %v3411 = vpack.c.b16 %v2926, %v2921
        %v3412 = vpack.c.b16 %v2932, %v2927
        %v3413 = vpack.c.b16 %v2933, %v2928
        %v3414 = vpack.c.b16 %v2934, %v2929
        %v3415 = vpack.c.b16 %v2935, %v2930
        %v3416 = vpack.c.b16 %v2936, %v2931
        %v3417 = vpack.c.b16 %v2942, %v2937
        %v3418 = vpack.c.b16 %v2943, %v2938
        %v3419 = vpack.c.b16 %v2944, %v2939
        %v3420 = vpack.c.b16 %v2945, %v2940
        %v3421 = vpack.c.b16 %v2946, %v2941
        %v3422 = vpack.c.b16 %v2952, %v2947
        %v3423 = vpack.c.b16 %v2953, %v2948
        %v3424 = vpack.c.b16 %v2954, %v2949
        %v3425 = vpack.c.b16 %v2955, %v2950
        %v3426 = vpack.c.b16 %v2956, %v2951
        %v3427 = vpack.c.b16 %v2962, %v2957
        %v3428 = vpack.c.b16 %v2963, %v2958
        %v3429 = vpack.c.b16 %v2964, %v2959
        %v3430 = vpack.c.b16 %v2965, %v2960
        %v3431 = vpack.c.b16 %v2966, %v2961
        %v3432 = vpack.c.b16 %v2972, %v2967
        %v3433 = vpack.c.b16 %v2973, %v2968
        %v3434 = vpack.c.b16 %v2974, %v2969
        %v3435 = vpack.c.b16 %v2975, %v2970
        %v3436 = vpack.c.b16 %v2976, %v2971
        %v3437 = vpack.c.b16 %v2982, %v2977
        %v3438 = vpack.c.b16 %v2983, %v2978
        %v3439 = vpack.c.b16 %v2984, %v2979
        %v3440 = vpack.c.b16 %v2985, %v2980
        %v3441 = vpack.c.b16 %v2986, %v2981
        %v3442 = vpack.c.b16 %v2992, %v2987
        %v3443 = vpack.c.b16 %v2993, %v2988
        %v3444 = vpack.c.b16 %v2994, %v2989
        %v3445 = vpack.c.b16 %v2995, %v2990
        %v3446 = vpack.c.b16 %v2996, %v2991
        %v3447 = vpack.c.b16 %v3002, %v2997
        %v3448 = vpack.c.b16 %v3003, %v2998
        %v3449 = vpack.c.b16 %v3004, %v2999
        %v3450 = vpack.c.b16 %v3005, %v3000
        %v3451 = vpack.c.b16 %v3006, %v3001
        %v3452 = vpack.c.b16 %v3012, %v3007
        %v3453 = vpack.c.b16 %v3013, %v3008
        %v3454 = vpack.c.b16 %v3014, %v3009
        %v3455 = vpack.c.b16 %v3015, %v3010
        %v3456 = vpack.c.b16 %v3016, %v3011
        %v3457 = vpack.c.b16 %v3022, %v3017
        %v3458 = vpack.c.b16 %v3023, %v3018
        %v3459 = vpack.c.b16 %v3024, %v3019
        %v3460 = vpack.c.b16 %v3025, %v3020
        %v3461 = vpack.c.b16 %v3026, %v3021
        %v3462 = vpack.c.b16 %v3032, %v3027
        %v3463 = vpack.c.b16 %v3033, %v3028
        %v3464 = vpack.c.b16 %v3034, %v3029
        %v3465 = vpack.c.b16 %v3035, %v3030
        %v3466 = vpack.c.b16 %v3036, %v3031
        %v3467 = vpack.c.b16 %v3042, %v3037
        %v3468 = vpack.c.b16 %v3043, %v3038
        %v3469 = vpack.c.b16 %v3044, %v3039
        %v3470 = vpack.c.b16 %v3045, %v3040
        %v3471 = vpack.c.b16 %v3046, %v3041
        %v3472 = vpack.c.b16 %v3052, %v3047
        %v3473 = vpack.c.b16 %v3053, %v3048
        %v3474 = vpack.c.b16 %v3054, %v3049
        %v3475 = vpack.c.b16 %v3055, %v3050
        %v3476 = vpack.c.b16 %v3056, %v3051
        %v3477 = vpack.c.b16 %v3062, %v3057
        %v3478 = vpack.c.b16 %v3063, %v3058
        %v3479 = vpack.c.b16 %v3064, %v3059
        %v3480 = vpack.c.b16 %v3065, %v3060
        %v3481 = vpack.c.b16 %v3066, %v3061
        %v3482 = vpack.c.b16 %v3072, %v3067
        %v3483 = vpack.c.b16 %v3073, %v3068
        %v3484 = vpack.c.b16 %v3074, %v3069
        %v3485 = vpack.c.b16 %v3075, %v3070
        %v3486 = vpack.c.b16 %v3076, %v3071
        %v3487 = vpack.c.b16 %v3082, %v3077
        %v3488 = vpack.c.b16 %v3083, %v3078
        %v3489 = vpack.c.b16 %v3084, %v3079
        %v3490 = vpack.c.b16 %v3085, %v3080
        %v3491 = vpack.c.b16 %v3086, %v3081
        %v3492 = vpack.c.b16 %v3092, %v3087
        %v3493 = vpack.c.b16 %v3093, %v3088
        %v3494 = vpack.c.b16 %v3094, %v3089
        %v3495 = vpack.c.b16 %v3095, %v3090
        %v3496 = vpack.c.b16 %v3096, %v3091
        %v3497 = vpack.c.b16 %v3102, %v3097
        %v3498 = vpack.c.b16 %v3103, %v3098
        %v3499 = vpack.c.b16 %v3104, %v3099
        %v3500 = vpack.c.b16 %v3105, %v3100
        %v3501 = vpack.c.b16 %v3106, %v3101
        %v3502 = vpack.c.b16 %v3112, %v3107
        %v3503 = vpack.c.b16 %v3113, %v3108
        %v3504 = vpack.c.b16 %v3114, %v3109
        %v3505 = vpack.c.b16 %v3115, %v3110
        %v3506 = vpack.c.b16 %v3116, %v3111
        %v3507 = vpack.c.b16 %v3122, %v3117
        %v3508 = vpack.c.b16 %v3123, %v3118
        %v3509 = vpack.c.b16 %v3124, %v3119
        %v3510 = vpack.c.b16 %v3125, %v3120
        %v3511 = vpack.c.b16 %v3126, %v3121
        %v3512 = vpack.c.b16 %v3132, %v3127
        %v3513 = vpack.c.b16 %v3133, %v3128
        %v3514 = vpack.c.b16 %v3134, %v3129
        %v3515 = vpack.c.b16 %v3135, %v3130
        %v3516 = vpack.c.b16 %v3136, %v3131
        %v3517 = vpack.c.b16 %v3142, %v3137
        %v3518 = vpack.c.b16 %v3143, %v3138
        %v3519 = vpack.c.b16 %v3144, %v3139
        %v3520 = vpack.c.b16 %v3145, %v3140
        %v3521 = vpack.c.b16 %v3146, %v3141
        %v3522 = vpack.c.b16 %v3152, %v3147
        %v3523 = vpack.c.b16 %v3153, %v3148
        %v3524 = vpack.c.b16 %v3154, %v3149
        %v3525 = vpack.c.b16 %v3155, %v3150
        %v3526 = vpack.c.b16 %v3156, %v3151
        %v3527 = vpack.c.b16 %v3162, %v3157
        %v3528 = vpack.c.b16 %v3163, %v3158
        %v3529 = vpack.c.b16 %v3164, %v3159
        %v3530 = vpack.c.b16 %v3165, %v3160
        %v3531 = vpack.c.b16 %v3166, %v3161
        %v3532 = vpack.c.b16 %v3172, %v3167
        %v3533 = vpack.c.b16 %v3173, %v3168
        %v3534 = vpack.c.b16 %v3174, %v3169
        %v3535 = vpack.c.b16 %v3175, %v3170
        %v3536 = vpack.c.b16 %v3176, %v3171
        %v3537 = vpack.c.b16 %v3182, %v3177
        %v3538 = vpack.c.b16 %v3183, %v3178
        %v3539 = vpack.c.b16 %v3184, %v3179
        %v3540 = vpack.c.b16 %v3185, %v3180
        %v3541 = vpack.c.b16 %v3186, %v3181
        %v3542 = vpack.c.b16 %v3192, %v3187
        %v3543 = vpack.c.b16 %v3193, %v3188
        %v3544 = vpack.c.b16 %v3194, %v3189
        %v3545 = vpack.c.b16 %v3195, %v3190
        %v3546 = vpack.c.b16 %v3196, %v3191
        %v3547 = vpack.c.b16 %v3202, %v3197
        %v3548 = vpack.c.b16 %v3203, %v3198
        %v3549 = vpack.c.b16 %v3204, %v3199
        %v3550 = vpack.c.b16 %v3205, %v3200
        %v3551 = vpack.c.b16 %v3206, %v3201
        %v3552 = vpack.c.b16 %v3212, %v3207
        %v3553 = vpack.c.b16 %v3213, %v3208
        %v3554 = vpack.c.b16 %v3214, %v3209
        %v3555 = vpack.c.b16 %v3215, %v3210
        %v3556 = vpack.c.b16 %v3216, %v3211
        %v3557 = vpack.c.b16 %v3222, %v3217
        %v3558 = vpack.c.b16 %v3223, %v3218
        %v3559 = vpack.c.b16 %v3224, %v3219
        %v3560 = vpack.c.b16 %v3225, %v3220
        %v3561 = vpack.c.b16 %v3226, %v3221
        %v3562 = vpack.c.b16 %v3232, %v3227
        %v3563 = vpack.c.b16 %v3233, %v3228
        %v3564 = vpack.c.b16 %v3234, %v3229
        %v3565 = vpack.c.b16 %v3235, %v3230
        %v3566 = vpack.c.b16 %v3236, %v3231
        %v3567 = vpack.c.b16 %v3242, %v3237
        %v3568 = vpack.c.b16 %v3243, %v3238
        %v3569 = vpack.c.b16 %v3244, %v3239
        %v3570 = vpack.c.b16 %v3245, %v3240
        %v3571 = vpack.c.b16 %v3246, %v3241
        %v3572 = vpack.c.b16 %v3252, %v3247
        %v3573 = vpack.c.b16 %v3253, %v3248
        %v3574 = vpack.c.b16 %v3254, %v3249
        %v3575 = vpack.c.b16 %v3255, %v3250
        %v3576 = vpack.c.b16 %v3256, %v3251
        %v3577 = vpack.c.b16 %v3262, %v3257
        %v3578 = vpack.c.b16 %v3263, %v3258
        %v3579 = vpack.c.b16 %v3264, %v3259
        %v3580 = vpack.c.b16 %v3265, %v3260
        %v3581 = vpack.c.b16 %v3266, %v3261
        %v3582 = vpack.c.b16 %v3267, %v3267
        %v3583 = vpack.c.b16 %v3268, %v3268
        %v3584 = vpack.c.b16 %v3269, %v3269
        %v3585 = vpack.c.b16 %v3270, %v3270
        %v3586 = vpack.c.b16 %v3271, %v3271
        %vm3897 = vcmask 850944
        %v3899 = vsel %vm3897, %v1896, 0
        %vm3901 = vcmask 1043456
        %v3903 = vsel %vm3901, %v3582, 0
        %v3906 = vsel %vm3901, %v3583, 0
        %v3909 = vsel %vm3901, %v3584, 0
        %v3912 = vsel %vm3901, %v3585, 0
        %v3915 = vsel %vm3901, %v3586, 0
        %3917 = vmatprep.subr.bf16.mxu0 %v3273
        %3918 = vmatpush1.bf16.msra.mxu0 %v3272
        %3919 = vmatprep.subr.bf16.mxu0 %v3278
        %3920 = vmatpush1.bf16.msra.mxu0 %v3277
        %3921 = vmatprep.subr.bf16.mxu0 %v3283
        %3922 = vmatpush1.bf16.msra.mxu0 %v3282
        %3923 = vmatprep.subr.bf16.mxu0 %v3288
        %3924 = vmatpush1.bf16.msra.mxu0 %v3287
        %3925 = vmatprep.subr.bf16.mxu0 %v3293
        %3926 = vmatpush1.bf16.msra.mxu0 %v3292
        %3927 = vmatprep.subr.bf16.mxu0 %v3298
        %3928 = vmatpush1.bf16.msra.mxu0 %v3297
        %3929 = vmatprep.subr.bf16.mxu0 %v3303
        %3930 = vmatpush1.bf16.msra.mxu0 %v3302
        %3931 = vmatprep.subr.bf16.mxu0 %v3308
        %3932 = vmatpush1.bf16.msra.mxu0 %v3307
        %3933 = vmatprep.subr.bf16.mxu0 %v3313
        %3934 = vmatpush1.bf16.msra.mxu0 %v3312
        %3935 = vmatprep.subr.bf16.mxu0 %v3318
        %3936 = vmatpush1.bf16.msra.mxu0 %v3317
        %3937 = vmatprep.subr.bf16.mxu0 %v3323
        %3938 = vmatpush1.bf16.msra.mxu0 %v3322
        %3939 = vmatprep.subr.bf16.mxu0 %v3328
        %3940 = vmatpush1.bf16.msra.mxu0 %v3327
        %3941 = vmatprep.subr.bf16.mxu0 %v3333
        %3942 = vmatpush1.bf16.msra.mxu0 %v3332
        %3943 = vmatprep.subr.bf16.mxu0 %v3338
        %3944 = vmatpush1.bf16.msra.mxu0 %v3337
        %3945 = vmatprep.subr.bf16.mxu0 %v3343
        %3946 = vmatpush1.bf16.msra.mxu0 %v3342
        %3947 = vmatprep.subr.bf16.mxu0 %v3348
        %3948 = vmatpush1.bf16.msra.mxu0 %v3347
        %3949 = vmatprep.mubr.bf16.mxu0 %v1890
        %3950 = vmatmul.mubr.bf16.gmra.mrb[0].mxu0 %v1889
        %v3951 = vpop.f32.mrb[0].mxu0
        %v3952 = vadd.f32 0.0, %v3951
        %v3953 = vpop.f32.mrb[0].mxu0
        %v3954 = vadd.f32 0.0, %v3953
        %v3955 = vpop.f32.mrb[0].mxu0
        %v3956 = vpop.f32.mrb[0].mxu0
        %3957 = vdwg.mxu0
        %3958 = vmatprep.subr.bf16.mxu0 %v3353
        %3959 = vmatpush1.bf16.msra.mxu0 %v3352
        %3960 = vmatprep.subr.bf16.mxu0 %v3358
        %3961 = vmatpush1.bf16.msra.mxu0 %v3357
        %3962 = vmatprep.subr.bf16.mxu0 %v3363
        %3963 = vmatpush1.bf16.msra.mxu0 %v3362
        %3964 = vmatprep.subr.bf16.mxu0 %v3368
        %3965 = vmatpush1.bf16.msra.mxu0 %v3367
        %3966 = vmatprep.subr.bf16.mxu0 %v3373
        %3967 = vmatpush1.bf16.msra.mxu0 %v3372
        %3968 = vmatprep.subr.bf16.mxu0 %v3378
        %3969 = vmatpush1.bf16.msra.mxu0 %v3377
        %3970 = vmatprep.subr.bf16.mxu0 %v3383
        %3971 = vmatpush1.bf16.msra.mxu0 %v3382
        %3972 = vmatprep.subr.bf16.mxu0 %v3388
        %3973 = vmatpush1.bf16.msra.mxu0 %v3387
        %3974 = vmatprep.subr.bf16.mxu0 %v3393
        %3975 = vmatpush1.bf16.msra.mxu0 %v3392
        %3976 = vmatprep.subr.bf16.mxu0 %v3398
        %3977 = vmatpush1.bf16.msra.mxu0 %v3397
        %3978 = vmatprep.subr.bf16.mxu0 %v3403
        %3979 = vmatpush1.bf16.msra.mxu0 %v3402
        %3980 = vmatprep.subr.bf16.mxu0 %v3408
        %3981 = vmatpush1.bf16.msra.mxu0 %v3407
        %3982 = vmatprep.subr.bf16.mxu0 %v3413
        %3983 = vmatpush1.bf16.msra.mxu0 %v3412
        %3984 = vmatprep.subr.bf16.mxu0 %v3418
        %3985 = vmatpush1.bf16.msra.mxu0 %v3417
        %3986 = vmatprep.subr.bf16.mxu0 %v3423
        %3987 = vmatpush1.bf16.msra.mxu0 %v3422
        %3988 = vmatprep.subr.bf16.mxu0 %v3428
        %3989 = vmatpush1.bf16.msra.mxu0 %v3427
        %3990 = vmatprep.mubr.bf16.mxu0 %v1892
        %3991 = vmatmul.mubr.bf16.gmra.mrb[0].mxu0 %v1891
        %v3992 = vpop.f32.mrb[0].mxu0
        %v3993 = vadd.f32 %v3952, %v3992
        %v3994 = vpop.f32.mrb[0].mxu0
        %v3995 = vadd.f32 %v3954, %v3994
        %v3996 = vpop.f32.mrb[0].mxu0
        %v3997 = vpop.f32.mrb[0].mxu0
        %3998 = vdwg.mxu0
        %3999 = vmatprep.subr.bf16.mxu0 %v3433
        %4000 = vmatpush1.bf16.msra.mxu0 %v3432
        %4001 = vmatprep.subr.bf16.mxu0 %v3438
        %4002 = vmatpush1.bf16.msra.mxu0 %v3437
        %4003 = vmatprep.subr.bf16.mxu0 %v3443
        %4004 = vmatpush1.bf16.msra.mxu0 %v3442
        %4005 = vmatprep.subr.bf16.mxu0 %v3448
        %4006 = vmatpush1.bf16.msra.mxu0 %v3447
        %4007 = vmatprep.subr.bf16.mxu0 %v3453
        %4008 = vmatpush1.bf16.msra.mxu0 %v3452
        %4009 = vmatprep.subr.bf16.mxu0 %v3458
        %4010 = vmatpush1.bf16.msra.mxu0 %v3457
        %4011 = vmatprep.subr.bf16.mxu0 %v3463
        %4012 = vmatpush1.bf16.msra.mxu0 %v3462
        %4013 = vmatprep.subr.bf16.mxu0 %v3468
        %4014 = vmatpush1.bf16.msra.mxu0 %v3467
        %4015 = vmatprep.subr.bf16.mxu0 %v3473
        %4016 = vmatpush1.bf16.msra.mxu0 %v3472
        %4017 = vmatprep.subr.bf16.mxu0 %v3478
        %4018 = vmatpush1.bf16.msra.mxu0 %v3477
        %4019 = vmatprep.subr.bf16.mxu0 %v3483
        %4020 = vmatpush1.bf16.msra.mxu0 %v3482
        %4021 = vmatprep.subr.bf16.mxu0 %v3488
        %4022 = vmatpush1.bf16.msra.mxu0 %v3487
        %4023 = vmatprep.subr.bf16.mxu0 %v3493
        %4024 = vmatpush1.bf16.msra.mxu0 %v3492
        %4025 = vmatprep.subr.bf16.mxu0 %v3498
        %4026 = vmatpush1.bf16.msra.mxu0 %v3497
        %4027 = vmatprep.subr.bf16.mxu0 %v3503
        %4028 = vmatpush1.bf16.msra.mxu0 %v3502
        %4029 = vmatprep.subr.bf16.mxu0 %v3508
        %4030 = vmatpush1.bf16.msra.mxu0 %v3507
        %4031 = vmatprep.mubr.bf16.mxu0 %v1894
        %4032 = vmatmul.mubr.bf16.gmra.mrb[0].mxu0 %v1893
        %v4033 = vpop.f32.mrb[0].mxu0
        %v4034 = vadd.f32 %v3993, %v4033
        %v4035 = vpop.f32.mrb[0].mxu0
        %v4036 = vadd.f32 %v3995, %v4035
        %v4037 = vpop.f32.mrb[0].mxu0
        %v4038 = vpop.f32.mrb[0].mxu0
        %4039 = vdwg.mxu0
        %4040 = vmatprep.subr.bf16.mxu0 %v3513
        %4041 = vmatpush1.bf16.msra.mxu0 %v3512
        %4042 = vmatprep.subr.bf16.mxu0 %v3518
        %4043 = vmatpush1.bf16.msra.mxu0 %v3517
        %4044 = vmatprep.subr.bf16.mxu0 %v3523
        %4045 = vmatpush1.bf16.msra.mxu0 %v3522
        %4046 = vmatprep.subr.bf16.mxu0 %v3528
        %4047 = vmatpush1.bf16.msra.mxu0 %v3527
        %4048 = vmatprep.subr.bf16.mxu0 %v3533
        %4049 = vmatpush1.bf16.msra.mxu0 %v3532
        %4050 = vmatprep.subr.bf16.mxu0 %v3538
        %4051 = vmatpush1.bf16.msra.mxu0 %v3537
        %4052 = vmatprep.subr.bf16.mxu0 %v3543
        %4053 = vmatpush1.bf16.msra.mxu0 %v3542
        %4054 = vmatprep.subr.bf16.mxu0 %v3548
        %4055 = vmatpush1.bf16.msra.mxu0 %v3547
        %4056 = vmatprep.subr.bf16.mxu0 %v3553
        %4057 = vmatpush1.bf16.msra.mxu0 %v3552
        %4058 = vmatprep.subr.bf16.mxu0 %v3558
        %4059 = vmatpush1.bf16.msra.mxu0 %v3557
        %4060 = vmatprep.subr.bf16.mxu0 %v3563
        %4061 = vmatpush1.bf16.msra.mxu0 %v3562
        %4062 = vmatprep.subr.bf16.mxu0 %v3568
        %4063 = vmatpush1.bf16.msra.mxu0 %v3567
        %4064 = vmatprep.subr.bf16.mxu0 %v3573
        %4065 = vmatpush1.bf16.msra.mxu0 %v3572
        %4066 = vmatprep.subr.bf16.mxu0 %v3578
        %4067 = vmatpush1.bf16.msra.mxu0 %v3577
        %4068 = vmatprep.subr.bf16.mxu0 %v3906
        %4069 = vmatpush1.bf16.msra.mxu0 %v3903
        %4070 = vmatprep.subr.bf16.mxu0 0
        %4071 = vmatpush1.bf16.msra.mxu0 0
        %4072 = vmatprep.mubr.bf16.mxu0 %v3899
        %4073 = vmatmul.mubr.bf16.gmra.mrb[0].mxu0 %v1895
        %v4074 = vpop.f32.mrb[0].mxu0
        %v4075 = vadd.f32 %v4034, %v4074
        %v4076 = vpop.f32.mrb[0].mxu0
        %v4077 = vadd.f32 %v4036, %v4076
        %v4078 = vpop.f32.mrb[0].mxu0
        %v4079 = vpop.f32.mrb[0].mxu0
        %4080 = vdwg.mxu0
        %4081 = vmatprep.subr.bf16.mxu0 %v3275
        %4082 = vmatpush1.bf16.msra.mxu0 %v3274
        %4083 = vmatprep.subr.bf16.mxu0 %v3280
        %4084 = vmatpush1.bf16.msra.mxu0 %v3279
        %4085 = vmatprep.subr.bf16.mxu0 %v3285
        %4086 = vmatpush1.bf16.msra.mxu0 %v3284
        %4087 = vmatprep.subr.bf16.mxu0 %v3290
        %4088 = vmatpush1.bf16.msra.mxu0 %v3289
        %4089 = vmatprep.subr.bf16.mxu0 %v3295
        %4090 = vmatpush1.bf16.msra.mxu0 %v3294
        %4091 = vmatprep.subr.bf16.mxu0 %v3300
        %4092 = vmatpush1.bf16.msra.mxu0 %v3299
        %4093 = vmatprep.subr.bf16.mxu0 %v3305
        %4094 = vmatpush1.bf16.msra.mxu0 %v3304
        %4095 = vmatprep.subr.bf16.mxu0 %v3310
        %4096 = vmatpush1.bf16.msra.mxu0 %v3309
        %4097 = vmatprep.subr.bf16.mxu0 %v3315
        %4098 = vmatpush1.bf16.msra.mxu0 %v3314
        %4099 = vmatprep.subr.bf16.mxu0 %v3320
        %4100 = vmatpush1.bf16.msra.mxu0 %v3319
        %4101 = vmatprep.subr.bf16.mxu0 %v3325
        %4102 = vmatpush1.bf16.msra.mxu0 %v3324
        %4103 = vmatprep.subr.bf16.mxu0 %v3330
        %4104 = vmatpush1.bf16.msra.mxu0 %v3329
        %4105 = vmatprep.subr.bf16.mxu0 %v3335
        %4106 = vmatpush1.bf16.msra.mxu0 %v3334
        %4107 = vmatprep.subr.bf16.mxu0 %v3340
        %4108 = vmatpush1.bf16.msra.mxu0 %v3339
        %4109 = vmatprep.subr.bf16.mxu0 %v3345
        %4110 = vmatpush1.bf16.msra.mxu0 %v3344
        %4111 = vmatprep.subr.bf16.mxu0 %v3350
        %4112 = vmatpush1.bf16.msra.mxu0 %v3349
        %4113 = vmatprep.mubr.bf16.mxu0 %v1890
        %4114 = vmatmul.mubr.bf16.gmra.mrb[0].mxu0 %v1889
        %v4115 = vpop.f32.mrb[0].mxu0
        %v4116 = vadd.f32 0.0, %v4115
        %v4117 = vpop.f32.mrb[0].mxu0
        %v4118 = vadd.f32 0.0, %v4117
        %v4119 = vpop.f32.mrb[0].mxu0
        %v4120 = vpop.f32.mrb[0].mxu0
        %4121 = vdwg.mxu0
        %4122 = vmatprep.subr.bf16.mxu0 %v3355
        %4123 = vmatpush1.bf16.msra.mxu0 %v3354
        %4124 = vmatprep.subr.bf16.mxu0 %v3360
        %4125 = vmatpush1.bf16.msra.mxu0 %v3359
        %4126 = vmatprep.subr.bf16.mxu0 %v3365
        %4127 = vmatpush1.bf16.msra.mxu0 %v3364
        %4128 = vmatprep.subr.bf16.mxu0 %v3370
        %4129 = vmatpush1.bf16.msra.mxu0 %v3369
        %4130 = vmatprep.subr.bf16.mxu0 %v3375
        %4131 = vmatpush1.bf16.msra.mxu0 %v3374
        %4132 = vmatprep.subr.bf16.mxu0 %v3380
        %4133 = vmatpush1.bf16.msra.mxu0 %v3379
        %4134 = vmatprep.subr.bf16.mxu0 %v3385
        %4135 = vmatpush1.bf16.msra.mxu0 %v3384
        %4136 = vmatprep.subr.bf16.mxu0 %v3390
        %4137 = vmatpush1.bf16.msra.mxu0 %v3389
        %4138 = vmatprep.subr.bf16.mxu0 %v3395
        %4139 = vmatpush1.bf16.msra.mxu0 %v3394
        %4140 = vmatprep.subr.bf16.mxu0 %v3400
        %4141 = vmatpush1.bf16.msra.mxu0 %v3399
        %4142 = vmatprep.subr.bf16.mxu0 %v3405
        %4143 = vmatpush1.bf16.msra.mxu0 %v3404
        %4144 = vmatprep.subr.bf16.mxu0 %v3410
        %4145 = vmatpush1.bf16.msra.mxu0 %v3409
        %4146 = vmatprep.subr.bf16.mxu0 %v3415
        %4147 = vmatpush1.bf16.msra.mxu0 %v3414
        %4148 = vmatprep.subr.bf16.mxu0 %v3420
        %4149 = vmatpush1.bf16.msra.mxu0 %v3419
        %4150 = vmatprep.subr.bf16.mxu0 %v3425
        %4151 = vmatpush1.bf16.msra.mxu0 %v3424
        %4152 = vmatprep.subr.bf16.mxu0 %v3430
        %4153 = vmatpush1.bf16.msra.mxu0 %v3429
        %4154 = vmatprep.mubr.bf16.mxu0 %v1892
        %4155 = vmatmul.mubr.bf16.gmra.mrb[0].mxu0 %v1891
        %v4156 = vpop.f32.mrb[0].mxu0
        %v4157 = vadd.f32 %v4116, %v4156
        %v4158 = vpop.f32.mrb[0].mxu0
        %v4159 = vadd.f32 %v4118, %v4158
        %v4160 = vpop.f32.mrb[0].mxu0
        %v4161 = vpop.f32.mrb[0].mxu0
        %4162 = vdwg.mxu0
        %4163 = vmatprep.subr.bf16.mxu0 %v3435
        %4164 = vmatpush1.bf16.msra.mxu0 %v3434
        %4165 = vmatprep.subr.bf16.mxu0 %v3440
        %4166 = vmatpush1.bf16.msra.mxu0 %v3439
        %4167 = vmatprep.subr.bf16.mxu0 %v3445
        %4168 = vmatpush1.bf16.msra.mxu0 %v3444
        %4169 = vmatprep.subr.bf16.mxu0 %v3450
        %4170 = vmatpush1.bf16.msra.mxu0 %v3449
        %4171 = vmatprep.subr.bf16.mxu0 %v3455
        %4172 = vmatpush1.bf16.msra.mxu0 %v3454
        %4173 = vmatprep.subr.bf16.mxu0 %v3460
        %4174 = vmatpush1.bf16.msra.mxu0 %v3459
        %4175 = vmatprep.subr.bf16.mxu0 %v3465
        %4176 = vmatpush1.bf16.msra.mxu0 %v3464
        %4177 = vmatprep.subr.bf16.mxu0 %v3470
        %4178 = vmatpush1.bf16.msra.mxu0 %v3469
        %4179 = vmatprep.subr.bf16.mxu0 %v3475
        %4180 = vmatpush1.bf16.msra.mxu0 %v3474
        %4181 = vmatprep.subr.bf16.mxu0 %v3480
        %4182 = vmatpush1.bf16.msra.mxu0 %v3479
        %4183 = vmatprep.subr.bf16.mxu0 %v3485
        %4184 = vmatpush1.bf16.msra.mxu0 %v3484
        %4185 = vmatprep.subr.bf16.mxu0 %v3490
        %4186 = vmatpush1.bf16.msra.mxu0 %v3489
        %4187 = vmatprep.subr.bf16.mxu0 %v3495
        %4188 = vmatpush1.bf16.msra.mxu0 %v3494
        %4189 = vmatprep.subr.bf16.mxu0 %v3500
        %4190 = vmatpush1.bf16.msra.mxu0 %v3499
        %4191 = vmatprep.subr.bf16.mxu0 %v3505
        %4192 = vmatpush1.bf16.msra.mxu0 %v3504
        %4193 = vmatprep.subr.bf16.mxu0 %v3510
        %4194 = vmatpush1.bf16.msra.mxu0 %v3509
        %4195 = vmatprep.mubr.bf16.mxu0 %v1894
        %4196 = vmatmul.mubr.bf16.gmra.mrb[0].mxu0 %v1893
        %v4197 = vpop.f32.mrb[0].mxu0
        %v4198 = vadd.f32 %v4157, %v4197
        %v4199 = vpop.f32.mrb[0].mxu0
        %v4200 = vadd.f32 %v4159, %v4199
        %v4201 = vpop.f32.mrb[0].mxu0
        %v4202 = vpop.f32.mrb[0].mxu0
        %4203 = vdwg.mxu0
        %4204 = vmatprep.subr.bf16.mxu0 %v3515
        %4205 = vmatpush1.bf16.msra.mxu0 %v3514
        %4206 = vmatprep.subr.bf16.mxu0 %v3520
        %4207 = vmatpush1.bf16.msra.mxu0 %v3519
        %4208 = vmatprep.subr.bf16.mxu0 %v3525
        %4209 = vmatpush1.bf16.msra.mxu0 %v3524
        %4210 = vmatprep.subr.bf16.mxu0 %v3530
        %4211 = vmatpush1.bf16.msra.mxu0 %v3529
        %4212 = vmatprep.subr.bf16.mxu0 %v3535
        %4213 = vmatpush1.bf16.msra.mxu0 %v3534
        %4214 = vmatprep.subr.bf16.mxu0 %v3540
        %4215 = vmatpush1.bf16.msra.mxu0 %v3539
        %4216 = vmatprep.subr.bf16.mxu0 %v3545
        %4217 = vmatpush1.bf16.msra.mxu0 %v3544
        %4218 = vmatprep.subr.bf16.mxu0 %v3550
        %4219 = vmatpush1.bf16.msra.mxu0 %v3549
        %4220 = vmatprep.subr.bf16.mxu0 %v3555
        %4221 = vmatpush1.bf16.msra.mxu0 %v3554
        %4222 = vmatprep.subr.bf16.mxu0 %v3560
        %4223 = vmatpush1.bf16.msra.mxu0 %v3559
        %4224 = vmatprep.subr.bf16.mxu0 %v3565
        %4225 = vmatpush1.bf16.msra.mxu0 %v3564
        %4226 = vmatprep.subr.bf16.mxu0 %v3570
        %4227 = vmatpush1.bf16.msra.mxu0 %v3569
        %4228 = vmatprep.subr.bf16.mxu0 %v3575
        %4229 = vmatpush1.bf16.msra.mxu0 %v3574
        %4230 = vmatprep.subr.bf16.mxu0 %v3580
        %4231 = vmatpush1.bf16.msra.mxu0 %v3579
        %4232 = vmatprep.subr.bf16.mxu0 %v3912
        %4233 = vmatpush1.bf16.msra.mxu0 %v3909
        %4234 = vmatprep.subr.bf16.mxu0 0
        %4235 = vmatpush1.bf16.msra.mxu0 0
        %4236 = vmatprep.mubr.bf16.mxu0 %v3899
        %4237 = vmatmul.mubr.bf16.gmra.mrb[0].mxu0 %v1895
        %v4238 = vpop.f32.mrb[0].mxu0
        %v4239 = vadd.f32 %v4198, %v4238
        %v4240 = vpop.f32.mrb[0].mxu0
        %v4241 = vadd.f32 %v4200, %v4240
        %v4242 = vpop.f32.mrb[0].mxu0
        %v4243 = vpop.f32.mrb[0].mxu0
        %4244 = vdwg.mxu0
        %4245 = vmatprep.subr.bf16.mxu0 0
        %4246 = vmatpush1.bf16.msra.mxu0 %v3276
        %4247 = vmatprep.subr.bf16.mxu0 0
        %4248 = vmatpush1.bf16.msra.mxu0 %v3281
        %4249 = vmatprep.subr.bf16.mxu0 0
        %4250 = vmatpush1.bf16.msra.mxu0 %v3286
        %4251 = vmatprep.subr.bf16.mxu0 0
        %4252 = vmatpush1.bf16.msra.mxu0 %v3291
        %4253 = vmatprep.subr.bf16.mxu0 0
        %4254 = vmatpush1.bf16.msra.mxu0 %v3296
        %4255 = vmatprep.subr.bf16.mxu0 0
        %4256 = vmatpush1.bf16.msra.mxu0 %v3301
        %4257 = vmatprep.subr.bf16.mxu0 0
        %4258 = vmatpush1.bf16.msra.mxu0 %v3306
        %4259 = vmatprep.subr.bf16.mxu0 0
        %4260 = vmatpush1.bf16.msra.mxu0 %v3311
        %4261 = vmatprep.subr.bf16.mxu0 0
        %4262 = vmatpush1.bf16.msra.mxu0 %v3316
        %4263 = vmatprep.subr.bf16.mxu0 0
        %4264 = vmatpush1.bf16.msra.mxu0 %v3321
        %4265 = vmatprep.subr.bf16.mxu0 0
        %4266 = vmatpush1.bf16.msra.mxu0 %v3326
        %4267 = vmatprep.subr.bf16.mxu0 0
        %4268 = vmatpush1.bf16.msra.mxu0 %v3331
        %4269 = vmatprep.subr.bf16.mxu0 0
        %4270 = vmatpush1.bf16.msra.mxu0 %v3336
        %4271 = vmatprep.subr.bf16.mxu0 0
        %4272 = vmatpush1.bf16.msra.mxu0 %v3341
        %4273 = vmatprep.subr.bf16.mxu0 0
        %4274 = vmatpush1.bf16.msra.mxu0 %v3346
        %4275 = vmatprep.subr.bf16.mxu0 0
        %4276 = vmatpush1.bf16.msra.mxu0 %v3351
        %4277 = vmatprep.mubr.bf16.mxu0 %v1890
        %4278 = vmatmul.mubr.bf16.gmra.mrb[0].mxu0 %v1889
        %v4279 = vpop.f32.mrb[0].mxu0
        %v4280 = vadd.f32 0.0, %v4279
        %v4281 = vpop.f32.mrb[0].mxu0
        %v4282 = vpop.f32.mrb[0].mxu0
        %v4283 = vpop.f32.mrb[0].mxu0
        %4284 = vdwg.mxu0
        %4285 = vmatprep.subr.bf16.mxu0 0
        %4286 = vmatpush1.bf16.msra.mxu0 %v3356
        %4287 = vmatprep.subr.bf16.mxu0 0
        %4288 = vmatpush1.bf16.msra.mxu0 %v3361
        %4289 = vmatprep.subr.bf16.mxu0 0
        %4290 = vmatpush1.bf16.msra.mxu0 %v3366
        %4291 = vmatprep.subr.bf16.mxu0 0
        %4292 = vmatpush1.bf16.msra.mxu0 %v3371
        %4293 = vmatprep.subr.bf16.mxu0 0
        %4294 = vmatpush1.bf16.msra.mxu0 %v3376
        %4295 = vmatprep.subr.bf16.mxu0 0
        %4296 = vmatpush1.bf16.msra.mxu0 %v3381
        %4297 = vmatprep.subr.bf16.mxu0 0
        %4298 = vmatpush1.bf16.msra.mxu0 %v3386
        %4299 = vmatprep.subr.bf16.mxu0 0
        %4300 = vmatpush1.bf16.msra.mxu0 %v3391
        %4301 = vmatprep.subr.bf16.mxu0 0
        %4302 = vmatpush1.bf16.msra.mxu0 %v3396
        %4303 = vmatprep.subr.bf16.mxu0 0
        %4304 = vmatpush1.bf16.msra.mxu0 %v3401
        %4305 = vmatprep.subr.bf16.mxu0 0
        %4306 = vmatpush1.bf16.msra.mxu0 %v3406
        %4307 = vmatprep.subr.bf16.mxu0 0
        %4308 = vmatpush1.bf16.msra.mxu0 %v3411
        %4309 = vmatprep.subr.bf16.mxu0 0
        %4310 = vmatpush1.bf16.msra.mxu0 %v3416
        %4311 = vmatprep.subr.bf16.mxu0 0
        %4312 = vmatpush1.bf16.msra.mxu0 %v3421
        %4313 = vmatprep.subr.bf16.mxu0 0
        %4314 = vmatpush1.bf16.msra.mxu0 %v3426
        %4315 = vmatprep.subr.bf16.mxu0 0
        %4316 = vmatpush1.bf16.msra.mxu0 %v3431
        %4317 = vmatprep.mubr.bf16.mxu0 %v1892
        %4318 = vmatmul.mubr.bf16.gmra.mrb[0].mxu0 %v1891
        %v4319 = vpop.f32.mrb[0].mxu0
        %v4320 = vadd.f32 %v4280, %v4319
        %v4321 = vpop.f32.mrb[0].mxu0
        %v4322 = vpop.f32.mrb[0].mxu0
        %v4323 = vpop.f32.mrb[0].mxu0
        %4324 = vdwg.mxu0
        %4325 = vmatprep.subr.bf16.mxu0 0
        %4326 = vmatpush1.bf16.msra.mxu0 %v3436
        %4327 = vmatprep.subr.bf16.mxu0 0
        %4328 = vmatpush1.bf16.msra.mxu0 %v3441
        %4329 = vmatprep.subr.bf16.mxu0 0
        %4330 = vmatpush1.bf16.msra.mxu0 %v3446
        %4331 = vmatprep.subr.bf16.mxu0 0
        %4332 = vmatpush1.bf16.msra.mxu0 %v3451
        %4333 = vmatprep.subr.bf16.mxu0 0
        %4334 = vmatpush1.bf16.msra.mxu0 %v3456
        %4335 = vmatprep.subr.bf16.mxu0 0
        %4336 = vmatpush1.bf16.msra.mxu0 %v3461
        %4337 = vmatprep.subr.bf16.mxu0 0
        %4338 = vmatpush1.bf16.msra.mxu0 %v3466
        %4339 = vmatprep.subr.bf16.mxu0 0
        %4340 = vmatpush1.bf16.msra.mxu0 %v3471
        %4341 = vmatprep.subr.bf16.mxu0 0
        %4342 = vmatpush1.bf16.msra.mxu0 %v3476
        %4343 = vmatprep.subr.bf16.mxu0 0
        %4344 = vmatpush1.bf16.msra.mxu0 %v3481
        %4345 = vmatprep.subr.bf16.mxu0 0
        %4346 = vmatpush1.bf16.msra.mxu0 %v3486
        %4347 = vmatprep.subr.bf16.mxu0 0
        %4348 = vmatpush1.bf16.msra.mxu0 %v3491
        %4349 = vmatprep.subr.bf16.mxu0 0
        %4350 = vmatpush1.bf16.msra.mxu0 %v3496
        %4351 = vmatprep.subr.bf16.mxu0 0
        %4352 = vmatpush1.bf16.msra.mxu0 %v3501
        %4353 = vmatprep.subr.bf16.mxu0 0
        %4354 = vmatpush1.bf16.msra.mxu0 %v3506
        %4355 = vmatprep.subr.bf16.mxu0 0
        %4356 = vmatpush1.bf16.msra.mxu0 %v3511
        %4357 = vmatprep.mubr.bf16.mxu0 %v1894
        %4358 = vmatmul.mubr.bf16.gmra.mrb[0].mxu0 %v1893
        %v4359 = vpop.f32.mrb[0].mxu0
        %v4360 = vadd.f32 %v4320, %v4359
        %v4361 = vpop.f32.mrb[0].mxu0
        %v4362 = vpop.f32.mrb[0].mxu0
        %v4363 = vpop.f32.mrb[0].mxu0
        %4364 = vdwg.mxu0
        %4365 = vmatprep.subr.bf16.mxu0 0
        %4366 = vmatpush1.bf16.msra.mxu0 %v3516
        %4367 = vmatprep.subr.bf16.mxu0 0
        %4368 = vmatpush1.bf16.msra.mxu0 %v3521
        %4369 = vmatprep.subr.bf16.mxu0 0
        %4370 = vmatpush1.bf16.msra.mxu0 %v3526
        %4371 = vmatprep.subr.bf16.mxu0 0
        %4372 = vmatpush1.bf16.msra.mxu0 %v3531
        %4373 = vmatprep.subr.bf16.mxu0 0
        %4374 = vmatpush1.bf16.msra.mxu0 %v3536
        %4375 = vmatprep.subr.bf16.mxu0 0
        %4376 = vmatpush1.bf16.msra.mxu0 %v3541
        %4377 = vmatprep.subr.bf16.mxu0 0
        %4378 = vmatpush1.bf16.msra.mxu0 %v3546
        %4379 = vmatprep.subr.bf16.mxu0 0
        %4380 = vmatpush1.bf16.msra.mxu0 %v3551
        %4381 = vmatprep.subr.bf16.mxu0 0
        %4382 = vmatpush1.bf16.msra.mxu0 %v3556
        %4383 = vmatprep.subr.bf16.mxu0 0
        %4384 = vmatpush1.bf16.msra.mxu0 %v3561
        %4385 = vmatprep.subr.bf16.mxu0 0
        %4386 = vmatpush1.bf16.msra.mxu0 %v3566
        %4387 = vmatprep.subr.bf16.mxu0 0
        %4388 = vmatpush1.bf16.msra.mxu0 %v3571
        %4389 = vmatprep.subr.bf16.mxu0 0
        %4390 = vmatpush1.bf16.msra.mxu0 %v3576
        %4391 = vmatprep.subr.bf16.mxu0 0
        %4392 = vmatpush1.bf16.msra.mxu0 %v3581
        %4393 = vmatprep.subr.bf16.mxu0 0
        %4394 = vmatpush1.bf16.msra.mxu0 %v3915
        %4395 = vmatprep.subr.bf16.mxu0 0
        %4396 = vmatpush1.bf16.msra.mxu0 0
        %4397 = vmatprep.mubr.bf16.mxu0 %v3899
        %4398 = vmatmul.mubr.bf16.gmra.mrb[0].mxu0 %v1895
        %v4399 = vpop.f32.mrb[0].mxu0
        %v4400 = vadd.f32 %v4360, %v4399
        %v4401 = vpop.f32.mrb[0].mxu0
        %v4402 = vpop.f32.mrb[0].mxu0
        %v4403 = vpop.f32.mrb[0].mxu0
        %4404 = vdwg.mxu0
        %v4480 = vunpack.c.l.b16 %v1814
        %v4481 = vunpack.c.h.b16 %v1814
        %v4482 = vunpack.c.l.b16 %v1815
        %v4483 = vunpack.c.h.b16 %v1815
        %v4484 = vunpack.c.l.b16 %v1816
        %v4485 = vunpack.c.l.b16 %v1817
        %v4486 = vunpack.c.h.b16 %v1817
        %v4487 = vunpack.c.l.b16 %v1818
        %v4488 = vunpack.c.h.b16 %v1818
        %v4489 = vunpack.c.l.b16 %v1819
        %v4490 = vunpack.c.l.b16 %v1820
        %v4491 = vunpack.c.h.b16 %v1820
        %v4492 = vunpack.c.l.b16 %v1821
        %v4493 = vunpack.c.h.b16 %v1821
        %v4494 = vunpack.c.l.b16 %v1822
        %v4495 = vunpack.c.l.b16 %v1823
        %v4496 = vunpack.c.h.b16 %v1823
        %v4497 = vunpack.c.l.b16 %v1824
        %v4498 = vunpack.c.h.b16 %v1824
        %v4499 = vunpack.c.l.b16 %v1825
        %v4500 = vunpack.c.l.b16 %v1826
        %v4501 = vunpack.c.h.b16 %v1826
        %v4502 = vunpack.c.l.b16 %v1827
        %v4503 = vunpack.c.h.b16 %v1827
        %v4504 = vunpack.c.l.b16 %v1828
        %v4505 = vunpack.c.l.b16 %v1829
        %v4506 = vunpack.c.h.b16 %v1829
        %v4507 = vunpack.c.l.b16 %v1830
        %v4508 = vunpack.c.h.b16 %v1830
        %v4509 = vunpack.c.l.b16 %v1831
        %v4510 = vunpack.c.l.b16 %v1832
        %v4511 = vunpack.c.h.b16 %v1832
        %v4512 = vunpack.c.l.b16 %v1833
        %v4513 = vunpack.c.h.b16 %v1833
        %v4514 = vunpack.c.l.b16 %v1834
        %v4515 = vunpack.c.l.b16 %v1835
        %v4516 = vunpack.c.h.b16 %v1835
        %v4517 = vunpack.c.l.b16 %v1836
        %v4518 = vunpack.c.h.b16 %v1836
        %v4519 = vunpack.c.l.b16 %v1837
        %v4520 = vunpack.c.l.b16 %v1838
        %v4521 = vunpack.c.h.b16 %v1838
        %v4522 = vunpack.c.l.b16 %v1839
        %v4523 = vunpack.c.h.b16 %v1839
        %v4524 = vunpack.c.l.b16 %v1840
        %v4525 = vunpack.c.l.b16 %v1841
        %v4526 = vunpack.c.h.b16 %v1841
        %v4527 = vunpack.c.l.b16 %v1842
        %v4528 = vunpack.c.h.b16 %v1842
        %v4529 = vunpack.c.l.b16 %v1843
        %v4530 = vunpack.c.l.b16 %v1844
        %v4531 = vunpack.c.h.b16 %v1844
        %v4532 = vunpack.c.l.b16 %v1845
        %v4533 = vunpack.c.h.b16 %v1845
        %v4534 = vunpack.c.l.b16 %v1846
        %v4535 = vunpack.c.l.b16 %v1847
        %v4536 = vunpack.c.h.b16 %v1847
        %v4537 = vunpack.c.l.b16 %v1848
        %v4538 = vunpack.c.h.b16 %v1848
        %v4539 = vunpack.c.l.b16 %v1849
        %v4540 = vunpack.c.l.b16 %v1850
        %v4541 = vunpack.c.h.b16 %v1850
        %v4542 = vunpack.c.l.b16 %v1851
        %v4543 = vunpack.c.h.b16 %v1851
        %v4544 = vunpack.c.l.b16 %v1852
        %v4545 = vunpack.c.l.b16 %v1853
        %v4546 = vunpack.c.h.b16 %v1853
        %v4547 = vunpack.c.l.b16 %v1854
        %v4548 = vunpack.c.h.b16 %v1854
        %v4549 = vunpack.c.l.b16 %v1855
        %v4550 = vunpack.c.l.b16 %v1856
        %v4551 = vunpack.c.h.b16 %v1856
        %v4552 = vunpack.c.l.b16 %v1857
        %v4553 = vunpack.c.h.b16 %v1857
        %v4554 = vunpack.c.l.b16 %v1858
        %v4555 = vunpack.c.l.b16 %v1859
        %v4556 = vunpack.c.h.b16 %v1859
        %v4557 = vunpack.c.l.b16 %v1860
        %v4558 = vunpack.c.h.b16 %v1860
        %v4559 = vunpack.c.l.b16 %v1861
        %v4560 = vunpack.c.l.b16 %v1862
        %v4561 = vunpack.c.h.b16 %v1862
        %v4562 = vunpack.c.l.b16 %v1863
        %v4563 = vunpack.c.h.b16 %v1863
        %v4564 = vunpack.c.l.b16 %v1864
        %v4565 = vunpack.c.l.b16 %v1865
        %v4566 = vunpack.c.h.b16 %v1865
        %v4567 = vunpack.c.l.b16 %v1866
        %v4568 = vunpack.c.h.b16 %v1866
        %v4569 = vunpack.c.l.b16 %v1867
        %v4570 = vunpack.c.l.b16 %v1868
        %v4571 = vunpack.c.h.b16 %v1868
        %v4572 = vunpack.c.l.b16 %v1869
        %v4573 = vunpack.c.h.b16 %v1869
        %v4574 = vunpack.c.l.b16 %v1870
        %v4575 = vunpack.c.l.b16 %v1871
        %v4576 = vunpack.c.h.b16 %v1871
        %v4577 = vunpack.c.l.b16 %v1872
        %v4578 = vunpack.c.h.b16 %v1872
        %v4579 = vunpack.c.l.b16 %v1873
        %v4580 = vunpack.c.l.b16 %v1874
        %v4581 = vunpack.c.h.b16 %v1874
        %v4582 = vunpack.c.l.b16 %v1875
        %v4583 = vunpack.c.h.b16 %v1875
        %v4584 = vunpack.c.l.b16 %v1876
        %v4585 = vunpack.c.l.b16 %v1877
        %v4586 = vunpack.c.h.b16 %v1877
        %v4587 = vunpack.c.l.b16 %v1878
        %v4588 = vunpack.c.h.b16 %v1878
        %v4589 = vunpack.c.l.b16 %v1879
        %v4590 = vunpack.c.l.b16 %v1880
        %v4591 = vunpack.c.h.b16 %v1880
        %v4592 = vunpack.c.l.b16 %v1881
        %v4593 = vunpack.c.h.b16 %v1881
        %v4594 = vunpack.c.l.b16 %v1882
        %v4595 = vunpack.c.l.b16 %v1883
        %v4596 = vunpack.c.h.b16 %v1883
        %v4597 = vunpack.c.l.b16 %v1884
        %v4598 = vunpack.c.h.b16 %v1884
        %v4599 = vunpack.c.l.b16 %v1885
        %v4600 = vunpack.c.l.b16 %v1886
        %v4601 = vunpack.c.h.b16 %v1886
        %v4602 = vunpack.c.l.b16 %v1887
        %v4603 = vunpack.c.h.b16 %v1887
        %v4604 = vunpack.c.l.b16 %v1888
        %v4605 = vpack.c.b16 %v4485, %v4480
        %v4606 = vpack.c.b16 %v4486, %v4481
        %v4607 = vpack.c.b16 %v4487, %v4482
        %v4608 = vpack.c.b16 %v4488, %v4483
        %v4609 = vpack.c.b16 %v4489, %v4484
        %v4610 = vpack.c.b16 %v4495, %v4490
        %v4611 = vpack.c.b16 %v4496, %v4491
        %v4612 = vpack.c.b16 %v4497, %v4492
        %v4613 = vpack.c.b16 %v4498, %v4493
        %v4614 = vpack.c.b16 %v4499, %v4494
        %v4615 = vpack.c.b16 %v4505, %v4500
        %v4616 = vpack.c.b16 %v4506, %v4501
        %v4617 = vpack.c.b16 %v4507, %v4502
        %v4618 = vpack.c.b16 %v4508, %v4503
        %v4619 = vpack.c.b16 %v4509, %v4504
        %v4620 = vpack.c.b16 %v4515, %v4510
        %v4621 = vpack.c.b16 %v4516, %v4511
        %v4622 = vpack.c.b16 %v4517, %v4512
        %v4623 = vpack.c.b16 %v4518, %v4513
        %v4624 = vpack.c.b16 %v4519, %v4514
        %v4625 = vpack.c.b16 %v4525, %v4520
        %v4626 = vpack.c.b16 %v4526, %v4521
        %v4627 = vpack.c.b16 %v4527, %v4522
        %v4628 = vpack.c.b16 %v4528, %v4523
        %v4629 = vpack.c.b16 %v4529, %v4524
        %v4630 = vpack.c.b16 %v4535, %v4530
        %v4631 = vpack.c.b16 %v4536, %v4531
        %v4632 = vpack.c.b16 %v4537, %v4532
        %v4633 = vpack.c.b16 %v4538, %v4533
        %v4634 = vpack.c.b16 %v4539, %v4534
        %v4635 = vpack.c.b16 %v4545, %v4540
        %v4636 = vpack.c.b16 %v4546, %v4541
        %v4637 = vpack.c.b16 %v4547, %v4542
        %v4638 = vpack.c.b16 %v4548, %v4543
        %v4639 = vpack.c.b16 %v4549, %v4544
        %v4640 = vpack.c.b16 %v4555, %v4550
        %v4641 = vpack.c.b16 %v4556, %v4551
        %v4642 = vpack.c.b16 %v4557, %v4552
        %v4643 = vpack.c.b16 %v4558, %v4553
        %v4644 = vpack.c.b16 %v4559, %v4554
        %v4645 = vpack.c.b16 %v4565, %v4560
        %v4646 = vpack.c.b16 %v4566, %v4561
        %v4647 = vpack.c.b16 %v4567, %v4562
        %v4648 = vpack.c.b16 %v4568, %v4563
        %v4649 = vpack.c.b16 %v4569, %v4564
        %v4650 = vpack.c.b16 %v4575, %v4570
        %v4651 = vpack.c.b16 %v4576, %v4571
        %v4652 = vpack.c.b16 %v4577, %v4572
        %v4653 = vpack.c.b16 %v4578, %v4573
        %v4654 = vpack.c.b16 %v4579, %v4574
        %v4655 = vpack.c.b16 %v4585, %v4580
        %v4656 = vpack.c.b16 %v4586, %v4581
        %v4657 = vpack.c.b16 %v4587, %v4582
        %v4658 = vpack.c.b16 %v4588, %v4583
        %v4659 = vpack.c.b16 %v4589, %v4584
        %v4660 = vpack.c.b16 %v4595, %v4590
        %v4661 = vpack.c.b16 %v4596, %v4591
        %v4662 = vpack.c.b16 %v4597, %v4592
        %v4663 = vpack.c.b16 %v4598, %v4593
        %v4664 = vpack.c.b16 %v4599, %v4594
        %v4665 = vpack.c.b16 %v4600, %v4600
        %v4666 = vpack.c.b16 %v4601, %v4601
        %v4667 = vpack.c.b16 %v4602, %v4602
        %v4668 = vpack.c.b16 %v4603, %v4603
        %v4669 = vpack.c.b16 %v4604, %v4604
        %vm4730 = vcmask 588800
        %v4732 = vsel %vm4730, %v1813, 0
        %v4735 = vsel %vm3901, %v4665, 0
        %v4738 = vsel %vm3901, %v4666, 0
        %v4741 = vsel %vm3901, %v4667, 0
        %v4744 = vsel %vm3901, %v4668, 0
        %v4747 = vsel %vm3901, %v4669, 0
        %4749 = vmatprep.subr.bf16.mxu0 %v4606
        %4750 = vmatpush1.bf16.msra.mxu0 %v4605
        %4751 = vmatprep.subr.bf16.mxu0 %v4611
        %4752 = vmatpush1.bf16.msra.mxu0 %v4610
        %4753 = vmatprep.subr.bf16.mxu0 %v4616
        %4754 = vmatpush1.bf16.msra.mxu0 %v4615
        %4755 = vmatprep.subr.bf16.mxu0 %v4621
        %4756 = vmatpush1.bf16.msra.mxu0 %v4620
        %4757 = vmatprep.subr.bf16.mxu0 %v4626
        %4758 = vmatpush1.bf16.msra.mxu0 %v4625
        %4759 = vmatprep.subr.bf16.mxu0 %v4631
        %4760 = vmatpush1.bf16.msra.mxu0 %v4630
        %4761 = vmatprep.subr.bf16.mxu0 %v4636
        %4762 = vmatpush1.bf16.msra.mxu0 %v4635
        %4763 = vmatprep.subr.bf16.mxu0 %v4641
        %4764 = vmatpush1.bf16.msra.mxu0 %v4640
        %4765 = vmatprep.subr.bf16.mxu0 %v4646
        %4766 = vmatpush1.bf16.msra.mxu0 %v4645
        %4767 = vmatprep.subr.bf16.mxu0 %v4651
        %4768 = vmatpush1.bf16.msra.mxu0 %v4650
        %4769 = vmatprep.subr.bf16.mxu0 %v4656
        %4770 = vmatpush1.bf16.msra.mxu0 %v4655
        %4771 = vmatprep.subr.bf16.mxu0 %v4661
        %4772 = vmatpush1.bf16.msra.mxu0 %v4660
        %4773 = vmatprep.subr.bf16.mxu0 %v4738
        %4774 = vmatpush1.bf16.msra.mxu0 %v4735
        %4775 = vmatprep.subr.bf16.mxu0 0
        %4776 = vmatpush1.bf16.msra.mxu0 0
        %4777 = vmatprep.subr.bf16.mxu0 0
        %4778 = vmatpush1.bf16.msra.mxu0 0
        %4779 = vmatprep.subr.bf16.mxu0 0
        %4780 = vmatpush1.bf16.msra.mxu0 0
        %4781 = vmatprep.mubr.bf16.mxu0 %v4732
        %4782 = vmatmul.mubr.bf16.gmra.mrb[0].mxu0 %v1812
        %v4783 = vpop.f32.mrb[0].mxu0
        %v4784 = vadd.f32 %v4075, %v4783
        %v4785 = vpop.f32.mrb[0].mxu0
        %v4786 = vadd.f32 %v4077, %v4785
        %v4787 = vpop.f32.mrb[0].mxu0
        %v4788 = vpop.f32.mrb[0].mxu0
        %4789 = vdwg.mxu0
        %4790 = vmatprep.subr.bf16.mxu0 %v4608
        %4791 = vmatpush1.bf16.msra.mxu0 %v4607
        %4792 = vmatprep.subr.bf16.mxu0 %v4613
        %4793 = vmatpush1.bf16.msra.mxu0 %v4612
        %4794 = vmatprep.subr.bf16.mxu0 %v4618
        %4795 = vmatpush1.bf16.msra.mxu0 %v4617
        %4796 = vmatprep.subr.bf16.mxu0 %v4623
        %4797 = vmatpush1.bf16.msra.mxu0 %v4622
        %4798 = vmatprep.subr.bf16.mxu0 %v4628
        %4799 = vmatpush1.bf16.msra.mxu0 %v4627
        %4800 = vmatprep.subr.bf16.mxu0 %v4633
        %4801 = vmatpush1.bf16.msra.mxu0 %v4632
        %4802 = vmatprep.subr.bf16.mxu0 %v4638
        %4803 = vmatpush1.bf16.msra.mxu0 %v4637
        %4804 = vmatprep.subr.bf16.mxu0 %v4643
        %4805 = vmatpush1.bf16.msra.mxu0 %v4642
        %4806 = vmatprep.subr.bf16.mxu0 %v4648
        %4807 = vmatpush1.bf16.msra.mxu0 %v4647
        %4808 = vmatprep.subr.bf16.mxu0 %v4653
        %4809 = vmatpush1.bf16.msra.mxu0 %v4652
        %4810 = vmatprep.subr.bf16.mxu0 %v4658
        %4811 = vmatpush1.bf16.msra.mxu0 %v4657
        %4812 = vmatprep.subr.bf16.mxu0 %v4663
        %4813 = vmatpush1.bf16.msra.mxu0 %v4662
        %4814 = vmatprep.subr.bf16.mxu0 %v4744
        %4815 = vmatpush1.bf16.msra.mxu0 %v4741
        %4816 = vmatprep.subr.bf16.mxu0 0
        %4817 = vmatpush1.bf16.msra.mxu0 0
        %4818 = vmatprep.subr.bf16.mxu0 0
        %4819 = vmatpush1.bf16.msra.mxu0 0
        %4820 = vmatprep.subr.bf16.mxu0 0
        %4821 = vmatpush1.bf16.msra.mxu0 0
        %4822 = vmatprep.mubr.bf16.mxu0 %v4732
        %4823 = vmatmul.mubr.bf16.gmra.mrb[0].mxu0 %v1812
        %v4824 = vpop.f32.mrb[0].mxu0
        %v4825 = vadd.f32 %v4239, %v4824
        %v4826 = vpop.f32.mrb[0].mxu0
        %v4827 = vadd.f32 %v4241, %v4826
        %v4828 = vpop.f32.mrb[0].mxu0
        %v4829 = vpop.f32.mrb[0].mxu0
        %4830 = vdwg.mxu0
        %4831 = vmatprep.subr.bf16.mxu0 0
        %4832 = vmatpush1.bf16.msra.mxu0 %v4609
        %4833 = vmatprep.subr.bf16.mxu0 0
        %4834 = vmatpush1.bf16.msra.mxu0 %v4614
        %4835 = vmatprep.subr.bf16.mxu0 0
        %4836 = vmatpush1.bf16.msra.mxu0 %v4619
        %4837 = vmatprep.subr.bf16.mxu0 0
        %4838 = vmatpush1.bf16.msra.mxu0 %v4624
        %4839 = vmatprep.subr.bf16.mxu0 0
        %4840 = vmatpush1.bf16.msra.mxu0 %v4629
        %4841 = vmatprep.subr.bf16.mxu0 0
        %4842 = vmatpush1.bf16.msra.mxu0 %v4634
        %4843 = vmatprep.subr.bf16.mxu0 0
        %4844 = vmatpush1.bf16.msra.mxu0 %v4639
        %4845 = vmatprep.subr.bf16.mxu0 0
        %4846 = vmatpush1.bf16.msra.mxu0 %v4644
        %4847 = vmatprep.subr.bf16.mxu0 0
        %4848 = vmatpush1.bf16.msra.mxu0 %v4649
        %4849 = vmatprep.subr.bf16.mxu0 0
        %4850 = vmatpush1.bf16.msra.mxu0 %v4654
        %4851 = vmatprep.subr.bf16.mxu0 0
        %4852 = vmatpush1.bf16.msra.mxu0 %v4659
        %4853 = vmatprep.subr.bf16.mxu0 0
        %4854 = vmatpush1.bf16.msra.mxu0 %v4664
        %4855 = vmatprep.subr.bf16.mxu0 0
        %4856 = vmatpush1.bf16.msra.mxu0 %v4747
        %4857 = vmatprep.subr.bf16.mxu0 0
        %4858 = vmatpush1.bf16.msra.mxu0 0
        %4859 = vmatprep.subr.bf16.mxu0 0
        %4860 = vmatpush1.bf16.msra.mxu0 0
        %4861 = vmatprep.subr.bf16.mxu0 0
        %4862 = vmatpush1.bf16.msra.mxu0 0
        %4863 = vmatprep.mubr.bf16.mxu0 %v4732
        %4864 = vmatmul.mubr.bf16.gmra.mrb[0].mxu0 %v1812
        %v4865 = vpop.f32.mrb[0].mxu0
        %v4866 = vadd.f32 %v4400, %v4865
        %v4867 = vpop.f32.mrb[0].mxu0
        %v4868 = vpop.f32.mrb[0].mxu0
        %v4869 = vpop.f32.mrb[0].mxu0
        %4870 = vdwg.mxu0
        %v4871 = vld [vmem:[%s1366] sm:$0x1f]
        %v4873 = vlaneseq
        %v4874 = vshrl.u32 %v4873, 7
        %v4875 = vsub.s32 0, %v4874
        %v4876 = vrot.slane %v4871, %v4875
        %v4877 = vlaneseq
        %v4878 = vshrl.u32 %v4877, 7
        %v4879 = vsub.s32 1, %v4878
        %v4880 = vrot.slane %v4871, %v4879
        %v4881 = vlaneseq
        %v4882 = vshrl.u32 %v4881, 7
        %v4883 = vsub.s32 2, %v4882
        %v4884 = vrot.slane %v4871, %v4883
        %v4885 = vlaneseq
        %v4886 = vshrl.u32 %v4885, 7
        %v4887 = vsub.s32 3, %v4886
        %v4888 = vrot.slane %v4871, %v4887
        %v4889 = vlaneseq
        %v4890 = vshrl.u32 %v4889, 7
        %v4891 = vsub.s32 4, %v4890
        %v4892 = vrot.slane %v4871, %v4891
        %v4898 = vadd.f32 %v4784, %v4876
        %v4899 = vadd.f32 %v4786, %v4880
        %v4900 = vadd.f32 %v4825, %v4884
        %v4901 = vadd.f32 %v4827, %v4888
        %v4902 = vadd.f32 %v4866, %v4892
        %v4903 = vmax.f32 %v4898, 0.0
        %v4904 = vmax.f32 %v4899, 0.0
        %v4905 = vmax.f32 %v4900, 0.0
        %v4906 = vmax.f32 %v4901, 0.0
        %v4907 = vmax.f32 %v4902, 0.0
        %v4908 = vpack.c.bf16 %v4903, %v4903
        %v4909 = vpack.c.bf16 %v4904, %v4904
        %v4910 = vpack.c.bf16 %v4905, %v4905
        %v4911 = vpack.c.bf16 %v4906, %v4906
        %v4912 = vpack.c.bf16 %v4907, %v4907
        %v4913 = vld [vmem:[%s1373] sm:$0xff]
        %v4914 = vld [vmem:[%s1373 + $0x8] sm:$0xff]
        %v4915 = vld [vmem:[%s1373 + $0x10] sm:$0xff]
        %v4916 = vld [vmem:[%s1373 + $0x18] sm:$0xf]
        %v4917 = vld [vmem:[%s1373 + $0x1c] sm:$0xff]
        %v4918 = vld [vmem:[%s1373 + $0x24] sm:$0xff]
        %v4919 = vld [vmem:[%s1373 + $0x2c] sm:$0xff]
        %v4920 = vld [vmem:[%s1373 + $0x34] sm:$0xf]
        %v4921 = vld [vmem:[%s1373 + $0x38] sm:$0xff]
        %v4922 = vld [vmem:[%s1373 + $0x40] sm:$0xff]
        %v4923 = vld [vmem:[%s1373 + $0x48] sm:$0xff]
        %v4924 = vld [vmem:[%s1373 + $0x50] sm:$0xf]
        %v4925 = vld [vmem:[%s1373 + $0x54] sm:$0xff]
        %v4926 = vld [vmem:[%s1373 + $0x5c] sm:$0xff]
        %v4927 = vld [vmem:[%s1373 + $0x64] sm:$0xff]
        %v4928 = vld [vmem:[%s1373 + $0x6c] sm:$0xf]
        %v4929 = vld [vmem:[%s1373 + $0x70] sm:$0xff]
        %v4930 = vld [vmem:[%s1373 + $0x78] sm:$0xff]
        %v4931 = vld [vmem:[%s1373 + $0x80] sm:$0xff]
        %v4932 = vld [vmem:[%s1373 + $0x88] sm:$0xf]
        %v4933 = vld [vmem:[%s1373 + $0x8c] sm:$0xff]
        %v4934 = vld [vmem:[%s1373 + $0x94] sm:$0xff]
        %v4935 = vld [vmem:[%s1373 + $0x9c] sm:$0xff]
        %v4936 = vld [vmem:[%s1373 + $0xa4] sm:$0xf]
        %v4937 = vld [vmem:[%s1373 + $0xa8] sm:$0xff]
        %v4938 = vld [vmem:[%s1373 + $0xb0] sm:$0xff]
        %v4939 = vld [vmem:[%s1373 + $0xb8] sm:$0xff]
        %v4940 = vld [vmem:[%s1373 + $0xc0] sm:$0xf]
        %v4941 = vld [vmem:[%s1373 + $0xc4] sm:$0xff]
        %v4942 = vld [vmem:[%s1373 + $0xcc] sm:$0xff]
        %v4943 = vld [vmem:[%s1373 + $0xd4] sm:$0xff]
        %v4944 = vld [vmem:[%s1373 + $0xdc] sm:$0xf]
        %v4945 = vld [vmem:[%s1373 + $0xe0] sm:$0xff]
        %v4946 = vld [vmem:[%s1373 + $0xe8] sm:$0xff]
        %v4947 = vld [vmem:[%s1373 + $0xf0] sm:$0xff]
        %v4948 = vld [vmem:[%s1373 + $0xf8] sm:$0xf]
        %v4949 = vld [vmem:[%s1373 + $0xfc] sm:$0xff]
        %v4950 = vld [vmem:[%s1373 + $0x104] sm:$0xff]
        %v4951 = vld [vmem:[%s1373 + $0x10c] sm:$0xff]
        %v4952 = vld [vmem:[%s1373 + $0x114] sm:$0xf]
        %v4953 = vld [vmem:[%s1373 + $0x118] sm:$0xff]
        %v4954 = vld [vmem:[%s1373 + $0x120] sm:$0xff]
        %v4955 = vld [vmem:[%s1373 + $0x128] sm:$0xff]
        %v4956 = vld [vmem:[%s1373 + $0x130] sm:$0xf]
        %v4957 = vld [vmem:[%s1373 + $0x134] sm:$0xff]
        %v4958 = vld [vmem:[%s1373 + $0x13c] sm:$0xff]
        %v4959 = vld [vmem:[%s1373 + $0x144] sm:$0xff]
        %v4960 = vld [vmem:[%s1373 + $0x14c] sm:$0xf]
        %v4961 = vld [vmem:[%s1373 + $0x150] sm:$0xff]
        %v4962 = vld [vmem:[%s1373 + $0x158] sm:$0xff]
        %v4963 = vld [vmem:[%s1373 + $0x160] sm:$0xff]
        %v4964 = vld [vmem:[%s1373 + $0x168] sm:$0xf]
        %v4965 = vld [vmem:[%s1373 + $0x16c] sm:$0xff]
        %v4966 = vld [vmem:[%s1373 + $0x174] sm:$0xff]
        %v4967 = vld [vmem:[%s1373 + $0x17c] sm:$0xff]
        %v4968 = vld [vmem:[%s1373 + $0x184] sm:$0xf]
        %v4969 = vld [vmem:[%s1373 + $0x188] sm:$0xff]
        %v4970 = vld [vmem:[%s1373 + $0x190] sm:$0xff]
        %v4971 = vld [vmem:[%s1373 + $0x198] sm:$0xff]
        %v4972 = vld [vmem:[%s1373 + $0x1a0] sm:$0xf]
        %v4973 = vld [vmem:[%s1373 + $0x1a4] sm:$0xff]
        %v4974 = vld [vmem:[%s1373 + $0x1ac] sm:$0xff]
        %v4975 = vld [vmem:[%s1373 + $0x1b4] sm:$0xff]
        %v4976 = vld [vmem:[%s1373 + $0x1bc] sm:$0xf]
        %v4977 = vld [vmem:[%s1373 + $0x1c0] sm:$0xff]
        %v4978 = vld [vmem:[%s1373 + $0x1c8] sm:$0xff]
        %v4979 = vld [vmem:[%s1373 + $0x1d0] sm:$0xff]
        %v4980 = vld [vmem:[%s1373 + $0x1d8] sm:$0xf]
        %v4981 = vld [vmem:[%s1373 + $0x1dc] sm:$0xff]
        %v4982 = vld [vmem:[%s1373 + $0x1e4] sm:$0xff]
        %v4983 = vld [vmem:[%s1373 + $0x1ec] sm:$0xff]
        %v4984 = vld [vmem:[%s1373 + $0x1f4] sm:$0xf]
        %v4985 = vld [vmem:[%s1373 + $0x1f8] sm:$0xff]
        %v4986 = vld [vmem:[%s1373 + $0x200] sm:$0xff]
        %v4987 = vld [vmem:[%s1373 + $0x208] sm:$0xff]
        %v4988 = vld [vmem:[%s1373 + $0x210] sm:$0xf]
        %v4989 = vld [vmem:[%s1373 + $0x214] sm:$0xff]
        %v4990 = vld [vmem:[%s1373 + $0x21c] sm:$0xff]
        %v4991 = vld [vmem:[%s1373 + $0x224] sm:$0xff]
        %v4992 = vld [vmem:[%s1373 + $0x22c] sm:$0xf]
        %v4993 = vld [vmem:[%s1373 + $0x230] sm:$0xff]
        %v4994 = vld [vmem:[%s1373 + $0x238] sm:$0xff]
        %v4995 = vld [vmem:[%s1373 + $0x240] sm:$0xff]
        %v4996 = vld [vmem:[%s1373 + $0x248] sm:$0xf]
        %v4997 = vld [vmem:[%s1373 + $0x24c] sm:$0xff]
        %v4998 = vld [vmem:[%s1373 + $0x254] sm:$0xff]
        %v4999 = vld [vmem:[%s1373 + $0x25c] sm:$0xff]
        %v5000 = vld [vmem:[%s1373 + $0x264] sm:$0xf]
        %v5001 = vld [vmem:[%s1373 + $0x268] sm:$0xff]
        %v5002 = vld [vmem:[%s1373 + $0x270] sm:$0xff]
        %v5003 = vld [vmem:[%s1373 + $0x278] sm:$0xff]
        %v5004 = vld [vmem:[%s1373 + $0x280] sm:$0xf]
        %v5005 = vld [vmem:[%s1373 + $0x284] sm:$0xff]
        %v5006 = vld [vmem:[%s1373 + $0x28c] sm:$0xff]
        %v5007 = vld [vmem:[%s1373 + $0x294] sm:$0xff]
        %v5008 = vld [vmem:[%s1373 + $0x29c] sm:$0xf]
        %v5009 = vld [vmem:[%s1373 + $0x2a0] sm:$0xff]
        %v5010 = vld [vmem:[%s1373 + $0x2a8] sm:$0xff]
        %v5011 = vld [vmem:[%s1373 + $0x2b0] sm:$0xff]
        %v5012 = vld [vmem:[%s1373 + $0x2b8] sm:$0xf]
        %v5013 = vld [vmem:[%s1373 + $0x2bc] sm:$0xff]
        %v5014 = vld [vmem:[%s1373 + $0x2c4] sm:$0xff]
        %v5015 = vld [vmem:[%s1373 + $0x2cc] sm:$0xff]
        %v5016 = vld [vmem:[%s1373 + $0x2d4] sm:$0xf]
        %v5017 = vld [vmem:[%s1373 + $0x2d8] sm:$0xff]
        %v5018 = vld [vmem:[%s1373 + $0x2e0] sm:$0xff]
        %v5019 = vld [vmem:[%s1373 + $0x2e8] sm:$0xff]
        %v5020 = vld [vmem:[%s1373 + $0x2f0] sm:$0xf]
        %v5021 = vld [vmem:[%s1373 + $0x2f4] sm:$0xff]
        %v5022 = vld [vmem:[%s1373 + $0x2fc] sm:$0xff]
        %v5023 = vld [vmem:[%s1373 + $0x304] sm:$0xff]
        %v5024 = vld [vmem:[%s1373 + $0x30c] sm:$0xf]
        %v5025 = vld [vmem:[%s1373 + $0x310] sm:$0xff]
        %v5026 = vld [vmem:[%s1373 + $0x318] sm:$0xff]
        %v5027 = vld [vmem:[%s1373 + $0x320] sm:$0xff]
        %v5028 = vld [vmem:[%s1373 + $0x328] sm:$0xf]
        %v5029 = vld [vmem:[%s1373 + $0x32c] sm:$0xff]
        %v5030 = vld [vmem:[%s1373 + $0x334] sm:$0xff]
        %v5031 = vld [vmem:[%s1373 + $0x33c] sm:$0xff]
        %v5032 = vld [vmem:[%s1373 + $0x344] sm:$0xf]
        %v5033 = vld [vmem:[%s1373 + $0x348] sm:$0xff]
        %v5034 = vld [vmem:[%s1373 + $0x350] sm:$0xff]
        %v5035 = vld [vmem:[%s1373 + $0x358] sm:$0xff]
        %v5036 = vld [vmem:[%s1373 + $0x360] sm:$0xf]
        %v5037 = vld [vmem:[%s1373 + $0x364] sm:$0xff]
        %v5038 = vld [vmem:[%s1373 + $0x36c] sm:$0xff]
        %v5039 = vld [vmem:[%s1373 + $0x374] sm:$0xff]
        %v5040 = vld [vmem:[%s1373 + $0x37c] sm:$0xf]
        %v5041 = vld [vmem:[%s1373 + $0x380] sm:$0xff]
        %v5042 = vld [vmem:[%s1373 + $0x388] sm:$0xff]
        %v5043 = vld [vmem:[%s1373 + $0x390] sm:$0xff]
        %v5044 = vld [vmem:[%s1373 + $0x398] sm:$0xf]
        %v5045 = vld [vmem:[%s1373 + $0x39c] sm:$0xff]
        %v5046 = vld [vmem:[%s1373 + $0x3a4] sm:$0xff]
        %v5047 = vld [vmem:[%s1373 + $0x3ac] sm:$0xff]
        %v5048 = vld [vmem:[%s1373 + $0x3b4] sm:$0xf]
        %v5049 = vld [vmem:[%s1373 + $0x3b8] sm:$0xff]
        %v5050 = vld [vmem:[%s1373 + $0x3c0] sm:$0xff]
        %v5051 = vld [vmem:[%s1373 + $0x3c8] sm:$0xff]
        %v5052 = vld [vmem:[%s1373 + $0x3d0] sm:$0xf]
        %v5053 = vld [vmem:[%s1373 + $0x3d4] sm:$0xff]
        %v5054 = vld [vmem:[%s1373 + $0x3dc] sm:$0xff]
        %v5055 = vld [vmem:[%s1373 + $0x3e4] sm:$0xff]
        %v5056 = vld [vmem:[%s1373 + $0x3ec] sm:$0xf]
        %v5057 = vld [vmem:[%s1373 + $0x3f0] sm:$0xff]
        %v5058 = vld [vmem:[%s1373 + $0x3f8] sm:$0xff]
        %v5059 = vld [vmem:[%s1373 + $0x400] sm:$0xff]
        %v5060 = vld [vmem:[%s1373 + $0x408] sm:$0xf]
        %v5061 = vld [vmem:[%s1373 + $0x40c] sm:$0xff]
        %v5062 = vld [vmem:[%s1373 + $0x414] sm:$0xff]
        %v5063 = vld [vmem:[%s1373 + $0x41c] sm:$0xff]
        %v5064 = vld [vmem:[%s1373 + $0x424] sm:$0xf]
        %v5065 = vld [vmem:[%s1373 + $0x428] sm:$0xff]
        %v5066 = vld [vmem:[%s1373 + $0x430] sm:$0xff]
        %v5067 = vld [vmem:[%s1373 + $0x438] sm:$0xff]
        %v5068 = vld [vmem:[%s1373 + $0x440] sm:$0xf]
        %v5069 = vld [vmem:[%s1373 + $0x444] sm:$0xff]
        %v5070 = vld [vmem:[%s1373 + $0x44c] sm:$0xff]
        %v5071 = vld [vmem:[%s1373 + $0x454] sm:$0xff]
        %v5072 = vld [vmem:[%s1373 + $0x45c] sm:$0xf]
        %v5073 = vld [vmem:[%s1373 + $0x460] sm:$0xff]
        %v5074 = vld [vmem:[%s1373 + $0x468] sm:$0xff]
        %v5075 = vld [vmem:[%s1373 + $0x470] sm:$0xff]
        %v5076 = vld [vmem:[%s1373 + $0x478] sm:$0xf]
        %v5077 = vld [vmem:[%s1373 + $0x47c] sm:$0xff]
        %v5078 = vld [vmem:[%s1373 + $0x484] sm:$0xff]
        %v5079 = vld [vmem:[%s1373 + $0x48c] sm:$0xff]
        %v5080 = vld [vmem:[%s1373 + $0x494] sm:$0xf]
        %v5081 = vld [vmem:[%s1373 + $0x498] sm:$0xff]
        %v5082 = vld [vmem:[%s1373 + $0x4a0] sm:$0xff]
        %v5083 = vld [vmem:[%s1373 + $0x4a8] sm:$0xff]
        %v5084 = vld [vmem:[%s1373 + $0x4b0] sm:$0xf]
        %v5085 = vld [vmem:[%s1373 + $0x4b4] sm:$0xff]
        %v5086 = vld [vmem:[%s1373 + $0x4bc] sm:$0xff]
        %v5087 = vld [vmem:[%s1373 + $0x4c4] sm:$0xff]
        %v5088 = vld [vmem:[%s1373 + $0x4cc] sm:$0xf]
        %v5089 = vld [vmem:[%s1373 + $0x4d0] sm:$0xff]
        %v5090 = vld [vmem:[%s1373 + $0x4d8] sm:$0xff]
        %v5091 = vld [vmem:[%s1373 + $0x4e0] sm:$0xff]
        %v5092 = vld [vmem:[%s1373 + $0x4e8] sm:$0xf]
        %v5093 = vld [vmem:[%s1373 + $0x4ec] sm:$0xff]
        %v5094 = vld [vmem:[%s1373 + $0x4f4] sm:$0xff]
        %v5095 = vld [vmem:[%s1373 + $0x4fc] sm:$0xff]
        %v5096 = vld [vmem:[%s1373 + $0x504] sm:$0xf]
        %v5097 = vld [vmem:[%s1373 + $0x508] sm:$0xff]
        %v5098 = vld [vmem:[%s1373 + $0x510] sm:$0xff]
        %v5099 = vld [vmem:[%s1373 + $0x518] sm:$0xff]
        %v5100 = vld [vmem:[%s1373 + $0x520] sm:$0xf]
        %v5101 = vld [vmem:[%s1373 + $0x524] sm:$0xff]
        %v5102 = vld [vmem:[%s1373 + $0x52c] sm:$0xff]
        %v5103 = vld [vmem:[%s1373 + $0x534] sm:$0xff]
        %v5104 = vld [vmem:[%s1373 + $0x53c] sm:$0xf]
        %v5105 = vld [vmem:[%s1373 + $0x540] sm:$0xff]
        %v5106 = vld [vmem:[%s1373 + $0x548] sm:$0xff]
        %v5107 = vld [vmem:[%s1373 + $0x550] sm:$0xff]
        %v5108 = vld [vmem:[%s1373 + $0x558] sm:$0xf]
        %v5109 = vld [vmem:[%s1373 + $0x55c] sm:$0xff]
        %v5110 = vld [vmem:[%s1373 + $0x564] sm:$0xff]
        %v5111 = vld [vmem:[%s1373 + $0x56c] sm:$0xff]
        %v5112 = vld [vmem:[%s1373 + $0x574] sm:$0xf]
        %v5113 = vld [vmem:[%s1373 + $0x578] sm:$0xff]
        %v5114 = vld [vmem:[%s1373 + $0x580] sm:$0xff]
        %v5115 = vld [vmem:[%s1373 + $0x588] sm:$0xff]
        %v5116 = vld [vmem:[%s1373 + $0x590] sm:$0xf]
        %v5117 = vld [vmem:[%s1373 + $0x594] sm:$0xff]
        %v5118 = vld [vmem:[%s1373 + $0x59c] sm:$0xff]
        %v5119 = vld [vmem:[%s1373 + $0x5a4] sm:$0xff]
        %v5120 = vld [vmem:[%s1373 + $0x5ac] sm:$0xf]
        %v5121 = vld [vmem:[%s1373 + $0x5b0] sm:$0xff]
        %v5122 = vld [vmem:[%s1373 + $0x5b8] sm:$0xff]
        %v5123 = vld [vmem:[%s1373 + $0x5c0] sm:$0xff]
        %v5124 = vld [vmem:[%s1373 + $0x5c8] sm:$0xf]
        %v5125 = vld [vmem:[%s1373 + $0x5cc] sm:$0xff]
        %v5126 = vld [vmem:[%s1373 + $0x5d4] sm:$0xff]
        %v5127 = vld [vmem:[%s1373 + $0x5dc] sm:$0xff]
        %v5128 = vld [vmem:[%s1373 + $0x5e4] sm:$0xf]
        %v5129 = vld [vmem:[%s1373 + $0x5e8] sm:$0xff]
        %v5130 = vld [vmem:[%s1373 + $0x5f0] sm:$0xff]
        %v5131 = vld [vmem:[%s1373 + $0x5f8] sm:$0xff]
        %v5132 = vld [vmem:[%s1373 + $0x600] sm:$0xf]
        %v5133 = vld [vmem:[%s1373 + $0x604] sm:$0xff]
        %v5134 = vld [vmem:[%s1373 + $0x60c] sm:$0xff]
        %v5135 = vld [vmem:[%s1373 + $0x614] sm:$0xff]
        %v5136 = vld [vmem:[%s1373 + $0x61c] sm:$0xf]
        %v5137 = vld [vmem:[%s1373 + $0x620] sm:$0xff]
        %v5138 = vld [vmem:[%s1373 + $0x628] sm:$0xff]
        %v5139 = vld [vmem:[%s1373 + $0x630] sm:$0xff]
        %v5140 = vld [vmem:[%s1373 + $0x638] sm:$0xf]
        %v5141 = vld [vmem:[%s1373 + $0x63c] sm:$0xff]
        %v5142 = vld [vmem:[%s1373 + $0x644] sm:$0xff]
        %v5143 = vld [vmem:[%s1373 + $0x64c] sm:$0xff]
        %v5144 = vld [vmem:[%s1373 + $0x654] sm:$0xf]
        %v5145 = vld [vmem:[%s1373 + $0x658] sm:$0xff]
        %v5146 = vld [vmem:[%s1373 + $0x660] sm:$0xff]
        %v5147 = vld [vmem:[%s1373 + $0x668] sm:$0xff]
        %v5148 = vld [vmem:[%s1373 + $0x670] sm:$0xf]
        %v5149 = vld [vmem:[%s1373 + $0x674] sm:$0xff]
        %v5150 = vld [vmem:[%s1373 + $0x67c] sm:$0xff]
        %v5151 = vld [vmem:[%s1373 + $0x684] sm:$0xff]
        %v5152 = vld [vmem:[%s1373 + $0x68c] sm:$0xf]
        %v5153 = vld [vmem:[%s1373 + $0x690] sm:$0xff]
        %v5154 = vld [vmem:[%s1373 + $0x698] sm:$0xff]
        %v5155 = vld [vmem:[%s1373 + $0x6a0] sm:$0xff]
        %v5156 = vld [vmem:[%s1373 + $0x6a8] sm:$0xf]
        %v5157 = vld [vmem:[%s1373 + $0x6ac] sm:$0xff]
        %v5158 = vld [vmem:[%s1373 + $0x6b4] sm:$0xff]
        %v5159 = vld [vmem:[%s1373 + $0x6bc] sm:$0xff]
        %v5160 = vld [vmem:[%s1373 + $0x6c4] sm:$0xf]
        %v5161 = vld [vmem:[%s1373 + $0x6c8] sm:$0xff]
        %v5162 = vld [vmem:[%s1373 + $0x6d0] sm:$0xff]
        %v5163 = vld [vmem:[%s1373 + $0x6d8] sm:$0xff]
        %v5164 = vld [vmem:[%s1373 + $0x6e0] sm:$0xf]
        %v5165 = vld [vmem:[%s1373 + $0x6e4] sm:$0xff]
        %v5166 = vld [vmem:[%s1373 + $0x6ec] sm:$0xff]
        %v5167 = vld [vmem:[%s1373 + $0x6f4] sm:$0xff]
        %v5168 = vld [vmem:[%s1373 + $0x6fc] sm:$0xf]
        %v5169 = vld [vmem:[%s1373 + $0x700] sm:$0xff]
        %v5170 = vld [vmem:[%s1373 + $0x708] sm:$0xff]
        %v5171 = vld [vmem:[%s1373 + $0x710] sm:$0xff]
        %v5172 = vld [vmem:[%s1373 + $0x718] sm:$0xf]
        %v5173 = vld [vmem:[%s1373 + $0x71c] sm:$0xff]
        %v5174 = vld [vmem:[%s1373 + $0x724] sm:$0xff]
        %v5175 = vld [vmem:[%s1373 + $0x72c] sm:$0xff]
        %v5176 = vld [vmem:[%s1373 + $0x734] sm:$0xf]
        %v5177 = vld [vmem:[%s1373 + $0x738] sm:$0xff]
        %v5178 = vld [vmem:[%s1373 + $0x740] sm:$0xff]
        %v5179 = vld [vmem:[%s1373 + $0x748] sm:$0xff]
        %v5180 = vld [vmem:[%s1373 + $0x750] sm:$0xf]
        %v5181 = vld [vmem:[%s1373 + $0x754] sm:$0xff]
        %v5182 = vld [vmem:[%s1373 + $0x75c] sm:$0xff]
        %v5183 = vld [vmem:[%s1373 + $0x764] sm:$0xff]
        %v5184 = vld [vmem:[%s1373 + $0x76c] sm:$0xf]
        %v5185 = vld [vmem:[%s1373 + $0x770] sm:$0xff]
        %v5186 = vld [vmem:[%s1373 + $0x778] sm:$0xff]
        %v5187 = vld [vmem:[%s1373 + $0x780] sm:$0xff]
        %v5188 = vld [vmem:[%s1373 + $0x788] sm:$0xf]
        %v5189 = vld [vmem:[%s1373 + $0x78c] sm:$0xff]
        %v5190 = vld [vmem:[%s1373 + $0x794] sm:$0xff]
        %v5191 = vld [vmem:[%s1373 + $0x79c] sm:$0xff]
        %v5192 = vld [vmem:[%s1373 + $0x7a4] sm:$0xf]
        %v5193 = vld [vmem:[%s1373 + $0x7a8] sm:$0xff]
        %v5194 = vld [vmem:[%s1373 + $0x7b0] sm:$0xff]
        %v5195 = vld [vmem:[%s1373 + $0x7b8] sm:$0xff]
        %v5196 = vld [vmem:[%s1373 + $0x7c0] sm:$0xf]
        %v5197 = vld [vmem:[%s1373 + $0x7c4] sm:$0xff]
        %v5198 = vld [vmem:[%s1373 + $0x7cc] sm:$0xff]
        %v5199 = vld [vmem:[%s1373 + $0x7d4] sm:$0xff]
        %v5200 = vld [vmem:[%s1373 + $0x7dc] sm:$0xf]
        %v5201 = vld [vmem:[%s1373 + $0x7e0] sm:$0xff]
        %v5202 = vld [vmem:[%s1373 + $0x7e8] sm:$0xff]
        %v5203 = vld [vmem:[%s1373 + $0x7f0] sm:$0xff]
        %v5204 = vld [vmem:[%s1373 + $0x7f8] sm:$0xf]
        %v5205 = vld [vmem:[%s1373 + $0x7fc] sm:$0xff]
        %v5206 = vld [vmem:[%s1373 + $0x804] sm:$0xff]
        %v5207 = vld [vmem:[%s1373 + $0x80c] sm:$0xff]
        %v5208 = vld [vmem:[%s1373 + $0x814] sm:$0xf]
        %v5209 = vld [vmem:[%s1373 + $0x818] sm:$0xff]
        %v5210 = vld [vmem:[%s1373 + $0x820] sm:$0xff]
        %v5211 = vld [vmem:[%s1373 + $0x828] sm:$0xff]
        %v5212 = vld [vmem:[%s1373 + $0x830] sm:$0xf]
        %v5213 = vld [vmem:[%s1373 + $0x834] sm:$0xff]
        %v5214 = vld [vmem:[%s1373 + $0x83c] sm:$0xff]
        %v5215 = vld [vmem:[%s1373 + $0x844] sm:$0xff]
        %v5216 = vld [vmem:[%s1373 + $0x84c] sm:$0xf]
        %v5217 = vld [vmem:[%s1373 + $0x850] sm:$0xff]
        %v5218 = vld [vmem:[%s1373 + $0x858] sm:$0xff]
        %v5219 = vld [vmem:[%s1373 + $0x860] sm:$0xff]
        %v5220 = vld [vmem:[%s1373 + $0x868] sm:$0xf]
        %v5221 = vld [vmem:[%s1373 + $0x86c] sm:$0xff]
        %v5222 = vld [vmem:[%s1373 + $0x874] sm:$0xff]
        %v5223 = vld [vmem:[%s1373 + $0x87c] sm:$0xff]
        %v5224 = vld [vmem:[%s1373 + $0x884] sm:$0xf]
        %v5225 = vld [vmem:[%s1373 + $0x888] sm:$0xff]
        %v5226 = vld [vmem:[%s1373 + $0x890] sm:$0xff]
        %v5227 = vld [vmem:[%s1373 + $0x898] sm:$0xff]
        %v5228 = vld [vmem:[%s1373 + $0x8a0] sm:$0xf]
        %v5229 = vld [vmem:[%s1373 + $0x8a4] sm:$0xff]
        %v5230 = vld [vmem:[%s1373 + $0x8ac] sm:$0xff]
        %v5231 = vld [vmem:[%s1373 + $0x8b4] sm:$0xff]
        %v5232 = vld [vmem:[%s1373 + $0x8bc] sm:$0xf]
        %v5553 = vunpack.c.l.b16 %v4913
        %v5554 = vunpack.c.h.b16 %v4913
        %v5555 = vunpack.c.l.b16 %v4914
        %v5556 = vunpack.c.h.b16 %v4914
        %v5557 = vunpack.c.l.b16 %v4915
        %v5558 = vunpack.c.h.b16 %v4915
        %v5559 = vunpack.c.l.b16 %v4916
        %v5560 = vunpack.c.l.b16 %v4917
        %v5561 = vunpack.c.h.b16 %v4917
        %v5562 = vunpack.c.l.b16 %v4918
        %v5563 = vunpack.c.h.b16 %v4918
        %v5564 = vunpack.c.l.b16 %v4919
        %v5565 = vunpack.c.h.b16 %v4919
        %v5566 = vunpack.c.l.b16 %v4920
        %v5567 = vunpack.c.l.b16 %v4921
        %v5568 = vunpack.c.h.b16 %v4921
        %v5569 = vunpack.c.l.b16 %v4922
        %v5570 = vunpack.c.h.b16 %v4922
        %v5571 = vunpack.c.l.b16 %v4923
        %v5572 = vunpack.c.h.b16 %v4923
        %v5573 = vunpack.c.l.b16 %v4924
        %v5574 = vunpack.c.l.b16 %v4925
        %v5575 = vunpack.c.h.b16 %v4925
        %v5576 = vunpack.c.l.b16 %v4926
        %v5577 = vunpack.c.h.b16 %v4926
        %v5578 = vunpack.c.l.b16 %v4927
        %v5579 = vunpack.c.h.b16 %v4927
        %v5580 = vunpack.c.l.b16 %v4928
        %v5581 = vunpack.c.l.b16 %v4929
        %v5582 = vunpack.c.h.b16 %v4929
        %v5583 = vunpack.c.l.b16 %v4930
        %v5584 = vunpack.c.h.b16 %v4930
        %v5585 = vunpack.c.l.b16 %v4931
        %v5586 = vunpack.c.h.b16 %v4931
        %v5587 = vunpack.c.l.b16 %v4932
        %v5588 = vunpack.c.l.b16 %v4933
        %v5589 = vunpack.c.h.b16 %v4933
        %v5590 = vunpack.c.l.b16 %v4934
        %v5591 = vunpack.c.h.b16 %v4934
        %v5592 = vunpack.c.l.b16 %v4935
        %v5593 = vunpack.c.h.b16 %v4935
        %v5594 = vunpack.c.l.b16 %v4936
        %v5595 = vunpack.c.l.b16 %v4937
        %v5596 = vunpack.c.h.b16 %v4937
        %v5597 = vunpack.c.l.b16 %v4938
        %v5598 = vunpack.c.h.b16 %v4938
        %v5599 = vunpack.c.l.b16 %v4939
        %v5600 = vunpack.c.h.b16 %v4939
        %v5601 = vunpack.c.l.b16 %v4940
        %v5602 = vunpack.c.l.b16 %v4941
        %v5603 = vunpack.c.h.b16 %v4941
        %v5604 = vunpack.c.l.b16 %v4942
        %v5605 = vunpack.c.h.b16 %v4942
        %v5606 = vunpack.c.l.b16 %v4943
        %v5607 = vunpack.c.h.b16 %v4943
        %v5608 = vunpack.c.l.b16 %v4944
        %v5609 = vunpack.c.l.b16 %v4945
        %v5610 = vunpack.c.h.b16 %v4945
        %v5611 = vunpack.c.l.b16 %v4946
        %v5612 = vunpack.c.h.b16 %v4946
        %v5613 = vunpack.c.l.b16 %v4947
        %v5614 = vunpack.c.h.b16 %v4947
        %v5615 = vunpack.c.l.b16 %v4948
        %v5616 = vunpack.c.l.b16 %v4949
        %v5617 = vunpack.c.h.b16 %v4949
        %v5618 = vunpack.c.l.b16 %v4950
        %v5619 = vunpack.c.h.b16 %v4950
        %v5620 = vunpack.c.l.b16 %v4951
        %v5621 = vunpack.c.h.b16 %v4951
        %v5622 = vunpack.c.l.b16 %v4952
        %v5623 = vunpack.c.l.b16 %v4953
        %v5624 = vunpack.c.h.b16 %v4953
        %v5625 = vunpack.c.l.b16 %v4954
        %v5626 = vunpack.c.h.b16 %v4954
        %v5627 = vunpack.c.l.b16 %v4955
        %v5628 = vunpack.c.h.b16 %v4955
        %v5629 = vunpack.c.l.b16 %v4956
        %v5630 = vunpack.c.l.b16 %v4957
        %v5631 = vunpack.c.h.b16 %v4957
        %v5632 = vunpack.c.l.b16 %v4958
        %v5633 = vunpack.c.h.b16 %v4958
        %v5634 = vunpack.c.l.b16 %v4959
        %v5635 = vunpack.c.h.b16 %v4959
        %v5636 = vunpack.c.l.b16 %v4960
        %v5637 = vunpack.c.l.b16 %v4961
        %v5638 = vunpack.c.h.b16 %v4961
        %v5639 = vunpack.c.l.b16 %v4962
        %v5640 = vunpack.c.h.b16 %v4962
        %v5641 = vunpack.c.l.b16 %v4963
        %v5642 = vunpack.c.h.b16 %v4963
        %v5643 = vunpack.c.l.b16 %v4964
        %v5644 = vunpack.c.l.b16 %v4965
        %v5645 = vunpack.c.h.b16 %v4965
        %v5646 = vunpack.c.l.b16 %v4966
        %v5647 = vunpack.c.h.b16 %v4966
        %v5648 = vunpack.c.l.b16 %v4967
        %v5649 = vunpack.c.h.b16 %v4967
        %v5650 = vunpack.c.l.b16 %v4968
        %v5651 = vunpack.c.l.b16 %v4969
        %v5652 = vunpack.c.h.b16 %v4969
        %v5653 = vunpack.c.l.b16 %v4970
        %v5654 = vunpack.c.h.b16 %v4970
        %v5655 = vunpack.c.l.b16 %v4971
        %v5656 = vunpack.c.h.b16 %v4971
        %v5657 = vunpack.c.l.b16 %v4972
        %v5658 = vunpack.c.l.b16 %v4973
        %v5659 = vunpack.c.h.b16 %v4973
        %v5660 = vunpack.c.l.b16 %v4974
        %v5661 = vunpack.c.h.b16 %v4974
        %v5662 = vunpack.c.l.b16 %v4975
        %v5663 = vunpack.c.h.b16 %v4975
        %v5664 = vunpack.c.l.b16 %v4976
        %v5665 = vunpack.c.l.b16 %v4977
        %v5666 = vunpack.c.h.b16 %v4977
        %v5667 = vunpack.c.l.b16 %v4978
        %v5668 = vunpack.c.h.b16 %v4978
        %v5669 = vunpack.c.l.b16 %v4979
        %v5670 = vunpack.c.h.b16 %v4979
        %v5671 = vunpack.c.l.b16 %v4980
        %v5672 = vunpack.c.l.b16 %v4981
        %v5673 = vunpack.c.h.b16 %v4981
        %v5674 = vunpack.c.l.b16 %v4982
        %v5675 = vunpack.c.h.b16 %v4982
        %v5676 = vunpack.c.l.b16 %v4983
        %v5677 = vunpack.c.h.b16 %v4983
        %v5678 = vunpack.c.l.b16 %v4984
        %v5679 = vunpack.c.l.b16 %v4985
        %v5680 = vunpack.c.h.b16 %v4985
        %v5681 = vunpack.c.l.b16 %v4986
        %v5682 = vunpack.c.h.b16 %v4986
        %v5683 = vunpack.c.l.b16 %v4987
        %v5684 = vunpack.c.h.b16 %v4987
        %v5685 = vunpack.c.l.b16 %v4988
        %v5686 = vunpack.c.l.b16 %v4989
        %v5687 = vunpack.c.h.b16 %v4989
        %v5688 = vunpack.c.l.b16 %v4990
        %v5689 = vunpack.c.h.b16 %v4990
        %v5690 = vunpack.c.l.b16 %v4991
        %v5691 = vunpack.c.h.b16 %v4991
        %v5692 = vunpack.c.l.b16 %v4992
        %v5693 = vunpack.c.l.b16 %v4993
        %v5694 = vunpack.c.h.b16 %v4993
        %v5695 = vunpack.c.l.b16 %v4994
        %v5696 = vunpack.c.h.b16 %v4994
        %v5697 = vunpack.c.l.b16 %v4995
        %v5698 = vunpack.c.h.b16 %v4995
        %v5699 = vunpack.c.l.b16 %v4996
        %v5700 = vunpack.c.l.b16 %v4997
        %v5701 = vunpack.c.h.b16 %v4997
        %v5702 = vunpack.c.l.b16 %v4998
        %v5703 = vunpack.c.h.b16 %v4998
        %v5704 = vunpack.c.l.b16 %v4999
        %v5705 = vunpack.c.h.b16 %v4999
        %v5706 = vunpack.c.l.b16 %v5000
        %v5707 = vunpack.c.l.b16 %v5001
        %v5708 = vunpack.c.h.b16 %v5001
        %v5709 = vunpack.c.l.b16 %v5002
        %v5710 = vunpack.c.h.b16 %v5002
        %v5711 = vunpack.c.l.b16 %v5003
        %v5712 = vunpack.c.h.b16 %v5003
        %v5713 = vunpack.c.l.b16 %v5004
        %v5714 = vunpack.c.l.b16 %v5005
        %v5715 = vunpack.c.h.b16 %v5005
        %v5716 = vunpack.c.l.b16 %v5006
        %v5717 = vunpack.c.h.b16 %v5006
        %v5718 = vunpack.c.l.b16 %v5007
        %v5719 = vunpack.c.h.b16 %v5007
        %v5720 = vunpack.c.l.b16 %v5008
        %v5721 = vunpack.c.l.b16 %v5009
        %v5722 = vunpack.c.h.b16 %v5009
        %v5723 = vunpack.c.l.b16 %v5010
        %v5724 = vunpack.c.h.b16 %v5010
        %v5725 = vunpack.c.l.b16 %v5011
        %v5726 = vunpack.c.h.b16 %v5011
        %v5727 = vunpack.c.l.b16 %v5012
        %v5728 = vunpack.c.l.b16 %v5013
        %v5729 = vunpack.c.h.b16 %v5013
        %v5730 = vunpack.c.l.b16 %v5014
        %v5731 = vunpack.c.h.b16 %v5014
        %v5732 = vunpack.c.l.b16 %v5015
        %v5733 = vunpack.c.h.b16 %v5015
        %v5734 = vunpack.c.l.b16 %v5016
        %v5735 = vunpack.c.l.b16 %v5017
        %v5736 = vunpack.c.h.b16 %v5017
        %v5737 = vunpack.c.l.b16 %v5018
        %v5738 = vunpack.c.h.b16 %v5018
        %v5739 = vunpack.c.l.b16 %v5019
        %v5740 = vunpack.c.h.b16 %v5019
        %v5741 = vunpack.c.l.b16 %v5020
        %v5742 = vunpack.c.l.b16 %v5021
        %v5743 = vunpack.c.h.b16 %v5021
        %v5744 = vunpack.c.l.b16 %v5022
        %v5745 = vunpack.c.h.b16 %v5022
        %v5746 = vunpack.c.l.b16 %v5023
        %v5747 = vunpack.c.h.b16 %v5023
        %v5748 = vunpack.c.l.b16 %v5024
        %v5749 = vunpack.c.l.b16 %v5025
        %v5750 = vunpack.c.h.b16 %v5025
        %v5751 = vunpack.c.l.b16 %v5026
        %v5752 = vunpack.c.h.b16 %v5026
        %v5753 = vunpack.c.l.b16 %v5027
        %v5754 = vunpack.c.h.b16 %v5027
        %v5755 = vunpack.c.l.b16 %v5028
        %v5756 = vunpack.c.l.b16 %v5029
        %v5757 = vunpack.c.h.b16 %v5029
        %v5758 = vunpack.c.l.b16 %v5030
        %v5759 = vunpack.c.h.b16 %v5030
        %v5760 = vunpack.c.l.b16 %v5031
        %v5761 = vunpack.c.h.b16 %v5031
        %v5762 = vunpack.c.l.b16 %v5032
        %v5763 = vunpack.c.l.b16 %v5033
        %v5764 = vunpack.c.h.b16 %v5033
        %v5765 = vunpack.c.l.b16 %v5034
        %v5766 = vunpack.c.h.b16 %v5034
        %v5767 = vunpack.c.l.b16 %v5035
        %v5768 = vunpack.c.h.b16 %v5035
        %v5769 = vunpack.c.l.b16 %v5036
        %v5770 = vunpack.c.l.b16 %v5037
        %v5771 = vunpack.c.h.b16 %v5037
        %v5772 = vunpack.c.l.b16 %v5038
        %v5773 = vunpack.c.h.b16 %v5038
        %v5774 = vunpack.c.l.b16 %v5039
        %v5775 = vunpack.c.h.b16 %v5039
        %v5776 = vunpack.c.l.b16 %v5040
        %v5777 = vunpack.c.l.b16 %v5041
        %v5778 = vunpack.c.h.b16 %v5041
        %v5779 = vunpack.c.l.b16 %v5042
        %v5780 = vunpack.c.h.b16 %v5042
        %v5781 = vunpack.c.l.b16 %v5043
        %v5782 = vunpack.c.h.b16 %v5043
        %v5783 = vunpack.c.l.b16 %v5044
        %v5784 = vunpack.c.l.b16 %v5045
        %v5785 = vunpack.c.h.b16 %v5045
        %v5786 = vunpack.c.l.b16 %v5046
        %v5787 = vunpack.c.h.b16 %v5046
        %v5788 = vunpack.c.l.b16 %v5047
        %v5789 = vunpack.c.h.b16 %v5047
        %v5790 = vunpack.c.l.b16 %v5048
        %v5791 = vunpack.c.l.b16 %v5049
        %v5792 = vunpack.c.h.b16 %v5049
        %v5793 = vunpack.c.l.b16 %v5050
        %v5794 = vunpack.c.h.b16 %v5050
        %v5795 = vunpack.c.l.b16 %v5051
        %v5796 = vunpack.c.h.b16 %v5051
        %v5797 = vunpack.c.l.b16 %v5052
        %v5798 = vunpack.c.l.b16 %v5053
        %v5799 = vunpack.c.h.b16 %v5053
        %v5800 = vunpack.c.l.b16 %v5054
        %v5801 = vunpack.c.h.b16 %v5054
        %v5802 = vunpack.c.l.b16 %v5055
        %v5803 = vunpack.c.h.b16 %v5055
        %v5804 = vunpack.c.l.b16 %v5056
        %v5805 = vunpack.c.l.b16 %v5057
        %v5806 = vunpack.c.h.b16 %v5057
        %v5807 = vunpack.c.l.b16 %v5058
        %v5808 = vunpack.c.h.b16 %v5058
        %v5809 = vunpack.c.l.b16 %v5059
        %v5810 = vunpack.c.h.b16 %v5059
        %v5811 = vunpack.c.l.b16 %v5060
        %v5812 = vunpack.c.l.b16 %v5061
        %v5813 = vunpack.c.h.b16 %v5061
        %v5814 = vunpack.c.l.b16 %v5062
        %v5815 = vunpack.c.h.b16 %v5062
        %v5816 = vunpack.c.l.b16 %v5063
        %v5817 = vunpack.c.h.b16 %v5063
        %v5818 = vunpack.c.l.b16 %v5064
        %v5819 = vunpack.c.l.b16 %v5065
        %v5820 = vunpack.c.h.b16 %v5065
        %v5821 = vunpack.c.l.b16 %v5066
        %v5822 = vunpack.c.h.b16 %v5066
        %v5823 = vunpack.c.l.b16 %v5067
        %v5824 = vunpack.c.h.b16 %v5067
        %v5825 = vunpack.c.l.b16 %v5068
        %v5826 = vunpack.c.l.b16 %v5069
        %v5827 = vunpack.c.h.b16 %v5069
        %v5828 = vunpack.c.l.b16 %v5070
        %v5829 = vunpack.c.h.b16 %v5070
        %v5830 = vunpack.c.l.b16 %v5071
        %v5831 = vunpack.c.h.b16 %v5071
        %v5832 = vunpack.c.l.b16 %v5072
        %v5833 = vunpack.c.l.b16 %v5073
        %v5834 = vunpack.c.h.b16 %v5073
        %v5835 = vunpack.c.l.b16 %v5074
        %v5836 = vunpack.c.h.b16 %v5074
        %v5837 = vunpack.c.l.b16 %v5075
        %v5838 = vunpack.c.h.b16 %v5075
        %v5839 = vunpack.c.l.b16 %v5076
        %v5840 = vunpack.c.l.b16 %v5077
        %v5841 = vunpack.c.h.b16 %v5077
        %v5842 = vunpack.c.l.b16 %v5078
        %v5843 = vunpack.c.h.b16 %v5078
        %v5844 = vunpack.c.l.b16 %v5079
        %v5845 = vunpack.c.h.b16 %v5079
        %v5846 = vunpack.c.l.b16 %v5080
        %v5847 = vunpack.c.l.b16 %v5081
        %v5848 = vunpack.c.h.b16 %v5081
        %v5849 = vunpack.c.l.b16 %v5082
        %v5850 = vunpack.c.h.b16 %v5082
        %v5851 = vunpack.c.l.b16 %v5083
        %v5852 = vunpack.c.h.b16 %v5083
        %v5853 = vunpack.c.l.b16 %v5084
        %v5854 = vunpack.c.l.b16 %v5085
        %v5855 = vunpack.c.h.b16 %v5085
        %v5856 = vunpack.c.l.b16 %v5086
        %v5857 = vunpack.c.h.b16 %v5086
        %v5858 = vunpack.c.l.b16 %v5087
        %v5859 = vunpack.c.h.b16 %v5087
        %v5860 = vunpack.c.l.b16 %v5088
        %v5861 = vunpack.c.l.b16 %v5089
        %v5862 = vunpack.c.h.b16 %v5089
        %v5863 = vunpack.c.l.b16 %v5090
        %v5864 = vunpack.c.h.b16 %v5090
        %v5865 = vunpack.c.l.b16 %v5091
        %v5866 = vunpack.c.h.b16 %v5091
        %v5867 = vunpack.c.l.b16 %v5092
        %v5868 = vunpack.c.l.b16 %v5093
        %v5869 = vunpack.c.h.b16 %v5093
        %v5870 = vunpack.c.l.b16 %v5094
        %v5871 = vunpack.c.h.b16 %v5094
        %v5872 = vunpack.c.l.b16 %v5095
        %v5873 = vunpack.c.h.b16 %v5095
        %v5874 = vunpack.c.l.b16 %v5096
        %v5875 = vunpack.c.l.b16 %v5097
        %v5876 = vunpack.c.h.b16 %v5097
        %v5877 = vunpack.c.l.b16 %v5098
        %v5878 = vunpack.c.h.b16 %v5098
        %v5879 = vunpack.c.l.b16 %v5099
        %v5880 = vunpack.c.h.b16 %v5099
        %v5881 = vunpack.c.l.b16 %v5100
        %v5882 = vunpack.c.l.b16 %v5101
        %v5883 = vunpack.c.h.b16 %v5101
        %v5884 = vunpack.c.l.b16 %v5102
        %v5885 = vunpack.c.h.b16 %v5102
        %v5886 = vunpack.c.l.b16 %v5103
        %v5887 = vunpack.c.h.b16 %v5103
        %v5888 = vunpack.c.l.b16 %v5104
        %v5889 = vunpack.c.l.b16 %v5105
        %v5890 = vunpack.c.h.b16 %v5105
        %v5891 = vunpack.c.l.b16 %v5106
        %v5892 = vunpack.c.h.b16 %v5106
        %v5893 = vunpack.c.l.b16 %v5107
        %v5894 = vunpack.c.h.b16 %v5107
        %v5895 = vunpack.c.l.b16 %v5108
        %v5896 = vunpack.c.l.b16 %v5109
        %v5897 = vunpack.c.h.b16 %v5109
        %v5898 = vunpack.c.l.b16 %v5110
        %v5899 = vunpack.c.h.b16 %v5110
        %v5900 = vunpack.c.l.b16 %v5111
        %v5901 = vunpack.c.h.b16 %v5111
        %v5902 = vunpack.c.l.b16 %v5112
        %v5903 = vunpack.c.l.b16 %v5113
        %v5904 = vunpack.c.h.b16 %v5113
        %v5905 = vunpack.c.l.b16 %v5114
        %v5906 = vunpack.c.h.b16 %v5114
        %v5907 = vunpack.c.l.b16 %v5115
        %v5908 = vunpack.c.h.b16 %v5115
        %v5909 = vunpack.c.l.b16 %v5116
        %v5910 = vunpack.c.l.b16 %v5117
        %v5911 = vunpack.c.h.b16 %v5117
        %v5912 = vunpack.c.l.b16 %v5118
        %v5913 = vunpack.c.h.b16 %v5118
        %v5914 = vunpack.c.l.b16 %v5119
        %v5915 = vunpack.c.h.b16 %v5119
        %v5916 = vunpack.c.l.b16 %v5120
        %v5917 = vunpack.c.l.b16 %v5121
        %v5918 = vunpack.c.h.b16 %v5121
        %v5919 = vunpack.c.l.b16 %v5122
        %v5920 = vunpack.c.h.b16 %v5122
        %v5921 = vunpack.c.l.b16 %v5123
        %v5922 = vunpack.c.h.b16 %v5123
        %v5923 = vunpack.c.l.b16 %v5124
        %v5924 = vunpack.c.l.b16 %v5125
        %v5925 = vunpack.c.h.b16 %v5125
        %v5926 = vunpack.c.l.b16 %v5126
        %v5927 = vunpack.c.h.b16 %v5126
        %v5928 = vunpack.c.l.b16 %v5127
        %v5929 = vunpack.c.h.b16 %v5127
        %v5930 = vunpack.c.l.b16 %v5128
        %v5931 = vunpack.c.l.b16 %v5129
        %v5932 = vunpack.c.h.b16 %v5129
        %v5933 = vunpack.c.l.b16 %v5130
        %v5934 = vunpack.c.h.b16 %v5130
        %v5935 = vunpack.c.l.b16 %v5131
        %v5936 = vunpack.c.h.b16 %v5131
        %v5937 = vunpack.c.l.b16 %v5132
        %v5938 = vunpack.c.l.b16 %v5133
        %v5939 = vunpack.c.h.b16 %v5133
        %v5940 = vunpack.c.l.b16 %v5134
        %v5941 = vunpack.c.h.b16 %v5134
        %v5942 = vunpack.c.l.b16 %v5135
        %v5943 = vunpack.c.h.b16 %v5135
        %v5944 = vunpack.c.l.b16 %v5136
        %v5945 = vunpack.c.l.b16 %v5137
        %v5946 = vunpack.c.h.b16 %v5137
        %v5947 = vunpack.c.l.b16 %v5138
        %v5948 = vunpack.c.h.b16 %v5138
        %v5949 = vunpack.c.l.b16 %v5139
        %v5950 = vunpack.c.h.b16 %v5139
        %v5951 = vunpack.c.l.b16 %v5140
        %v5952 = vunpack.c.l.b16 %v5141
        %v5953 = vunpack.c.h.b16 %v5141
        %v5954 = vunpack.c.l.b16 %v5142
        %v5955 = vunpack.c.h.b16 %v5142
        %v5956 = vunpack.c.l.b16 %v5143
        %v5957 = vunpack.c.h.b16 %v5143
        %v5958 = vunpack.c.l.b16 %v5144
        %v5959 = vunpack.c.l.b16 %v5145
        %v5960 = vunpack.c.h.b16 %v5145
        %v5961 = vunpack.c.l.b16 %v5146
        %v5962 = vunpack.c.h.b16 %v5146
        %v5963 = vunpack.c.l.b16 %v5147
        %v5964 = vunpack.c.h.b16 %v5147
        %v5965 = vunpack.c.l.b16 %v5148
        %v5966 = vunpack.c.l.b16 %v5149
        %v5967 = vunpack.c.h.b16 %v5149
        %v5968 = vunpack.c.l.b16 %v5150
        %v5969 = vunpack.c.h.b16 %v5150
        %v5970 = vunpack.c.l.b16 %v5151
        %v5971 = vunpack.c.h.b16 %v5151
        %v5972 = vunpack.c.l.b16 %v5152
        %v5973 = vunpack.c.l.b16 %v5153
        %v5974 = vunpack.c.h.b16 %v5153
        %v5975 = vunpack.c.l.b16 %v5154
        %v5976 = vunpack.c.h.b16 %v5154
        %v5977 = vunpack.c.l.b16 %v5155
        %v5978 = vunpack.c.h.b16 %v5155
        %v5979 = vunpack.c.l.b16 %v5156
        %v5980 = vunpack.c.l.b16 %v5157
        %v5981 = vunpack.c.h.b16 %v5157
        %v5982 = vunpack.c.l.b16 %v5158
        %v5983 = vunpack.c.h.b16 %v5158
        %v5984 = vunpack.c.l.b16 %v5159
        %v5985 = vunpack.c.h.b16 %v5159
        %v5986 = vunpack.c.l.b16 %v5160
        %v5987 = vunpack.c.l.b16 %v5161
        %v5988 = vunpack.c.h.b16 %v5161
        %v5989 = vunpack.c.l.b16 %v5162
        %v5990 = vunpack.c.h.b16 %v5162
        %v5991 = vunpack.c.l.b16 %v5163
        %v5992 = vunpack.c.h.b16 %v5163
        %v5993 = vunpack.c.l.b16 %v5164
        %v5994 = vunpack.c.l.b16 %v5165
        %v5995 = vunpack.c.h.b16 %v5165
        %v5996 = vunpack.c.l.b16 %v5166
        %v5997 = vunpack.c.h.b16 %v5166
        %v5998 = vunpack.c.l.b16 %v5167
        %v5999 = vunpack.c.h.b16 %v5167
        %v6000 = vunpack.c.l.b16 %v5168
        %v6001 = vunpack.c.l.b16 %v5169
        %v6002 = vunpack.c.h.b16 %v5169
        %v6003 = vunpack.c.l.b16 %v5170
        %v6004 = vunpack.c.h.b16 %v5170
        %v6005 = vunpack.c.l.b16 %v5171
        %v6006 = vunpack.c.h.b16 %v5171
        %v6007 = vunpack.c.l.b16 %v5172
        %v6008 = vunpack.c.l.b16 %v5173
        %v6009 = vunpack.c.h.b16 %v5173
        %v6010 = vunpack.c.l.b16 %v5174
        %v6011 = vunpack.c.h.b16 %v5174
        %v6012 = vunpack.c.l.b16 %v5175
        %v6013 = vunpack.c.h.b16 %v5175
        %v6014 = vunpack.c.l.b16 %v5176
        %v6015 = vunpack.c.l.b16 %v5177
        %v6016 = vunpack.c.h.b16 %v5177
        %v6017 = vunpack.c.l.b16 %v5178
        %v6018 = vunpack.c.h.b16 %v5178
        %v6019 = vunpack.c.l.b16 %v5179
        %v6020 = vunpack.c.h.b16 %v5179
        %v6021 = vunpack.c.l.b16 %v5180
        %v6022 = vunpack.c.l.b16 %v5181
        %v6023 = vunpack.c.h.b16 %v5181
        %v6024 = vunpack.c.l.b16 %v5182
        %v6025 = vunpack.c.h.b16 %v5182
        %v6026 = vunpack.c.l.b16 %v5183
        %v6027 = vunpack.c.h.b16 %v5183
        %v6028 = vunpack.c.l.b16 %v5184
        %v6029 = vunpack.c.l.b16 %v5185
        %v6030 = vunpack.c.h.b16 %v5185
        %v6031 = vunpack.c.l.b16 %v5186
        %v6032 = vunpack.c.h.b16 %v5186
        %v6033 = vunpack.c.l.b16 %v5187
        %v6034 = vunpack.c.h.b16 %v5187
        %v6035 = vunpack.c.l.b16 %v5188
        %v6036 = vunpack.c.l.b16 %v5189
        %v6037 = vunpack.c.h.b16 %v5189
        %v6038 = vunpack.c.l.b16 %v5190
        %v6039 = vunpack.c.h.b16 %v5190
        %v6040 = vunpack.c.l.b16 %v5191
        %v6041 = vunpack.c.h.b16 %v5191
        %v6042 = vunpack.c.l.b16 %v5192
        %v6043 = vunpack.c.l.b16 %v5193
        %v6044 = vunpack.c.h.b16 %v5193
        %v6045 = vunpack.c.l.b16 %v5194
        %v6046 = vunpack.c.h.b16 %v5194
        %v6047 = vunpack.c.l.b16 %v5195
        %v6048 = vunpack.c.h.b16 %v5195
        %v6049 = vunpack.c.l.b16 %v5196
        %v6050 = vunpack.c.l.b16 %v5197
        %v6051 = vunpack.c.h.b16 %v5197
        %v6052 = vunpack.c.l.b16 %v5198
        %v6053 = vunpack.c.h.b16 %v5198
        %v6054 = vunpack.c.l.b16 %v5199
        %v6055 = vunpack.c.h.b16 %v5199
        %v6056 = vunpack.c.l.b16 %v5200
        %v6057 = vunpack.c.l.b16 %v5201
        %v6058 = vunpack.c.h.b16 %v5201
        %v6059 = vunpack.c.l.b16 %v5202
        %v6060 = vunpack.c.h.b16 %v5202
        %v6061 = vunpack.c.l.b16 %v5203
        %v6062 = vunpack.c.h.b16 %v5203
        %v6063 = vunpack.c.l.b16 %v5204
        %v6064 = vunpack.c.l.b16 %v5205
        %v6065 = vunpack.c.h.b16 %v5205
        %v6066 = vunpack.c.l.b16 %v5206
        %v6067 = vunpack.c.h.b16 %v5206
        %v6068 = vunpack.c.l.b16 %v5207
        %v6069 = vunpack.c.h.b16 %v5207
        %v6070 = vunpack.c.l.b16 %v5208
        %v6071 = vunpack.c.l.b16 %v5209
        %v6072 = vunpack.c.h.b16 %v5209
        %v6073 = vunpack.c.l.b16 %v5210
        %v6074 = vunpack.c.h.b16 %v5210
        %v6075 = vunpack.c.l.b16 %v5211
        %v6076 = vunpack.c.h.b16 %v5211
        %v6077 = vunpack.c.l.b16 %v5212
        %v6078 = vunpack.c.l.b16 %v5213
        %v6079 = vunpack.c.h.b16 %v5213
        %v6080 = vunpack.c.l.b16 %v5214
        %v6081 = vunpack.c.h.b16 %v5214
        %v6082 = vunpack.c.l.b16 %v5215
        %v6083 = vunpack.c.h.b16 %v5215
        %v6084 = vunpack.c.l.b16 %v5216
        %v6085 = vunpack.c.l.b16 %v5217
        %v6086 = vunpack.c.h.b16 %v5217
        %v6087 = vunpack.c.l.b16 %v5218
        %v6088 = vunpack.c.h.b16 %v5218
        %v6089 = vunpack.c.l.b16 %v5219
        %v6090 = vunpack.c.h.b16 %v5219
        %v6091 = vunpack.c.l.b16 %v5220
        %v6092 = vunpack.c.l.b16 %v5221
        %v6093 = vunpack.c.h.b16 %v5221
        %v6094 = vunpack.c.l.b16 %v5222
        %v6095 = vunpack.c.h.b16 %v5222
        %v6096 = vunpack.c.l.b16 %v5223
        %v6097 = vunpack.c.h.b16 %v5223
        %v6098 = vunpack.c.l.b16 %v5224
        %v6099 = vunpack.c.l.b16 %v5225
        %v6100 = vunpack.c.h.b16 %v5225
        %v6101 = vunpack.c.l.b16 %v5226
        %v6102 = vunpack.c.h.b16 %v5226
        %v6103 = vunpack.c.l.b16 %v5227
        %v6104 = vunpack.c.h.b16 %v5227
        %v6105 = vunpack.c.l.b16 %v5228
        %v6106 = vunpack.c.l.b16 %v5229
        %v6107 = vunpack.c.h.b16 %v5229
        %v6108 = vunpack.c.l.b16 %v5230
        %v6109 = vunpack.c.h.b16 %v5230
        %v6110 = vunpack.c.l.b16 %v5231
        %v6111 = vunpack.c.h.b16 %v5231
        %v6112 = vunpack.c.l.b16 %v5232
        %v6113 = vpack.c.b16 %v5560, %v5553
        %v6114 = vpack.c.b16 %v5561, %v5554
        %v6115 = vpack.c.b16 %v5562, %v5555
        %v6116 = vpack.c.b16 %v5563, %v5556
        %v6117 = vpack.c.b16 %v5564, %v5557
        %v6118 = vpack.c.b16 %v5565, %v5558
        %v6119 = vpack.c.b16 %v5566, %v5559
        %v6120 = vpack.c.b16 %v5574, %v5567
        %v6121 = vpack.c.b16 %v5575, %v5568
        %v6122 = vpack.c.b16 %v5576, %v5569
        %v6123 = vpack.c.b16 %v5577, %v5570
        %v6124 = vpack.c.b16 %v5578, %v5571
        %v6125 = vpack.c.b16 %v5579, %v5572
        %v6126 = vpack.c.b16 %v5580, %v5573
        %v6127 = vpack.c.b16 %v5588, %v5581
        %v6128 = vpack.c.b16 %v5589, %v5582
        %v6129 = vpack.c.b16 %v5590, %v5583
        %v6130 = vpack.c.b16 %v5591, %v5584
        %v6131 = vpack.c.b16 %v5592, %v5585
        %v6132 = vpack.c.b16 %v5593, %v5586
        %v6133 = vpack.c.b16 %v5594, %v5587
        %v6134 = vpack.c.b16 %v5602, %v5595
        %v6135 = vpack.c.b16 %v5603, %v5596
        %v6136 = vpack.c.b16 %v5604, %v5597
        %v6137 = vpack.c.b16 %v5605, %v5598
        %v6138 = vpack.c.b16 %v5606, %v5599
        %v6139 = vpack.c.b16 %v5607, %v5600
        %v6140 = vpack.c.b16 %v5608, %v5601
        %v6141 = vpack.c.b16 %v5616, %v5609
        %v6142 = vpack.c.b16 %v5617, %v5610
        %v6143 = vpack.c.b16 %v5618, %v5611
        %v6144 = vpack.c.b16 %v5619, %v5612
        %v6145 = vpack.c.b16 %v5620, %v5613
        %v6146 = vpack.c.b16 %v5621, %v5614
        %v6147 = vpack.c.b16 %v5622, %v5615
        %v6148 = vpack.c.b16 %v5630, %v5623
        %v6149 = vpack.c.b16 %v5631, %v5624
        %v6150 = vpack.c.b16 %v5632, %v5625
        %v6151 = vpack.c.b16 %v5633, %v5626
        %v6152 = vpack.c.b16 %v5634, %v5627
        %v6153 = vpack.c.b16 %v5635, %v5628
        %v6154 = vpack.c.b16 %v5636, %v5629
        %v6155 = vpack.c.b16 %v5644, %v5637
        %v6156 = vpack.c.b16 %v5645, %v5638
        %v6157 = vpack.c.b16 %v5646, %v5639
        %v6158 = vpack.c.b16 %v5647, %v5640
        %v6159 = vpack.c.b16 %v5648, %v5641
        %v6160 = vpack.c.b16 %v5649, %v5642
        %v6161 = vpack.c.b16 %v5650, %v5643
        %v6162 = vpack.c.b16 %v5658, %v5651
        %v6163 = vpack.c.b16 %v5659, %v5652
        %v6164 = vpack.c.b16 %v5660, %v5653
        %v6165 = vpack.c.b16 %v5661, %v5654
        %v6166 = vpack.c.b16 %v5662, %v5655
        %v6167 = vpack.c.b16 %v5663, %v5656
        %v6168 = vpack.c.b16 %v5664, %v5657
        %v6169 = vpack.c.b16 %v5672, %v5665
        %v6170 = vpack.c.b16 %v5673, %v5666
        %v6171 = vpack.c.b16 %v5674, %v5667
        %v6172 = vpack.c.b16 %v5675, %v5668
        %v6173 = vpack.c.b16 %v5676, %v5669
        %v6174 = vpack.c.b16 %v5677, %v5670
        %v6175 = vpack.c.b16 %v5678, %v5671
        %v6176 = vpack.c.b16 %v5686, %v5679
        %v6177 = vpack.c.b16 %v5687, %v5680
        %v6178 = vpack.c.b16 %v5688, %v5681
        %v6179 = vpack.c.b16 %v5689, %v5682
        %v6180 = vpack.c.b16 %v5690, %v5683
        %v6181 = vpack.c.b16 %v5691, %v5684
        %v6182 = vpack.c.b16 %v5692, %v5685
        %v6183 = vpack.c.b16 %v5700, %v5693
        %v6184 = vpack.c.b16 %v5701, %v5694
        %v6185 = vpack.c.b16 %v5702, %v5695
        %v6186 = vpack.c.b16 %v5703, %v5696
        %v6187 = vpack.c.b16 %v5704, %v5697
        %v6188 = vpack.c.b16 %v5705, %v5698
        %v6189 = vpack.c.b16 %v5706, %v5699
        %v6190 = vpack.c.b16 %v5714, %v5707
        %v6191 = vpack.c.b16 %v5715, %v5708
        %v6192 = vpack.c.b16 %v5716, %v5709
        %v6193 = vpack.c.b16 %v5717, %v5710
        %v6194 = vpack.c.b16 %v5718, %v5711
        %v6195 = vpack.c.b16 %v5719, %v5712
        %v6196 = vpack.c.b16 %v5720, %v5713
        %v6197 = vpack.c.b16 %v5728, %v5721
        %v6198 = vpack.c.b16 %v5729, %v5722
        %v6199 = vpack.c.b16 %v5730, %v5723
        %v6200 = vpack.c.b16 %v5731, %v5724
        %v6201 = vpack.c.b16 %v5732, %v5725
        %v6202 = vpack.c.b16 %v5733, %v5726
        %v6203 = vpack.c.b16 %v5734, %v5727
        %v6204 = vpack.c.b16 %v5742, %v5735
        %v6205 = vpack.c.b16 %v5743, %v5736
        %v6206 = vpack.c.b16 %v5744, %v5737
        %v6207 = vpack.c.b16 %v5745, %v5738
        %v6208 = vpack.c.b16 %v5746, %v5739
        %v6209 = vpack.c.b16 %v5747, %v5740
        %v6210 = vpack.c.b16 %v5748, %v5741
        %v6211 = vpack.c.b16 %v5756, %v5749
        %v6212 = vpack.c.b16 %v5757, %v5750
        %v6213 = vpack.c.b16 %v5758, %v5751
        %v6214 = vpack.c.b16 %v5759, %v5752
        %v6215 = vpack.c.b16 %v5760, %v5753
        %v6216 = vpack.c.b16 %v5761, %v5754
        %v6217 = vpack.c.b16 %v5762, %v5755
        %v6218 = vpack.c.b16 %v5770, %v5763
        %v6219 = vpack.c.b16 %v5771, %v5764
        %v6220 = vpack.c.b16 %v5772, %v5765
        %v6221 = vpack.c.b16 %v5773, %v5766
        %v6222 = vpack.c.b16 %v5774, %v5767
        %v6223 = vpack.c.b16 %v5775, %v5768
        %v6224 = vpack.c.b16 %v5776, %v5769
        %v6225 = vpack.c.b16 %v5784, %v5777
        %v6226 = vpack.c.b16 %v5785, %v5778
        %v6227 = vpack.c.b16 %v5786, %v5779
        %v6228 = vpack.c.b16 %v5787, %v5780
        %v6229 = vpack.c.b16 %v5788, %v5781
        %v6230 = vpack.c.b16 %v5789, %v5782
        %v6231 = vpack.c.b16 %v5790, %v5783
        %v6232 = vpack.c.b16 %v5798, %v5791
        %v6233 = vpack.c.b16 %v5799, %v5792
        %v6234 = vpack.c.b16 %v5800, %v5793
        %v6235 = vpack.c.b16 %v5801, %v5794
        %v6236 = vpack.c.b16 %v5802, %v5795
        %v6237 = vpack.c.b16 %v5803, %v5796
        %v6238 = vpack.c.b16 %v5804, %v5797
        %v6239 = vpack.c.b16 %v5812, %v5805
        %v6240 = vpack.c.b16 %v5813, %v5806
        %v6241 = vpack.c.b16 %v5814, %v5807
        %v6242 = vpack.c.b16 %v5815, %v5808
        %v6243 = vpack.c.b16 %v5816, %v5809
        %v6244 = vpack.c.b16 %v5817, %v5810
        %v6245 = vpack.c.b16 %v5818, %v5811
        %v6246 = vpack.c.b16 %v5826, %v5819
        %v6247 = vpack.c.b16 %v5827, %v5820
        %v6248 = vpack.c.b16 %v5828, %v5821
        %v6249 = vpack.c.b16 %v5829, %v5822
        %v6250 = vpack.c.b16 %v5830, %v5823
        %v6251 = vpack.c.b16 %v5831, %v5824
        %v6252 = vpack.c.b16 %v5832, %v5825
        %v6253 = vpack.c.b16 %v5840, %v5833
        %v6254 = vpack.c.b16 %v5841, %v5834
        %v6255 = vpack.c.b16 %v5842, %v5835
        %v6256 = vpack.c.b16 %v5843, %v5836
        %v6257 = vpack.c.b16 %v5844, %v5837
        %v6258 = vpack.c.b16 %v5845, %v5838
        %v6259 = vpack.c.b16 %v5846, %v5839
        %v6260 = vpack.c.b16 %v5854, %v5847
        %v6261 = vpack.c.b16 %v5855, %v5848
        %v6262 = vpack.c.b16 %v5856, %v5849
        %v6263 = vpack.c.b16 %v5857, %v5850
        %v6264 = vpack.c.b16 %v5858, %v5851
        %v6265 = vpack.c.b16 %v5859, %v5852
        %v6266 = vpack.c.b16 %v5860, %v5853
        %v6267 = vpack.c.b16 %v5868, %v5861
        %v6268 = vpack.c.b16 %v5869, %v5862
        %v6269 = vpack.c.b16 %v5870, %v5863
        %v6270 = vpack.c.b16 %v5871, %v5864
        %v6271 = vpack.c.b16 %v5872, %v5865
        %v6272 = vpack.c.b16 %v5873, %v5866
        %v6273 = vpack.c.b16 %v5874, %v5867
        %v6274 = vpack.c.b16 %v5882, %v5875
        %v6275 = vpack.c.b16 %v5883, %v5876
        %v6276 = vpack.c.b16 %v5884, %v5877
        %v6277 = vpack.c.b16 %v5885, %v5878
        %v6278 = vpack.c.b16 %v5886, %v5879
        %v6279 = vpack.c.b16 %v5887, %v5880
        %v6280 = vpack.c.b16 %v5888, %v5881
        %v6281 = vpack.c.b16 %v5896, %v5889
        %v6282 = vpack.c.b16 %v5897, %v5890
        %v6283 = vpack.c.b16 %v5898, %v5891
        %v6284 = vpack.c.b16 %v5899, %v5892
        %v6285 = vpack.c.b16 %v5900, %v5893
        %v6286 = vpack.c.b16 %v5901, %v5894
        %v6287 = vpack.c.b16 %v5902, %v5895
        %v6288 = vpack.c.b16 %v5910, %v5903
        %v6289 = vpack.c.b16 %v5911, %v5904
        %v6290 = vpack.c.b16 %v5912, %v5905
        %v6291 = vpack.c.b16 %v5913, %v5906
        %v6292 = vpack.c.b16 %v5914, %v5907
        %v6293 = vpack.c.b16 %v5915, %v5908
        %v6294 = vpack.c.b16 %v5916, %v5909
        %v6295 = vpack.c.b16 %v5924, %v5917
        %v6296 = vpack.c.b16 %v5925, %v5918
        %v6297 = vpack.c.b16 %v5926, %v5919
        %v6298 = vpack.c.b16 %v5927, %v5920
        %v6299 = vpack.c.b16 %v5928, %v5921
        %v6300 = vpack.c.b16 %v5929, %v5922
        %v6301 = vpack.c.b16 %v5930, %v5923
        %v6302 = vpack.c.b16 %v5938, %v5931
        %v6303 = vpack.c.b16 %v5939, %v5932
        %v6304 = vpack.c.b16 %v5940, %v5933
        %v6305 = vpack.c.b16 %v5941, %v5934
        %v6306 = vpack.c.b16 %v5942, %v5935
        %v6307 = vpack.c.b16 %v5943, %v5936
        %v6308 = vpack.c.b16 %v5944, %v5937
        %v6309 = vpack.c.b16 %v5952, %v5945
        %v6310 = vpack.c.b16 %v5953, %v5946
        %v6311 = vpack.c.b16 %v5954, %v5947
        %v6312 = vpack.c.b16 %v5955, %v5948
        %v6313 = vpack.c.b16 %v5956, %v5949
        %v6314 = vpack.c.b16 %v5957, %v5950
        %v6315 = vpack.c.b16 %v5958, %v5951
        %v6316 = vpack.c.b16 %v5966, %v5959
        %v6317 = vpack.c.b16 %v5967, %v5960
        %v6318 = vpack.c.b16 %v5968, %v5961
        %v6319 = vpack.c.b16 %v5969, %v5962
        %v6320 = vpack.c.b16 %v5970, %v5963
        %v6321 = vpack.c.b16 %v5971, %v5964
        %v6322 = vpack.c.b16 %v5972, %v5965
        %v6323 = vpack.c.b16 %v5980, %v5973
        %v6324 = vpack.c.b16 %v5981, %v5974
        %v6325 = vpack.c.b16 %v5982, %v5975
        %v6326 = vpack.c.b16 %v5983, %v5976
        %v6327 = vpack.c.b16 %v5984, %v5977
        %v6328 = vpack.c.b16 %v5985, %v5978
        %v6329 = vpack.c.b16 %v5986, %v5979
        %v6330 = vpack.c.b16 %v5994, %v5987
        %v6331 = vpack.c.b16 %v5995, %v5988
        %v6332 = vpack.c.b16 %v5996, %v5989
        %v6333 = vpack.c.b16 %v5997, %v5990
        %v6334 = vpack.c.b16 %v5998, %v5991
        %v6335 = vpack.c.b16 %v5999, %v5992
        %v6336 = vpack.c.b16 %v6000, %v5993
        %v6337 = vpack.c.b16 %v6008, %v6001
        %v6338 = vpack.c.b16 %v6009, %v6002
        %v6339 = vpack.c.b16 %v6010, %v6003
        %v6340 = vpack.c.b16 %v6011, %v6004
        %v6341 = vpack.c.b16 %v6012, %v6005
        %v6342 = vpack.c.b16 %v6013, %v6006
        %v6343 = vpack.c.b16 %v6014, %v6007
        %v6344 = vpack.c.b16 %v6022, %v6015
        %v6345 = vpack.c.b16 %v6023, %v6016
        %v6346 = vpack.c.b16 %v6024, %v6017
        %v6347 = vpack.c.b16 %v6025, %v6018
        %v6348 = vpack.c.b16 %v6026, %v6019
        %v6349 = vpack.c.b16 %v6027, %v6020
        %v6350 = vpack.c.b16 %v6028, %v6021
        %v6351 = vpack.c.b16 %v6036, %v6029
        %v6352 = vpack.c.b16 %v6037, %v6030
        %v6353 = vpack.c.b16 %v6038, %v6031
        %v6354 = vpack.c.b16 %v6039, %v6032
        %v6355 = vpack.c.b16 %v6040, %v6033
        %v6356 = vpack.c.b16 %v6041, %v6034
        %v6357 = vpack.c.b16 %v6042, %v6035
        %v6358 = vpack.c.b16 %v6050, %v6043
        %v6359 = vpack.c.b16 %v6051, %v6044
        %v6360 = vpack.c.b16 %v6052, %v6045
        %v6361 = vpack.c.b16 %v6053, %v6046
        %v6362 = vpack.c.b16 %v6054, %v6047
        %v6363 = vpack.c.b16 %v6055, %v6048
        %v6364 = vpack.c.b16 %v6056, %v6049
        %v6365 = vpack.c.b16 %v6064, %v6057
        %v6366 = vpack.c.b16 %v6065, %v6058
        %v6367 = vpack.c.b16 %v6066, %v6059
        %v6368 = vpack.c.b16 %v6067, %v6060
        %v6369 = vpack.c.b16 %v6068, %v6061
        %v6370 = vpack.c.b16 %v6069, %v6062
        %v6371 = vpack.c.b16 %v6070, %v6063
        %v6372 = vpack.c.b16 %v6078, %v6071
        %v6373 = vpack.c.b16 %v6079, %v6072
        %v6374 = vpack.c.b16 %v6080, %v6073
        %v6375 = vpack.c.b16 %v6081, %v6074
        %v6376 = vpack.c.b16 %v6082, %v6075
        %v6377 = vpack.c.b16 %v6083, %v6076
        %v6378 = vpack.c.b16 %v6084, %v6077
        %v6379 = vpack.c.b16 %v6092, %v6085
        %v6380 = vpack.c.b16 %v6093, %v6086
        %v6381 = vpack.c.b16 %v6094, %v6087
        %v6382 = vpack.c.b16 %v6095, %v6088
        %v6383 = vpack.c.b16 %v6096, %v6089
        %v6384 = vpack.c.b16 %v6097, %v6090
        %v6385 = vpack.c.b16 %v6098, %v6091
        %v6386 = vpack.c.b16 %v6106, %v6099
        %v6387 = vpack.c.b16 %v6107, %v6100
        %v6388 = vpack.c.b16 %v6108, %v6101
        %v6389 = vpack.c.b16 %v6109, %v6102
        %v6390 = vpack.c.b16 %v6110, %v6103
        %v6391 = vpack.c.b16 %v6111, %v6104
        %v6392 = vpack.c.b16 %v6112, %v6105
        %6673 = vmatprep.subr.bf16.mxu0 %v6114
        %6674 = vmatpush1.bf16.msra.mxu0 %v6113
        %6675 = vmatprep.subr.bf16.mxu0 %v6121
        %6676 = vmatpush1.bf16.msra.mxu0 %v6120
        %6677 = vmatprep.subr.bf16.mxu0 %v6128
        %6678 = vmatpush1.bf16.msra.mxu0 %v6127
        %6679 = vmatprep.subr.bf16.mxu0 %v6135
        %6680 = vmatpush1.bf16.msra.mxu0 %v6134
        %6681 = vmatprep.subr.bf16.mxu0 %v6142
        %6682 = vmatpush1.bf16.msra.mxu0 %v6141
        %6683 = vmatprep.subr.bf16.mxu0 %v6149
        %6684 = vmatpush1.bf16.msra.mxu0 %v6148
        %6685 = vmatprep.subr.bf16.mxu0 %v6156
        %6686 = vmatpush1.bf16.msra.mxu0 %v6155
        %6687 = vmatprep.subr.bf16.mxu0 %v6163
        %6688 = vmatpush1.bf16.msra.mxu0 %v6162
        %6689 = vmatprep.subr.bf16.mxu0 %v6170
        %6690 = vmatpush1.bf16.msra.mxu0 %v6169
        %6691 = vmatprep.subr.bf16.mxu0 %v6177
        %6692 = vmatpush1.bf16.msra.mxu0 %v6176
        %6693 = vmatprep.subr.bf16.mxu0 %v6184
        %6694 = vmatpush1.bf16.msra.mxu0 %v6183
        %6695 = vmatprep.subr.bf16.mxu0 %v6191
        %6696 = vmatpush1.bf16.msra.mxu0 %v6190
        %6697 = vmatprep.subr.bf16.mxu0 %v6198
        %6698 = vmatpush1.bf16.msra.mxu0 %v6197
        %6699 = vmatprep.subr.bf16.mxu0 %v6205
        %6700 = vmatpush1.bf16.msra.mxu0 %v6204
        %6701 = vmatprep.subr.bf16.mxu0 %v6212
        %6702 = vmatpush1.bf16.msra.mxu0 %v6211
        %6703 = vmatprep.subr.bf16.mxu0 %v6219
        %6704 = vmatpush1.bf16.msra.mxu0 %v6218
        %6705 = vmatprep.mubr.bf16.mxu0 %v4909
        %6706 = vmatmul.mubr.bf16.gmra.mrb[0].mxu0 %v4908
        %v6707 = vpop.f32.mrb[0].mxu0
        %v6708 = vadd.f32 0.0, %v6707
        %v6709 = vpop.f32.mrb[0].mxu0
        %v6710 = vadd.f32 0.0, %v6709
        %v6711 = vpop.f32.mrb[0].mxu0
        %v6712 = vpop.f32.mrb[0].mxu0
        %6713 = vdwg.mxu0
        %6714 = vmatprep.subr.bf16.mxu0 %v6226
        %6715 = vmatpush1.bf16.msra.mxu0 %v6225
        %6716 = vmatprep.subr.bf16.mxu0 %v6233
        %6717 = vmatpush1.bf16.msra.mxu0 %v6232
        %6718 = vmatprep.subr.bf16.mxu0 %v6240
        %6719 = vmatpush1.bf16.msra.mxu0 %v6239
        %6720 = vmatprep.subr.bf16.mxu0 %v6247
        %6721 = vmatpush1.bf16.msra.mxu0 %v6246
        %6722 = vmatprep.subr.bf16.mxu0 %v6254
        %6723 = vmatpush1.bf16.msra.mxu0 %v6253
        %6724 = vmatprep.subr.bf16.mxu0 %v6261
        %6725 = vmatpush1.bf16.msra.mxu0 %v6260
        %6726 = vmatprep.subr.bf16.mxu0 %v6268
        %6727 = vmatpush1.bf16.msra.mxu0 %v6267
        %6728 = vmatprep.subr.bf16.mxu0 %v6275
        %6729 = vmatpush1.bf16.msra.mxu0 %v6274
        %6730 = vmatprep.subr.bf16.mxu0 %v6282
        %6731 = vmatpush1.bf16.msra.mxu0 %v6281
        %6732 = vmatprep.subr.bf16.mxu0 %v6289
        %6733 = vmatpush1.bf16.msra.mxu0 %v6288
        %6734 = vmatprep.subr.bf16.mxu0 %v6296
        %6735 = vmatpush1.bf16.msra.mxu0 %v6295
        %6736 = vmatprep.subr.bf16.mxu0 %v6303
        %6737 = vmatpush1.bf16.msra.mxu0 %v6302
        %6738 = vmatprep.subr.bf16.mxu0 %v6310
        %6739 = vmatpush1.bf16.msra.mxu0 %v6309
        %6740 = vmatprep.subr.bf16.mxu0 %v6317
        %6741 = vmatpush1.bf16.msra.mxu0 %v6316
        %6742 = vmatprep.subr.bf16.mxu0 %v6324
        %6743 = vmatpush1.bf16.msra.mxu0 %v6323
        %6744 = vmatprep.subr.bf16.mxu0 %v6331
        %6745 = vmatpush1.bf16.msra.mxu0 %v6330
        %6746 = vmatprep.mubr.bf16.mxu0 %v4911
        %6747 = vmatmul.mubr.bf16.gmra.mrb[0].mxu0 %v4910
        %v6748 = vpop.f32.mrb[0].mxu0
        %v6749 = vadd.f32 %v6708, %v6748
        %v6750 = vpop.f32.mrb[0].mxu0
        %v6751 = vadd.f32 %v6710, %v6750
        %v6752 = vpop.f32.mrb[0].mxu0
        %v6753 = vpop.f32.mrb[0].mxu0
        %6754 = vdwg.mxu0
        %6755 = vmatprep.subr.bf16.mxu0 %v6338
        %6756 = vmatpush1.bf16.msra.mxu0 %v6337
        %6757 = vmatprep.subr.bf16.mxu0 %v6345
        %6758 = vmatpush1.bf16.msra.mxu0 %v6344
        %6759 = vmatprep.subr.bf16.mxu0 %v6352
        %6760 = vmatpush1.bf16.msra.mxu0 %v6351
        %6761 = vmatprep.subr.bf16.mxu0 %v6359
        %6762 = vmatpush1.bf16.msra.mxu0 %v6358
        %6763 = vmatprep.subr.bf16.mxu0 %v6366
        %6764 = vmatpush1.bf16.msra.mxu0 %v6365
        %6765 = vmatprep.subr.bf16.mxu0 %v6373
        %6766 = vmatpush1.bf16.msra.mxu0 %v6372
        %6767 = vmatprep.subr.bf16.mxu0 %v6380
        %6768 = vmatpush1.bf16.msra.mxu0 %v6379
        %6769 = vmatprep.subr.bf16.mxu0 %v6387
        %6770 = vmatpush1.bf16.msra.mxu0 %v6386
        %6771 = vmatprep.subr.bf16.mxu0 0
        %6772 = vmatpush1.bf16.msra.mxu0 0
        %6773 = vmatprep.subr.bf16.mxu0 0
        %6774 = vmatpush1.bf16.msra.mxu0 0
        %6775 = vmatprep.subr.bf16.mxu0 0
        %6776 = vmatpush1.bf16.msra.mxu0 0
        %6777 = vmatprep.subr.bf16.mxu0 0
        %6778 = vmatpush1.bf16.msra.mxu0 0
        %6779 = vmatprep.subr.bf16.mxu0 0
        %6780 = vmatpush1.bf16.msra.mxu0 0
        %6781 = vmatprep.subr.bf16.mxu0 0
        %6782 = vmatpush1.bf16.msra.mxu0 0
        %6783 = vmatprep.subr.bf16.mxu0 0
        %6784 = vmatpush1.bf16.msra.mxu0 0
        %6785 = vmatprep.subr.bf16.mxu0 0
        %6786 = vmatpush1.bf16.msra.mxu0 0
        %6787 = vmatprep.mubr.bf16.mxu0 0
        %6788 = vmatmul.mubr.bf16.gmra.mrb[0].mxu0 %v4912
        %v6789 = vpop.f32.mrb[0].mxu0
        %v6790 = vadd.f32 %v6749, %v6789
        %v6791 = vpop.f32.mrb[0].mxu0
        %v6792 = vadd.f32 %v6751, %v6791
        %v6793 = vpop.f32.mrb[0].mxu0
        %v6794 = vpop.f32.mrb[0].mxu0
        %6795 = vdwg.mxu0
        %6796 = vmatprep.subr.bf16.mxu0 %v6116
        %6797 = vmatpush1.bf16.msra.mxu0 %v6115
        %6798 = vmatprep.subr.bf16.mxu0 %v6123
        %6799 = vmatpush1.bf16.msra.mxu0 %v6122
        %6800 = vmatprep.subr.bf16.mxu0 %v6130
        %6801 = vmatpush1.bf16.msra.mxu0 %v6129
        %6802 = vmatprep.subr.bf16.mxu0 %v6137
        %6803 = vmatpush1.bf16.msra.mxu0 %v6136
        %6804 = vmatprep.subr.bf16.mxu0 %v6144
        %6805 = vmatpush1.bf16.msra.mxu0 %v6143
        %6806 = vmatprep.subr.bf16.mxu0 %v6151
        %6807 = vmatpush1.bf16.msra.mxu0 %v6150
        %6808 = vmatprep.subr.bf16.mxu0 %v6158
        %6809 = vmatpush1.bf16.msra.mxu0 %v6157
        %6810 = vmatprep.subr.bf16.mxu0 %v6165
        %6811 = vmatpush1.bf16.msra.mxu0 %v6164
        %6812 = vmatprep.subr.bf16.mxu0 %v6172
        %6813 = vmatpush1.bf16.msra.mxu0 %v6171
        %6814 = vmatprep.subr.bf16.mxu0 %v6179
        %6815 = vmatpush1.bf16.msra.mxu0 %v6178
        %6816 = vmatprep.subr.bf16.mxu0 %v6186
        %6817 = vmatpush1.bf16.msra.mxu0 %v6185
        %6818 = vmatprep.subr.bf16.mxu0 %v6193
        %6819 = vmatpush1.bf16.msra.mxu0 %v6192
        %6820 = vmatprep.subr.bf16.mxu0 %v6200
        %6821 = vmatpush1.bf16.msra.mxu0 %v6199
        %6822 = vmatprep.subr.bf16.mxu0 %v6207
        %6823 = vmatpush1.bf16.msra.mxu0 %v6206
        %6824 = vmatprep.subr.bf16.mxu0 %v6214
        %6825 = vmatpush1.bf16.msra.mxu0 %v6213
        %6826 = vmatprep.subr.bf16.mxu0 %v6221
        %6827 = vmatpush1.bf16.msra.mxu0 %v6220
        %6828 = vmatprep.mubr.bf16.mxu0 %v4909
        %6829 = vmatmul.mubr.bf16.gmra.mrb[0].mxu0 %v4908
        %v6830 = vpop.f32.mrb[0].mxu0
        %v6831 = vadd.f32 0.0, %v6830
        %v6832 = vpop.f32.mrb[0].mxu0
        %v6833 = vadd.f32 0.0, %v6832
        %v6834 = vpop.f32.mrb[0].mxu0
        %v6835 = vpop.f32.mrb[0].mxu0
        %6836 = vdwg.mxu0
        %6837 = vmatprep.subr.bf16.mxu0 %v6228
        %6838 = vmatpush1.bf16.msra.mxu0 %v6227
        %6839 = vmatprep.subr.bf16.mxu0 %v6235
        %6840 = vmatpush1.bf16.msra.mxu0 %v6234
        %6841 = vmatprep.subr.bf16.mxu0 %v6242
        %6842 = vmatpush1.bf16.msra.mxu0 %v6241
        %6843 = vmatprep.subr.bf16.mxu0 %v6249
        %6844 = vmatpush1.bf16.msra.mxu0 %v6248
        %6845 = vmatprep.subr.bf16.mxu0 %v6256
        %6846 = vmatpush1.bf16.msra.mxu0 %v6255
        %6847 = vmatprep.subr.bf16.mxu0 %v6263
        %6848 = vmatpush1.bf16.msra.mxu0 %v6262
        %6849 = vmatprep.subr.bf16.mxu0 %v6270
        %6850 = vmatpush1.bf16.msra.mxu0 %v6269
        %6851 = vmatprep.subr.bf16.mxu0 %v6277
        %6852 = vmatpush1.bf16.msra.mxu0 %v6276
        %6853 = vmatprep.subr.bf16.mxu0 %v6284
        %6854 = vmatpush1.bf16.msra.mxu0 %v6283
        %6855 = vmatprep.subr.bf16.mxu0 %v6291
        %6856 = vmatpush1.bf16.msra.mxu0 %v6290
        %6857 = vmatprep.subr.bf16.mxu0 %v6298
        %6858 = vmatpush1.bf16.msra.mxu0 %v6297
        %6859 = vmatprep.subr.bf16.mxu0 %v6305
        %6860 = vmatpush1.bf16.msra.mxu0 %v6304
        %6861 = vmatprep.subr.bf16.mxu0 %v6312
        %6862 = vmatpush1.bf16.msra.mxu0 %v6311
        %6863 = vmatprep.subr.bf16.mxu0 %v6319
        %6864 = vmatpush1.bf16.msra.mxu0 %v6318
        %6865 = vmatprep.subr.bf16.mxu0 %v6326
        %6866 = vmatpush1.bf16.msra.mxu0 %v6325
        %6867 = vmatprep.subr.bf16.mxu0 %v6333
        %6868 = vmatpush1.bf16.msra.mxu0 %v6332
        %6869 = vmatprep.mubr.bf16.mxu0 %v4911
        %6870 = vmatmul.mubr.bf16.gmra.mrb[0].mxu0 %v4910
        %v6871 = vpop.f32.mrb[0].mxu0
        %v6872 = vadd.f32 %v6831, %v6871
        %v6873 = vpop.f32.mrb[0].mxu0
        %v6874 = vadd.f32 %v6833, %v6873
        %v6875 = vpop.f32.mrb[0].mxu0
        %v6876 = vpop.f32.mrb[0].mxu0
        %6877 = vdwg.mxu0
        %6878 = vmatprep.subr.bf16.mxu0 %v6340
        %6879 = vmatpush1.bf16.msra.mxu0 %v6339
        %6880 = vmatprep.subr.bf16.mxu0 %v6347
        %6881 = vmatpush1.bf16.msra.mxu0 %v6346
        %6882 = vmatprep.subr.bf16.mxu0 %v6354
        %6883 = vmatpush1.bf16.msra.mxu0 %v6353
        %6884 = vmatprep.subr.bf16.mxu0 %v6361
        %6885 = vmatpush1.bf16.msra.mxu0 %v6360
        %6886 = vmatprep.subr.bf16.mxu0 %v6368
        %6887 = vmatpush1.bf16.msra.mxu0 %v6367
        %6888 = vmatprep.subr.bf16.mxu0 %v6375
        %6889 = vmatpush1.bf16.msra.mxu0 %v6374
        %6890 = vmatprep.subr.bf16.mxu0 %v6382
        %6891 = vmatpush1.bf16.msra.mxu0 %v6381
        %6892 = vmatprep.subr.bf16.mxu0 %v6389
        %6893 = vmatpush1.bf16.msra.mxu0 %v6388
        %6894 = vmatprep.subr.bf16.mxu0 0
        %6895 = vmatpush1.bf16.msra.mxu0 0
        %6896 = vmatprep.subr.bf16.mxu0 0
        %6897 = vmatpush1.bf16.msra.mxu0 0
        %6898 = vmatprep.subr.bf16.mxu0 0
        %6899 = vmatpush1.bf16.msra.mxu0 0
        %6900 = vmatprep.subr.bf16.mxu0 0
        %6901 = vmatpush1.bf16.msra.mxu0 0
        %6902 = vmatprep.subr.bf16.mxu0 0
        %6903 = vmatpush1.bf16.msra.mxu0 0
        %6904 = vmatprep.subr.bf16.mxu0 0
        %6905 = vmatpush1.bf16.msra.mxu0 0
        %6906 = vmatprep.subr.bf16.mxu0 0
        %6907 = vmatpush1.bf16.msra.mxu0 0
        %6908 = vmatprep.subr.bf16.mxu0 0
        %6909 = vmatpush1.bf16.msra.mxu0 0
        %6910 = vmatprep.mubr.bf16.mxu0 0
        %6911 = vmatmul.mubr.bf16.gmra.mrb[0].mxu0 %v4912
        %v6912 = vpop.f32.mrb[0].mxu0
        %v6913 = vadd.f32 %v6872, %v6912
        %v6914 = vpop.f32.mrb[0].mxu0
        %v6915 = vadd.f32 %v6874, %v6914
        %v6916 = vpop.f32.mrb[0].mxu0
        %v6917 = vpop.f32.mrb[0].mxu0
        %6918 = vdwg.mxu0
        %6919 = vmatprep.subr.bf16.mxu0 %v6118
        %6920 = vmatpush1.bf16.msra.mxu0 %v6117
        %6921 = vmatprep.subr.bf16.mxu0 %v6125
        %6922 = vmatpush1.bf16.msra.mxu0 %v6124
        %6923 = vmatprep.subr.bf16.mxu0 %v6132
        %6924 = vmatpush1.bf16.msra.mxu0 %v6131
        %6925 = vmatprep.subr.bf16.mxu0 %v6139
        %6926 = vmatpush1.bf16.msra.mxu0 %v6138
        %6927 = vmatprep.subr.bf16.mxu0 %v6146
        %6928 = vmatpush1.bf16.msra.mxu0 %v6145
        %6929 = vmatprep.subr.bf16.mxu0 %v6153
        %6930 = vmatpush1.bf16.msra.mxu0 %v6152
        %6931 = vmatprep.subr.bf16.mxu0 %v6160
        %6932 = vmatpush1.bf16.msra.mxu0 %v6159
        %6933 = vmatprep.subr.bf16.mxu0 %v6167
        %6934 = vmatpush1.bf16.msra.mxu0 %v6166
        %6935 = vmatprep.subr.bf16.mxu0 %v6174
        %6936 = vmatpush1.bf16.msra.mxu0 %v6173
        %6937 = vmatprep.subr.bf16.mxu0 %v6181
        %6938 = vmatpush1.bf16.msra.mxu0 %v6180
        %6939 = vmatprep.subr.bf16.mxu0 %v6188
        %6940 = vmatpush1.bf16.msra.mxu0 %v6187
        %6941 = vmatprep.subr.bf16.mxu0 %v6195
        %6942 = vmatpush1.bf16.msra.mxu0 %v6194
        %6943 = vmatprep.subr.bf16.mxu0 %v6202
        %6944 = vmatpush1.bf16.msra.mxu0 %v6201
        %6945 = vmatprep.subr.bf16.mxu0 %v6209
        %6946 = vmatpush1.bf16.msra.mxu0 %v6208
        %6947 = vmatprep.subr.bf16.mxu0 %v6216
        %6948 = vmatpush1.bf16.msra.mxu0 %v6215
        %6949 = vmatprep.subr.bf16.mxu0 %v6223
        %6950 = vmatpush1.bf16.msra.mxu0 %v6222
        %6951 = vmatprep.mubr.bf16.mxu0 %v4909
        %6952 = vmatmul.mubr.bf16.gmra.mrb[0].mxu0 %v4908
        %v6953 = vpop.f32.mrb[0].mxu0
        %v6954 = vadd.f32 0.0, %v6953
        %v6955 = vpop.f32.mrb[0].mxu0
        %v6956 = vadd.f32 0.0, %v6955
        %v6957 = vpop.f32.mrb[0].mxu0
        %v6958 = vpop.f32.mrb[0].mxu0
        %6959 = vdwg.mxu0
        %6960 = vmatprep.subr.bf16.mxu0 %v6230
        %6961 = vmatpush1.bf16.msra.mxu0 %v6229
        %6962 = vmatprep.subr.bf16.mxu0 %v6237
        %6963 = vmatpush1.bf16.msra.mxu0 %v6236
        %6964 = vmatprep.subr.bf16.mxu0 %v6244
        %6965 = vmatpush1.bf16.msra.mxu0 %v6243
        %6966 = vmatprep.subr.bf16.mxu0 %v6251
        %6967 = vmatpush1.bf16.msra.mxu0 %v6250
        %6968 = vmatprep.subr.bf16.mxu0 %v6258
        %6969 = vmatpush1.bf16.msra.mxu0 %v6257
        %6970 = vmatprep.subr.bf16.mxu0 %v6265
        %6971 = vmatpush1.bf16.msra.mxu0 %v6264
        %6972 = vmatprep.subr.bf16.mxu0 %v6272
        %6973 = vmatpush1.bf16.msra.mxu0 %v6271
        %6974 = vmatprep.subr.bf16.mxu0 %v6279
        %6975 = vmatpush1.bf16.msra.mxu0 %v6278
        %6976 = vmatprep.subr.bf16.mxu0 %v6286
        %6977 = vmatpush1.bf16.msra.mxu0 %v6285
        %6978 = vmatprep.subr.bf16.mxu0 %v6293
        %6979 = vmatpush1.bf16.msra.mxu0 %v6292
        %6980 = vmatprep.subr.bf16.mxu0 %v6300
        %6981 = vmatpush1.bf16.msra.mxu0 %v6299
        %6982 = vmatprep.subr.bf16.mxu0 %v6307
        %6983 = vmatpush1.bf16.msra.mxu0 %v6306
        %6984 = vmatprep.subr.bf16.mxu0 %v6314
        %6985 = vmatpush1.bf16.msra.mxu0 %v6313
        %6986 = vmatprep.subr.bf16.mxu0 %v6321
        %6987 = vmatpush1.bf16.msra.mxu0 %v6320
        %6988 = vmatprep.subr.bf16.mxu0 %v6328
        %6989 = vmatpush1.bf16.msra.mxu0 %v6327
        %6990 = vmatprep.subr.bf16.mxu0 %v6335
        %6991 = vmatpush1.bf16.msra.mxu0 %v6334
        %6992 = vmatprep.mubr.bf16.mxu0 %v4911
        %6993 = vmatmul.mubr.bf16.gmra.mrb[0].mxu0 %v4910
        %v6994 = vpop.f32.mrb[0].mxu0
        %v6995 = vadd.f32 %v6954, %v6994
        %v6996 = vpop.f32.mrb[0].mxu0
        %v6997 = vadd.f32 %v6956, %v6996
        %v6998 = vpop.f32.mrb[0].mxu0
        %v6999 = vpop.f32.mrb[0].mxu0
        %7000 = vdwg.mxu0
        %7001 = vmatprep.subr.bf16.mxu0 %v6342
        %7002 = vmatpush1.bf16.msra.mxu0 %v6341
        %7003 = vmatprep.subr.bf16.mxu0 %v6349
        %7004 = vmatpush1.bf16.msra.mxu0 %v6348
        %7005 = vmatprep.subr.bf16.mxu0 %v6356
        %7006 = vmatpush1.bf16.msra.mxu0 %v6355
        %7007 = vmatprep.subr.bf16.mxu0 %v6363
        %7008 = vmatpush1.bf16.msra.mxu0 %v6362
        %7009 = vmatprep.subr.bf16.mxu0 %v6370
        %7010 = vmatpush1.bf16.msra.mxu0 %v6369
        %7011 = vmatprep.subr.bf16.mxu0 %v6377
        %7012 = vmatpush1.bf16.msra.mxu0 %v6376
        %7013 = vmatprep.subr.bf16.mxu0 %v6384
        %7014 = vmatpush1.bf16.msra.mxu0 %v6383
        %7015 = vmatprep.subr.bf16.mxu0 %v6391
        %7016 = vmatpush1.bf16.msra.mxu0 %v6390
        %7017 = vmatprep.subr.bf16.mxu0 0
        %7018 = vmatpush1.bf16.msra.mxu0 0
        %7019 = vmatprep.subr.bf16.mxu0 0
        %7020 = vmatpush1.bf16.msra.mxu0 0
        %7021 = vmatprep.subr.bf16.mxu0 0
        %7022 = vmatpush1.bf16.msra.mxu0 0
        %7023 = vmatprep.subr.bf16.mxu0 0
        %7024 = vmatpush1.bf16.msra.mxu0 0
        %7025 = vmatprep.subr.bf16.mxu0 0
        %7026 = vmatpush1.bf16.msra.mxu0 0
        %7027 = vmatprep.subr.bf16.mxu0 0
        %7028 = vmatpush1.bf16.msra.mxu0 0
        %7029 = vmatprep.subr.bf16.mxu0 0
        %7030 = vmatpush1.bf16.msra.mxu0 0
        %7031 = vmatprep.subr.bf16.mxu0 0
        %7032 = vmatpush1.bf16.msra.mxu0 0
        %7033 = vmatprep.mubr.bf16.mxu0 0
        %7034 = vmatmul.mubr.bf16.gmra.mrb[0].mxu0 %v4912
        %v7035 = vpop.f32.mrb[0].mxu0
        %v7036 = vadd.f32 %v6995, %v7035
        %v7037 = vpop.f32.mrb[0].mxu0
        %v7038 = vadd.f32 %v6997, %v7037
        %v7039 = vpop.f32.mrb[0].mxu0
        %v7040 = vpop.f32.mrb[0].mxu0
        %7041 = vdwg.mxu0
        %7042 = vmatprep.subr.bf16.mxu0 0
        %7043 = vmatpush1.bf16.msra.mxu0 %v6119
        %7044 = vmatprep.subr.bf16.mxu0 0
        %7045 = vmatpush1.bf16.msra.mxu0 %v6126
        %7046 = vmatprep.subr.bf16.mxu0 0
        %7047 = vmatpush1.bf16.msra.mxu0 %v6133
        %7048 = vmatprep.subr.bf16.mxu0 0
        %7049 = vmatpush1.bf16.msra.mxu0 %v6140
        %7050 = vmatprep.subr.bf16.mxu0 0
        %7051 = vmatpush1.bf16.msra.mxu0 %v6147
        %7052 = vmatprep.subr.bf16.mxu0 0
        %7053 = vmatpush1.bf16.msra.mxu0 %v6154
        %7054 = vmatprep.subr.bf16.mxu0 0
        %7055 = vmatpush1.bf16.msra.mxu0 %v6161
        %7056 = vmatprep.subr.bf16.mxu0 0
        %7057 = vmatpush1.bf16.msra.mxu0 %v6168
        %7058 = vmatprep.subr.bf16.mxu0 0
        %7059 = vmatpush1.bf16.msra.mxu0 %v6175
        %7060 = vmatprep.subr.bf16.mxu0 0
        %7061 = vmatpush1.bf16.msra.mxu0 %v6182
        %7062 = vmatprep.subr.bf16.mxu0 0
        %7063 = vmatpush1.bf16.msra.mxu0 %v6189
        %7064 = vmatprep.subr.bf16.mxu0 0
        %7065 = vmatpush1.bf16.msra.mxu0 %v6196
        %7066 = vmatprep.subr.bf16.mxu0 0
        %7067 = vmatpush1.bf16.msra.mxu0 %v6203
        %7068 = vmatprep.subr.bf16.mxu0 0
        %7069 = vmatpush1.bf16.msra.mxu0 %v6210
        %7070 = vmatprep.subr.bf16.mxu0 0
        %7071 = vmatpush1.bf16.msra.mxu0 %v6217
        %7072 = vmatprep.subr.bf16.mxu0 0
        %7073 = vmatpush1.bf16.msra.mxu0 %v6224
        %7074 = vmatprep.mubr.bf16.mxu0 %v4909
        %7075 = vmatmul.mubr.bf16.gmra.mrb[0].mxu0 %v4908
        %v7076 = vpop.f32.mrb[0].mxu0
        %v7077 = vadd.f32 0.0, %v7076
        %v7078 = vpop.f32.mrb[0].mxu0
        %v7079 = vpop.f32.mrb[0].mxu0
        %v7080 = vpop.f32.mrb[0].mxu0
        %7081 = vdwg.mxu0
        %7082 = vmatprep.subr.bf16.mxu0 0
        %7083 = vmatpush1.bf16.msra.mxu0 %v6231
        %7084 = vmatprep.subr.bf16.mxu0 0
        %7085 = vmatpush1.bf16.msra.mxu0 %v6238
        %7086 = vmatprep.subr.bf16.mxu0 0
        %7087 = vmatpush1.bf16.msra.mxu0 %v6245
        %7088 = vmatprep.subr.bf16.mxu0 0
        %7089 = vmatpush1.bf16.msra.mxu0 %v6252
        %7090 = vmatprep.subr.bf16.mxu0 0
        %7091 = vmatpush1.bf16.msra.mxu0 %v6259
        %7092 = vmatprep.subr.bf16.mxu0 0
        %7093 = vmatpush1.bf16.msra.mxu0 %v6266
        %7094 = vmatprep.subr.bf16.mxu0 0
        %7095 = vmatpush1.bf16.msra.mxu0 %v6273
        %7096 = vmatprep.subr.bf16.mxu0 0
        %7097 = vmatpush1.bf16.msra.mxu0 %v6280
        %7098 = vmatprep.subr.bf16.mxu0 0
        %7099 = vmatpush1.bf16.msra.mxu0 %v6287
        %7100 = vmatprep.subr.bf16.mxu0 0
        %7101 = vmatpush1.bf16.msra.mxu0 %v6294
        %7102 = vmatprep.subr.bf16.mxu0 0
        %7103 = vmatpush1.bf16.msra.mxu0 %v6301
        %7104 = vmatprep.subr.bf16.mxu0 0
        %7105 = vmatpush1.bf16.msra.mxu0 %v6308
        %7106 = vmatprep.subr.bf16.mxu0 0
        %7107 = vmatpush1.bf16.msra.mxu0 %v6315
        %7108 = vmatprep.subr.bf16.mxu0 0
        %7109 = vmatpush1.bf16.msra.mxu0 %v6322
        %7110 = vmatprep.subr.bf16.mxu0 0
        %7111 = vmatpush1.bf16.msra.mxu0 %v6329
        %7112 = vmatprep.subr.bf16.mxu0 0
        %7113 = vmatpush1.bf16.msra.mxu0 %v6336
        %7114 = vmatprep.mubr.bf16.mxu0 %v4911
        %7115 = vmatmul.mubr.bf16.gmra.mrb[0].mxu0 %v4910
        %v7116 = vpop.f32.mrb[0].mxu0
        %v7117 = vadd.f32 %v7077, %v7116
        %v7118 = vpop.f32.mrb[0].mxu0
        %v7119 = vpop.f32.mrb[0].mxu0
        %v7120 = vpop.f32.mrb[0].mxu0
        %7121 = vdwg.mxu0
        %7122 = vmatprep.subr.bf16.mxu0 0
        %7123 = vmatpush1.bf16.msra.mxu0 %v6343
        %7124 = vmatprep.subr.bf16.mxu0 0
        %7125 = vmatpush1.bf16.msra.mxu0 %v6350
        %7126 = vmatprep.subr.bf16.mxu0 0
        %7127 = vmatpush1.bf16.msra.mxu0 %v6357
        %7128 = vmatprep.subr.bf16.mxu0 0
        %7129 = vmatpush1.bf16.msra.mxu0 %v6364
        %7130 = vmatprep.subr.bf16.mxu0 0
        %7131 = vmatpush1.bf16.msra.mxu0 %v6371
        %7132 = vmatprep.subr.bf16.mxu0 0
        %7133 = vmatpush1.bf16.msra.mxu0 %v6378
        %7134 = vmatprep.subr.bf16.mxu0 0
        %7135 = vmatpush1.bf16.msra.mxu0 %v6385
        %7136 = vmatprep.subr.bf16.mxu0 0
        %7137 = vmatpush1.bf16.msra.mxu0 %v6392
        %7138 = vmatprep.subr.bf16.mxu0 0
        %7139 = vmatpush1.bf16.msra.mxu0 0
        %7140 = vmatprep.subr.bf16.mxu0 0
        %7141 = vmatpush1.bf16.msra.mxu0 0
        %7142 = vmatprep.subr.bf16.mxu0 0
        %7143 = vmatpush1.bf16.msra.mxu0 0
        %7144 = vmatprep.subr.bf16.mxu0 0
        %7145 = vmatpush1.bf16.msra.mxu0 0
        %7146 = vmatprep.subr.bf16.mxu0 0
        %7147 = vmatpush1.bf16.msra.mxu0 0
        %7148 = vmatprep.subr.bf16.mxu0 0
        %7149 = vmatpush1.bf16.msra.mxu0 0
        %7150 = vmatprep.subr.bf16.mxu0 0
        %7151 = vmatpush1.bf16.msra.mxu0 0
        %7152 = vmatprep.subr.bf16.mxu0 0
        %7153 = vmatpush1.bf16.msra.mxu0 0
        %7154 = vmatprep.mubr.bf16.mxu0 0
        %7155 = vmatmul.mubr.bf16.gmra.mrb[0].mxu0 %v4912
        %v7156 = vpop.f32.mrb[0].mxu0
        %v7157 = vadd.f32 %v7117, %v7156
        %v7158 = vpop.f32.mrb[0].mxu0
        %v7159 = vpop.f32.mrb[0].mxu0
        %v7160 = vpop.f32.mrb[0].mxu0
        %7161 = vdwg.mxu0
        %7162 = vst [vmem:[%s1379] sm:$0xff] %v6790
        %7163 = vst [vmem:[%s1379 + $0x8] sm:$0xff] %v6792
        %7164 = vst [vmem:[%s1379 + $0x10] sm:$0xff] %v6913
        %7165 = vst [vmem:[%s1379 + $0x18] sm:$0xff] %v6915
        %7166 = vst [vmem:[%s1379 + $0x20] sm:$0xff] %v7036
        %7167 = vst [vmem:[%s1379 + $0x28] sm:$0xff] %v7038
        %vm7168 = vcmask 130048
        %7169 = vst.msk [vmem:[%s1379 + $0x30] sm:$0xff] %vm7168, %v7157
        %p7170 = scmp.lt.s32.totalorder %s21, 1
        %s7171 = scalar_select %p7170, %s21, 1
        %s7172 = smul.addr %s7171, 7
        %s7173 = smul.addr %s7172, 8
        %s7174 = scalar_lea.vmem %s10, %s7173
        // Predicated region
        $region113: #{generator_forward.1} parent=103 // pred_check
          %p7175 = pneg %p269
        $region114: #{generator_forward.1} parent=103 // pred_check_branch
          %7177 = sbr.rel (%p7175) target = $region116
        $region115: #{generator_forward.1} parent=103 // pred_region
          _
        $region116: #{generator_forward.1} parent=103 // pred_fallthru
          _
      $region104: #{generator_forward.1} parent=5 // pred_fallthru
        _
      %p7178 = scmp.le.s32.totalorder 2, %s16
      // Predicated region
      $region117: #{generator_forward.1} parent=5 // pred_check
        %p7179 = pneg %p7178
      $region118: #{generator_forward.1} parent=5 // pred_check_branch
        %7181 = sbr.rel (%p7179) target = $region120
      $region119: #{generator_forward.1} parent=5 // pred_region
        %s7182 = ssub.s32 %s16, 2
        // Predicated region
        $region121: #{generator_forward.1} parent=119 // pred_check
          %p7183 = pneg %p275
        $region122: #{generator_forward.1} parent=119 // pred_check_branch
          %7185 = sbr.rel (%p7183) target = $region124
        $region123: #{generator_forward.1} parent=119 // pred_region
          %p7186 = scmp.lt.s32.totalorder %s22, 1
          %s7187 = scalar_select %p7186, %s22, 1
          %s7188 = smul.addr %s7187, 7
          %s7189 = smul.addr %s7188, 8
          %s7190 = scalar_lea.vmem %s10, %s7189
        $region124: #{generator_forward.1} parent=119 // pred_fallthru
          _
      $region120: #{generator_forward.1} parent=5 // pred_fallthru
        _
    $region6: #{generator_forward.1} parent=1 // loop_footer
      %s20 = sadd.s32 1, %s16
    $region7: #{generator_forward.1} parent=1 // loop_footer_branch
      %15 = sbr.rel target = $region3
    $region8: #{generator_forward.1} parent=1 // loop_exit
      _

</llo_original>
